<compile_context>
chip_gen: v5e
topology: v5e:2x2
jax: 0.10.0
libtpu: 0.0.40
codegen_flags: <defaults>
</compile_context>

<pallas_src>
import functools

import jax
import jax.numpy as jnp
from jax.experimental import pallas as pl
from jax.experimental.pallas import tpu as pltpu


# ---------------------------------------------------------------------------
# Fused encoder kernel: [Conv2d(3x3, s1, p1) + BatchNorm2d(eval) + ReLU] x L
# ---------------------------------------------------------------------------
def _encoder_kernel(x_ref, w0_ref, wr_ref, scale_ref, shift_ref, o_ref, pad_scr):
    # x_ref:     [bb, H, W, Cin]            batch tile, NHWC
    # w0_ref:    [9, Cin, Chid]             layer-0 taps, tap-major (t = dy*3+dx)
    # wr_ref:    [max(L-1,1), 9, Chid, Chid] taps of layers 1..L-1 (dummy if L==1)
    # scale_ref: [L, 1, Chid], shift_ref: [L, 1, Chid]  (conv bias + eval BN folded)
    # o_ref:     [bb, H*W, Chid]            == PyTorch view(B,C,-1).permute(0,2,1)
    # pad_scr:   [bb, H+2, W+2, Cmax]       zero-halo scratch, reused across layers
    bb, H, W, Cin = x_ref.shape
    Chid = o_ref.shape[-1]
    L = scale_ref.shape[0]

    # In-kernel halo pad: zero the scratch, copy the interior.
    pad_scr[...] = jnp.zeros_like(pad_scr)
    pad_scr[:, 1:H + 1, 1:W + 1, :Cin] = x_ref[...]

    cin_l = Cin
    for l in range(L):                                   # static unroll over layers
        acc = jnp.zeros((bb * H * W, Chid), jnp.float32)
        for t in range(9):                               # 9 tap matmuls, f32 K-accum
            dy, dx = divmod(t, 3)
            patch = pad_scr[:, dy:dy + H, dx:dx + W, :cin_l]
            patch = patch.reshape(bb * H * W, cin_l)
            w_tap = w0_ref[t] if l == 0 else wr_ref[l - 1, t]
            acc = acc + jnp.dot(patch, w_tap, preferred_element_type=jnp.float32)
        y = jnp.maximum(acc * scale_ref[l] + shift_ref[l], 0.0)
        if l + 1 < L:
            # Keep the inter-layer activation in VMEM (halo stays zero).
            pad_scr[:, 1:H + 1, 1:W + 1, :Chid] = y.reshape(bb, H, W, Chid)
            cin_l = Chid
        else:
            o_ref[...] = y.reshape(bb, H * W, Chid)


def encoder_forward(x_nhwc, ep):
    B, H, W, Cin = x_nhwc.shape
    w0, wr, scale, shift = ep['w0'], ep['w_rest'], ep['scale'], ep['shift']
    Chid = w0.shape[-1]
    Cmax = max(Cin, Chid)
    bb = 2 if (B % 2 == 0 and B >= 2) else 1       # >= 2 batch rows per MXU matmul
    return pl.pallas_call(
        _encoder_kernel,
        grid=(B // bb,),
        out_shape=jax.ShapeDtypeStruct((B, H * W, Chid), jnp.float32),
        in_specs=[
            pl.BlockSpec((bb, H, W, Cin), lambda b: (b, 0, 0, 0)),
            pl.BlockSpec(w0.shape, lambda b: (0, 0, 0)),      # resident weights
            pl.BlockSpec(wr.shape, lambda b: (0, 0, 0, 0)),
            pl.BlockSpec(scale.shape, lambda b: (0, 0, 0)),
            pl.BlockSpec(shift.shape, lambda b: (0, 0, 0)),
        ],
        out_specs=pl.BlockSpec((bb, H * W, Chid), lambda b: (b, 0, 0)),
        scratch_shapes=[pltpu.VMEM((bb, H + 2, W + 2, Cmax), jnp.float32)],
        compiler_params=pltpu.CompilerParams(dimension_semantics=("parallel",)),
    )(x_nhwc, w0, wr, scale, shift)


# ---------------------------------------------------------------------------
# Fused greedy decoder: whole max_seq_len loop inside one grid step per tile
# ---------------------------------------------------------------------------
def _decode_kernel(sos_index,
                   emb_ref, enc_ref, encw_W_ref, encw_b_ref,
                   hidw_W_ref, hidw_b_ref, v_ref,
                   combW_e_ref, combW_a_ref, comb_b_ref,
                   gru_Wi_ref, gru_Wh_ref, gru_bi_ref, gru_bh_ref,
                   out_W_ref, out_b_ref,
                   logits_ref,
                   encw_scr):
    bb, T, Hd = enc_ref.shape
    V = emb_ref.shape[0]
    S = logits_ref.shape[1]

    # Hoisted, step-invariant attention projection enc @ W_enc + b as one flat
    # [bb*T, H] @ [H, H] matmul, kept in VMEM scratch for the whole decode.
    encw_scr[...] = (jnp.dot(enc_ref[...].reshape(bb * T, Hd), encw_W_ref[...],
                             preferred_element_type=jnp.float32)
                     + encw_b_ref[...]).reshape(bb, T, Hd)

    vidx = jax.lax.broadcasted_iota(jnp.int32, (bb, V), 1)
    neg_idx = -vidx.astype(jnp.float32)                   # 0 .. -(V-1)

    hidden = jnp.zeros((bb, Hd), jnp.float32)             # decoder_hidden = 0
    onehot = (vidx == sos_index).astype(jnp.float32)      # decoder_input = SOS

    for step in range(S):            # static unroll: no per-step grid/DMA overhead
        # previous-token embedding via one-hot gather
        emb = jnp.dot(onehot, emb_ref[...], preferred_element_type=jnp.float32)

        # additive attention
        hid_w = (jnp.dot(hidden, hidw_W_ref[...],
                         preferred_element_type=jnp.float32) + hidw_b_ref[...])
        s_act = jnp.tanh(encw_scr[...] + hid_w[:, None, :])        # [bb, T, H]
        # v-projection as VPU multiply + lane reduction (avoids N=1 MXU matmul)
        scores = jnp.sum(s_act * v_ref[...], axis=-1)              # [bb, T]
        scores = scores - jnp.max(scores, axis=1, keepdims=True)
        p = jnp.exp(scores)
        attn = p / jnp.sum(p, axis=1, keepdims=True)               # softmax over T
        attn_applied = jnp.sum(attn[:, :, None] * enc_ref[...], axis=1)   # [bb, H]

        # attn_combine with split weight halves (no lane-dim concat) + ReLU
        x = (jnp.dot(emb, combW_e_ref[...], preferred_element_type=jnp.float32)
             + jnp.dot(attn_applied, combW_a_ref[...],
                       preferred_element_type=jnp.float32)
             + comb_b_ref[...])
        x = jnp.maximum(x, 0.0)

        # GRU cell (PyTorch gate order r, z, n), lane-aligned per-gate weights
        i_r = jnp.dot(x, gru_Wi_ref[0], preferred_element_type=jnp.float32) + gru_bi_ref[0]
        i_z = jnp.dot(x, gru_Wi_ref[1], preferred_element_type=jnp.float32) + gru_bi_ref[1]
        i_n = jnp.dot(x, gru_Wi_ref[2], preferred_element_type=jnp.float32) + gru_bi_ref[2]
        h_r = jnp.dot(hidden, gru_Wh_ref[0], preferred_element_type=jnp.float32) + gru_bh_ref[0]
        h_z = jnp.dot(hidden, gru_Wh_ref[1], preferred_element_type=jnp.float32) + gru_bh_ref[1]
        h_n = jnp.dot(hidden, gru_Wh_ref[2], preferred_element_type=jnp.float32) + gru_bh_ref[2]
        r = jax.nn.sigmoid(i_r + h_r)
        z = jax.nn.sigmoid(i_z + h_z)
        n = jnp.tanh(i_n + r * h_n)
        hidden = (1.0 - z) * n + z * hidden                        # [bb, H]

        # output projection (eval path: no log_softmax)
        logits = (jnp.dot(hidden, out_W_ref[...],
                          preferred_element_type=jnp.float32) + out_b_ref[...])   # [bb, V]
        # write into the VMEM-resident output block; flushed to HBM once at the end
        logits_ref[:, step, :] = logits

        # greedy argmax -> one-hot next input (first-max tie-break, like torch)
        vmax = jnp.max(logits, axis=1, keepdims=True)
        best = jnp.max(jnp.where(logits == vmax, neg_idx, jnp.float32(-V)),
                       axis=1, keepdims=True)                       # = -argmax
        onehot = (neg_idx == best).astype(jnp.float32)


def _decode_batch_tiles(B):
    # Shard the batch across TensorCores on multi-core chips (v7x); keep one
    # whole-batch tile on single-core chips (v5e / v6e).
    try:
        kind = jax.devices()[0].device_kind.lower()
    except Exception:
        kind = ""
    multi_core = "v7" in kind
    return 2 if (multi_core and B >= 2 and B % 2 == 0) else 1


def decode_greedy(enc, dp, *, max_seq_len, sos_index, batch_tiles=None):
    B, T, H = enc.shape
    V = dp['out_b'].shape[-1]
    n_bt = batch_tiles if batch_tiles is not None else _decode_batch_tiles(B)
    bb = B // n_bt

    args = (dp['embedding'], enc,
            dp['encw_W'], dp['encw_b'], dp['hidw_W'], dp['hidw_b'], dp['v'],
            dp['comb_W_emb'], dp['comb_W_attn'], dp['comb_b'],
            dp['gru_Wi'], dp['gru_Wh'], dp['gru_bi'], dp['gru_bh'],
            dp['out_W'], dp['out_b'])
    in_specs = []
    for i, a in enumerate(args):
        if i == 1:   # enc: tiled over the batch
            in_specs.append(pl.BlockSpec((bb, T, H), lambda t: (t, 0, 0)))
        else:        # weights: constant index_map -> DMA'd once, VMEM-resident
            in_specs.append(pl.BlockSpec(a.shape, lambda t, _nd=a.ndim: (0,) * _nd))

    out = pl.pallas_call(
        functools.partial(_decode_kernel, sos_index),
        grid=(n_bt,),
        out_shape=jax.ShapeDtypeStruct((B, max_seq_len, V), jnp.float32),
        in_specs=in_specs,
        out_specs=pl.BlockSpec((bb, max_seq_len, V), lambda t: (t, 0, 0)),
        scratch_shapes=[pltpu.VMEM((bb, T, H), jnp.float32)],   # hoisted enc @ W_enc
        compiler_params=pltpu.CompilerParams(dimension_semantics=("parallel",)),
    )(*args)
    # PyTorch stacks per-step outputs -> [max_seq_len, B, V]
    return jnp.transpose(out, (1, 0, 2))


# ---------------------------------------------------------------------------
# Full head forward (inference / __forward_test semantics)
# ---------------------------------------------------------------------------
def text_recognition_head_attention_forward(features_nchw, params, *,
                                             max_seq_len, sos_index):
    # Single NCHW -> NHWC transpose; encoder runs NHWC and emits [B, H*W, C],
    # which equals PyTorch's features.view(B, C, -1).permute(0, 2, 1).
    x = jnp.transpose(features_nchw, (0, 2, 3, 1)).astype(jnp.float32)
    enc = encoder_forward(x, params['encoder'])
    return decode_greedy(enc, params['decoder'],
                         max_seq_len=max_seq_len, sos_index=sos_index)


# ---------------------------------------------------------------------------
# Deterministic parameter construction + demo
# ---------------------------------------------------------------------------
def make_params(key, *, cin, c_hidden, num_layers, vocab):
    H = c_hidden
    keys = iter(jax.random.split(key, 64))

    def nrm(shape, s=0.1):
        return (s * jax.random.normal(next(keys), shape)).astype(jnp.float32)

    bn_eps = 1e-5
    # Conv weights in [kh, kw, Cin, Cout] (import path: permute PyTorch
    # [Cout, Cin, kh, kw] -> [kh, kw, Cin, Cout]), flattened tap-major.
    w0 = nrm((3, 3, cin, H)).reshape(9, cin, H)
    if num_layers > 1:
        w_rest = nrm((num_layers - 1, 3, 3, H, H)).reshape(num_layers - 1, 9, H, H)
    else:
        w_rest = jnp.zeros((1, 9, H, H), jnp.float32)   # unused dummy
    # eval BatchNorm with default running stats (mean=0, var=1, gamma=1,
    # beta=0) and conv bias=0 (kaiming init) folded into scale/shift.
    scale = jnp.full((num_layers, 1, H), (1.0 + bn_eps) ** -0.5, jnp.float32)
    shift = jnp.zeros((num_layers, 1, H), jnp.float32)
    encoder = dict(w0=w0, w_rest=w_rest, scale=scale, shift=shift)

    comb_W = nrm((2 * H, H))    # == PyTorch attn_combine.weight.T, stored [in, out]
    decoder = dict(
        embedding=nrm((vocab, H)),
        encw_W=nrm((H, H)), encw_b=nrm((1, H), 0.01),
        hidw_W=nrm((H, H)), hidw_b=nrm((1, H), 0.01),
        v=nrm((1, H)),                                   # row layout for VPU mul
        comb_W_emb=comb_W[:H], comb_W_attn=comb_W[H:],   # split: no concat needed
        comb_b=nrm((1, H), 0.01),
        # PyTorch GRU weight_ih/hh.T split into the (r, z, n) gate blocks and
        # stacked [3, H, H] so each per-gate matmul is lane-aligned.
        gru_Wi=nrm((3, H, H)), gru_Wh=nrm((3, H, H)),
        gru_bi=nrm((3, 1, H), 0.01), gru_bh=nrm((3, 1, H), 0.01),
        out_W=nrm((H, vocab)), out_b=nrm((1, vocab), 0.01),
    )
    return dict(encoder=encoder, decoder=decoder)


if __name__ == "__main__":
    # Small config:
    #   input_feature_size = (8, 8), encoder_dim_input = 4,
    #   encoder_dim_internal = decoder_dim_hidden = 32, encoder_num_layers = 2,
    #   decoder_input_feature_size = (8, 8)  (T = 64),
    #   decoder_vocab_size = 16, decoder_max_seq_len = 5, decoder_sos_index = 1,
    #   decoder_rnn_type = 'GRU'.
    B, CIN, SP = 2, 4, 8
    HID, VOCAB, SEQ, SOS, NLAYERS = 32, 16, 5, 1, 2

    key = jax.random.PRNGKey(0)
    k_feat, k_par = jax.random.split(key)
    features = jax.random.normal(k_feat, (B, CIN, SP, SP), jnp.float32)  # NCHW
    params = make_params(k_par, cin=CIN, c_hidden=HID,
                         num_layers=NLAYERS, vocab=VOCAB)

    fwd = jax.jit(functools.partial(text_recognition_head_attention_forward,
                                    max_seq_len=SEQ, sos_index=SOS))
    out = jax.block_until_ready(fwd(features, params))
    assert out.shape == (SEQ, B, VOCAB), out.shape
    print("KERNEL_OK")
</pallas_src>

<mosaic_0001>
module attributes {stable_mosaic.version = 11 : i64} {
  func.func @_encoder_kernel(%arg0: i32, %arg1: memref<2x8x8x4xf32, #tpu.memory_space<vmem>>, %arg2: memref<9x4x32xf32, #tpu.memory_space<vmem>>, %arg3: memref<1x9x32x32xf32, #tpu.memory_space<vmem>>, %arg4: memref<2x1x32xf32, #tpu.memory_space<vmem>>, %arg5: memref<2x1x32xf32, #tpu.memory_space<vmem>>, %arg6: memref<2x64x32xf32, #tpu.memory_space<vmem>>, %arg7: memref<2x10x10x32xf32, #tpu.memory_space<vmem>>) attributes {dimension_semantics = [#tpu.dimension_semantics<parallel>], iteration_bounds = array<i64: 1>, scalar_prefetch = 0 : i64, scratch_operands = 1 : i64, tpu.core_type = #tpu.core_type<tc>, window_params = [{transform_indices = @transform_0, window_bounds = array<i64: 2, 8, 8, 4>}, {pipeline_mode = #tpu.pipeline_mode<synchronous>, transform_indices = @transform_1, window_bounds = array<i64: 9, 4, 32>}, {pipeline_mode = #tpu.pipeline_mode<synchronous>, transform_indices = @transform_2, window_bounds = array<i64: 1, 9, 32, 32>}, {pipeline_mode = #tpu.pipeline_mode<synchronous>, transform_indices = @transform_3, window_bounds = array<i64: 2, 1, 32>}, {pipeline_mode = #tpu.pipeline_mode<synchronous>, transform_indices = @transform_4, window_bounds = array<i64: 2, 1, 32>}, {transform_indices = @transform_5, window_bounds = array<i64: 2, 64, 32>}]} {
    %cst = arith.constant 0.000000e+00 : f32
    %0 = vector.broadcast %cst : f32 to vector<2x10x10x32xf32>
    %c0 = arith.constant 0 : index
    %c0_0 = arith.constant 0 : index
    %c0_1 = arith.constant 0 : index
    %c0_2 = arith.constant 0 : index
    %1 = vector.load %arg7[%c0, %c0_0, %c0_1, %c0_2] : memref<2x10x10x32xf32, #tpu.memory_space<vmem>>, vector<2x10x10x32xf32>
    tpu.vector_store %arg7[%c0, %c0_0, %c0_1, %c0_2], %0 {strides = array<i32>} : memref<2x10x10x32xf32, #tpu.memory_space<vmem>>, vector<2x10x10x32xf32>,
    %c0_3 = arith.constant 0 : index
    %c0_4 = arith.constant 0 : index
    %c0_5 = arith.constant 0 : index
    %c0_6 = arith.constant 0 : index
    %2 = vector.load %arg1[%c0_3, %c0_4, %c0_5, %c0_6] : memref<2x8x8x4xf32, #tpu.memory_space<vmem>>, vector<2x8x8x4xf32>
    %c0_7 = arith.constant 0 : index
    %c1 = arith.constant 1 : index
    %c1_8 = arith.constant 1 : index
    %c0_9 = arith.constant 0 : index
    %3 = vector.load %arg7[%c0_7, %c1, %c1_8, %c0_9] : memref<2x10x10x32xf32, #tpu.memory_space<vmem>>, vector<2x8x8x4xf32>
    tpu.vector_store %arg7[%c0_7, %c1, %c1_8, %c0_9], %2 {strides = array<i32>} : memref<2x10x10x32xf32, #tpu.memory_space<vmem>>, vector<2x8x8x4xf32>,
    %cst_10 = arith.constant 0.000000e+00 : f32
    %4 = vector.broadcast %cst_10 : f32 to vector<128x32xf32>
    %c0_11 = arith.constant 0 : index
    %c0_12 = arith.constant 0 : index
    %c0_13 = arith.constant 0 : index
    %c0_14 = arith.constant 0 : index
    %5 = vector.load %arg7[%c0_11, %c0_12, %c0_13, %c0_14] : memref<2x10x10x32xf32, #tpu.memory_space<vmem>>, vector<2x8x8x4xf32>
    %6 = vector.shape_cast %5 : vector<2x8x8x4xf32> to vector<128x4xf32>
    %c0_15 = arith.constant 0 : index
    %c0_16 = arith.constant 0 : index
    %c0_17 = arith.constant 0 : index
    %7 = vector.load %arg2[%c0_15, %c0_16, %c0_17] : memref<9x4x32xf32, #tpu.memory_space<vmem>>, vector<1x4x32xf32>
    %8 = vector.shape_cast %7 : vector<1x4x32xf32> to vector<4x32xf32>
    %cst_18 = arith.constant dense<0.000000e+00> : vector<128x32xf32>
    %9 = tpu.matmul %6, %8, %cst_18 {dimension_numbers = #tpu.dot_dimension_numbers<[1], [0], [0], [1], [0, 0, 1, 1], [], []>} : vector<128x4xf32>, vector<4x32xf32>, vector<128x32xf32> -> vector<128x32xf32>
    %10 = arith.addf %4, %9 : vector<128x32xf32>
    %c0_19 = arith.constant 0 : index
    %c0_20 = arith.constant 0 : index
    %c1_21 = arith.constant 1 : index
    %c0_22 = arith.constant 0 : index
    %11 = vector.load %arg7[%c0_19, %c0_20, %c1_21, %c0_22] : memref<2x10x10x32xf32, #tpu.memory_space<vmem>>, vector<2x8x8x4xf32>
    %12 = vector.shape_cast %11 : vector<2x8x8x4xf32> to vector<128x4xf32>
    %c1_23 = arith.constant 1 : index
    %c0_24 = arith.constant 0 : index
    %c0_25 = arith.constant 0 : index
    %13 = vector.load %arg2[%c1_23, %c0_24, %c0_25] : memref<9x4x32xf32, #tpu.memory_space<vmem>>, vector<1x4x32xf32>
    %14 = vector.shape_cast %13 : vector<1x4x32xf32> to vector<4x32xf32>
    %cst_26 = arith.constant dense<0.000000e+00> : vector<128x32xf32>
    %15 = tpu.matmul %12, %14, %cst_26 {dimension_numbers = #tpu.dot_dimension_numbers<[1], [0], [0], [1], [0, 0, 1, 1], [], []>} : vector<128x4xf32>, vector<4x32xf32>, vector<128x32xf32> -> vector<128x32xf32>
    %16 = arith.addf %10, %15 : vector<128x32xf32>
    %c0_27 = arith.constant 0 : index
    %c0_28 = arith.constant 0 : index
    %c2 = arith.constant 2 : index
    %c0_29 = arith.constant 0 : index
    %17 = vector.load %arg7[%c0_27, %c0_28, %c2, %c0_29] : memref<2x10x10x32xf32, #tpu.memory_space<vmem>>, vector<2x8x8x4xf32>
    %18 = vector.shape_cast %17 : vector<2x8x8x4xf32> to vector<128x4xf32>
    %c2_30 = arith.constant 2 : index
    %c0_31 = arith.constant 0 : index
    %c0_32 = arith.constant 0 : index
    %19 = vector.load %arg2[%c2_30, %c0_31, %c0_32] : memref<9x4x32xf32, #tpu.memory_space<vmem>>, vector<1x4x32xf32>
    %20 = vector.shape_cast %19 : vector<1x4x32xf32> to vector<4x32xf32>
    %cst_33 = arith.constant dense<0.000000e+00> : vector<128x32xf32>
    %21 = tpu.matmul %18, %20, %cst_33 {dimension_numbers = #tpu.dot_dimension_numbers<[1], [0], [0], [1], [0, 0, 1, 1], [], []>} : vector<128x4xf32>, vector<4x32xf32>, vector<128x32xf32> -> vector<128x32xf32>
    %22 = arith.addf %16, %21 : vector<128x32xf32>
    %c0_34 = arith.constant 0 : index
    %c1_35 = arith.constant 1 : index
    %c0_36 = arith.constant 0 : index
    %c0_37 = arith.constant 0 : index
    %23 = vector.load %arg7[%c0_34, %c1_35, %c0_36, %c0_37] : memref<2x10x10x32xf32, #tpu.memory_space<vmem>>, vector<2x8x8x4xf32>
    %24 = vector.shape_cast %23 : vector<2x8x8x4xf32> to vector<128x4xf32>
    %c3 = arith.constant 3 : index
    %c0_38 = arith.constant 0 : index
    %c0_39 = arith.constant 0 : index
    %25 = vector.load %arg2[%c3, %c0_38, %c0_39] : memref<9x4x32xf32, #tpu.memory_space<vmem>>, vector<1x4x32xf32>
    %26 = vector.shape_cast %25 : vector<1x4x32xf32> to vector<4x32xf32>
    %cst_40 = arith.constant dense<0.000000e+00> : vector<128x32xf32>
    %27 = tpu.matmul %24, %26, %cst_40 {dimension_numbers = #tpu.dot_dimension_numbers<[1], [0], [0], [1], [0, 0, 1, 1], [], []>} : vector<128x4xf32>, vector<4x32xf32>, vector<128x32xf32> -> vector<128x32xf32>
    %28 = arith.addf %22, %27 : vector<128x32xf32>
    %c0_41 = arith.constant 0 : index
    %c1_42 = arith.constant 1 : index
    %c1_43 = arith.constant 1 : index
    %c0_44 = arith.constant 0 : index
    %29 = vector.load %arg7[%c0_41, %c1_42, %c1_43, %c0_44] : memref<2x10x10x32xf32, #tpu.memory_space<vmem>>, vector<2x8x8x4xf32>
    %30 = vector.shape_cast %29 : vector<2x8x8x4xf32> to vector<128x4xf32>
    %c4 = arith.constant 4 : index
    %c0_45 = arith.constant 0 : index
    %c0_46 = arith.constant 0 : index
    %31 = vector.load %arg2[%c4, %c0_45, %c0_46] : memref<9x4x32xf32, #tpu.memory_space<vmem>>, vector<1x4x32xf32>
    %32 = vector.shape_cast %31 : vector<1x4x32xf32> to vector<4x32xf32>
    %cst_47 = arith.constant dense<0.000000e+00> : vector<128x32xf32>
    %33 = tpu.matmul %30, %32, %cst_47 {dimension_numbers = #tpu.dot_dimension_numbers<[1], [0], [0], [1], [0, 0, 1, 1], [], []>} : vector<128x4xf32>, vector<4x32xf32>, vector<128x32xf32> -> vector<128x32xf32>
    %34 = arith.addf %28, %33 : vector<128x32xf32>
    %c0_48 = arith.constant 0 : index
    %c1_49 = arith.constant 1 : index
    %c2_50 = arith.constant 2 : index
    %c0_51 = arith.constant 0 : index
    %35 = vector.load %arg7[%c0_48, %c1_49, %c2_50, %c0_51] : memref<2x10x10x32xf32, #tpu.memory_space<vmem>>, vector<2x8x8x4xf32>
    %36 = vector.shape_cast %35 : vector<2x8x8x4xf32> to vector<128x4xf32>
    %c5 = arith.constant 5 : index
    %c0_52 = arith.constant 0 : index
    %c0_53 = arith.constant 0 : index
    %37 = vector.load %arg2[%c5, %c0_52, %c0_53] : memref<9x4x32xf32, #tpu.memory_space<vmem>>, vector<1x4x32xf32>
    %38 = vector.shape_cast %37 : vector<1x4x32xf32> to vector<4x32xf32>
    %cst_54 = arith.constant dense<0.000000e+00> : vector<128x32xf32>
    %39 = tpu.matmul %36, %38, %cst_54 {dimension_numbers = #tpu.dot_dimension_numbers<[1], [0], [0], [1], [0, 0, 1, 1], [], []>} : vector<128x4xf32>, vector<4x32xf32>, vector<128x32xf32> -> vector<128x32xf32>
    %40 = arith.addf %34, %39 : vector<128x32xf32>
    %c0_55 = arith.constant 0 : index
    %c2_56 = arith.constant 2 : index
    %c0_57 = arith.constant 0 : index
    %c0_58 = arith.constant 0 : index
    %41 = vector.load %arg7[%c0_55, %c2_56, %c0_57, %c0_58] : memref<2x10x10x32xf32, #tpu.memory_space<vmem>>, vector<2x8x8x4xf32>
    %42 = vector.shape_cast %41 : vector<2x8x8x4xf32> to vector<128x4xf32>
    %c6 = arith.constant 6 : index
    %c0_59 = arith.constant 0 : index
    %c0_60 = arith.constant 0 : index
    %43 = vector.load %arg2[%c6, %c0_59, %c0_60] : memref<9x4x32xf32, #tpu.memory_space<vmem>>, vector<1x4x32xf32>
    %44 = vector.shape_cast %43 : vector<1x4x32xf32> to vector<4x32xf32>
    %cst_61 = arith.constant dense<0.000000e+00> : vector<128x32xf32>
    %45 = tpu.matmul %42, %44, %cst_61 {dimension_numbers = #tpu.dot_dimension_numbers<[1], [0], [0], [1], [0, 0, 1, 1], [], []>} : vector<128x4xf32>, vector<4x32xf32>, vector<128x32xf32> -> vector<128x32xf32>
    %46 = arith.addf %40, %45 : vector<128x32xf32>
    %c0_62 = arith.constant 0 : index
    %c2_63 = arith.constant 2 : index
    %c1_64 = arith.constant 1 : index
    %c0_65 = arith.constant 0 : index
    %47 = vector.load %arg7[%c0_62, %c2_63, %c1_64, %c0_65] : memref<2x10x10x32xf32, #tpu.memory_space<vmem>>, vector<2x8x8x4xf32>
    %48 = vector.shape_cast %47 : vector<2x8x8x4xf32> to vector<128x4xf32>
    %c7 = arith.constant 7 : index
    %c0_66 = arith.constant 0 : index
    %c0_67 = arith.constant 0 : index
    %49 = vector.load %arg2[%c7, %c0_66, %c0_67] : memref<9x4x32xf32, #tpu.memory_space<vmem>>, vector<1x4x32xf32>
    %50 = vector.shape_cast %49 : vector<1x4x32xf32> to vector<4x32xf32>
    %cst_68 = arith.constant dense<0.000000e+00> : vector<128x32xf32>
    %51 = tpu.matmul %48, %50, %cst_68 {dimension_numbers = #tpu.dot_dimension_numbers<[1], [0], [0], [1], [0, 0, 1, 1], [], []>} : vector<128x4xf32>, vector<4x32xf32>, vector<128x32xf32> -> vector<128x32xf32>
    %52 = arith.addf %46, %51 : vector<128x32xf32>
    %c0_69 = arith.constant 0 : index
    %c2_70 = arith.constant 2 : index
    %c2_71 = arith.constant 2 : index
    %c0_72 = arith.constant 0 : index
    %53 = vector.load %arg7[%c0_69, %c2_70, %c2_71, %c0_72] : memref<2x10x10x32xf32, #tpu.memory_space<vmem>>, vector<2x8x8x4xf32>
    %54 = vector.shape_cast %53 : vector<2x8x8x4xf32> to vector<128x4xf32>
    %c8 = arith.constant 8 : index
    %c0_73 = arith.constant 0 : index
    %c0_74 = arith.constant 0 : index
    %55 = vector.load %arg2[%c8, %c0_73, %c0_74] : memref<9x4x32xf32, #tpu.memory_space<vmem>>, vector<1x4x32xf32>
    %56 = vector.shape_cast %55 : vector<1x4x32xf32> to vector<4x32xf32>
    %cst_75 = arith.constant dense<0.000000e+00> : vector<128x32xf32>
    %57 = tpu.matmul %54, %56, %cst_75 {dimension_numbers = #tpu.dot_dimension_numbers<[1], [0], [0], [1], [0, 0, 1, 1], [], []>} : vector<128x4xf32>, vector<4x32xf32>, vector<128x32xf32> -> vector<128x32xf32>
    %58 = arith.addf %52, %57 : vector<128x32xf32>
    %c0_76 = arith.constant 0 : index
    %c0_77 = arith.constant 0 : index
    %c0_78 = arith.constant 0 : index
    %59 = vector.load %arg4[%c0_76, %c0_77, %c0_78] : memref<2x1x32xf32, #tpu.memory_space<vmem>>, vector<1x1x32xf32>
    %60 = vector.shape_cast %59 : vector<1x1x32xf32> to vector<1x32xf32>
    %61 = vector.broadcast %60 : vector<1x32xf32> to vector<128x32xf32>
    %62 = arith.mulf %58, %61 : vector<128x32xf32>
    %c0_79 = arith.constant 0 : index
    %c0_80 = arith.constant 0 : index
    %c0_81 = arith.constant 0 : index
    %63 = vector.load %arg5[%c0_79, %c0_80, %c0_81] : memref<2x1x32xf32, #tpu.memory_space<vmem>>, vector<1x1x32xf32>
    %64 = vector.shape_cast %63 : vector<1x1x32xf32> to vector<1x32xf32>
    %65 = vector.broadcast %64 : vector<1x32xf32> to vector<128x32xf32>
    %66 = arith.addf %62, %65 : vector<128x32xf32>
    %cst_82 = arith.constant 0.000000e+00 : f32
    %67 = vector.broadcast %cst_82 : f32 to vector<128x32xf32>
    %68 = arith.maximumf %66, %67 : vector<128x32xf32>
    %69 = vector.shape_cast %68 : vector<128x32xf32> to vector<2x8x8x32xf32>
    %c0_83 = arith.constant 0 : index
    %c1_84 = arith.constant 1 : index
    %c1_85 = arith.constant 1 : index
    %c0_86 = arith.constant 0 : index
    %70 = vector.load %arg7[%c0_83, %c1_84, %c1_85, %c0_86] : memref<2x10x10x32xf32, #tpu.memory_space<vmem>>, vector<2x8x8x32xf32>
    tpu.vector_store %arg7[%c0_83, %c1_84, %c1_85, %c0_86], %69 {strides = array<i32>} : memref<2x10x10x32xf32, #tpu.memory_space<vmem>>, vector<2x8x8x32xf32>,
    %cst_87 = arith.constant 0.000000e+00 : f32
    %71 = vector.broadcast %cst_87 : f32 to vector<128x32xf32>
    %c0_88 = arith.constant 0 : index
    %c0_89 = arith.constant 0 : index
    %c0_90 = arith.constant 0 : index
    %c0_91 = arith.constant 0 : index
    %72 = vector.load %arg7[%c0_88, %c0_89, %c0_90, %c0_91] : memref<2x10x10x32xf32, #tpu.memory_space<vmem>>, vector<2x8x8x32xf32>
    %73 = vector.shape_cast %72 : vector<2x8x8x32xf32> to vector<128x32xf32>
    %c0_92 = arith.constant 0 : index
    %c0_93 = arith.constant 0 : index
    %c0_94 = arith.constant 0 : index
    %c0_95 = arith.constant 0 : index
    %74 = vector.load %arg3[%c0_92, %c0_93, %c0_94, %c0_95] : memref<1x9x32x32xf32, #tpu.memory_space<vmem>>, vector<1x1x32x32xf32>
    %75 = vector.shape_cast %74 : vector<1x1x32x32xf32> to vector<32x32xf32>
    %cst_96 = arith.constant dense<0.000000e+00> : vector<128x32xf32>
    %76 = tpu.matmul %73, %75, %cst_96 {dimension_numbers = #tpu.dot_dimension_numbers<[1], [0], [0], [1], [0, 0, 1, 1], [], []>} : vector<128x32xf32>, vector<32x32xf32>, vector<128x32xf32> -> vector<128x32xf32>
    %77 = arith.addf %71, %76 : vector<128x32xf32>
    %c0_97 = arith.constant 0 : index
    %c0_98 = arith.constant 0 : index
    %c1_99 = arith.constant 1 : index
    %c0_100 = arith.constant 0 : index
    %78 = vector.load %arg7[%c0_97, %c0_98, %c1_99, %c0_100] : memref<2x10x10x32xf32, #tpu.memory_space<vmem>>, vector<2x8x8x32xf32>
    %79 = vector.shape_cast %78 : vector<2x8x8x32xf32> to vector<128x32xf32>
    %c0_101 = arith.constant 0 : index
    %c1_102 = arith.constant 1 : index
    %c0_103 = arith.constant 0 : index
    %c0_104 = arith.constant 0 : index
    %80 = vector.load %arg3[%c0_101, %c1_102, %c0_103, %c0_104] : memref<1x9x32x32xf32, #tpu.memory_space<vmem>>, vector<1x1x32x32xf32>
    %81 = vector.shape_cast %80 : vector<1x1x32x32xf32> to vector<32x32xf32>
    %cst_105 = arith.constant dense<0.000000e+00> : vector<128x32xf32>
    %82 = tpu.matmul %79, %81, %cst_105 {dimension_numbers = #tpu.dot_dimension_numbers<[1], [0], [0], [1], [0, 0, 1, 1], [], []>} : vector<128x32xf32>, vector<32x32xf32>, vector<128x32xf32> -> vector<128x32xf32>
    %83 = arith.addf %77, %82 : vector<128x32xf32>
    %c0_106 = arith.constant 0 : index
    %c0_107 = arith.constant 0 : index
    %c2_108 = arith.constant 2 : index
    %c0_109 = arith.constant 0 : index
    %84 = vector.load %arg7[%c0_106, %c0_107, %c2_108, %c0_109] : memref<2x10x10x32xf32, #tpu.memory_space<vmem>>, vector<2x8x8x32xf32>
    %85 = vector.shape_cast %84 : vector<2x8x8x32xf32> to vector<128x32xf32>
    %c0_110 = arith.constant 0 : index
    %c2_111 = arith.constant 2 : index
    %c0_112 = arith.constant 0 : index
    %c0_113 = arith.constant 0 : index
    %86 = vector.load %arg3[%c0_110, %c2_111, %c0_112, %c0_113] : memref<1x9x32x32xf32, #tpu.memory_space<vmem>>, vector<1x1x32x32xf32>
    %87 = vector.shape_cast %86 : vector<1x1x32x32xf32> to vector<32x32xf32>
    %cst_114 = arith.constant dense<0.000000e+00> : vector<128x32xf32>
    %88 = tpu.matmul %85, %87, %cst_114 {dimension_numbers = #tpu.dot_dimension_numbers<[1], [0], [0], [1], [0, 0, 1, 1], [], []>} : vector<128x32xf32>, vector<32x32xf32>, vector<128x32xf32> -> vector<128x32xf32>
    %89 = arith.addf %83, %88 : vector<128x32xf32>
    %c0_115 = arith.constant 0 : index
    %c1_116 = arith.constant 1 : index
    %c0_117 = arith.constant 0 : index
    %c0_118 = arith.constant 0 : index
    %90 = vector.load %arg7[%c0_115, %c1_116, %c0_117, %c0_118] : memref<2x10x10x32xf32, #tpu.memory_space<vmem>>, vector<2x8x8x32xf32>
    %91 = vector.shape_cast %90 : vector<2x8x8x32xf32> to vector<128x32xf32>
    %c0_119 = arith.constant 0 : index
    %c3_120 = arith.constant 3 : index
    %c0_121 = arith.constant 0 : index
    %c0_122 = arith.constant 0 : index
    %92 = vector.load %arg3[%c0_119, %c3_120, %c0_121, %c0_122] : memref<1x9x32x32xf32, #tpu.memory_space<vmem>>, vector<1x1x32x32xf32>
    %93 = vector.shape_cast %92 : vector<1x1x32x32xf32> to vector<32x32xf32>
    %cst_123 = arith.constant dense<0.000000e+00> : vector<128x32xf32>
    %94 = tpu.matmul %91, %93, %cst_123 {dimension_numbers = #tpu.dot_dimension_numbers<[1], [0], [0], [1], [0, 0, 1, 1], [], []>} : vector<128x32xf32>, vector<32x32xf32>, vector<128x32xf32> -> vector<128x32xf32>
    %95 = arith.addf %89, %94 : vector<128x32xf32>
    %c0_124 = arith.constant 0 : index
    %c1_125 = arith.constant 1 : index
    %c1_126 = arith.constant 1 : index
    %c0_127 = arith.constant 0 : index
    %96 = vector.load %arg7[%c0_124, %c1_125, %c1_126, %c0_127] : memref<2x10x10x32xf32, #tpu.memory_space<vmem>>, vector<2x8x8x32xf32>
    %97 = vector.shape_cast %96 : vector<2x8x8x32xf32> to vector<128x32xf32>
    %c0_128 = arith.constant 0 : index
    %c4_129 = arith.constant 4 : index
    %c0_130 = arith.constant 0 : index
    %c0_131 = arith.constant 0 : index
    %98 = vector.load %arg3[%c0_128, %c4_129, %c0_130, %c0_131] : memref<1x9x32x32xf32, #tpu.memory_space<vmem>>, vector<1x1x32x32xf32>
    %99 = vector.shape_cast %98 : vector<1x1x32x32xf32> to vector<32x32xf32>
    %cst_132 = arith.constant dense<0.000000e+00> : vector<128x32xf32>
    %100 = tpu.matmul %97, %99, %cst_132 {dimension_numbers = #tpu.dot_dimension_numbers<[1], [0], [0], [1], [0, 0, 1, 1], [], []>} : vector<128x32xf32>, vector<32x32xf32>, vector<128x32xf32> -> vector<128x32xf32>
    %101 = arith.addf %95, %100 : vector<128x32xf32>
    %c0_133 = arith.constant 0 : index
    %c1_134 = arith.constant 1 : index
    %c2_135 = arith.constant 2 : index
    %c0_136 = arith.constant 0 : index
    %102 = vector.load %arg7[%c0_133, %c1_134, %c2_135, %c0_136] : memref<2x10x10x32xf32, #tpu.memory_space<vmem>>, vector<2x8x8x32xf32>
    %103 = vector.shape_cast %102 : vector<2x8x8x32xf32> to vector<128x32xf32>
    %c0_137 = arith.constant 0 : index
    %c5_138 = arith.constant 5 : index
    %c0_139 = arith.constant 0 : index
    %c0_140 = arith.constant 0 : index
    %104 = vector.load %arg3[%c0_137, %c5_138, %c0_139, %c0_140] : memref<1x9x32x32xf32, #tpu.memory_space<vmem>>, vector<1x1x32x32xf32>
    %105 = vector.shape_cast %104 : vector<1x1x32x32xf32> to vector<32x32xf32>
    %cst_141 = arith.constant dense<0.000000e+00> : vector<128x32xf32>
    %106 = tpu.matmul %103, %105, %cst_141 {dimension_numbers = #tpu.dot_dimension_numbers<[1], [0], [0], [1], [0, 0, 1, 1], [], []>} : vector<128x32xf32>, vector<32x32xf32>, vector<128x32xf32> -> vector<128x32xf32>
    %107 = arith.addf %101, %106 : vector<128x32xf32>
    %c0_142 = arith.constant 0 : index
    %c2_143 = arith.constant 2 : index
    %c0_144 = arith.constant 0 : index
    %c0_145 = arith.constant 0 : index
    %108 = vector.load %arg7[%c0_142, %c2_143, %c0_144, %c0_145] : memref<2x10x10x32xf32, #tpu.memory_space<vmem>>, vector<2x8x8x32xf32>
    %109 = vector.shape_cast %108 : vector<2x8x8x32xf32> to vector<128x32xf32>
    %c0_146 = arith.constant 0 : index
    %c6_147 = arith.constant 6 : index
    %c0_148 = arith.constant 0 : index
    %c0_149 = arith.constant 0 : index
    %110 = vector.load %arg3[%c0_146, %c6_147, %c0_148, %c0_149] : memref<1x9x32x32xf32, #tpu.memory_space<vmem>>, vector<1x1x32x32xf32>
    %111 = vector.shape_cast %110 : vector<1x1x32x32xf32> to vector<32x32xf32>
    %cst_150 = arith.constant dense<0.000000e+00> : vector<128x32xf32>
    %112 = tpu.matmul %109, %111, %cst_150 {dimension_numbers = #tpu.dot_dimension_numbers<[1], [0], [0], [1], [0, 0, 1, 1], [], []>} : vector<128x32xf32>, vector<32x32xf32>, vector<128x32xf32> -> vector<128x32xf32>
    %113 = arith.addf %107, %112 : vector<128x32xf32>
    %c0_151 = arith.constant 0 : index
    %c2_152 = arith.constant 2 : index
    %c1_153 = arith.constant 1 : index
    %c0_154 = arith.constant 0 : index
    %114 = vector.load %arg7[%c0_151, %c2_152, %c1_153, %c0_154] : memref<2x10x10x32xf32, #tpu.memory_space<vmem>>, vector<2x8x8x32xf32>
    %115 = vector.shape_cast %114 : vector<2x8x8x32xf32> to vector<128x32xf32>
    %c0_155 = arith.constant 0 : index
    %c7_156 = arith.constant 7 : index
    %c0_157 = arith.constant 0 : index
    %c0_158 = arith.constant 0 : index
    %116 = vector.load %arg3[%c0_155, %c7_156, %c0_157, %c0_158] : memref<1x9x32x32xf32, #tpu.memory_space<vmem>>, vector<1x1x32x32xf32>
    %117 = vector.shape_cast %116 : vector<1x1x32x32xf32> to vector<32x32xf32>
    %cst_159 = arith.constant dense<0.000000e+00> : vector<128x32xf32>
    %118 = tpu.matmul %115, %117, %cst_159 {dimension_numbers = #tpu.dot_dimension_numbers<[1], [0], [0], [1], [0, 0, 1, 1], [], []>} : vector<128x32xf32>, vector<32x32xf32>, vector<128x32xf32> -> vector<128x32xf32>
    %119 = arith.addf %113, %118 : vector<128x32xf32>
    %c0_160 = arith.constant 0 : index
    %c2_161 = arith.constant 2 : index
    %c2_162 = arith.constant 2 : index
    %c0_163 = arith.constant 0 : index
    %120 = vector.load %arg7[%c0_160, %c2_161, %c2_162, %c0_163] : memref<2x10x10x32xf32, #tpu.memory_space<vmem>>, vector<2x8x8x32xf32>
    %121 = vector.shape_cast %120 : vector<2x8x8x32xf32> to vector<128x32xf32>
    %c0_164 = arith.constant 0 : index
    %c8_165 = arith.constant 8 : index
    %c0_166 = arith.constant 0 : index
    %c0_167 = arith.constant 0 : index
    %122 = vector.load %arg3[%c0_164, %c8_165, %c0_166, %c0_167] : memref<1x9x32x32xf32, #tpu.memory_space<vmem>>, vector<1x1x32x32xf32>
    %123 = vector.shape_cast %122 : vector<1x1x32x32xf32> to vector<32x32xf32>
    %cst_168 = arith.constant dense<0.000000e+00> : vector<128x32xf32>
    %124 = tpu.matmul %121, %123, %cst_168 {dimension_numbers = #tpu.dot_dimension_numbers<[1], [0], [0], [1], [0, 0, 1, 1], [], []>} : vector<128x32xf32>, vector<32x32xf32>, vector<128x32xf32> -> vector<128x32xf32>
    %125 = arith.addf %119, %124 : vector<128x32xf32>
    %c1_169 = arith.constant 1 : index
    %c0_170 = arith.constant 0 : index
    %c0_171 = arith.constant 0 : index
    %126 = vector.load %arg4[%c1_169, %c0_170, %c0_171] : memref<2x1x32xf32, #tpu.memory_space<vmem>>, vector<1x1x32xf32>
    %127 = vector.shape_cast %126 : vector<1x1x32xf32> to vector<1x32xf32>
    %128 = vector.broadcast %127 : vector<1x32xf32> to vector<128x32xf32>
    %129 = arith.mulf %125, %128 : vector<128x32xf32>
    %c1_172 = arith.constant 1 : index
    %c0_173 = arith.constant 0 : index
    %c0_174 = arith.constant 0 : index
    %130 = vector.load %arg5[%c1_172, %c0_173, %c0_174] : memref<2x1x32xf32, #tpu.memory_space<vmem>>, vector<1x1x32xf32>
    %131 = vector.shape_cast %130 : vector<1x1x32xf32> to vector<1x32xf32>
    %132 = vector.broadcast %131 : vector<1x32xf32> to vector<128x32xf32>
    %133 = arith.addf %129, %132 : vector<128x32xf32>
    %cst_175 = arith.constant 0.000000e+00 : f32
    %134 = vector.broadcast %cst_175 : f32 to vector<128x32xf32>
    %135 = arith.maximumf %133, %134 : vector<128x32xf32>
    %136 = vector.shape_cast %135 : vector<128x32xf32> to vector<2x64x32xf32>
    %c0_176 = arith.constant 0 : index
    %c0_177 = arith.constant 0 : index
    %c0_178 = arith.constant 0 : index
    %137 = vector.load %arg6[%c0_176, %c0_177, %c0_178] : memref<2x64x32xf32, #tpu.memory_space<vmem>>, vector<2x64x32xf32>
    tpu.vector_store %arg6[%c0_176, %c0_177, %c0_178], %136 {strides = array<i32>} : memref<2x64x32xf32, #tpu.memory_space<vmem>>, vector<2x64x32xf32>,
    return
  }
  func.func @transform_0(%arg0: i32) -> (i32, i32, i32, i32) {
    %c0_i32 = arith.constant 0 : i32
    %c0_i32_0 = arith.constant 0 : i32
    %c0_i32_1 = arith.constant 0 : i32
    %c0_i32_2 = arith.constant 0 : i32
    return %arg0, %c0_i32, %c0_i32_0, %c0_i32_1 : i32, i32, i32, i32
  }
  func.func @transform_1(%arg0: i32) -> (i32, i32, i32) {
    %c0_i32 = arith.constant 0 : i32
    %c0_i32_0 = arith.constant 0 : i32
    %c0_i32_1 = arith.constant 0 : i32
    %c0_i32_2 = arith.constant 0 : i32
    return %c0_i32, %c0_i32_0, %c0_i32_1 : i32, i32, i32
  }
  func.func @transform_2(%arg0: i32) -> (i32, i32, i32, i32) {
    %c0_i32 = arith.constant 0 : i32
    %c0_i32_0 = arith.constant 0 : i32
    %c0_i32_1 = arith.constant 0 : i32
    %c0_i32_2 = arith.constant 0 : i32
    %c0_i32_3 = arith.constant 0 : i32
    return %c0_i32, %c0_i32_0, %c0_i32_1, %c0_i32_2 : i32, i32, i32, i32
  }
  func.func @transform_3(%arg0: i32) -> (i32, i32, i32) {
    %c0_i32 = arith.constant 0 : i32
    %c0_i32_0 = arith.constant 0 : i32
    %c0_i32_1 = arith.constant 0 : i32
    %c0_i32_2 = arith.constant 0 : i32
    return %c0_i32, %c0_i32_0, %c0_i32_1 : i32, i32, i32
  }
  func.func @transform_4(%arg0: i32) -> (i32, i32, i32) {
    %c0_i32 = arith.constant 0 : i32
    %c0_i32_0 = arith.constant 0 : i32
    %c0_i32_1 = arith.constant 0 : i32
    %c0_i32_2 = arith.constant 0 : i32
    return %c0_i32, %c0_i32_0, %c0_i32_1 : i32, i32, i32
  }
  func.func @transform_5(%arg0: i32) -> (i32, i32, i32) {
    %c0_i32 = arith.constant 0 : i32
    %c0_i32_0 = arith.constant 0 : i32
    %c0_i32_1 = arith.constant 0 : i32
    return %arg0, %c0_i32, %c0_i32_0 : i32, i32, i32
  }
}

module attributes {stable_mosaic.version = 11 : i64} {
  func.func @_decode_kernel(%arg0: i32, %arg1: memref<16x32xf32, #tpu.memory_space<vmem>>, %arg2: memref<2x64x32xf32, #tpu.memory_space<vmem>>, %arg3: memref<32x32xf32, #tpu.memory_space<vmem>>, %arg4: memref<1x32xf32, #tpu.memory_space<vmem>>, %arg5: memref<32x32xf32, #tpu.memory_space<vmem>>, %arg6: memref<1x32xf32, #tpu.memory_space<vmem>>, %arg7: memref<1x32xf32, #tpu.memory_space<vmem>>, %arg8: memref<32x32xf32, #tpu.memory_space<vmem>>, %arg9: memref<32x32xf32, #tpu.memory_space<vmem>>, %arg10: memref<1x32xf32, #tpu.memory_space<vmem>>, %arg11: memref<3x32x32xf32, #tpu.memory_space<vmem>>, %arg12: memref<3x32x32xf32, #tpu.memory_space<vmem>>, %arg13: memref<3x1x32xf32, #tpu.memory_space<vmem>>, %arg14: memref<3x1x32xf32, #tpu.memory_space<vmem>>, %arg15: memref<32x16xf32, #tpu.memory_space<vmem>>, %arg16: memref<1x16xf32, #tpu.memory_space<vmem>>, %arg17: memref<2x5x16xf32, #tpu.memory_space<vmem>>, %arg18: memref<2x64x32xf32, #tpu.memory_space<vmem>>) attributes {dimension_semantics = [#tpu.dimension_semantics<parallel>], iteration_bounds = array<i64: 1>, scalar_prefetch = 0 : i64, scratch_operands = 1 : i64, tpu.core_type = #tpu.core_type<tc>, window_params = [{pipeline_mode = #tpu.pipeline_mode<synchronous>, transform_indices = @transform_0, window_bounds = array<i64: 16, 32>}, {transform_indices = @transform_1, window_bounds = array<i64: 2, 64, 32>}, {pipeline_mode = #tpu.pipeline_mode<synchronous>, transform_indices = @transform_2, window_bounds = array<i64: 32, 32>}, {pipeline_mode = #tpu.pipeline_mode<synchronous>, transform_indices = @transform_3, window_bounds = array<i64: 1, 32>}, {pipeline_mode = #tpu.pipeline_mode<synchronous>, transform_indices = @transform_4, window_bounds = array<i64: 32, 32>}, {pipeline_mode = #tpu.pipeline_mode<synchronous>, transform_indices = @transform_5, window_bounds = array<i64: 1, 32>}, {pipeline_mode = #tpu.pipeline_mode<synchronous>, transform_indices = @transform_6, window_bounds = array<i64: 1, 32>}, {pipeline_mode = #tpu.pipeline_mode<synchronous>, transform_indices = @transform_7, window_bounds = array<i64: 32, 32>}, {pipeline_mode = #tpu.pipeline_mode<synchronous>, transform_indices = @transform_8, window_bounds = array<i64: 32, 32>}, {pipeline_mode = #tpu.pipeline_mode<synchronous>, transform_indices = @transform_9, window_bounds = array<i64: 1, 32>}, {pipeline_mode = #tpu.pipeline_mode<synchronous>, transform_indices = @transform_10, window_bounds = array<i64: 3, 32, 32>}, {pipeline_mode = #tpu.pipeline_mode<synchronous>, transform_indices = @transform_11, window_bounds = array<i64: 3, 32, 32>}, {pipeline_mode = #tpu.pipeline_mode<synchronous>, transform_indices = @transform_12, window_bounds = array<i64: 3, 1, 32>}, {pipeline_mode = #tpu.pipeline_mode<synchronous>, transform_indices = @transform_13, window_bounds = array<i64: 3, 1, 32>}, {pipeline_mode = #tpu.pipeline_mode<synchronous>, transform_indices = @transform_14, window_bounds = array<i64: 32, 16>}, {pipeline_mode = #tpu.pipeline_mode<synchronous>, transform_indices = @transform_15, window_bounds = array<i64: 1, 16>}, {transform_indices = @transform_16, window_bounds = array<i64: 2, 5, 16>}]} {
    %c0 = arith.constant 0 : index
    %c0_0 = arith.constant 0 : index
    %c0_1 = arith.constant 0 : index
    %0 = vector.load %arg2[%c0, %c0_0, %c0_1] : memref<2x64x32xf32, #tpu.memory_space<vmem>>, vector<2x64x32xf32>
    %1 = vector.shape_cast %0 : vector<2x64x32xf32> to vector<128x32xf32>
    %c0_2 = arith.constant 0 : index
    %c0_3 = arith.constant 0 : index
    %2 = vector.load %arg3[%c0_2, %c0_3] : memref<32x32xf32, #tpu.memory_space<vmem>>, vector<32x32xf32>
    %cst = arith.constant dense<0.000000e+00> : vector<128x32xf32>
    %3 = tpu.matmul %1, %2, %cst {dimension_numbers = #tpu.dot_dimension_numbers<[1], [0], [0], [1], [0, 0, 1, 1], [], []>} : vector<128x32xf32>, vector<32x32xf32>, vector<128x32xf32> -> vector<128x32xf32>
    %c0_4 = arith.constant 0 : index
    %c0_5 = arith.constant 0 : index
    %4 = vector.load %arg4[%c0_4, %c0_5] : memref<1x32xf32, #tpu.memory_space<vmem>>, vector<1x32xf32>
    %5 = vector.broadcast %4 : vector<1x32xf32> to vector<128x32xf32>
    %6 = arith.addf %3, %5 : vector<128x32xf32>
    %7 = vector.shape_cast %6 : vector<128x32xf32> to vector<2x64x32xf32>
    %c0_6 = arith.constant 0 : index
    %c0_7 = arith.constant 0 : index
    %c0_8 = arith.constant 0 : index
    %8 = vector.load %arg18[%c0_6, %c0_7, %c0_8] : memref<2x64x32xf32, #tpu.memory_space<vmem>>, vector<2x64x32xf32>
    tpu.vector_store %arg18[%c0_6, %c0_7, %c0_8], %7 {strides = array<i32>} : memref<2x64x32xf32, #tpu.memory_space<vmem>>, vector<2x64x32xf32>,
    %9 = tpu.iota {dimensions = array<i32: 1>} : vector<2x16xi32>
    %10 = arith.sitofp %9 : vector<2x16xi32> to vector<2x16xf32>
    %cst_9 = arith.constant 0.000000e+00 : f32
    %11 = vector.broadcast %cst_9 : f32 to vector<2x16xf32>
    %12 = arith.subf %11, %10 : vector<2x16xf32>
    %cst_10 = arith.constant 0.000000e+00 : f32
    %13 = vector.broadcast %cst_10 : f32 to vector<2x32xf32>
    %c1_i32 = arith.constant 1 : i32
    %14 = vector.broadcast %c1_i32 : i32 to vector<2x16xi32>
    %15 = arith.cmpi eq, %9, %14 : vector<2x16xi32>
    %16 = arith.extui %15 : vector<2x16xi1> to vector<2x16xi32>
    %17 = arith.sitofp %16 : vector<2x16xi32> to vector<2x16xf32>
    %c0_11 = arith.constant 0 : index
    %c0_12 = arith.constant 0 : index
    %18 = vector.load %arg1[%c0_11, %c0_12] : memref<16x32xf32, #tpu.memory_space<vmem>>, vector<16x32xf32>
    %cst_13 = arith.constant dense<0.000000e+00> : vector<2x32xf32>
    %19 = tpu.matmul %17, %18, %cst_13 {dimension_numbers = #tpu.dot_dimension_numbers<[1], [0], [0], [1], [0, 0, 1, 1], [], []>} : vector<2x16xf32>, vector<16x32xf32>, vector<2x32xf32> -> vector<2x32xf32>
    %c0_14 = arith.constant 0 : index
    %c0_15 = arith.constant 0 : index
    %20 = vector.load %arg5[%c0_14, %c0_15] : memref<32x32xf32, #tpu.memory_space<vmem>>, vector<32x32xf32>
    %cst_16 = arith.constant dense<0.000000e+00> : vector<2x32xf32>
    %21 = tpu.matmul %13, %20, %cst_16 {dimension_numbers = #tpu.dot_dimension_numbers<[1], [0], [0], [1], [0, 0, 1, 1], [], []>} : vector<2x32xf32>, vector<32x32xf32>, vector<2x32xf32> -> vector<2x32xf32>
    %c0_17 = arith.constant 0 : index
    %c0_18 = arith.constant 0 : index
    %22 = vector.load %arg6[%c0_17, %c0_18] : memref<1x32xf32, #tpu.memory_space<vmem>>, vector<1x32xf32>
    %23 = vector.broadcast %22 : vector<1x32xf32> to vector<2x32xf32>
    %24 = arith.addf %21, %23 : vector<2x32xf32>
    %c0_19 = arith.constant 0 : index
    %c0_20 = arith.constant 0 : index
    %c0_21 = arith.constant 0 : index
    %25 = vector.load %arg18[%c0_19, %c0_20, %c0_21] : memref<2x64x32xf32, #tpu.memory_space<vmem>>, vector<2x64x32xf32>
    %26 = vector.shape_cast %24 : vector<2x32xf32> to vector<2x1x32xf32>
    %27 = vector.broadcast %26 : vector<2x1x32xf32> to vector<2x64x32xf32>
    %28 = arith.addf %25, %27 : vector<2x64x32xf32>
    %29 = math.tanh %28 : vector<2x64x32xf32>
    %c0_22 = arith.constant 0 : index
    %c0_23 = arith.constant 0 : index
    %30 = vector.load %arg7[%c0_22, %c0_23] : memref<1x32xf32, #tpu.memory_space<vmem>>, vector<1x32xf32>
    %31 = vector.shape_cast %30 : vector<1x32xf32> to vector<1x1x32xf32>
    %32 = vector.broadcast %31 : vector<1x1x32xf32> to vector<2x64x32xf32>
    %33 = arith.mulf %29, %32 : vector<2x64x32xf32>
    %cst_24 = arith.constant dense<0.000000e+00> : vector<2x64xf32>
    %34 = vector.multi_reduction <add>, %33, %cst_24 [2] : vector<2x64x32xf32> to vector<2x64xf32>
    %cst_25 = arith.constant dense<0xFF800000> : vector<2xf32>
    %35 = vector.multi_reduction <maximumf>, %34, %cst_25 [1] : vector<2x64xf32> to vector<2xf32>
    %36 = vector.shape_cast %35 : vector<2xf32> to vector<2x1xf32>
    %37 = vector.broadcast %36 : vector<2x1xf32> to vector<2x64xf32>
    %38 = arith.subf %34, %37 : vector<2x64xf32>
    %39 = math.exp %38 : vector<2x64xf32>
    %cst_26 = arith.constant dense<0.000000e+00> : vector<2xf32>
    %40 = vector.multi_reduction <add>, %39, %cst_26 [1] : vector<2x64xf32> to vector<2xf32>
    %41 = vector.shape_cast %40 : vector<2xf32> to vector<2x1xf32>
    %42 = vector.broadcast %41 : vector<2x1xf32> to vector<2x64xf32>
    %43 = arith.divf %39, %42 : vector<2x64xf32>
    %44 = vector.shape_cast %43 : vector<2x64xf32> to vector<2x64x1xf32>
    %c0_27 = arith.constant 0 : index
    %c0_28 = arith.constant 0 : index
    %c0_29 = arith.constant 0 : index
    %45 = vector.load %arg2[%c0_27, %c0_28, %c0_29] : memref<2x64x32xf32, #tpu.memory_space<vmem>>, vector<2x64x32xf32>
    %46 = vector.broadcast %44 : vector<2x64x1xf32> to vector<2x64x32xf32>
    %47 = arith.mulf %46, %45 : vector<2x64x32xf32>
    %cst_30 = arith.constant dense<0.000000e+00> : vector<2x32xf32>
    %48 = vector.multi_reduction <add>, %47, %cst_30 [1] : vector<2x64x32xf32> to vector<2x32xf32>
    %c0_31 = arith.constant 0 : index
    %c0_32 = arith.constant 0 : index
    %49 = vector.load %arg8[%c0_31, %c0_32] : memref<32x32xf32, #tpu.memory_space<vmem>>, vector<32x32xf32>
    %cst_33 = arith.constant dense<0.000000e+00> : vector<2x32xf32>
    %50 = tpu.matmul %19, %49, %cst_33 {dimension_numbers = #tpu.dot_dimension_numbers<[1], [0], [0], [1], [0, 0, 1, 1], [], []>} : vector<2x32xf32>, vector<32x32xf32>, vector<2x32xf32> -> vector<2x32xf32>
    %c0_34 = arith.constant 0 : index
    %c0_35 = arith.constant 0 : index
    %51 = vector.load %arg9[%c0_34, %c0_35] : memref<32x32xf32, #tpu.memory_space<vmem>>, vector<32x32xf32>
    %cst_36 = arith.constant dense<0.000000e+00> : vector<2x32xf32>
    %52 = tpu.matmul %48, %51, %cst_36 {dimension_numbers = #tpu.dot_dimension_numbers<[1], [0], [0], [1], [0, 0, 1, 1], [], []>} : vector<2x32xf32>, vector<32x32xf32>, vector<2x32xf32> -> vector<2x32xf32>
    %53 = arith.addf %50, %52 : vector<2x32xf32>
    %c0_37 = arith.constant 0 : index
    %c0_38 = arith.constant 0 : index
    %54 = vector.load %arg10[%c0_37, %c0_38] : memref<1x32xf32, #tpu.memory_space<vmem>>, vector<1x32xf32>
    %55 = vector.broadcast %54 : vector<1x32xf32> to vector<2x32xf32>
    %56 = arith.addf %53, %55 : vector<2x32xf32>
    %cst_39 = arith.constant 0.000000e+00 : f32
    %57 = vector.broadcast %cst_39 : f32 to vector<2x32xf32>
    %58 = arith.maximumf %56, %57 : vector<2x32xf32>
    %c0_40 = arith.constant 0 : index
    %c0_41 = arith.constant 0 : index
    %c0_42 = arith.constant 0 : index
    %59 = vector.load %arg11[%c0_40, %c0_41, %c0_42] : memref<3x32x32xf32, #tpu.memory_space<vmem>>, vector<1x32x32xf32>
    %60 = vector.shape_cast %59 : vector<1x32x32xf32> to vector<32x32xf32>
    %cst_43 = arith.constant dense<0.000000e+00> : vector<2x32xf32>
    %61 = tpu.matmul %58, %60, %cst_43 {dimension_numbers = #tpu.dot_dimension_numbers<[1], [0], [0], [1], [0, 0, 1, 1], [], []>} : vector<2x32xf32>, vector<32x32xf32>, vector<2x32xf32> -> vector<2x32xf32>
    %c0_44 = arith.constant 0 : index
    %c0_45 = arith.constant 0 : index
    %c0_46 = arith.constant 0 : index
    %62 = vector.load %arg13[%c0_44, %c0_45, %c0_46] : memref<3x1x32xf32, #tpu.memory_space<vmem>>, vector<1x1x32xf32>
    %63 = vector.shape_cast %62 : vector<1x1x32xf32> to vector<1x32xf32>
    %64 = vector.broadcast %63 : vector<1x32xf32> to vector<2x32xf32>
    %65 = arith.addf %61, %64 : vector<2x32xf32>
    %c1 = arith.constant 1 : index
    %c0_47 = arith.constant 0 : index
    %c0_48 = arith.constant 0 : index
    %66 = vector.load %arg11[%c1, %c0_47, %c0_48] : memref<3x32x32xf32, #tpu.memory_space<vmem>>, vector<1x32x32xf32>
    %67 = vector.shape_cast %66 : vector<1x32x32xf32> to vector<32x32xf32>
    %cst_49 = arith.constant dense<0.000000e+00> : vector<2x32xf32>
    %68 = tpu.matmul %58, %67, %cst_49 {dimension_numbers = #tpu.dot_dimension_numbers<[1], [0], [0], [1], [0, 0, 1, 1], [], []>} : vector<2x32xf32>, vector<32x32xf32>, vector<2x32xf32> -> vector<2x32xf32>
    %c1_50 = arith.constant 1 : index
    %c0_51 = arith.constant 0 : index
    %c0_52 = arith.constant 0 : index
    %69 = vector.load %arg13[%c1_50, %c0_51, %c0_52] : memref<3x1x32xf32, #tpu.memory_space<vmem>>, vector<1x1x32xf32>
    %70 = vector.shape_cast %69 : vector<1x1x32xf32> to vector<1x32xf32>
    %71 = vector.broadcast %70 : vector<1x32xf32> to vector<2x32xf32>
    %72 = arith.addf %68, %71 : vector<2x32xf32>
    %c2 = arith.constant 2 : index
    %c0_53 = arith.constant 0 : index
    %c0_54 = arith.constant 0 : index
    %73 = vector.load %arg11[%c2, %c0_53, %c0_54] : memref<3x32x32xf32, #tpu.memory_space<vmem>>, vector<1x32x32xf32>
    %74 = vector.shape_cast %73 : vector<1x32x32xf32> to vector<32x32xf32>
    %cst_55 = arith.constant dense<0.000000e+00> : vector<2x32xf32>
    %75 = tpu.matmul %58, %74, %cst_55 {dimension_numbers = #tpu.dot_dimension_numbers<[1], [0], [0], [1], [0, 0, 1, 1], [], []>} : vector<2x32xf32>, vector<32x32xf32>, vector<2x32xf32> -> vector<2x32xf32>
    %c2_56 = arith.constant 2 : index
    %c0_57 = arith.constant 0 : index
    %c0_58 = arith.constant 0 : index
    %76 = vector.load %arg13[%c2_56, %c0_57, %c0_58] : memref<3x1x32xf32, #tpu.memory_space<vmem>>, vector<1x1x32xf32>
    %77 = vector.shape_cast %76 : vector<1x1x32xf32> to vector<1x32xf32>
    %78 = vector.broadcast %77 : vector<1x32xf32> to vector<2x32xf32>
    %79 = arith.addf %75, %78 : vector<2x32xf32>
    %c0_59 = arith.constant 0 : index
    %c0_60 = arith.constant 0 : index
    %c0_61 = arith.constant 0 : index
    %80 = vector.load %arg12[%c0_59, %c0_60, %c0_61] : memref<3x32x32xf32, #tpu.memory_space<vmem>>, vector<1x32x32xf32>
    %81 = vector.shape_cast %80 : vector<1x32x32xf32> to vector<32x32xf32>
    %cst_62 = arith.constant dense<0.000000e+00> : vector<2x32xf32>
    %82 = tpu.matmul %13, %81, %cst_62 {dimension_numbers = #tpu.dot_dimension_numbers<[1], [0], [0], [1], [0, 0, 1, 1], [], []>} : vector<2x32xf32>, vector<32x32xf32>, vector<2x32xf32> -> vector<2x32xf32>
    %c0_63 = arith.constant 0 : index
    %c0_64 = arith.constant 0 : index
    %c0_65 = arith.constant 0 : index
    %83 = vector.load %arg14[%c0_63, %c0_64, %c0_65] : memref<3x1x32xf32, #tpu.memory_space<vmem>>, vector<1x1x32xf32>
    %84 = vector.shape_cast %83 : vector<1x1x32xf32> to vector<1x32xf32>
    %85 = vector.broadcast %84 : vector<1x32xf32> to vector<2x32xf32>
    %86 = arith.addf %82, %85 : vector<2x32xf32>
    %c1_66 = arith.constant 1 : index
    %c0_67 = arith.constant 0 : index
    %c0_68 = arith.constant 0 : index
    %87 = vector.load %arg12[%c1_66, %c0_67, %c0_68] : memref<3x32x32xf32, #tpu.memory_space<vmem>>, vector<1x32x32xf32>
    %88 = vector.shape_cast %87 : vector<1x32x32xf32> to vector<32x32xf32>
    %cst_69 = arith.constant dense<0.000000e+00> : vector<2x32xf32>
    %89 = tpu.matmul %13, %88, %cst_69 {dimension_numbers = #tpu.dot_dimension_numbers<[1], [0], [0], [1], [0, 0, 1, 1], [], []>} : vector<2x32xf32>, vector<32x32xf32>, vector<2x32xf32> -> vector<2x32xf32>
    %c1_70 = arith.constant 1 : index
    %c0_71 = arith.constant 0 : index
    %c0_72 = arith.constant 0 : index
    %90 = vector.load %arg14[%c1_70, %c0_71, %c0_72] : memref<3x1x32xf32, #tpu.memory_space<vmem>>, vector<1x1x32xf32>
    %91 = vector.shape_cast %90 : vector<1x1x32xf32> to vector<1x32xf32>
    %92 = vector.broadcast %91 : vector<1x32xf32> to vector<2x32xf32>
    %93 = arith.addf %89, %92 : vector<2x32xf32>
    %c2_73 = arith.constant 2 : index
    %c0_74 = arith.constant 0 : index
    %c0_75 = arith.constant 0 : index
    %94 = vector.load %arg12[%c2_73, %c0_74, %c0_75] : memref<3x32x32xf32, #tpu.memory_space<vmem>>, vector<1x32x32xf32>
    %95 = vector.shape_cast %94 : vector<1x32x32xf32> to vector<32x32xf32>
    %cst_76 = arith.constant dense<0.000000e+00> : vector<2x32xf32>
    %96 = tpu.matmul %13, %95, %cst_76 {dimension_numbers = #tpu.dot_dimension_numbers<[1], [0], [0], [1], [0, 0, 1, 1], [], []>} : vector<2x32xf32>, vector<32x32xf32>, vector<2x32xf32> -> vector<2x32xf32>
    %c2_77 = arith.constant 2 : index
    %c0_78 = arith.constant 0 : index
    %c0_79 = arith.constant 0 : index
    %97 = vector.load %arg14[%c2_77, %c0_78, %c0_79] : memref<3x1x32xf32, #tpu.memory_space<vmem>>, vector<1x1x32xf32>
    %98 = vector.shape_cast %97 : vector<1x1x32xf32> to vector<1x32xf32>
    %99 = vector.broadcast %98 : vector<1x32xf32> to vector<2x32xf32>
    %100 = arith.addf %96, %99 : vector<2x32xf32>
    %101 = arith.addf %65, %86 : vector<2x32xf32>
    %102 = arith.negf %101 : vector<2x32xf32>
    %103 = math.exp %102 : vector<2x32xf32>
    %cst_80 = arith.constant 1.000000e+00 : f32
    %104 = vector.broadcast %cst_80 : f32 to vector<2x32xf32>
    %105 = arith.addf %104, %103 : vector<2x32xf32>
    %106 = arith.divf %104, %105 : vector<2x32xf32>
    %107 = arith.addf %72, %93 : vector<2x32xf32>
    %108 = arith.negf %107 : vector<2x32xf32>
    %109 = math.exp %108 : vector<2x32xf32>
    %cst_81 = arith.constant 1.000000e+00 : f32
    %110 = vector.broadcast %cst_81 : f32 to vector<2x32xf32>
    %111 = arith.addf %110, %109 : vector<2x32xf32>
    %112 = arith.divf %110, %111 : vector<2x32xf32>
    %113 = arith.mulf %106, %100 : vector<2x32xf32>
    %114 = arith.addf %79, %113 : vector<2x32xf32>
    %115 = math.tanh %114 : vector<2x32xf32>
    %cst_82 = arith.constant 1.000000e+00 : f32
    %116 = vector.broadcast %cst_82 : f32 to vector<2x32xf32>
    %117 = arith.subf %116, %112 : vector<2x32xf32>
    %118 = arith.mulf %117, %115 : vector<2x32xf32>
    %119 = arith.mulf %112, %13 : vector<2x32xf32>
    %120 = arith.addf %118, %119 : vector<2x32xf32>
    %c0_83 = arith.constant 0 : index
    %c0_84 = arith.constant 0 : index
    %121 = vector.load %arg15[%c0_83, %c0_84] : memref<32x16xf32, #tpu.memory_space<vmem>>, vector<32x16xf32>
    %cst_85 = arith.constant dense<0.000000e+00> : vector<2x16xf32>
    %122 = tpu.matmul %120, %121, %cst_85 {dimension_numbers = #tpu.dot_dimension_numbers<[1], [0], [0], [1], [0, 0, 1, 1], [], []>} : vector<2x32xf32>, vector<32x16xf32>, vector<2x16xf32> -> vector<2x16xf32>
    %c0_86 = arith.constant 0 : index
    %c0_87 = arith.constant 0 : index
    %123 = vector.load %arg16[%c0_86, %c0_87] : memref<1x16xf32, #tpu.memory_space<vmem>>, vector<1x16xf32>
    %124 = vector.broadcast %123 : vector<1x16xf32> to vector<2x16xf32>
    %125 = arith.addf %122, %124 : vector<2x16xf32>
    %c0_88 = arith.constant 0 : index
    %c0_89 = arith.constant 0 : index
    %c0_90 = arith.constant 0 : index
    %126 = vector.load %arg17[%c0_88, %c0_89, %c0_90] : memref<2x5x16xf32, #tpu.memory_space<vmem>>, vector<2x1x16xf32>
    %127 = vector.shape_cast %126 : vector<2x1x16xf32> to vector<2x16xf32>
    %128 = vector.shape_cast %125 : vector<2x16xf32> to vector<2x1x16xf32>
    tpu.vector_store %arg17[%c0_88, %c0_89, %c0_90], %128 {strides = array<i32>} : memref<2x5x16xf32, #tpu.memory_space<vmem>>, vector<2x1x16xf32>,
    %cst_91 = arith.constant dense<0xFF800000> : vector<2xf32>
    %129 = vector.multi_reduction <maximumf>, %125, %cst_91 [1] : vector<2x16xf32> to vector<2xf32>
    %130 = vector.shape_cast %129 : vector<2xf32> to vector<2x1xf32>
    %131 = vector.broadcast %130 : vector<2x1xf32> to vector<2x16xf32>
    %132 = arith.cmpf oeq, %125, %131 : vector<2x16xf32>
    %cst_92 = arith.constant -1.600000e+01 : f32
    %133 = vector.broadcast %cst_92 : f32 to vector<2x16xf32>
    %134 = arith.select %132, %12, %133 : vector<2x16xi1>, vector<2x16xf32>
    %cst_93 = arith.constant dense<0xFF800000> : vector<2xf32>
    %135 = vector.multi_reduction <maximumf>, %134, %cst_93 [1] : vector<2x16xf32> to vector<2xf32>
    %136 = vector.shape_cast %135 : vector<2xf32> to vector<2x1xf32>
    %137 = vector.broadcast %136 : vector<2x1xf32> to vector<2x16xf32>
    %138 = arith.cmpf oeq, %12, %137 : vector<2x16xf32>
    %139 = arith.extui %138 : vector<2x16xi1> to vector<2x16xi32>
    %140 = arith.sitofp %139 : vector<2x16xi32> to vector<2x16xf32>
    %c0_94 = arith.constant 0 : index
    %c0_95 = arith.constant 0 : index
    %141 = vector.load %arg1[%c0_94, %c0_95] : memref<16x32xf32, #tpu.memory_space<vmem>>, vector<16x32xf32>
    %cst_96 = arith.constant dense<0.000000e+00> : vector<2x32xf32>
    %142 = tpu.matmul %140, %141, %cst_96 {dimension_numbers = #tpu.dot_dimension_numbers<[1], [0], [0], [1], [0, 0, 1, 1], [], []>} : vector<2x16xf32>, vector<16x32xf32>, vector<2x32xf32> -> vector<2x32xf32>
    %c0_97 = arith.constant 0 : index
    %c0_98 = arith.constant 0 : index
    %143 = vector.load %arg5[%c0_97, %c0_98] : memref<32x32xf32, #tpu.memory_space<vmem>>, vector<32x32xf32>
    %cst_99 = arith.constant dense<0.000000e+00> : vector<2x32xf32>
    %144 = tpu.matmul %120, %143, %cst_99 {dimension_numbers = #tpu.dot_dimension_numbers<[1], [0], [0], [1], [0, 0, 1, 1], [], []>} : vector<2x32xf32>, vector<32x32xf32>, vector<2x32xf32> -> vector<2x32xf32>
    %c0_100 = arith.constant 0 : index
    %c0_101 = arith.constant 0 : index
    %145 = vector.load %arg6[%c0_100, %c0_101] : memref<1x32xf32, #tpu.memory_space<vmem>>, vector<1x32xf32>
    %146 = vector.broadcast %145 : vector<1x32xf32> to vector<2x32xf32>
    %147 = arith.addf %144, %146 : vector<2x32xf32>
    %c0_102 = arith.constant 0 : index
    %c0_103 = arith.constant 0 : index
    %c0_104 = arith.constant 0 : index
    %148 = vector.load %arg18[%c0_102, %c0_103, %c0_104] : memref<2x64x32xf32, #tpu.memory_space<vmem>>, vector<2x64x32xf32>
    %149 = vector.shape_cast %147 : vector<2x32xf32> to vector<2x1x32xf32>
    %150 = vector.broadcast %149 : vector<2x1x32xf32> to vector<2x64x32xf32>
    %151 = arith.addf %148, %150 : vector<2x64x32xf32>
    %152 = math.tanh %151 : vector<2x64x32xf32>
    %c0_105 = arith.constant 0 : index
    %c0_106 = arith.constant 0 : index
    %153 = vector.load %arg7[%c0_105, %c0_106] : memref<1x32xf32, #tpu.memory_space<vmem>>, vector<1x32xf32>
    %154 = vector.shape_cast %153 : vector<1x32xf32> to vector<1x1x32xf32>
    %155 = vector.broadcast %154 : vector<1x1x32xf32> to vector<2x64x32xf32>
    %156 = arith.mulf %152, %155 : vector<2x64x32xf32>
    %cst_107 = arith.constant dense<0.000000e+00> : vector<2x64xf32>
    %157 = vector.multi_reduction <add>, %156, %cst_107 [2] : vector<2x64x32xf32> to vector<2x64xf32>
    %cst_108 = arith.constant dense<0xFF800000> : vector<2xf32>
    %158 = vector.multi_reduction <maximumf>, %157, %cst_108 [1] : vector<2x64xf32> to vector<2xf32>
    %159 = vector.shape_cast %158 : vector<2xf32> to vector<2x1xf32>
    %160 = vector.broadcast %159 : vector<2x1xf32> to vector<2x64xf32>
    %161 = arith.subf %157, %160 : vector<2x64xf32>
    %162 = math.exp %161 : vector<2x64xf32>
    %cst_109 = arith.constant dense<0.000000e+00> : vector<2xf32>
    %163 = vector.multi_reduction <add>, %162, %cst_109 [1] : vector<2x64xf32> to vector<2xf32>
    %164 = vector.shape_cast %163 : vector<2xf32> to vector<2x1xf32>
    %165 = vector.broadcast %164 : vector<2x1xf32> to vector<2x64xf32>
    %166 = arith.divf %162, %165 : vector<2x64xf32>
    %167 = vector.shape_cast %166 : vector<2x64xf32> to vector<2x64x1xf32>
    %c0_110 = arith.constant 0 : index
    %c0_111 = arith.constant 0 : index
    %c0_112 = arith.constant 0 : index
    %168 = vector.load %arg2[%c0_110, %c0_111, %c0_112] : memref<2x64x32xf32, #tpu.memory_space<vmem>>, vector<2x64x32xf32>
    %169 = vector.broadcast %167 : vector<2x64x1xf32> to vector<2x64x32xf32>
    %170 = arith.mulf %169, %168 : vector<2x64x32xf32>
    %cst_113 = arith.constant dense<0.000000e+00> : vector<2x32xf32>
    %171 = vector.multi_reduction <add>, %170, %cst_113 [1] : vector<2x64x32xf32> to vector<2x32xf32>
    %c0_114 = arith.constant 0 : index
    %c0_115 = arith.constant 0 : index
    %172 = vector.load %arg8[%c0_114, %c0_115] : memref<32x32xf32, #tpu.memory_space<vmem>>, vector<32x32xf32>
    %cst_116 = arith.constant dense<0.000000e+00> : vector<2x32xf32>
    %173 = tpu.matmul %142, %172, %cst_116 {dimension_numbers = #tpu.dot_dimension_numbers<[1], [0], [0], [1], [0, 0, 1, 1], [], []>} : vector<2x32xf32>, vector<32x32xf32>, vector<2x32xf32> -> vector<2x32xf32>
    %c0_117 = arith.constant 0 : index
    %c0_118 = arith.constant 0 : index
    %174 = vector.load %arg9[%c0_117, %c0_118] : memref<32x32xf32, #tpu.memory_space<vmem>>, vector<32x32xf32>
    %cst_119 = arith.constant dense<0.000000e+00> : vector<2x32xf32>
    %175 = tpu.matmul %171, %174, %cst_119 {dimension_numbers = #tpu.dot_dimension_numbers<[1], [0], [0], [1], [0, 0, 1, 1], [], []>} : vector<2x32xf32>, vector<32x32xf32>, vector<2x32xf32> -> vector<2x32xf32>
    %176 = arith.addf %173, %175 : vector<2x32xf32>
    %c0_120 = arith.constant 0 : index
    %c0_121 = arith.constant 0 : index
    %177 = vector.load %arg10[%c0_120, %c0_121] : memref<1x32xf32, #tpu.memory_space<vmem>>, vector<1x32xf32>
    %178 = vector.broadcast %177 : vector<1x32xf32> to vector<2x32xf32>
    %179 = arith.addf %176, %178 : vector<2x32xf32>
    %cst_122 = arith.constant 0.000000e+00 : f32
    %180 = vector.broadcast %cst_122 : f32 to vector<2x32xf32>
    %181 = arith.maximumf %179, %180 : vector<2x32xf32>
    %c0_123 = arith.constant 0 : index
    %c0_124 = arith.constant 0 : index
    %c0_125 = arith.constant 0 : index
    %182 = vector.load %arg11[%c0_123, %c0_124, %c0_125] : memref<3x32x32xf32, #tpu.memory_space<vmem>>, vector<1x32x32xf32>
    %183 = vector.shape_cast %182 : vector<1x32x32xf32> to vector<32x32xf32>
    %cst_126 = arith.constant dense<0.000000e+00> : vector<2x32xf32>
    %184 = tpu.matmul %181, %183, %cst_126 {dimension_numbers = #tpu.dot_dimension_numbers<[1], [0], [0], [1], [0, 0, 1, 1], [], []>} : vector<2x32xf32>, vector<32x32xf32>, vector<2x32xf32> -> vector<2x32xf32>
    %c0_127 = arith.constant 0 : index
    %c0_128 = arith.constant 0 : index
    %c0_129 = arith.constant 0 : index
    %185 = vector.load %arg13[%c0_127, %c0_128, %c0_129] : memref<3x1x32xf32, #tpu.memory_space<vmem>>, vector<1x1x32xf32>
    %186 = vector.shape_cast %185 : vector<1x1x32xf32> to vector<1x32xf32>
    %187 = vector.broadcast %186 : vector<1x32xf32> to vector<2x32xf32>
    %188 = arith.addf %184, %187 : vector<2x32xf32>
    %c1_130 = arith.constant 1 : index
    %c0_131 = arith.constant 0 : index
    %c0_132 = arith.constant 0 : index
    %189 = vector.load %arg11[%c1_130, %c0_131, %c0_132] : memref<3x32x32xf32, #tpu.memory_space<vmem>>, vector<1x32x32xf32>
    %190 = vector.shape_cast %189 : vector<1x32x32xf32> to vector<32x32xf32>
    %cst_133 = arith.constant dense<0.000000e+00> : vector<2x32xf32>
    %191 = tpu.matmul %181, %190, %cst_133 {dimension_numbers = #tpu.dot_dimension_numbers<[1], [0], [0], [1], [0, 0, 1, 1], [], []>} : vector<2x32xf32>, vector<32x32xf32>, vector<2x32xf32> -> vector<2x32xf32>
    %c1_134 = arith.constant 1 : index
    %c0_135 = arith.constant 0 : index
    %c0_136 = arith.constant 0 : index
    %192 = vector.load %arg13[%c1_134, %c0_135, %c0_136] : memref<3x1x32xf32, #tpu.memory_space<vmem>>, vector<1x1x32xf32>
    %193 = vector.shape_cast %192 : vector<1x1x32xf32> to vector<1x32xf32>
    %194 = vector.broadcast %193 : vector<1x32xf32> to vector<2x32xf32>
    %195 = arith.addf %191, %194 : vector<2x32xf32>
    %c2_137 = arith.constant 2 : index
    %c0_138 = arith.constant 0 : index
    %c0_139 = arith.constant 0 : index
    %196 = vector.load %arg11[%c2_137, %c0_138, %c0_139] : memref<3x32x32xf32, #tpu.memory_space<vmem>>, vector<1x32x32xf32>
    %197 = vector.shape_cast %196 : vector<1x32x32xf32> to vector<32x32xf32>
    %cst_140 = arith.constant dense<0.000000e+00> : vector<2x32xf32>
    %198 = tpu.matmul %181, %197, %cst_140 {dimension_numbers = #tpu.dot_dimension_numbers<[1], [0], [0], [1], [0, 0, 1, 1], [], []>} : vector<2x32xf32>, vector<32x32xf32>, vector<2x32xf32> -> vector<2x32xf32>
    %c2_141 = arith.constant 2 : index
    %c0_142 = arith.constant 0 : index
    %c0_143 = arith.constant 0 : index
    %199 = vector.load %arg13[%c2_141, %c0_142, %c0_143] : memref<3x1x32xf32, #tpu.memory_space<vmem>>, vector<1x1x32xf32>
    %200 = vector.shape_cast %199 : vector<1x1x32xf32> to vector<1x32xf32>
    %201 = vector.broadcast %200 : vector<1x32xf32> to vector<2x32xf32>
    %202 = arith.addf %198, %201 : vector<2x32xf32>
    %c0_144 = arith.constant 0 : index
    %c0_145 = arith.constant 0 : index
    %c0_146 = arith.constant 0 : index
    %203 = vector.load %arg12[%c0_144, %c0_145, %c0_146] : memref<3x32x32xf32, #tpu.memory_space<vmem>>, vector<1x32x32xf32>
    %204 = vector.shape_cast %203 : vector<1x32x32xf32> to vector<32x32xf32>
    %cst_147 = arith.constant dense<0.000000e+00> : vector<2x32xf32>
    %205 = tpu.matmul %120, %204, %cst_147 {dimension_numbers = #tpu.dot_dimension_numbers<[1], [0], [0], [1], [0, 0, 1, 1], [], []>} : vector<2x32xf32>, vector<32x32xf32>, vector<2x32xf32> -> vector<2x32xf32>
    %c0_148 = arith.constant 0 : index
    %c0_149 = arith.constant 0 : index
    %c0_150 = arith.constant 0 : index
    %206 = vector.load %arg14[%c0_148, %c0_149, %c0_150] : memref<3x1x32xf32, #tpu.memory_space<vmem>>, vector<1x1x32xf32>
    %207 = vector.shape_cast %206 : vector<1x1x32xf32> to vector<1x32xf32>
    %208 = vector.broadcast %207 : vector<1x32xf32> to vector<2x32xf32>
    %209 = arith.addf %205, %208 : vector<2x32xf32>
    %c1_151 = arith.constant 1 : index
    %c0_152 = arith.constant 0 : index
    %c0_153 = arith.constant 0 : index
    %210 = vector.load %arg12[%c1_151, %c0_152, %c0_153] : memref<3x32x32xf32, #tpu.memory_space<vmem>>, vector<1x32x32xf32>
    %211 = vector.shape_cast %210 : vector<1x32x32xf32> to vector<32x32xf32>
    %cst_154 = arith.constant dense<0.000000e+00> : vector<2x32xf32>
    %212 = tpu.matmul %120, %211, %cst_154 {dimension_numbers = #tpu.dot_dimension_numbers<[1], [0], [0], [1], [0, 0, 1, 1], [], []>} : vector<2x32xf32>, vector<32x32xf32>, vector<2x32xf32> -> vector<2x32xf32>
    %c1_155 = arith.constant 1 : index
    %c0_156 = arith.constant 0 : index
    %c0_157 = arith.constant 0 : index
    %213 = vector.load %arg14[%c1_155, %c0_156, %c0_157] : memref<3x1x32xf32, #tpu.memory_space<vmem>>, vector<1x1x32xf32>
    %214 = vector.shape_cast %213 : vector<1x1x32xf32> to vector<1x32xf32>
    %215 = vector.broadcast %214 : vector<1x32xf32> to vector<2x32xf32>
    %216 = arith.addf %212, %215 : vector<2x32xf32>
    %c2_158 = arith.constant 2 : index
    %c0_159 = arith.constant 0 : index
    %c0_160 = arith.constant 0 : index
    %217 = vector.load %arg12[%c2_158, %c0_159, %c0_160] : memref<3x32x32xf32, #tpu.memory_space<vmem>>, vector<1x32x32xf32>
    %218 = vector.shape_cast %217 : vector<1x32x32xf32> to vector<32x32xf32>
    %cst_161 = arith.constant dense<0.000000e+00> : vector<2x32xf32>
    %219 = tpu.matmul %120, %218, %cst_161 {dimension_numbers = #tpu.dot_dimension_numbers<[1], [0], [0], [1], [0, 0, 1, 1], [], []>} : vector<2x32xf32>, vector<32x32xf32>, vector<2x32xf32> -> vector<2x32xf32>
    %c2_162 = arith.constant 2 : index
    %c0_163 = arith.constant 0 : index
    %c0_164 = arith.constant 0 : index
    %220 = vector.load %arg14[%c2_162, %c0_163, %c0_164] : memref<3x1x32xf32, #tpu.memory_space<vmem>>, vector<1x1x32xf32>
    %221 = vector.shape_cast %220 : vector<1x1x32xf32> to vector<1x32xf32>
    %222 = vector.broadcast %221 : vector<1x32xf32> to vector<2x32xf32>
    %223 = arith.addf %219, %222 : vector<2x32xf32>
    %224 = arith.addf %188, %209 : vector<2x32xf32>
    %225 = arith.negf %224 : vector<2x32xf32>
    %226 = math.exp %225 : vector<2x32xf32>
    %cst_165 = arith.constant 1.000000e+00 : f32
    %227 = vector.broadcast %cst_165 : f32 to vector<2x32xf32>
    %228 = arith.addf %227, %226 : vector<2x32xf32>
    %229 = arith.divf %227, %228 : vector<2x32xf32>
    %230 = arith.addf %195, %216 : vector<2x32xf32>
    %231 = arith.negf %230 : vector<2x32xf32>
    %232 = math.exp %231 : vector<2x32xf32>
    %cst_166 = arith.constant 1.000000e+00 : f32
    %233 = vector.broadcast %cst_166 : f32 to vector<2x32xf32>
    %234 = arith.addf %233, %232 : vector<2x32xf32>
    %235 = arith.divf %233, %234 : vector<2x32xf32>
    %236 = arith.mulf %229, %223 : vector<2x32xf32>
    %237 = arith.addf %202, %236 : vector<2x32xf32>
    %238 = math.tanh %237 : vector<2x32xf32>
    %cst_167 = arith.constant 1.000000e+00 : f32
    %239 = vector.broadcast %cst_167 : f32 to vector<2x32xf32>
    %240 = arith.subf %239, %235 : vector<2x32xf32>
    %241 = arith.mulf %240, %238 : vector<2x32xf32>
    %242 = arith.mulf %235, %120 : vector<2x32xf32>
    %243 = arith.addf %241, %242 : vector<2x32xf32>
    %c0_168 = arith.constant 0 : index
    %c0_169 = arith.constant 0 : index
    %244 = vector.load %arg15[%c0_168, %c0_169] : memref<32x16xf32, #tpu.memory_space<vmem>>, vector<32x16xf32>
    %cst_170 = arith.constant dense<0.000000e+00> : vector<2x16xf32>
    %245 = tpu.matmul %243, %244, %cst_170 {dimension_numbers = #tpu.dot_dimension_numbers<[1], [0], [0], [1], [0, 0, 1, 1], [], []>} : vector<2x32xf32>, vector<32x16xf32>, vector<2x16xf32> -> vector<2x16xf32>
    %c0_171 = arith.constant 0 : index
    %c0_172 = arith.constant 0 : index
    %246 = vector.load %arg16[%c0_171, %c0_172] : memref<1x16xf32, #tpu.memory_space<vmem>>, vector<1x16xf32>
    %247 = vector.broadcast %246 : vector<1x16xf32> to vector<2x16xf32>
    %248 = arith.addf %245, %247 : vector<2x16xf32>
    %c0_173 = arith.constant 0 : index
    %c1_174 = arith.constant 1 : index
    %c0_175 = arith.constant 0 : index
    %249 = vector.load %arg17[%c0_173, %c1_174, %c0_175] : memref<2x5x16xf32, #tpu.memory_space<vmem>>, vector<2x1x16xf32>
    %250 = vector.shape_cast %249 : vector<2x1x16xf32> to vector<2x16xf32>
    %251 = vector.shape_cast %248 : vector<2x16xf32> to vector<2x1x16xf32>
    tpu.vector_store %arg17[%c0_173, %c1_174, %c0_175], %251 {strides = array<i32>} : memref<2x5x16xf32, #tpu.memory_space<vmem>>, vector<2x1x16xf32>,
    %cst_176 = arith.constant dense<0xFF800000> : vector<2xf32>
    %252 = vector.multi_reduction <maximumf>, %248, %cst_176 [1] : vector<2x16xf32> to vector<2xf32>
    %253 = vector.shape_cast %252 : vector<2xf32> to vector<2x1xf32>
    %254 = vector.broadcast %253 : vector<2x1xf32> to vector<2x16xf32>
    %255 = arith.cmpf oeq, %248, %254 : vector<2x16xf32>
    %cst_177 = arith.constant -1.600000e+01 : f32
    %256 = vector.broadcast %cst_177 : f32 to vector<2x16xf32>
    %257 = arith.select %255, %12, %256 : vector<2x16xi1>, vector<2x16xf32>
    %cst_178 = arith.constant dense<0xFF800000> : vector<2xf32>
    %258 = vector.multi_reduction <maximumf>, %257, %cst_178 [1] : vector<2x16xf32> to vector<2xf32>
    %259 = vector.shape_cast %258 : vector<2xf32> to vector<2x1xf32>
    %260 = vector.broadcast %259 : vector<2x1xf32> to vector<2x16xf32>
    %261 = arith.cmpf oeq, %12, %260 : vector<2x16xf32>
    %262 = arith.extui %261 : vector<2x16xi1> to vector<2x16xi32>
    %263 = arith.sitofp %262 : vector<2x16xi32> to vector<2x16xf32>
    %c0_179 = arith.constant 0 : index
    %c0_180 = arith.constant 0 : index
    %264 = vector.load %arg1[%c0_179, %c0_180] : memref<16x32xf32, #tpu.memory_space<vmem>>, vector<16x32xf32>
    %cst_181 = arith.constant dense<0.000000e+00> : vector<2x32xf32>
    %265 = tpu.matmul %263, %264, %cst_181 {dimension_numbers = #tpu.dot_dimension_numbers<[1], [0], [0], [1], [0, 0, 1, 1], [], []>} : vector<2x16xf32>, vector<16x32xf32>, vector<2x32xf32> -> vector<2x32xf32>
    %c0_182 = arith.constant 0 : index
    %c0_183 = arith.constant 0 : index
    %266 = vector.load %arg5[%c0_182, %c0_183] : memref<32x32xf32, #tpu.memory_space<vmem>>, vector<32x32xf32>
    %cst_184 = arith.constant dense<0.000000e+00> : vector<2x32xf32>
    %267 = tpu.matmul %243, %266, %cst_184 {dimension_numbers = #tpu.dot_dimension_numbers<[1], [0], [0], [1], [0, 0, 1, 1], [], []>} : vector<2x32xf32>, vector<32x32xf32>, vector<2x32xf32> -> vector<2x32xf32>
    %c0_185 = arith.constant 0 : index
    %c0_186 = arith.constant 0 : index
    %268 = vector.load %arg6[%c0_185, %c0_186] : memref<1x32xf32, #tpu.memory_space<vmem>>, vector<1x32xf32>
    %269 = vector.broadcast %268 : vector<1x32xf32> to vector<2x32xf32>
    %270 = arith.addf %267, %269 : vector<2x32xf32>
    %c0_187 = arith.constant 0 : index
    %c0_188 = arith.constant 0 : index
    %c0_189 = arith.constant 0 : index
    %271 = vector.load %arg18[%c0_187, %c0_188, %c0_189] : memref<2x64x32xf32, #tpu.memory_space<vmem>>, vector<2x64x32xf32>
    %272 = vector.shape_cast %270 : vector<2x32xf32> to vector<2x1x32xf32>
    %273 = vector.broadcast %272 : vector<2x1x32xf32> to vector<2x64x32xf32>
    %274 = arith.addf %271, %273 : vector<2x64x32xf32>
    %275 = math.tanh %274 : vector<2x64x32xf32>
    %c0_190 = arith.constant 0 : index
    %c0_191 = arith.constant 0 : index
    %276 = vector.load %arg7[%c0_190, %c0_191] : memref<1x32xf32, #tpu.memory_space<vmem>>, vector<1x32xf32>
    %277 = vector.shape_cast %276 : vector<1x32xf32> to vector<1x1x32xf32>
    %278 = vector.broadcast %277 : vector<1x1x32xf32> to vector<2x64x32xf32>
    %279 = arith.mulf %275, %278 : vector<2x64x32xf32>
    %cst_192 = arith.constant dense<0.000000e+00> : vector<2x64xf32>
    %280 = vector.multi_reduction <add>, %279, %cst_192 [2] : vector<2x64x32xf32> to vector<2x64xf32>
    %cst_193 = arith.constant dense<0xFF800000> : vector<2xf32>
    %281 = vector.multi_reduction <maximumf>, %280, %cst_193 [1] : vector<2x64xf32> to vector<2xf32>
    %282 = vector.shape_cast %281 : vector<2xf32> to vector<2x1xf32>
    %283 = vector.broadcast %282 : vector<2x1xf32> to vector<2x64xf32>
    %284 = arith.subf %280, %283 : vector<2x64xf32>
    %285 = math.exp %284 : vector<2x64xf32>
    %cst_194 = arith.constant dense<0.000000e+00> : vector<2xf32>
    %286 = vector.multi_reduction <add>, %285, %cst_194 [1] : vector<2x64xf32> to vector<2xf32>
    %287 = vector.shape_cast %286 : vector<2xf32> to vector<2x1xf32>
    %288 = vector.broadcast %287 : vector<2x1xf32> to vector<2x64xf32>
    %289 = arith.divf %285, %288 : vector<2x64xf32>
    %290 = vector.shape_cast %289 : vector<2x64xf32> to vector<2x64x1xf32>
    %c0_195 = arith.constant 0 : index
    %c0_196 = arith.constant 0 : index
    %c0_197 = arith.constant 0 : index
    %291 = vector.load %arg2[%c0_195, %c0_196, %c0_197] : memref<2x64x32xf32, #tpu.memory_space<vmem>>, vector<2x64x32xf32>
    %292 = vector.broadcast %290 : vector<2x64x1xf32> to vector<2x64x32xf32>
    %293 = arith.mulf %292, %291 : vector<2x64x32xf32>
    %cst_198 = arith.constant dense<0.000000e+00> : vector<2x32xf32>
    %294 = vector.multi_reduction <add>, %293, %cst_198 [1] : vector<2x64x32xf32> to vector<2x32xf32>
    %c0_199 = arith.constant 0 : index
    %c0_200 = arith.constant 0 : index
    %295 = vector.load %arg8[%c0_199, %c0_200] : memref<32x32xf32, #tpu.memory_space<vmem>>, vector<32x32xf32>
    %cst_201 = arith.constant dense<0.000000e+00> : vector<2x32xf32>
    %296 = tpu.matmul %265, %295, %cst_201 {dimension_numbers = #tpu.dot_dimension_numbers<[1], [0], [0], [1], [0, 0, 1, 1], [], []>} : vector<2x32xf32>, vector<32x32xf32>, vector<2x32xf32> -> vector<2x32xf32>
    %c0_202 = arith.constant 0 : index
    %c0_203 = arith.constant 0 : index
    %297 = vector.load %arg9[%c0_202, %c0_203] : memref<32x32xf32, #tpu.memory_space<vmem>>, vector<32x32xf32>
    %cst_204 = arith.constant dense<0.000000e+00> : vector<2x32xf32>
    %298 = tpu.matmul %294, %297, %cst_204 {dimension_numbers = #tpu.dot_dimension_numbers<[1], [0], [0], [1], [0, 0, 1, 1], [], []>} : vector<2x32xf32>, vector<32x32xf32>, vector<2x32xf32> -> vector<2x32xf32>
    %299 = arith.addf %296, %298 : vector<2x32xf32>
    %c0_205 = arith.constant 0 : index
    %c0_206 = arith.constant 0 : index
    %300 = vector.load %arg10[%c0_205, %c0_206] : memref<1x32xf32, #tpu.memory_space<vmem>>, vector<1x32xf32>
    %301 = vector.broadcast %300 : vector<1x32xf32> to vector<2x32xf32>
    %302 = arith.addf %299, %301 : vector<2x32xf32>
    %cst_207 = arith.constant 0.000000e+00 : f32
    %303 = vector.broadcast %cst_207 : f32 to vector<2x32xf32>
    %304 = arith.maximumf %302, %303 : vector<2x32xf32>
    %c0_208 = arith.constant 0 : index
    %c0_209 = arith.constant 0 : index
    %c0_210 = arith.constant 0 : index
    %305 = vector.load %arg11[%c0_208, %c0_209, %c0_210] : memref<3x32x32xf32, #tpu.memory_space<vmem>>, vector<1x32x32xf32>
    %306 = vector.shape_cast %305 : vector<1x32x32xf32> to vector<32x32xf32>
    %cst_211 = arith.constant dense<0.000000e+00> : vector<2x32xf32>
    %307 = tpu.matmul %304, %306, %cst_211 {dimension_numbers = #tpu.dot_dimension_numbers<[1], [0], [0], [1], [0, 0, 1, 1], [], []>} : vector<2x32xf32>, vector<32x32xf32>, vector<2x32xf32> -> vector<2x32xf32>
    %c0_212 = arith.constant 0 : index
    %c0_213 = arith.constant 0 : index
    %c0_214 = arith.constant 0 : index
    %308 = vector.load %arg13[%c0_212, %c0_213, %c0_214] : memref<3x1x32xf32, #tpu.memory_space<vmem>>, vector<1x1x32xf32>
    %309 = vector.shape_cast %308 : vector<1x1x32xf32> to vector<1x32xf32>
    %310 = vector.broadcast %309 : vector<1x32xf32> to vector<2x32xf32>
    %311 = arith.addf %307, %310 : vector<2x32xf32>
    %c1_215 = arith.constant 1 : index
    %c0_216 = arith.constant 0 : index
    %c0_217 = arith.constant 0 : index
    %312 = vector.load %arg11[%c1_215, %c0_216, %c0_217] : memref<3x32x32xf32, #tpu.memory_space<vmem>>, vector<1x32x32xf32>
    %313 = vector.shape_cast %312 : vector<1x32x32xf32> to vector<32x32xf32>
    %cst_218 = arith.constant dense<0.000000e+00> : vector<2x32xf32>
    %314 = tpu.matmul %304, %313, %cst_218 {dimension_numbers = #tpu.dot_dimension_numbers<[1], [0], [0], [1], [0, 0, 1, 1], [], []>} : vector<2x32xf32>, vector<32x32xf32>, vector<2x32xf32> -> vector<2x32xf32>
    %c1_219 = arith.constant 1 : index
    %c0_220 = arith.constant 0 : index
    %c0_221 = arith.constant 0 : index
    %315 = vector.load %arg13[%c1_219, %c0_220, %c0_221] : memref<3x1x32xf32, #tpu.memory_space<vmem>>, vector<1x1x32xf32>
    %316 = vector.shape_cast %315 : vector<1x1x32xf32> to vector<1x32xf32>
    %317 = vector.broadcast %316 : vector<1x32xf32> to vector<2x32xf32>
    %318 = arith.addf %314, %317 : vector<2x32xf32>
    %c2_222 = arith.constant 2 : index
    %c0_223 = arith.constant 0 : index
    %c0_224 = arith.constant 0 : index
    %319 = vector.load %arg11[%c2_222, %c0_223, %c0_224] : memref<3x32x32xf32, #tpu.memory_space<vmem>>, vector<1x32x32xf32>
    %320 = vector.shape_cast %319 : vector<1x32x32xf32> to vector<32x32xf32>
    %cst_225 = arith.constant dense<0.000000e+00> : vector<2x32xf32>
    %321 = tpu.matmul %304, %320, %cst_225 {dimension_numbers = #tpu.dot_dimension_numbers<[1], [0], [0], [1], [0, 0, 1, 1], [], []>} : vector<2x32xf32>, vector<32x32xf32>, vector<2x32xf32> -> vector<2x32xf32>
    %c2_226 = arith.constant 2 : index
    %c0_227 = arith.constant 0 : index
    %c0_228 = arith.constant 0 : index
    %322 = vector.load %arg13[%c2_226, %c0_227, %c0_228] : memref<3x1x32xf32, #tpu.memory_space<vmem>>, vector<1x1x32xf32>
    %323 = vector.shape_cast %322 : vector<1x1x32xf32> to vector<1x32xf32>
    %324 = vector.broadcast %323 : vector<1x32xf32> to vector<2x32xf32>
    %325 = arith.addf %321, %324 : vector<2x32xf32>
    %c0_229 = arith.constant 0 : index
    %c0_230 = arith.constant 0 : index
    %c0_231 = arith.constant 0 : index
    %326 = vector.load %arg12[%c0_229, %c0_230, %c0_231] : memref<3x32x32xf32, #tpu.memory_space<vmem>>, vector<1x32x32xf32>
    %327 = vector.shape_cast %326 : vector<1x32x32xf32> to vector<32x32xf32>
    %cst_232 = arith.constant dense<0.000000e+00> : vector<2x32xf32>
    %328 = tpu.matmul %243, %327, %cst_232 {dimension_numbers = #tpu.dot_dimension_numbers<[1], [0], [0], [1], [0, 0, 1, 1], [], []>} : vector<2x32xf32>, vector<32x32xf32>, vector<2x32xf32> -> vector<2x32xf32>
    %c0_233 = arith.constant 0 : index
    %c0_234 = arith.constant 0 : index
    %c0_235 = arith.constant 0 : index
    %329 = vector.load %arg14[%c0_233, %c0_234, %c0_235] : memref<3x1x32xf32, #tpu.memory_space<vmem>>, vector<1x1x32xf32>
    %330 = vector.shape_cast %329 : vector<1x1x32xf32> to vector<1x32xf32>
    %331 = vector.broadcast %330 : vector<1x32xf32> to vector<2x32xf32>
    %332 = arith.addf %328, %331 : vector<2x32xf32>
    %c1_236 = arith.constant 1 : index
    %c0_237 = arith.constant 0 : index
    %c0_238 = arith.constant 0 : index
    %333 = vector.load %arg12[%c1_236, %c0_237, %c0_238] : memref<3x32x32xf32, #tpu.memory_space<vmem>>, vector<1x32x32xf32>
    %334 = vector.shape_cast %333 : vector<1x32x32xf32> to vector<32x32xf32>
    %cst_239 = arith.constant dense<0.000000e+00> : vector<2x32xf32>
    %335 = tpu.matmul %243, %334, %cst_239 {dimension_numbers = #tpu.dot_dimension_numbers<[1], [0], [0], [1], [0, 0, 1, 1], [], []>} : vector<2x32xf32>, vector<32x32xf32>, vector<2x32xf32> -> vector<2x32xf32>
    %c1_240 = arith.constant 1 : index
    %c0_241 = arith.constant 0 : index
    %c0_242 = arith.constant 0 : index
    %336 = vector.load %arg14[%c1_240, %c0_241, %c0_242] : memref<3x1x32xf32, #tpu.memory_space<vmem>>, vector<1x1x32xf32>
    %337 = vector.shape_cast %336 : vector<1x1x32xf32> to vector<1x32xf32>
    %338 = vector.broadcast %337 : vector<1x32xf32> to vector<2x32xf32>
    %339 = arith.addf %335, %338 : vector<2x32xf32>
    %c2_243 = arith.constant 2 : index
    %c0_244 = arith.constant 0 : index
    %c0_245 = arith.constant 0 : index
    %340 = vector.load %arg12[%c2_243, %c0_244, %c0_245] : memref<3x32x32xf32, #tpu.memory_space<vmem>>, vector<1x32x32xf32>
    %341 = vector.shape_cast %340 : vector<1x32x32xf32> to vector<32x32xf32>
    %cst_246 = arith.constant dense<0.000000e+00> : vector<2x32xf32>
    %342 = tpu.matmul %243, %341, %cst_246 {dimension_numbers = #tpu.dot_dimension_numbers<[1], [0], [0], [1], [0, 0, 1, 1], [], []>} : vector<2x32xf32>, vector<32x32xf32>, vector<2x32xf32> -> vector<2x32xf32>
    %c2_247 = arith.constant 2 : index
    %c0_248 = arith.constant 0 : index
    %c0_249 = arith.constant 0 : index
    %343 = vector.load %arg14[%c2_247, %c0_248, %c0_249] : memref<3x1x32xf32, #tpu.memory_space<vmem>>, vector<1x1x32xf32>
    %344 = vector.shape_cast %343 : vector<1x1x32xf32> to vector<1x32xf32>
    %345 = vector.broadcast %344 : vector<1x32xf32> to vector<2x32xf32>
    %346 = arith.addf %342, %345 : vector<2x32xf32>
    %347 = arith.addf %311, %332 : vector<2x32xf32>
    %348 = arith.negf %347 : vector<2x32xf32>
    %349 = math.exp %348 : vector<2x32xf32>
    %cst_250 = arith.constant 1.000000e+00 : f32
    %350 = vector.broadcast %cst_250 : f32 to vector<2x32xf32>
    %351 = arith.addf %350, %349 : vector<2x32xf32>
    %352 = arith.divf %350, %351 : vector<2x32xf32>
    %353 = arith.addf %318, %339 : vector<2x32xf32>
    %354 = arith.negf %353 : vector<2x32xf32>
    %355 = math.exp %354 : vector<2x32xf32>
    %cst_251 = arith.constant 1.000000e+00 : f32
    %356 = vector.broadcast %cst_251 : f32 to vector<2x32xf32>
    %357 = arith.addf %356, %355 : vector<2x32xf32>
    %358 = arith.divf %356, %357 : vector<2x32xf32>
    %359 = arith.mulf %352, %346 : vector<2x32xf32>
    %360 = arith.addf %325, %359 : vector<2x32xf32>
    %361 = math.tanh %360 : vector<2x32xf32>
    %cst_252 = arith.constant 1.000000e+00 : f32
    %362 = vector.broadcast %cst_252 : f32 to vector<2x32xf32>
    %363 = arith.subf %362, %358 : vector<2x32xf32>
    %364 = arith.mulf %363, %361 : vector<2x32xf32>
    %365 = arith.mulf %358, %243 : vector<2x32xf32>
    %366 = arith.addf %364, %365 : vector<2x32xf32>
    %c0_253 = arith.constant 0 : index
    %c0_254 = arith.constant 0 : index
    %367 = vector.load %arg15[%c0_253, %c0_254] : memref<32x16xf32, #tpu.memory_space<vmem>>, vector<32x16xf32>
    %cst_255 = arith.constant dense<0.000000e+00> : vector<2x16xf32>
    %368 = tpu.matmul %366, %367, %cst_255 {dimension_numbers = #tpu.dot_dimension_numbers<[1], [0], [0], [1], [0, 0, 1, 1], [], []>} : vector<2x32xf32>, vector<32x16xf32>, vector<2x16xf32> -> vector<2x16xf32>
    %c0_256 = arith.constant 0 : index
    %c0_257 = arith.constant 0 : index
    %369 = vector.load %arg16[%c0_256, %c0_257] : memref<1x16xf32, #tpu.memory_space<vmem>>, vector<1x16xf32>
    %370 = vector.broadcast %369 : vector<1x16xf32> to vector<2x16xf32>
    %371 = arith.addf %368, %370 : vector<2x16xf32>
    %c0_258 = arith.constant 0 : index
    %c2_259 = arith.constant 2 : index
    %c0_260 = arith.constant 0 : index
    %372 = vector.load %arg17[%c0_258, %c2_259, %c0_260] : memref<2x5x16xf32, #tpu.memory_space<vmem>>, vector<2x1x16xf32>
    %373 = vector.shape_cast %372 : vector<2x1x16xf32> to vector<2x16xf32>
    %374 = vector.shape_cast %371 : vector<2x16xf32> to vector<2x1x16xf32>
    tpu.vector_store %arg17[%c0_258, %c2_259, %c0_260], %374 {strides = array<i32>} : memref<2x5x16xf32, #tpu.memory_space<vmem>>, vector<2x1x16xf32>,
    %cst_261 = arith.constant dense<0xFF800000> : vector<2xf32>
    %375 = vector.multi_reduction <maximumf>, %371, %cst_261 [1] : vector<2x16xf32> to vector<2xf32>
    %376 = vector.shape_cast %375 : vector<2xf32> to vector<2x1xf32>
    %377 = vector.broadcast %376 : vector<2x1xf32> to vector<2x16xf32>
    %378 = arith.cmpf oeq, %371, %377 : vector<2x16xf32>
    %cst_262 = arith.constant -1.600000e+01 : f32
    %379 = vector.broadcast %cst_262 : f32 to vector<2x16xf32>
    %380 = arith.select %378, %12, %379 : vector<2x16xi1>, vector<2x16xf32>
    %cst_263 = arith.constant dense<0xFF800000> : vector<2xf32>
    %381 = vector.multi_reduction <maximumf>, %380, %cst_263 [1] : vector<2x16xf32> to vector<2xf32>
    %382 = vector.shape_cast %381 : vector<2xf32> to vector<2x1xf32>
    %383 = vector.broadcast %382 : vector<2x1xf32> to vector<2x16xf32>
    %384 = arith.cmpf oeq, %12, %383 : vector<2x16xf32>
    %385 = arith.extui %384 : vector<2x16xi1> to vector<2x16xi32>
    %386 = arith.sitofp %385 : vector<2x16xi32> to vector<2x16xf32>
    %c0_264 = arith.constant 0 : index
    %c0_265 = arith.constant 0 : index
    %387 = vector.load %arg1[%c0_264, %c0_265] : memref<16x32xf32, #tpu.memory_space<vmem>>, vector<16x32xf32>
    %cst_266 = arith.constant dense<0.000000e+00> : vector<2x32xf32>
    %388 = tpu.matmul %386, %387, %cst_266 {dimension_numbers = #tpu.dot_dimension_numbers<[1], [0], [0], [1], [0, 0, 1, 1], [], []>} : vector<2x16xf32>, vector<16x32xf32>, vector<2x32xf32> -> vector<2x32xf32>
    %c0_267 = arith.constant 0 : index
    %c0_268 = arith.constant 0 : index
    %389 = vector.load %arg5[%c0_267, %c0_268] : memref<32x32xf32, #tpu.memory_space<vmem>>, vector<32x32xf32>
    %cst_269 = arith.constant dense<0.000000e+00> : vector<2x32xf32>
    %390 = tpu.matmul %366, %389, %cst_269 {dimension_numbers = #tpu.dot_dimension_numbers<[1], [0], [0], [1], [0, 0, 1, 1], [], []>} : vector<2x32xf32>, vector<32x32xf32>, vector<2x32xf32> -> vector<2x32xf32>
    %c0_270 = arith.constant 0 : index
    %c0_271 = arith.constant 0 : index
    %391 = vector.load %arg6[%c0_270, %c0_271] : memref<1x32xf32, #tpu.memory_space<vmem>>, vector<1x32xf32>
    %392 = vector.broadcast %391 : vector<1x32xf32> to vector<2x32xf32>
    %393 = arith.addf %390, %392 : vector<2x32xf32>
    %c0_272 = arith.constant 0 : index
    %c0_273 = arith.constant 0 : index
    %c0_274 = arith.constant 0 : index
    %394 = vector.load %arg18[%c0_272, %c0_273, %c0_274] : memref<2x64x32xf32, #tpu.memory_space<vmem>>, vector<2x64x32xf32>
    %395 = vector.shape_cast %393 : vector<2x32xf32> to vector<2x1x32xf32>
    %396 = vector.broadcast %395 : vector<2x1x32xf32> to vector<2x64x32xf32>
    %397 = arith.addf %394, %396 : vector<2x64x32xf32>
    %398 = math.tanh %397 : vector<2x64x32xf32>
    %c0_275 = arith.constant 0 : index
    %c0_276 = arith.constant 0 : index
    %399 = vector.load %arg7[%c0_275, %c0_276] : memref<1x32xf32, #tpu.memory_space<vmem>>, vector<1x32xf32>
    %400 = vector.shape_cast %399 : vector<1x32xf32> to vector<1x1x32xf32>
    %401 = vector.broadcast %400 : vector<1x1x32xf32> to vector<2x64x32xf32>
    %402 = arith.mulf %398, %401 : vector<2x64x32xf32>
    %cst_277 = arith.constant dense<0.000000e+00> : vector<2x64xf32>
    %403 = vector.multi_reduction <add>, %402, %cst_277 [2] : vector<2x64x32xf32> to vector<2x64xf32>
    %cst_278 = arith.constant dense<0xFF800000> : vector<2xf32>
    %404 = vector.multi_reduction <maximumf>, %403, %cst_278 [1] : vector<2x64xf32> to vector<2xf32>
    %405 = vector.shape_cast %404 : vector<2xf32> to vector<2x1xf32>
    %406 = vector.broadcast %405 : vector<2x1xf32> to vector<2x64xf32>
    %407 = arith.subf %403, %406 : vector<2x64xf32>
    %408 = math.exp %407 : vector<2x64xf32>
    %cst_279 = arith.constant dense<0.000000e+00> : vector<2xf32>
    %409 = vector.multi_reduction <add>, %408, %cst_279 [1] : vector<2x64xf32> to vector<2xf32>
    %410 = vector.shape_cast %409 : vector<2xf32> to vector<2x1xf32>
    %411 = vector.broadcast %410 : vector<2x1xf32> to vector<2x64xf32>
    %412 = arith.divf %408, %411 : vector<2x64xf32>
    %413 = vector.shape_cast %412 : vector<2x64xf32> to vector<2x64x1xf32>
    %c0_280 = arith.constant 0 : index
    %c0_281 = arith.constant 0 : index
    %c0_282 = arith.constant 0 : index
    %414 = vector.load %arg2[%c0_280, %c0_281, %c0_282] : memref<2x64x32xf32, #tpu.memory_space<vmem>>, vector<2x64x32xf32>
    %415 = vector.broadcast %413 : vector<2x64x1xf32> to vector<2x64x32xf32>
    %416 = arith.mulf %415, %414 : vector<2x64x32xf32>
    %cst_283 = arith.constant dense<0.000000e+00> : vector<2x32xf32>
    %417 = vector.multi_reduction <add>, %416, %cst_283 [1] : vector<2x64x32xf32> to vector<2x32xf32>
    %c0_284 = arith.constant 0 : index
    %c0_285 = arith.constant 0 : index
    %418 = vector.load %arg8[%c0_284, %c0_285] : memref<32x32xf32, #tpu.memory_space<vmem>>, vector<32x32xf32>
    %cst_286 = arith.constant dense<0.000000e+00> : vector<2x32xf32>
    %419 = tpu.matmul %388, %418, %cst_286 {dimension_numbers = #tpu.dot_dimension_numbers<[1], [0], [0], [1], [0, 0, 1, 1], [], []>} : vector<2x32xf32>, vector<32x32xf32>, vector<2x32xf32> -> vector<2x32xf32>
    %c0_287 = arith.constant 0 : index
    %c0_288 = arith.constant 0 : index
    %420 = vector.load %arg9[%c0_287, %c0_288] : memref<32x32xf32, #tpu.memory_space<vmem>>, vector<32x32xf32>
    %cst_289 = arith.constant dense<0.000000e+00> : vector<2x32xf32>
    %421 = tpu.matmul %417, %420, %cst_289 {dimension_numbers = #tpu.dot_dimension_numbers<[1], [0], [0], [1], [0, 0, 1, 1], [], []>} : vector<2x32xf32>, vector<32x32xf32>, vector<2x32xf32> -> vector<2x32xf32>
    %422 = arith.addf %419, %421 : vector<2x32xf32>
    %c0_290 = arith.constant 0 : index
    %c0_291 = arith.constant 0 : index
    %423 = vector.load %arg10[%c0_290, %c0_291] : memref<1x32xf32, #tpu.memory_space<vmem>>, vector<1x32xf32>
    %424 = vector.broadcast %423 : vector<1x32xf32> to vector<2x32xf32>
    %425 = arith.addf %422, %424 : vector<2x32xf32>
    %cst_292 = arith.constant 0.000000e+00 : f32
    %426 = vector.broadcast %cst_292 : f32 to vector<2x32xf32>
    %427 = arith.maximumf %425, %426 : vector<2x32xf32>
    %c0_293 = arith.constant 0 : index
    %c0_294 = arith.constant 0 : index
    %c0_295 = arith.constant 0 : index
    %428 = vector.load %arg11[%c0_293, %c0_294, %c0_295] : memref<3x32x32xf32, #tpu.memory_space<vmem>>, vector<1x32x32xf32>
    %429 = vector.shape_cast %428 : vector<1x32x32xf32> to vector<32x32xf32>
    %cst_296 = arith.constant dense<0.000000e+00> : vector<2x32xf32>
    %430 = tpu.matmul %427, %429, %cst_296 {dimension_numbers = #tpu.dot_dimension_numbers<[1], [0], [0], [1], [0, 0, 1, 1], [], []>} : vector<2x32xf32>, vector<32x32xf32>, vector<2x32xf32> -> vector<2x32xf32>
    %c0_297 = arith.constant 0 : index
    %c0_298 = arith.constant 0 : index
    %c0_299 = arith.constant 0 : index
    %431 = vector.load %arg13[%c0_297, %c0_298, %c0_299] : memref<3x1x32xf32, #tpu.memory_space<vmem>>, vector<1x1x32xf32>
    %432 = vector.shape_cast %431 : vector<1x1x32xf32> to vector<1x32xf32>
    %433 = vector.broadcast %432 : vector<1x32xf32> to vector<2x32xf32>
    %434 = arith.addf %430, %433 : vector<2x32xf32>
    %c1_300 = arith.constant 1 : index
    %c0_301 = arith.constant 0 : index
    %c0_302 = arith.constant 0 : index
    %435 = vector.load %arg11[%c1_300, %c0_301, %c0_302] : memref<3x32x32xf32, #tpu.memory_space<vmem>>, vector<1x32x32xf32>
    %436 = vector.shape_cast %435 : vector<1x32x32xf32> to vector<32x32xf32>
    %cst_303 = arith.constant dense<0.000000e+00> : vector<2x32xf32>
    %437 = tpu.matmul %427, %436, %cst_303 {dimension_numbers = #tpu.dot_dimension_numbers<[1], [0], [0], [1], [0, 0, 1, 1], [], []>} : vector<2x32xf32>, vector<32x32xf32>, vector<2x32xf32> -> vector<2x32xf32>
    %c1_304 = arith.constant 1 : index
    %c0_305 = arith.constant 0 : index
    %c0_306 = arith.constant 0 : index
    %438 = vector.load %arg13[%c1_304, %c0_305, %c0_306] : memref<3x1x32xf32, #tpu.memory_space<vmem>>, vector<1x1x32xf32>
    %439 = vector.shape_cast %438 : vector<1x1x32xf32> to vector<1x32xf32>
    %440 = vector.broadcast %439 : vector<1x32xf32> to vector<2x32xf32>
    %441 = arith.addf %437, %440 : vector<2x32xf32>
    %c2_307 = arith.constant 2 : index
    %c0_308 = arith.constant 0 : index
    %c0_309 = arith.constant 0 : index
    %442 = vector.load %arg11[%c2_307, %c0_308, %c0_309] : memref<3x32x32xf32, #tpu.memory_space<vmem>>, vector<1x32x32xf32>
    %443 = vector.shape_cast %442 : vector<1x32x32xf32> to vector<32x32xf32>
    %cst_310 = arith.constant dense<0.000000e+00> : vector<2x32xf32>
    %444 = tpu.matmul %427, %443, %cst_310 {dimension_numbers = #tpu.dot_dimension_numbers<[1], [0], [0], [1], [0, 0, 1, 1], [], []>} : vector<2x32xf32>, vector<32x32xf32>, vector<2x32xf32> -> vector<2x32xf32>
    %c2_311 = arith.constant 2 : index
    %c0_312 = arith.constant 0 : index
    %c0_313 = arith.constant 0 : index
    %445 = vector.load %arg13[%c2_311, %c0_312, %c0_313] : memref<3x1x32xf32, #tpu.memory_space<vmem>>, vector<1x1x32xf32>
    %446 = vector.shape_cast %445 : vector<1x1x32xf32> to vector<1x32xf32>
    %447 = vector.broadcast %446 : vector<1x32xf32> to vector<2x32xf32>
    %448 = arith.addf %444, %447 : vector<2x32xf32>
    %c0_314 = arith.constant 0 : index
    %c0_315 = arith.constant 0 : index
    %c0_316 = arith.constant 0 : index
    %449 = vector.load %arg12[%c0_314, %c0_315, %c0_316] : memref<3x32x32xf32, #tpu.memory_space<vmem>>, vector<1x32x32xf32>
    %450 = vector.shape_cast %449 : vector<1x32x32xf32> to vector<32x32xf32>
    %cst_317 = arith.constant dense<0.000000e+00> : vector<2x32xf32>
    %451 = tpu.matmul %366, %450, %cst_317 {dimension_numbers = #tpu.dot_dimension_numbers<[1], [0], [0], [1], [0, 0, 1, 1], [], []>} : vector<2x32xf32>, vector<32x32xf32>, vector<2x32xf32> -> vector<2x32xf32>
    %c0_318 = arith.constant 0 : index
    %c0_319 = arith.constant 0 : index
    %c0_320 = arith.constant 0 : index
    %452 = vector.load %arg14[%c0_318, %c0_319, %c0_320] : memref<3x1x32xf32, #tpu.memory_space<vmem>>, vector<1x1x32xf32>
    %453 = vector.shape_cast %452 : vector<1x1x32xf32> to vector<1x32xf32>
    %454 = vector.broadcast %453 : vector<1x32xf32> to vector<2x32xf32>
    %455 = arith.addf %451, %454 : vector<2x32xf32>
    %c1_321 = arith.constant 1 : index
    %c0_322 = arith.constant 0 : index
    %c0_323 = arith.constant 0 : index
    %456 = vector.load %arg12[%c1_321, %c0_322, %c0_323] : memref<3x32x32xf32, #tpu.memory_space<vmem>>, vector<1x32x32xf32>
    %457 = vector.shape_cast %456 : vector<1x32x32xf32> to vector<32x32xf32>
    %cst_324 = arith.constant dense<0.000000e+00> : vector<2x32xf32>
    %458 = tpu.matmul %366, %457, %cst_324 {dimension_numbers = #tpu.dot_dimension_numbers<[1], [0], [0], [1], [0, 0, 1, 1], [], []>} : vector<2x32xf32>, vector<32x32xf32>, vector<2x32xf32> -> vector<2x32xf32>
    %c1_325 = arith.constant 1 : index
    %c0_326 = arith.constant 0 : index
    %c0_327 = arith.constant 0 : index
    %459 = vector.load %arg14[%c1_325, %c0_326, %c0_327] : memref<3x1x32xf32, #tpu.memory_space<vmem>>, vector<1x1x32xf32>
    %460 = vector.shape_cast %459 : vector<1x1x32xf32> to vector<1x32xf32>
    %461 = vector.broadcast %460 : vector<1x32xf32> to vector<2x32xf32>
    %462 = arith.addf %458, %461 : vector<2x32xf32>
    %c2_328 = arith.constant 2 : index
    %c0_329 = arith.constant 0 : index
    %c0_330 = arith.constant 0 : index
    %463 = vector.load %arg12[%c2_328, %c0_329, %c0_330] : memref<3x32x32xf32, #tpu.memory_space<vmem>>, vector<1x32x32xf32>
    %464 = vector.shape_cast %463 : vector<1x32x32xf32> to vector<32x32xf32>
    %cst_331 = arith.constant dense<0.000000e+00> : vector<2x32xf32>
    %465 = tpu.matmul %366, %464, %cst_331 {dimension_numbers = #tpu.dot_dimension_numbers<[1], [0], [0], [1], [0, 0, 1, 1], [], []>} : vector<2x32xf32>, vector<32x32xf32>, vector<2x32xf32> -> vector<2x32xf32>
    %c2_332 = arith.constant 2 : index
    %c0_333 = arith.constant 0 : index
    %c0_334 = arith.constant 0 : index
    %466 = vector.load %arg14[%c2_332, %c0_333, %c0_334] : memref<3x1x32xf32, #tpu.memory_space<vmem>>, vector<1x1x32xf32>
    %467 = vector.shape_cast %466 : vector<1x1x32xf32> to vector<1x32xf32>
    %468 = vector.broadcast %467 : vector<1x32xf32> to vector<2x32xf32>
    %469 = arith.addf %465, %468 : vector<2x32xf32>
    %470 = arith.addf %434, %455 : vector<2x32xf32>
    %471 = arith.negf %470 : vector<2x32xf32>
    %472 = math.exp %471 : vector<2x32xf32>
    %cst_335 = arith.constant 1.000000e+00 : f32
    %473 = vector.broadcast %cst_335 : f32 to vector<2x32xf32>
    %474 = arith.addf %473, %472 : vector<2x32xf32>
    %475 = arith.divf %473, %474 : vector<2x32xf32>
    %476 = arith.addf %441, %462 : vector<2x32xf32>
    %477 = arith.negf %476 : vector<2x32xf32>
    %478 = math.exp %477 : vector<2x32xf32>
    %cst_336 = arith.constant 1.000000e+00 : f32
    %479 = vector.broadcast %cst_336 : f32 to vector<2x32xf32>
    %480 = arith.addf %479, %478 : vector<2x32xf32>
    %481 = arith.divf %479, %480 : vector<2x32xf32>
    %482 = arith.mulf %475, %469 : vector<2x32xf32>
    %483 = arith.addf %448, %482 : vector<2x32xf32>
    %484 = math.tanh %483 : vector<2x32xf32>
    %cst_337 = arith.constant 1.000000e+00 : f32
    %485 = vector.broadcast %cst_337 : f32 to vector<2x32xf32>
    %486 = arith.subf %485, %481 : vector<2x32xf32>
    %487 = arith.mulf %486, %484 : vector<2x32xf32>
    %488 = arith.mulf %481, %366 : vector<2x32xf32>
    %489 = arith.addf %487, %488 : vector<2x32xf32>
    %c0_338 = arith.constant 0 : index
    %c0_339 = arith.constant 0 : index
    %490 = vector.load %arg15[%c0_338, %c0_339] : memref<32x16xf32, #tpu.memory_space<vmem>>, vector<32x16xf32>
    %cst_340 = arith.constant dense<0.000000e+00> : vector<2x16xf32>
    %491 = tpu.matmul %489, %490, %cst_340 {dimension_numbers = #tpu.dot_dimension_numbers<[1], [0], [0], [1], [0, 0, 1, 1], [], []>} : vector<2x32xf32>, vector<32x16xf32>, vector<2x16xf32> -> vector<2x16xf32>
    %c0_341 = arith.constant 0 : index
    %c0_342 = arith.constant 0 : index
    %492 = vector.load %arg16[%c0_341, %c0_342] : memref<1x16xf32, #tpu.memory_space<vmem>>, vector<1x16xf32>
    %493 = vector.broadcast %492 : vector<1x16xf32> to vector<2x16xf32>
    %494 = arith.addf %491, %493 : vector<2x16xf32>
    %c0_343 = arith.constant 0 : index
    %c3 = arith.constant 3 : index
    %c0_344 = arith.constant 0 : index
    %495 = vector.load %arg17[%c0_343, %c3, %c0_344] : memref<2x5x16xf32, #tpu.memory_space<vmem>>, vector<2x1x16xf32>
    %496 = vector.shape_cast %495 : vector<2x1x16xf32> to vector<2x16xf32>
    %497 = vector.shape_cast %494 : vector<2x16xf32> to vector<2x1x16xf32>
    tpu.vector_store %arg17[%c0_343, %c3, %c0_344], %497 {strides = array<i32>} : memref<2x5x16xf32, #tpu.memory_space<vmem>>, vector<2x1x16xf32>,
    %cst_345 = arith.constant dense<0xFF800000> : vector<2xf32>
    %498 = vector.multi_reduction <maximumf>, %494, %cst_345 [1] : vector<2x16xf32> to vector<2xf32>
    %499 = vector.shape_cast %498 : vector<2xf32> to vector<2x1xf32>
    %500 = vector.broadcast %499 : vector<2x1xf32> to vector<2x16xf32>
    %501 = arith.cmpf oeq, %494, %500 : vector<2x16xf32>
    %cst_346 = arith.constant -1.600000e+01 : f32
    %502 = vector.broadcast %cst_346 : f32 to vector<2x16xf32>
    %503 = arith.select %501, %12, %502 : vector<2x16xi1>, vector<2x16xf32>
    %cst_347 = arith.constant dense<0xFF800000> : vector<2xf32>
    %504 = vector.multi_reduction <maximumf>, %503, %cst_347 [1] : vector<2x16xf32> to vector<2xf32>
    %505 = vector.shape_cast %504 : vector<2xf32> to vector<2x1xf32>
    %506 = vector.broadcast %505 : vector<2x1xf32> to vector<2x16xf32>
    %507 = arith.cmpf oeq, %12, %506 : vector<2x16xf32>
    %508 = arith.extui %507 : vector<2x16xi1> to vector<2x16xi32>
    %509 = arith.sitofp %508 : vector<2x16xi32> to vector<2x16xf32>
    %c0_348 = arith.constant 0 : index
    %c0_349 = arith.constant 0 : index
    %510 = vector.load %arg1[%c0_348, %c0_349] : memref<16x32xf32, #tpu.memory_space<vmem>>, vector<16x32xf32>
    %cst_350 = arith.constant dense<0.000000e+00> : vector<2x32xf32>
    %511 = tpu.matmul %509, %510, %cst_350 {dimension_numbers = #tpu.dot_dimension_numbers<[1], [0], [0], [1], [0, 0, 1, 1], [], []>} : vector<2x16xf32>, vector<16x32xf32>, vector<2x32xf32> -> vector<2x32xf32>
    %c0_351 = arith.constant 0 : index
    %c0_352 = arith.constant 0 : index
    %512 = vector.load %arg5[%c0_351, %c0_352] : memref<32x32xf32, #tpu.memory_space<vmem>>, vector<32x32xf32>
    %cst_353 = arith.constant dense<0.000000e+00> : vector<2x32xf32>
    %513 = tpu.matmul %489, %512, %cst_353 {dimension_numbers = #tpu.dot_dimension_numbers<[1], [0], [0], [1], [0, 0, 1, 1], [], []>} : vector<2x32xf32>, vector<32x32xf32>, vector<2x32xf32> -> vector<2x32xf32>
    %c0_354 = arith.constant 0 : index
    %c0_355 = arith.constant 0 : index
    %514 = vector.load %arg6[%c0_354, %c0_355] : memref<1x32xf32, #tpu.memory_space<vmem>>, vector<1x32xf32>
    %515 = vector.broadcast %514 : vector<1x32xf32> to vector<2x32xf32>
    %516 = arith.addf %513, %515 : vector<2x32xf32>
    %c0_356 = arith.constant 0 : index
    %c0_357 = arith.constant 0 : index
    %c0_358 = arith.constant 0 : index
    %517 = vector.load %arg18[%c0_356, %c0_357, %c0_358] : memref<2x64x32xf32, #tpu.memory_space<vmem>>, vector<2x64x32xf32>
    %518 = vector.shape_cast %516 : vector<2x32xf32> to vector<2x1x32xf32>
    %519 = vector.broadcast %518 : vector<2x1x32xf32> to vector<2x64x32xf32>
    %520 = arith.addf %517, %519 : vector<2x64x32xf32>
    %521 = math.tanh %520 : vector<2x64x32xf32>
    %c0_359 = arith.constant 0 : index
    %c0_360 = arith.constant 0 : index
    %522 = vector.load %arg7[%c0_359, %c0_360] : memref<1x32xf32, #tpu.memory_space<vmem>>, vector<1x32xf32>
    %523 = vector.shape_cast %522 : vector<1x32xf32> to vector<1x1x32xf32>
    %524 = vector.broadcast %523 : vector<1x1x32xf32> to vector<2x64x32xf32>
    %525 = arith.mulf %521, %524 : vector<2x64x32xf32>
    %cst_361 = arith.constant dense<0.000000e+00> : vector<2x64xf32>
    %526 = vector.multi_reduction <add>, %525, %cst_361 [2] : vector<2x64x32xf32> to vector<2x64xf32>
    %cst_362 = arith.constant dense<0xFF800000> : vector<2xf32>
    %527 = vector.multi_reduction <maximumf>, %526, %cst_362 [1] : vector<2x64xf32> to vector<2xf32>
    %528 = vector.shape_cast %527 : vector<2xf32> to vector<2x1xf32>
    %529 = vector.broadcast %528 : vector<2x1xf32> to vector<2x64xf32>
    %530 = arith.subf %526, %529 : vector<2x64xf32>
    %531 = math.exp %530 : vector<2x64xf32>
    %cst_363 = arith.constant dense<0.000000e+00> : vector<2xf32>
    %532 = vector.multi_reduction <add>, %531, %cst_363 [1] : vector<2x64xf32> to vector<2xf32>
    %533 = vector.shape_cast %532 : vector<2xf32> to vector<2x1xf32>
    %534 = vector.broadcast %533 : vector<2x1xf32> to vector<2x64xf32>
    %535 = arith.divf %531, %534 : vector<2x64xf32>
    %536 = vector.shape_cast %535 : vector<2x64xf32> to vector<2x64x1xf32>
    %c0_364 = arith.constant 0 : index
    %c0_365 = arith.constant 0 : index
    %c0_366 = arith.constant 0 : index
    %537 = vector.load %arg2[%c0_364, %c0_365, %c0_366] : memref<2x64x32xf32, #tpu.memory_space<vmem>>, vector<2x64x32xf32>
    %538 = vector.broadcast %536 : vector<2x64x1xf32> to vector<2x64x32xf32>
    %539 = arith.mulf %538, %537 : vector<2x64x32xf32>
    %cst_367 = arith.constant dense<0.000000e+00> : vector<2x32xf32>
    %540 = vector.multi_reduction <add>, %539, %cst_367 [1] : vector<2x64x32xf32> to vector<2x32xf32>
    %c0_368 = arith.constant 0 : index
    %c0_369 = arith.constant 0 : index
    %541 = vector.load %arg8[%c0_368, %c0_369] : memref<32x32xf32, #tpu.memory_space<vmem>>, vector<32x32xf32>
    %cst_370 = arith.constant dense<0.000000e+00> : vector<2x32xf32>
    %542 = tpu.matmul %511, %541, %cst_370 {dimension_numbers = #tpu.dot_dimension_numbers<[1], [0], [0], [1], [0, 0, 1, 1], [], []>} : vector<2x32xf32>, vector<32x32xf32>, vector<2x32xf32> -> vector<2x32xf32>
    %c0_371 = arith.constant 0 : index
    %c0_372 = arith.constant 0 : index
    %543 = vector.load %arg9[%c0_371, %c0_372] : memref<32x32xf32, #tpu.memory_space<vmem>>, vector<32x32xf32>
    %cst_373 = arith.constant dense<0.000000e+00> : vector<2x32xf32>
    %544 = tpu.matmul %540, %543, %cst_373 {dimension_numbers = #tpu.dot_dimension_numbers<[1], [0], [0], [1], [0, 0, 1, 1], [], []>} : vector<2x32xf32>, vector<32x32xf32>, vector<2x32xf32> -> vector<2x32xf32>
    %545 = arith.addf %542, %544 : vector<2x32xf32>
    %c0_374 = arith.constant 0 : index
    %c0_375 = arith.constant 0 : index
    %546 = vector.load %arg10[%c0_374, %c0_375] : memref<1x32xf32, #tpu.memory_space<vmem>>, vector<1x32xf32>
    %547 = vector.broadcast %546 : vector<1x32xf32> to vector<2x32xf32>
    %548 = arith.addf %545, %547 : vector<2x32xf32>
    %cst_376 = arith.constant 0.000000e+00 : f32
    %549 = vector.broadcast %cst_376 : f32 to vector<2x32xf32>
    %550 = arith.maximumf %548, %549 : vector<2x32xf32>
    %c0_377 = arith.constant 0 : index
    %c0_378 = arith.constant 0 : index
    %c0_379 = arith.constant 0 : index
    %551 = vector.load %arg11[%c0_377, %c0_378, %c0_379] : memref<3x32x32xf32, #tpu.memory_space<vmem>>, vector<1x32x32xf32>
    %552 = vector.shape_cast %551 : vector<1x32x32xf32> to vector<32x32xf32>
    %cst_380 = arith.constant dense<0.000000e+00> : vector<2x32xf32>
    %553 = tpu.matmul %550, %552, %cst_380 {dimension_numbers = #tpu.dot_dimension_numbers<[1], [0], [0], [1], [0, 0, 1, 1], [], []>} : vector<2x32xf32>, vector<32x32xf32>, vector<2x32xf32> -> vector<2x32xf32>
    %c0_381 = arith.constant 0 : index
    %c0_382 = arith.constant 0 : index
    %c0_383 = arith.constant 0 : index
    %554 = vector.load %arg13[%c0_381, %c0_382, %c0_383] : memref<3x1x32xf32, #tpu.memory_space<vmem>>, vector<1x1x32xf32>
    %555 = vector.shape_cast %554 : vector<1x1x32xf32> to vector<1x32xf32>
    %556 = vector.broadcast %555 : vector<1x32xf32> to vector<2x32xf32>
    %557 = arith.addf %553, %556 : vector<2x32xf32>
    %c1_384 = arith.constant 1 : index
    %c0_385 = arith.constant 0 : index
    %c0_386 = arith.constant 0 : index
    %558 = vector.load %arg11[%c1_384, %c0_385, %c0_386] : memref<3x32x32xf32, #tpu.memory_space<vmem>>, vector<1x32x32xf32>
    %559 = vector.shape_cast %558 : vector<1x32x32xf32> to vector<32x32xf32>
    %cst_387 = arith.constant dense<0.000000e+00> : vector<2x32xf32>
    %560 = tpu.matmul %550, %559, %cst_387 {dimension_numbers = #tpu.dot_dimension_numbers<[1], [0], [0], [1], [0, 0, 1, 1], [], []>} : vector<2x32xf32>, vector<32x32xf32>, vector<2x32xf32> -> vector<2x32xf32>
    %c1_388 = arith.constant 1 : index
    %c0_389 = arith.constant 0 : index
    %c0_390 = arith.constant 0 : index
    %561 = vector.load %arg13[%c1_388, %c0_389, %c0_390] : memref<3x1x32xf32, #tpu.memory_space<vmem>>, vector<1x1x32xf32>
    %562 = vector.shape_cast %561 : vector<1x1x32xf32> to vector<1x32xf32>
    %563 = vector.broadcast %562 : vector<1x32xf32> to vector<2x32xf32>
    %564 = arith.addf %560, %563 : vector<2x32xf32>
    %c2_391 = arith.constant 2 : index
    %c0_392 = arith.constant 0 : index
    %c0_393 = arith.constant 0 : index
    %565 = vector.load %arg11[%c2_391, %c0_392, %c0_393] : memref<3x32x32xf32, #tpu.memory_space<vmem>>, vector<1x32x32xf32>
    %566 = vector.shape_cast %565 : vector<1x32x32xf32> to vector<32x32xf32>
    %cst_394 = arith.constant dense<0.000000e+00> : vector<2x32xf32>
    %567 = tpu.matmul %550, %566, %cst_394 {dimension_numbers = #tpu.dot_dimension_numbers<[1], [0], [0], [1], [0, 0, 1, 1], [], []>} : vector<2x32xf32>, vector<32x32xf32>, vector<2x32xf32> -> vector<2x32xf32>
    %c2_395 = arith.constant 2 : index
    %c0_396 = arith.constant 0 : index
    %c0_397 = arith.constant 0 : index
    %568 = vector.load %arg13[%c2_395, %c0_396, %c0_397] : memref<3x1x32xf32, #tpu.memory_space<vmem>>, vector<1x1x32xf32>
    %569 = vector.shape_cast %568 : vector<1x1x32xf32> to vector<1x32xf32>
    %570 = vector.broadcast %569 : vector<1x32xf32> to vector<2x32xf32>
    %571 = arith.addf %567, %570 : vector<2x32xf32>
    %c0_398 = arith.constant 0 : index
    %c0_399 = arith.constant 0 : index
    %c0_400 = arith.constant 0 : index
    %572 = vector.load %arg12[%c0_398, %c0_399, %c0_400] : memref<3x32x32xf32, #tpu.memory_space<vmem>>, vector<1x32x32xf32>
    %573 = vector.shape_cast %572 : vector<1x32x32xf32> to vector<32x32xf32>
    %cst_401 = arith.constant dense<0.000000e+00> : vector<2x32xf32>
    %574 = tpu.matmul %489, %573, %cst_401 {dimension_numbers = #tpu.dot_dimension_numbers<[1], [0], [0], [1], [0, 0, 1, 1], [], []>} : vector<2x32xf32>, vector<32x32xf32>, vector<2x32xf32> -> vector<2x32xf32>
    %c0_402 = arith.constant 0 : index
    %c0_403 = arith.constant 0 : index
    %c0_404 = arith.constant 0 : index
    %575 = vector.load %arg14[%c0_402, %c0_403, %c0_404] : memref<3x1x32xf32, #tpu.memory_space<vmem>>, vector<1x1x32xf32>
    %576 = vector.shape_cast %575 : vector<1x1x32xf32> to vector<1x32xf32>
    %577 = vector.broadcast %576 : vector<1x32xf32> to vector<2x32xf32>
    %578 = arith.addf %574, %577 : vector<2x32xf32>
    %c1_405 = arith.constant 1 : index
    %c0_406 = arith.constant 0 : index
    %c0_407 = arith.constant 0 : index
    %579 = vector.load %arg12[%c1_405, %c0_406, %c0_407] : memref<3x32x32xf32, #tpu.memory_space<vmem>>, vector<1x32x32xf32>
    %580 = vector.shape_cast %579 : vector<1x32x32xf32> to vector<32x32xf32>
    %cst_408 = arith.constant dense<0.000000e+00> : vector<2x32xf32>
    %581 = tpu.matmul %489, %580, %cst_408 {dimension_numbers = #tpu.dot_dimension_numbers<[1], [0], [0], [1], [0, 0, 1, 1], [], []>} : vector<2x32xf32>, vector<32x32xf32>, vector<2x32xf32> -> vector<2x32xf32>
    %c1_409 = arith.constant 1 : index
    %c0_410 = arith.constant 0 : index
    %c0_411 = arith.constant 0 : index
    %582 = vector.load %arg14[%c1_409, %c0_410, %c0_411] : memref<3x1x32xf32, #tpu.memory_space<vmem>>, vector<1x1x32xf32>
    %583 = vector.shape_cast %582 : vector<1x1x32xf32> to vector<1x32xf32>
    %584 = vector.broadcast %583 : vector<1x32xf32> to vector<2x32xf32>
    %585 = arith.addf %581, %584 : vector<2x32xf32>
    %c2_412 = arith.constant 2 : index
    %c0_413 = arith.constant 0 : index
    %c0_414 = arith.constant 0 : index
    %586 = vector.load %arg12[%c2_412, %c0_413, %c0_414] : memref<3x32x32xf32, #tpu.memory_space<vmem>>, vector<1x32x32xf32>
    %587 = vector.shape_cast %586 : vector<1x32x32xf32> to vector<32x32xf32>
    %cst_415 = arith.constant dense<0.000000e+00> : vector<2x32xf32>
    %588 = tpu.matmul %489, %587, %cst_415 {dimension_numbers = #tpu.dot_dimension_numbers<[1], [0], [0], [1], [0, 0, 1, 1], [], []>} : vector<2x32xf32>, vector<32x32xf32>, vector<2x32xf32> -> vector<2x32xf32>
    %c2_416 = arith.constant 2 : index
    %c0_417 = arith.constant 0 : index
    %c0_418 = arith.constant 0 : index
    %589 = vector.load %arg14[%c2_416, %c0_417, %c0_418] : memref<3x1x32xf32, #tpu.memory_space<vmem>>, vector<1x1x32xf32>
    %590 = vector.shape_cast %589 : vector<1x1x32xf32> to vector<1x32xf32>
    %591 = vector.broadcast %590 : vector<1x32xf32> to vector<2x32xf32>
    %592 = arith.addf %588, %591 : vector<2x32xf32>
    %593 = arith.addf %557, %578 : vector<2x32xf32>
    %594 = arith.negf %593 : vector<2x32xf32>
    %595 = math.exp %594 : vector<2x32xf32>
    %cst_419 = arith.constant 1.000000e+00 : f32
    %596 = vector.broadcast %cst_419 : f32 to vector<2x32xf32>
    %597 = arith.addf %596, %595 : vector<2x32xf32>
    %598 = arith.divf %596, %597 : vector<2x32xf32>
    %599 = arith.addf %564, %585 : vector<2x32xf32>
    %600 = arith.negf %599 : vector<2x32xf32>
    %601 = math.exp %600 : vector<2x32xf32>
    %cst_420 = arith.constant 1.000000e+00 : f32
    %602 = vector.broadcast %cst_420 : f32 to vector<2x32xf32>
    %603 = arith.addf %602, %601 : vector<2x32xf32>
    %604 = arith.divf %602, %603 : vector<2x32xf32>
    %605 = arith.mulf %598, %592 : vector<2x32xf32>
    %606 = arith.addf %571, %605 : vector<2x32xf32>
    %607 = math.tanh %606 : vector<2x32xf32>
    %cst_421 = arith.constant 1.000000e+00 : f32
    %608 = vector.broadcast %cst_421 : f32 to vector<2x32xf32>
    %609 = arith.subf %608, %604 : vector<2x32xf32>
    %610 = arith.mulf %609, %607 : vector<2x32xf32>
    %611 = arith.mulf %604, %489 : vector<2x32xf32>
    %612 = arith.addf %610, %611 : vector<2x32xf32>
    %c0_422 = arith.constant 0 : index
    %c0_423 = arith.constant 0 : index
    %613 = vector.load %arg15[%c0_422, %c0_423] : memref<32x16xf32, #tpu.memory_space<vmem>>, vector<32x16xf32>
    %cst_424 = arith.constant dense<0.000000e+00> : vector<2x16xf32>
    %614 = tpu.matmul %612, %613, %cst_424 {dimension_numbers = #tpu.dot_dimension_numbers<[1], [0], [0], [1], [0, 0, 1, 1], [], []>} : vector<2x32xf32>, vector<32x16xf32>, vector<2x16xf32> -> vector<2x16xf32>
    %c0_425 = arith.constant 0 : index
    %c0_426 = arith.constant 0 : index
    %615 = vector.load %arg16[%c0_425, %c0_426] : memref<1x16xf32, #tpu.memory_space<vmem>>, vector<1x16xf32>
    %616 = vector.broadcast %615 : vector<1x16xf32> to vector<2x16xf32>
    %617 = arith.addf %614, %616 : vector<2x16xf32>
    %c0_427 = arith.constant 0 : index
    %c4 = arith.constant 4 : index
    %c0_428 = arith.constant 0 : index
    %618 = vector.load %arg17[%c0_427, %c4, %c0_428] : memref<2x5x16xf32, #tpu.memory_space<vmem>>, vector<2x1x16xf32>
    %619 = vector.shape_cast %618 : vector<2x1x16xf32> to vector<2x16xf32>
    %620 = vector.shape_cast %617 : vector<2x16xf32> to vector<2x1x16xf32>
    tpu.vector_store %arg17[%c0_427, %c4, %c0_428], %620 {strides = array<i32>} : memref<2x5x16xf32, #tpu.memory_space<vmem>>, vector<2x1x16xf32>,
    return
  }
  func.func @transform_0(%arg0: i32) -> (i32, i32) {
    %c0_i32 = arith.constant 0 : i32
    %c0_i32_0 = arith.constant 0 : i32
    %c0_i32_1 = arith.constant 0 : i32
    return %c0_i32, %c0_i32_0 : i32, i32
  }
  func.func @transform_1(%arg0: i32) -> (i32, i32, i32) {
    %c0_i32 = arith.constant 0 : i32
    %c0_i32_0 = arith.constant 0 : i32
    %c0_i32_1 = arith.constant 0 : i32
    return %arg0, %c0_i32, %c0_i32_0 : i32, i32, i32
  }
  func.func @transform_2(%arg0: i32) -> (i32, i32) {
    %c0_i32 = arith.constant 0 : i32
    %c0_i32_0 = arith.constant 0 : i32
    %c0_i32_1 = arith.constant 0 : i32
    return %c0_i32, %c0_i32_0 : i32, i32
  }
  func.func @transform_3(%arg0: i32) -> (i32, i32) {
    %c0_i32 = arith.constant 0 : i32
    %c0_i32_0 = arith.constant 0 : i32
    %c0_i32_1 = arith.constant 0 : i32
    return %c0_i32, %c0_i32_0 : i32, i32
  }
  func.func @transform_4(%arg0: i32) -> (i32, i32) {
    %c0_i32 = arith.constant 0 : i32
    %c0_i32_0 = arith.constant 0 : i32
    %c0_i32_1 = arith.constant 0 : i32
    return %c0_i32, %c0_i32_0 : i32, i32
  }
  func.func @transform_5(%arg0: i32) -> (i32, i32) {
    %c0_i32 = arith.constant 0 : i32
    %c0_i32_0 = arith.constant 0 : i32
    %c0_i32_1 = arith.constant 0 : i32
    return %c0_i32, %c0_i32_0 : i32, i32
  }
  func.func @transform_6(%arg0: i32) -> (i32, i32) {
    %c0_i32 = arith.constant 0 : i32
    %c0_i32_0 = arith.constant 0 : i32
    %c0_i32_1 = arith.constant 0 : i32
    return %c0_i32, %c0_i32_0 : i32, i32
  }
  func.func @transform_7(%arg0: i32) -> (i32, i32) {
    %c0_i32 = arith.constant 0 : i32
    %c0_i32_0 = arith.constant 0 : i32
    %c0_i32_1 = arith.constant 0 : i32
    return %c0_i32, %c0_i32_0 : i32, i32
  }
  func.func @transform_8(%arg0: i32) -> (i32, i32) {
    %c0_i32 = arith.constant 0 : i32
    %c0_i32_0 = arith.constant 0 : i32
    %c0_i32_1 = arith.constant 0 : i32
    return %c0_i32, %c0_i32_0 : i32, i32
  }
  func.func @transform_9(%arg0: i32) -> (i32, i32) {
    %c0_i32 = arith.constant 0 : i32
    %c0_i32_0 = arith.constant 0 : i32
    %c0_i32_1 = arith.constant 0 : i32
    return %c0_i32, %c0_i32_0 : i32, i32
  }
  func.func @transform_10(%arg0: i32) -> (i32, i32, i32) {
    %c0_i32 = arith.constant 0 : i32
    %c0_i32_0 = arith.constant 0 : i32
    %c0_i32_1 = arith.constant 0 : i32
    %c0_i32_2 = arith.constant 0 : i32
    return %c0_i32, %c0_i32_0, %c0_i32_1 : i32, i32, i32
  }
  func.func @transform_11(%arg0: i32) -> (i32, i32, i32) {
    %c0_i32 = arith.constant 0 : i32
    %c0_i32_0 = arith.constant 0 : i32
    %c0_i32_1 = arith.constant 0 : i32
    %c0_i32_2 = arith.constant 0 : i32
    return %c0_i32, %c0_i32_0, %c0_i32_1 : i32, i32, i32
  }
  func.func @transform_12(%arg0: i32) -> (i32, i32, i32) {
    %c0_i32 = arith.constant 0 : i32
    %c0_i32_0 = arith.constant 0 : i32
    %c0_i32_1 = arith.constant 0 : i32
    %c0_i32_2 = arith.constant 0 : i32
    return %c0_i32, %c0_i32_0, %c0_i32_1 : i32, i32, i32
  }
  func.func @transform_13(%arg0: i32) -> (i32, i32, i32) {
    %c0_i32 = arith.constant 0 : i32
    %c0_i32_0 = arith.constant 0 : i32
    %c0_i32_1 = arith.constant 0 : i32
    %c0_i32_2 = arith.constant 0 : i32
    return %c0_i32, %c0_i32_0, %c0_i32_1 : i32, i32, i32
  }
  func.func @transform_14(%arg0: i32) -> (i32, i32) {
    %c0_i32 = arith.constant 0 : i32
    %c0_i32_0 = arith.constant 0 : i32
    %c0_i32_1 = arith.constant 0 : i32
    return %c0_i32, %c0_i32_0 : i32, i32
  }
  func.func @transform_15(%arg0: i32) -> (i32, i32) {
    %c0_i32 = arith.constant 0 : i32
    %c0_i32_0 = arith.constant 0 : i32
    %c0_i32_1 = arith.constant 0 : i32
    return %c0_i32, %c0_i32_0 : i32, i32
  }
  func.func @transform_16(%arg0: i32) -> (i32, i32, i32) {
    %c0_i32 = arith.constant 0 : i32
    %c0_i32_0 = arith.constant 0 : i32
    %c0_i32_1 = arith.constant 0 : i32
    return %arg0, %c0_i32, %c0_i32_0 : i32, i32, i32
  }
}

</mosaic_0001>

<llo_original>
// kernel: text_recognition_head_attention_forward.2
$region0: #{text_recognition_head_attention_forward.2}
  #allocation0 [shape = 'u32[]', space=smem, size = 0x4, offset = 0x4, fixed_abs, tag = 'smem constant byte address 0x4 - core index']
  #allocation1 [shape = 'u32[72,128]{1,0:T(1,128)}', space=vmem, size = 0x9000, scoped, tag = 'internal scratch']
  #allocation2 [shape = 'f32[2,10,10,32]{3,2,1,0:T(8,128)}', space=vmem, size = 0x28000, scoped, tag = 'scratch operand']
  %s0 = inlined_call_operand.vmem [shape: f32[2,8,8,4], index: 0, kind: input, shape index: {}]
  %s1 = inlined_call_operand.vmem [shape: f32[9,4,32], index: 1, kind: input, shape index: {}]
  %s2 = inlined_call_operand.hbm [shape: f32[1,9,32,32], index: 2, kind: input, shape index: {}]
  %s3 = inlined_call_operand.vmem [shape: f32[2,1,32], index: 3, kind: input, shape index: {}]
  %s4 = inlined_call_operand.vmem [shape: f32[2,1,32], index: 4, kind: input, shape index: {}]
  %s5 = inlined_call_operand.vmem [shape: f32[2,64,32], index: 5, kind: output, shape index: {}]
  %s6 = sld [smem:[#allocation0]]
  $region34: #{text_recognition_head_attention_forward.2} parent=0
    _
  %s8 = ssub.s32 1, %s6
  %s9 = scalar_select 0, %s8, %s6
  $region1: #{text_recognition_head_attention_forward.2} parent=0
    #allocation3 [shape = 'u8[147456]{0}', space=vmem, size = 0x24000, scoped, tag = 'input window, operand 2, single buffered']
    #allocation4 [shape = 's32[1]{0}', space=sflag, size = 0x4, scoped, tag = 'scoped memory for text_recognition_head_attention_forward.2']
    %10 = vsyncpa [#allocation4], 0
    // Predicated region
    $region2: #{text_recognition_head_attention_forward.2} parent=1 // pred_check
      _
    $region3: #{text_recognition_head_attention_forward.2} parent=1 // pred_check_branch
      %12 = sbr.rel (0) target = $region5
    $region4: #{text_recognition_head_attention_forward.2} parent=1 // pred_region
      _
    $region5: #{text_recognition_head_attention_forward.2} parent=1 // pred_fallthru
      _
    // Predicated region
    $region6: #{text_recognition_head_attention_forward.2} parent=1 // pred_check
      _
    $region7: #{text_recognition_head_attention_forward.2} parent=1 // pred_check_branch
      %14 = sbr.rel (0) target = $region9
    $region8: #{text_recognition_head_attention_forward.2} parent=1 // pred_region
      _
    $region9: #{text_recognition_head_attention_forward.2} parent=1 // pred_fallthru
      _
    // Predicated region
    $region10: #{text_recognition_head_attention_forward.2} parent=1 // pred_check
      _
    $region11: #{text_recognition_head_attention_forward.2} parent=1 // pred_check_branch
      %16 = sbr.rel (0) target = $region13
    $region12: #{text_recognition_head_attention_forward.2} parent=1 // pred_region
      %18 = vsyncadd [#allocation4], 0
      %s19 = sshll.u32 %s2, 4
      %s20 = int_to_ptr.hbm [resolvable:$true] %s19
      %s21 = sshll.u32 [#allocation3], 4
      %s22 = int_to_ptr.vmem [resolvable:$true] %s21
      %27 = dma.hbm_to_vmem [thread:$0]  %s20, 4608, %s22, [#allocation4], 128, 128, 8
    $region13: #{text_recognition_head_attention_forward.2} parent=1 // pred_fallthru
      _
    // Predicated region
    $region14: #{text_recognition_head_attention_forward.2} parent=1 // pred_check
      _
    $region15: #{text_recognition_head_attention_forward.2} parent=1 // pred_check_branch
      %29 = sbr.rel (0) target = $region17
    $region16: #{text_recognition_head_attention_forward.2} parent=1 // pred_region
      _
    $region17: #{text_recognition_head_attention_forward.2} parent=1 // pred_fallthru
      _
    // Predicated region
    $region18: #{text_recognition_head_attention_forward.2} parent=1 // pred_check
      _
    $region19: #{text_recognition_head_attention_forward.2} parent=1 // pred_check_branch
      %31 = sbr.rel (0) target = $region21
    $region20: #{text_recognition_head_attention_forward.2} parent=1 // pred_region
      _
    $region21: #{text_recognition_head_attention_forward.2} parent=1 // pred_fallthru
      _
    // Predicated region
    $region22: #{text_recognition_head_attention_forward.2} parent=1 // pred_check
      _
    $region23: #{text_recognition_head_attention_forward.2} parent=1 // pred_check_branch
      %33 = sbr.rel (0) target = $region25
    $region24: #{text_recognition_head_attention_forward.2} parent=1 // pred_region
      %35 = dma.done [#allocation4], 4608
    $region25: #{text_recognition_head_attention_forward.2} parent=1 // pred_fallthru
      _
    %vm36 = vcmask 261120
    %37 = vst.msk [vmem:[#allocation2] sm:$0xff] %vm36, 0.0
    %vm38 = vcmask 254976
    %39 = vst.msk [vmem:[#allocation2 + $0x8] sm:$0x3] %vm38, 0.0
    %40 = vst.msk [vmem:[#allocation2 + $0x10] sm:$0xff] %vm36, 0.0
    %41 = vst.msk [vmem:[#allocation2 + $0x18] sm:$0x3] %vm38, 0.0
    %42 = vst.msk [vmem:[#allocation2 + $0x20] sm:$0xff] %vm36, 0.0
    %43 = vst.msk [vmem:[#allocation2 + $0x28] sm:$0x3] %vm38, 0.0
    %44 = vst.msk [vmem:[#allocation2 + $0x30] sm:$0xff] %vm36, 0.0
    %45 = vst.msk [vmem:[#allocation2 + $0x38] sm:$0x3] %vm38, 0.0
    %46 = vst.msk [vmem:[#allocation2 + $0x40] sm:$0xff] %vm36, 0.0
    %47 = vst.msk [vmem:[#allocation2 + $0x48] sm:$0x3] %vm38, 0.0
    %48 = vst.msk [vmem:[#allocation2 + $0x50] sm:$0xff] %vm36, 0.0
    %49 = vst.msk [vmem:[#allocation2 + $0x58] sm:$0x3] %vm38, 0.0
    %50 = vst.msk [vmem:[#allocation2 + $0x60] sm:$0xff] %vm36, 0.0
    %51 = vst.msk [vmem:[#allocation2 + $0x68] sm:$0x3] %vm38, 0.0
    %52 = vst.msk [vmem:[#allocation2 + $0x70] sm:$0xff] %vm36, 0.0
    %53 = vst.msk [vmem:[#allocation2 + $0x78] sm:$0x3] %vm38, 0.0
    %54 = vst.msk [vmem:[#allocation2 + $0x80] sm:$0xff] %vm36, 0.0
    %55 = vst.msk [vmem:[#allocation2 + $0x88] sm:$0x3] %vm38, 0.0
    %56 = vst.msk [vmem:[#allocation2 + $0x90] sm:$0xff] %vm36, 0.0
    %57 = vst.msk [vmem:[#allocation2 + $0x98] sm:$0x3] %vm38, 0.0
    %58 = vst.msk [vmem:[#allocation2 + $0xa0] sm:$0xff] %vm36, 0.0
    %59 = vst.msk [vmem:[#allocation2 + $0xa8] sm:$0x3] %vm38, 0.0
    %60 = vst.msk [vmem:[#allocation2 + $0xb0] sm:$0xff] %vm36, 0.0
    %61 = vst.msk [vmem:[#allocation2 + $0xb8] sm:$0x3] %vm38, 0.0
    %62 = vst.msk [vmem:[#allocation2 + $0xc0] sm:$0xff] %vm36, 0.0
    %63 = vst.msk [vmem:[#allocation2 + $0xc8] sm:$0x3] %vm38, 0.0
    %64 = vst.msk [vmem:[#allocation2 + $0xd0] sm:$0xff] %vm36, 0.0
    %65 = vst.msk [vmem:[#allocation2 + $0xd8] sm:$0x3] %vm38, 0.0
    %66 = vst.msk [vmem:[#allocation2 + $0xe0] sm:$0xff] %vm36, 0.0
    %67 = vst.msk [vmem:[#allocation2 + $0xe8] sm:$0x3] %vm38, 0.0
    %68 = vst.msk [vmem:[#allocation2 + $0xf0] sm:$0xff] %vm36, 0.0
    %69 = vst.msk [vmem:[#allocation2 + $0xf8] sm:$0x3] %vm38, 0.0
    %70 = vst.msk [vmem:[#allocation2 + $0x100] sm:$0xff] %vm36, 0.0
    %71 = vst.msk [vmem:[#allocation2 + $0x108] sm:$0x3] %vm38, 0.0
    %72 = vst.msk [vmem:[#allocation2 + $0x110] sm:$0xff] %vm36, 0.0
    %73 = vst.msk [vmem:[#allocation2 + $0x118] sm:$0x3] %vm38, 0.0
    %74 = vst.msk [vmem:[#allocation2 + $0x120] sm:$0xff] %vm36, 0.0
    %75 = vst.msk [vmem:[#allocation2 + $0x128] sm:$0x3] %vm38, 0.0
    %76 = vst.msk [vmem:[#allocation2 + $0x130] sm:$0xff] %vm36, 0.0
    %77 = vst.msk [vmem:[#allocation2 + $0x138] sm:$0x3] %vm38, 0.0
    %v78 = vld [vmem:[%s0] sm:$0xff]
    %v79 = vld [vmem:[%s0 + $0x8] sm:$0xff]
    %v80 = vld [vmem:[%s0 + $0x10] sm:$0xff]
    %v81 = vld [vmem:[%s0 + $0x18] sm:$0xff]
    %v82 = vld [vmem:[%s0 + $0x20] sm:$0xff]
    %v83 = vld [vmem:[%s0 + $0x28] sm:$0xff]
    %v84 = vld [vmem:[%s0 + $0x30] sm:$0xff]
    %v85 = vld [vmem:[%s0 + $0x38] sm:$0xff]
    %v86 = vld [vmem:[%s0 + $0x40] sm:$0xff]
    %v87 = vld [vmem:[%s0 + $0x48] sm:$0xff]
    %v88 = vld [vmem:[%s0 + $0x50] sm:$0xff]
    %v89 = vld [vmem:[%s0 + $0x58] sm:$0xff]
    %v90 = vld [vmem:[%s0 + $0x60] sm:$0xff]
    %v91 = vld [vmem:[%s0 + $0x68] sm:$0xff]
    %v92 = vld [vmem:[%s0 + $0x70] sm:$0xff]
    %v93 = vld [vmem:[%s0 + $0x78] sm:$0xff]
    %s94 = scalar_lea.vmem [#allocation2], 16
    %vm95 = vcmask 31744
    %96 = vst.msk [vmem:[%s94 + $0x1] sm:$0xff] %vm95, %v78
    %97 = vst.msk [vmem:[%s94 + $0x11] sm:$0xff] %vm95, %v79
    %98 = vst.msk [vmem:[%s94 + $0x21] sm:$0xff] %vm95, %v80
    %99 = vst.msk [vmem:[%s94 + $0x31] sm:$0xff] %vm95, %v81
    %100 = vst.msk [vmem:[%s94 + $0x41] sm:$0xff] %vm95, %v82
    %101 = vst.msk [vmem:[%s94 + $0x51] sm:$0xff] %vm95, %v83
    %102 = vst.msk [vmem:[%s94 + $0x61] sm:$0xff] %vm95, %v84
    %103 = vst.msk [vmem:[%s94 + $0x71] sm:$0xff] %vm95, %v85
    %104 = vst.msk [vmem:[%s94 + $0xa1] sm:$0xff] %vm95, %v86
    %105 = vst.msk [vmem:[%s94 + $0xb1] sm:$0xff] %vm95, %v87
    %106 = vst.msk [vmem:[%s94 + $0xc1] sm:$0xff] %vm95, %v88
    %107 = vst.msk [vmem:[%s94 + $0xd1] sm:$0xff] %vm95, %v89
    %108 = vst.msk [vmem:[%s94 + $0xe1] sm:$0xff] %vm95, %v90
    %109 = vst.msk [vmem:[%s94 + $0xf1] sm:$0xff] %vm95, %v91
    %110 = vst.msk [vmem:[%s94 + $0x101] sm:$0xff] %vm95, %v92
    %111 = vst.msk [vmem:[%s94 + $0x111] sm:$0xff] %vm95, %v93
    %v112 = vld [vmem:[#allocation2] sm:$0xff]
    %v113 = vld [vmem:[#allocation2 + $0x10] sm:$0xff]
    %v114 = vld [vmem:[#allocation2 + $0x20] sm:$0xff]
    %v115 = vld [vmem:[#allocation2 + $0x30] sm:$0xff]
    %v116 = vld [vmem:[#allocation2 + $0x40] sm:$0xff]
    %v117 = vld [vmem:[#allocation2 + $0x50] sm:$0xff]
    %v118 = vld [vmem:[#allocation2 + $0x60] sm:$0xff]
    %v119 = vld [vmem:[#allocation2 + $0x70] sm:$0xff]
    %v120 = vld [vmem:[#allocation2 + $0xa0] sm:$0xff]
    %v121 = vld [vmem:[#allocation2 + $0xb0] sm:$0xff]
    %v122 = vld [vmem:[#allocation2 + $0xc0] sm:$0xff]
    %v123 = vld [vmem:[#allocation2 + $0xd0] sm:$0xff]
    %v124 = vld [vmem:[#allocation2 + $0xe0] sm:$0xff]
    %v125 = vld [vmem:[#allocation2 + $0xf0] sm:$0xff]
    %v126 = vld [vmem:[#allocation2 + $0x100] sm:$0xff]
    %v127 = vld [vmem:[#allocation2 + $0x110] sm:$0xff]
    %v128 = vld [vmem:[%s1] sm:$0xf]
    %v129 = vld [vmem:[#allocation2 + $0x1] sm:$0xff]
    %v130 = vld [vmem:[#allocation2 + $0x11] sm:$0xff]
    %v131 = vld [vmem:[#allocation2 + $0x21] sm:$0xff]
    %v132 = vld [vmem:[#allocation2 + $0x31] sm:$0xff]
    %v133 = vld [vmem:[#allocation2 + $0x41] sm:$0xff]
    %v134 = vld [vmem:[#allocation2 + $0x51] sm:$0xff]
    %v135 = vld [vmem:[#allocation2 + $0x61] sm:$0xff]
    %v136 = vld [vmem:[#allocation2 + $0x71] sm:$0xff]
    %v137 = vld [vmem:[#allocation2 + $0xa1] sm:$0xff]
    %v138 = vld [vmem:[#allocation2 + $0xb1] sm:$0xff]
    %v139 = vld [vmem:[#allocation2 + $0xc1] sm:$0xff]
    %v140 = vld [vmem:[#allocation2 + $0xd1] sm:$0xff]
    %v141 = vld [vmem:[#allocation2 + $0xe1] sm:$0xff]
    %v142 = vld [vmem:[#allocation2 + $0xf1] sm:$0xff]
    %v143 = vld [vmem:[#allocation2 + $0x101] sm:$0xff]
    %v144 = vld [vmem:[#allocation2 + $0x111] sm:$0xff]
    %s145 = scalar_lea.vmem %s1, 4
    %v146 = vld [vmem:[%s145] sm:$0xf]
    %v148 = vsel %vm95, %v129, 0
    %v151 = vsel %vm95, %v130, 0
    %v154 = vsel %vm95, %v131, 0
    %v157 = vsel %vm95, %v132, 0
    %v160 = vsel %vm95, %v133, 0
    %v163 = vsel %vm95, %v134, 0
    %v166 = vsel %vm95, %v135, 0
    %v169 = vsel %vm95, %v136, 0
    %v172 = vsel %vm95, %v137, 0
    %v175 = vsel %vm95, %v138, 0
    %v178 = vsel %vm95, %v139, 0
    %v181 = vsel %vm95, %v140, 0
    %v184 = vsel %vm95, %v141, 0
    %v187 = vsel %vm95, %v142, 0
    %v190 = vsel %vm95, %v143, 0
    %v193 = vsel %vm95, %v144, 0
    %vm195 = vcmask 1043456
    %v197 = vsel %vm195, %v146, 0
    %199 = vmatpush.msra.mxu0 0.0
    %200 = vmatpush.msra.mxu0 0.0
    %201 = vmatpush.msra.mxu0 0.0
    %202 = vmatpush.msra.mxu0 0.0
    %203 = vmatpush.msra.mxu0 0.0
    %204 = vmatpush.msra.mxu0 0.0
    %205 = vmatpush.msra.mxu0 0.0
    %206 = vmatpush.msra.mxu0 0.0
    %207 = vmatpush.msra.mxu0 0.0
    %208 = vmatpush.msra.mxu0 0.0
    %209 = vmatpush.msra.mxu0 0.0
    %210 = vmatpush.msra.mxu0 0.0
    %211 = vmatpush.msra.mxu0 0.0
    %212 = vmatpush.msra.mxu0 0.0
    %213 = vmatpush.msra.mxu0 0.0
    %214 = vmatpush.msra.mxu0 %v197
    %215 = vmatmul.f32.gmra.mxu0 %v148
    %v216 = vpop.f32.mrf.mxu0
    %v217 = vadd.f32 0.0, %v216
    %218 = vmatmul.f32.gmra.mxu0 %v151
    %v219 = vpop.f32.mrf.mxu0
    %v220 = vadd.f32 0.0, %v219
    %221 = vmatmul.f32.gmra.mxu0 %v154
    %v222 = vpop.f32.mrf.mxu0
    %v223 = vadd.f32 0.0, %v222
    %224 = vmatmul.f32.gmra.mxu0 %v157
    %v225 = vpop.f32.mrf.mxu0
    %v226 = vadd.f32 0.0, %v225
    %227 = vmatmul.f32.gmra.mxu0 %v160
    %v228 = vpop.f32.mrf.mxu0
    %v229 = vadd.f32 0.0, %v228
    %230 = vmatmul.f32.gmra.mxu0 %v163
    %v231 = vpop.f32.mrf.mxu0
    %v232 = vadd.f32 0.0, %v231
    %233 = vmatmul.f32.gmra.mxu0 %v166
    %v234 = vpop.f32.mrf.mxu0
    %v235 = vadd.f32 0.0, %v234
    %236 = vmatmul.f32.gmra.mxu0 %v169
    %v237 = vpop.f32.mrf.mxu0
    %v238 = vadd.f32 0.0, %v237
    %239 = vmatmul.f32.gmra.mxu0 %v172
    %v240 = vpop.f32.mrf.mxu0
    %v241 = vadd.f32 0.0, %v240
    %242 = vmatmul.f32.gmra.mxu0 %v175
    %v243 = vpop.f32.mrf.mxu0
    %v244 = vadd.f32 0.0, %v243
    %245 = vmatmul.f32.gmra.mxu0 %v178
    %v246 = vpop.f32.mrf.mxu0
    %v247 = vadd.f32 0.0, %v246
    %248 = vmatmul.f32.gmra.mxu0 %v181
    %v249 = vpop.f32.mrf.mxu0
    %v250 = vadd.f32 0.0, %v249
    %251 = vmatmul.f32.gmra.mxu0 %v184
    %v252 = vpop.f32.mrf.mxu0
    %v253 = vadd.f32 0.0, %v252
    %254 = vmatmul.f32.gmra.mxu0 %v187
    %v255 = vpop.f32.mrf.mxu0
    %v256 = vadd.f32 0.0, %v255
    %257 = vmatmul.f32.gmra.mxu0 %v190
    %v258 = vpop.f32.mrf.mxu0
    %v259 = vadd.f32 0.0, %v258
    %260 = vmatmul.f32.gmra.mxu0 %v193
    %v261 = vpop.f32.mrf.mxu0
    %v262 = vadd.f32 0.0, %v261
    %263 = vdwg.mxu0
    %v265 = vsel %vm95, %v112, 0
    %v268 = vsel %vm95, %v113, 0
    %v271 = vsel %vm95, %v114, 0
    %v274 = vsel %vm95, %v115, 0
    %v277 = vsel %vm95, %v116, 0
    %v280 = vsel %vm95, %v117, 0
    %v283 = vsel %vm95, %v118, 0
    %v286 = vsel %vm95, %v119, 0
    %v289 = vsel %vm95, %v120, 0
    %v292 = vsel %vm95, %v121, 0
    %v295 = vsel %vm95, %v122, 0
    %v298 = vsel %vm95, %v123, 0
    %v301 = vsel %vm95, %v124, 0
    %v304 = vsel %vm95, %v125, 0
    %v307 = vsel %vm95, %v126, 0
    %v310 = vsel %vm95, %v127, 0
    %v313 = vsel %vm195, %v128, 0
    %315 = vmatpush.msra.mxu0 0.0
    %316 = vmatpush.msra.mxu0 0.0
    %317 = vmatpush.msra.mxu0 0.0
    %318 = vmatpush.msra.mxu0 0.0
    %319 = vmatpush.msra.mxu0 0.0
    %320 = vmatpush.msra.mxu0 0.0
    %321 = vmatpush.msra.mxu0 0.0
    %322 = vmatpush.msra.mxu0 0.0
    %323 = vmatpush.msra.mxu0 0.0
    %324 = vmatpush.msra.mxu0 0.0
    %325 = vmatpush.msra.mxu0 0.0
    %326 = vmatpush.msra.mxu0 0.0
    %327 = vmatpush.msra.mxu0 0.0
    %328 = vmatpush.msra.mxu0 0.0
    %329 = vmatpush.msra.mxu0 0.0
    %330 = vmatpush.msra.mxu0 %v313
    %331 = vmatmul.f32.gmra.mxu0 %v265
    %v332 = vpop.f32.mrf.mxu0
    %v333 = vadd.f32 %v217, %v332
    %334 = vmatmul.f32.gmra.mxu0 %v268
    %v335 = vpop.f32.mrf.mxu0
    %v336 = vadd.f32 %v220, %v335
    %337 = vmatmul.f32.gmra.mxu0 %v271
    %v338 = vpop.f32.mrf.mxu0
    %v339 = vadd.f32 %v223, %v338
    %340 = vmatmul.f32.gmra.mxu0 %v274
    %v341 = vpop.f32.mrf.mxu0
    %v342 = vadd.f32 %v226, %v341
    %343 = vmatmul.f32.gmra.mxu0 %v277
    %v344 = vpop.f32.mrf.mxu0
    %v345 = vadd.f32 %v229, %v344
    %346 = vmatmul.f32.gmra.mxu0 %v280
    %v347 = vpop.f32.mrf.mxu0
    %v348 = vadd.f32 %v232, %v347
    %349 = vmatmul.f32.gmra.mxu0 %v283
    %v350 = vpop.f32.mrf.mxu0
    %v351 = vadd.f32 %v235, %v350
    %352 = vmatmul.f32.gmra.mxu0 %v286
    %v353 = vpop.f32.mrf.mxu0
    %v354 = vadd.f32 %v238, %v353
    %355 = vmatmul.f32.gmra.mxu0 %v289
    %v356 = vpop.f32.mrf.mxu0
    %v357 = vadd.f32 %v241, %v356
    %358 = vmatmul.f32.gmra.mxu0 %v292
    %v359 = vpop.f32.mrf.mxu0
    %v360 = vadd.f32 %v244, %v359
    %361 = vmatmul.f32.gmra.mxu0 %v295
    %v362 = vpop.f32.mrf.mxu0
    %v363 = vadd.f32 %v247, %v362
    %364 = vmatmul.f32.gmra.mxu0 %v298
    %v365 = vpop.f32.mrf.mxu0
    %v366 = vadd.f32 %v250, %v365
    %367 = vmatmul.f32.gmra.mxu0 %v301
    %v368 = vpop.f32.mrf.mxu0
    %v369 = vadd.f32 %v253, %v368
    %370 = vmatmul.f32.gmra.mxu0 %v304
    %v371 = vpop.f32.mrf.mxu0
    %v372 = vadd.f32 %v256, %v371
    %373 = vmatmul.f32.gmra.mxu0 %v307
    %v374 = vpop.f32.mrf.mxu0
    %v375 = vadd.f32 %v259, %v374
    %376 = vmatmul.f32.gmra.mxu0 %v310
    %v377 = vpop.f32.mrf.mxu0
    %v378 = vadd.f32 %v262, %v377
    %379 = vdwg.mxu0
    %v380 = vld [vmem:[#allocation2 + $0x2] sm:$0xff]
    %v381 = vld [vmem:[#allocation2 + $0x12] sm:$0xff]
    %v382 = vld [vmem:[#allocation2 + $0x22] sm:$0xff]
    %v383 = vld [vmem:[#allocation2 + $0x32] sm:$0xff]
    %v384 = vld [vmem:[#allocation2 + $0x42] sm:$0xff]
    %v385 = vld [vmem:[#allocation2 + $0x52] sm:$0xff]
    %v386 = vld [vmem:[#allocation2 + $0x62] sm:$0xff]
    %v387 = vld [vmem:[#allocation2 + $0x72] sm:$0xff]
    %v388 = vld [vmem:[#allocation2 + $0xa2] sm:$0xff]
    %v389 = vld [vmem:[#allocation2 + $0xb2] sm:$0xff]
    %v390 = vld [vmem:[#allocation2 + $0xc2] sm:$0xff]
    %v391 = vld [vmem:[#allocation2 + $0xd2] sm:$0xff]
    %v392 = vld [vmem:[#allocation2 + $0xe2] sm:$0xff]
    %v393 = vld [vmem:[#allocation2 + $0xf2] sm:$0xff]
    %v394 = vld [vmem:[#allocation2 + $0x102] sm:$0xff]
    %v395 = vld [vmem:[#allocation2 + $0x112] sm:$0xff]
    %s396 = scalar_lea.vmem %s1, 8
    %v397 = vld [vmem:[%s396] sm:$0xf]
    %v399 = vsel %vm95, %v380, 0
    %v402 = vsel %vm95, %v381, 0
    %v405 = vsel %vm95, %v382, 0
    %v408 = vsel %vm95, %v383, 0
    %v411 = vsel %vm95, %v384, 0
    %v414 = vsel %vm95, %v385, 0
    %v417 = vsel %vm95, %v386, 0
    %v420 = vsel %vm95, %v387, 0
    %v423 = vsel %vm95, %v388, 0
    %v426 = vsel %vm95, %v389, 0
    %v429 = vsel %vm95, %v390, 0
    %v432 = vsel %vm95, %v391, 0
    %v435 = vsel %vm95, %v392, 0
    %v438 = vsel %vm95, %v393, 0
    %v441 = vsel %vm95, %v394, 0
    %v444 = vsel %vm95, %v395, 0
    %v447 = vsel %vm195, %v397, 0
    %449 = vmatpush.msra.mxu0 0.0
    %450 = vmatpush.msra.mxu0 0.0
    %451 = vmatpush.msra.mxu0 0.0
    %452 = vmatpush.msra.mxu0 0.0
    %453 = vmatpush.msra.mxu0 0.0
    %454 = vmatpush.msra.mxu0 0.0
    %455 = vmatpush.msra.mxu0 0.0
    %456 = vmatpush.msra.mxu0 0.0
    %457 = vmatpush.msra.mxu0 0.0
    %458 = vmatpush.msra.mxu0 0.0
    %459 = vmatpush.msra.mxu0 0.0
    %460 = vmatpush.msra.mxu0 0.0
    %461 = vmatpush.msra.mxu0 0.0
    %462 = vmatpush.msra.mxu0 0.0
    %463 = vmatpush.msra.mxu0 0.0
    %464 = vmatpush.msra.mxu0 %v447
    %465 = vmatmul.f32.gmra.mxu0 %v399
    %v466 = vpop.f32.mrf.mxu0
    %v467 = vadd.f32 0.0, %v466
    %468 = vmatmul.f32.gmra.mxu0 %v402
    %v469 = vpop.f32.mrf.mxu0
    %v470 = vadd.f32 0.0, %v469
    %471 = vmatmul.f32.gmra.mxu0 %v405
    %v472 = vpop.f32.mrf.mxu0
    %v473 = vadd.f32 0.0, %v472
    %474 = vmatmul.f32.gmra.mxu0 %v408
    %v475 = vpop.f32.mrf.mxu0
    %v476 = vadd.f32 0.0, %v475
    %477 = vmatmul.f32.gmra.mxu0 %v411
    %v478 = vpop.f32.mrf.mxu0
    %v479 = vadd.f32 0.0, %v478
    %480 = vmatmul.f32.gmra.mxu0 %v414
    %v481 = vpop.f32.mrf.mxu0
    %v482 = vadd.f32 0.0, %v481
    %483 = vmatmul.f32.gmra.mxu0 %v417
    %v484 = vpop.f32.mrf.mxu0
    %v485 = vadd.f32 0.0, %v484
    %486 = vmatmul.f32.gmra.mxu0 %v420
    %v487 = vpop.f32.mrf.mxu0
    %v488 = vadd.f32 0.0, %v487
    %489 = vmatmul.f32.gmra.mxu0 %v423
    %v490 = vpop.f32.mrf.mxu0
    %v491 = vadd.f32 0.0, %v490
    %492 = vmatmul.f32.gmra.mxu0 %v426
    %v493 = vpop.f32.mrf.mxu0
    %v494 = vadd.f32 0.0, %v493
    %495 = vmatmul.f32.gmra.mxu0 %v429
    %v496 = vpop.f32.mrf.mxu0
    %v497 = vadd.f32 0.0, %v496
    %498 = vmatmul.f32.gmra.mxu0 %v432
    %v499 = vpop.f32.mrf.mxu0
    %v500 = vadd.f32 0.0, %v499
    %501 = vmatmul.f32.gmra.mxu0 %v435
    %v502 = vpop.f32.mrf.mxu0
    %v503 = vadd.f32 0.0, %v502
    %504 = vmatmul.f32.gmra.mxu0 %v438
    %v505 = vpop.f32.mrf.mxu0
    %v506 = vadd.f32 0.0, %v505
    %507 = vmatmul.f32.gmra.mxu0 %v441
    %v508 = vpop.f32.mrf.mxu0
    %v509 = vadd.f32 0.0, %v508
    %510 = vmatmul.f32.gmra.mxu0 %v444
    %v511 = vpop.f32.mrf.mxu0
    %v512 = vadd.f32 0.0, %v511
    %513 = vdwg.mxu0
    %v514 = vadd.f32 %v333, %v467
    %v515 = vadd.f32 %v336, %v470
    %v516 = vadd.f32 %v339, %v473
    %v517 = vadd.f32 %v342, %v476
    %v518 = vadd.f32 %v345, %v479
    %v519 = vadd.f32 %v348, %v482
    %v520 = vadd.f32 %v351, %v485
    %v521 = vadd.f32 %v354, %v488
    %v522 = vadd.f32 %v357, %v491
    %v523 = vadd.f32 %v360, %v494
    %v524 = vadd.f32 %v363, %v497
    %v525 = vadd.f32 %v366, %v500
    %v526 = vadd.f32 %v369, %v503
    %v527 = vadd.f32 %v372, %v506
    %v528 = vadd.f32 %v375, %v509
    %v529 = vadd.f32 %v378, %v512
    %v530 = vld [vmem:[%s94] sm:$0xff]
    %v531 = vld [vmem:[%s94 + $0x10] sm:$0xff]
    %v532 = vld [vmem:[%s94 + $0x20] sm:$0xff]
    %v533 = vld [vmem:[%s94 + $0x30] sm:$0xff]
    %v534 = vld [vmem:[%s94 + $0x40] sm:$0xff]
    %v535 = vld [vmem:[%s94 + $0x50] sm:$0xff]
    %v536 = vld [vmem:[%s94 + $0x60] sm:$0xff]
    %v537 = vld [vmem:[%s94 + $0x70] sm:$0xff]
    %v538 = vld [vmem:[%s94 + $0xa0] sm:$0xff]
    %v539 = vld [vmem:[%s94 + $0xb0] sm:$0xff]
    %v540 = vld [vmem:[%s94 + $0xc0] sm:$0xff]
    %v541 = vld [vmem:[%s94 + $0xd0] sm:$0xff]
    %v542 = vld [vmem:[%s94 + $0xe0] sm:$0xff]
    %v543 = vld [vmem:[%s94 + $0xf0] sm:$0xff]
    %v544 = vld [vmem:[%s94 + $0x100] sm:$0xff]
    %v545 = vld [vmem:[%s94 + $0x110] sm:$0xff]
    %s546 = scalar_lea.vmem %s1, 12
    %v547 = vld [vmem:[%s546] sm:$0xf]
    %v549 = vsel %vm95, %v530, 0
    %v552 = vsel %vm95, %v531, 0
    %v555 = vsel %vm95, %v532, 0
    %v558 = vsel %vm95, %v533, 0
    %v561 = vsel %vm95, %v534, 0
    %v564 = vsel %vm95, %v535, 0
    %v567 = vsel %vm95, %v536, 0
    %v570 = vsel %vm95, %v537, 0
    %v573 = vsel %vm95, %v538, 0
    %v576 = vsel %vm95, %v539, 0
    %v579 = vsel %vm95, %v540, 0
    %v582 = vsel %vm95, %v541, 0
    %v585 = vsel %vm95, %v542, 0
    %v588 = vsel %vm95, %v543, 0
    %v591 = vsel %vm95, %v544, 0
    %v594 = vsel %vm95, %v545, 0
    %v597 = vsel %vm195, %v547, 0
    %599 = vmatpush.msra.mxu0 0.0
    %600 = vmatpush.msra.mxu0 0.0
    %601 = vmatpush.msra.mxu0 0.0
    %602 = vmatpush.msra.mxu0 0.0
    %603 = vmatpush.msra.mxu0 0.0
    %604 = vmatpush.msra.mxu0 0.0
    %605 = vmatpush.msra.mxu0 0.0
    %606 = vmatpush.msra.mxu0 0.0
    %607 = vmatpush.msra.mxu0 0.0
    %608 = vmatpush.msra.mxu0 0.0
    %609 = vmatpush.msra.mxu0 0.0
    %610 = vmatpush.msra.mxu0 0.0
    %611 = vmatpush.msra.mxu0 0.0
    %612 = vmatpush.msra.mxu0 0.0
    %613 = vmatpush.msra.mxu0 0.0
    %614 = vmatpush.msra.mxu0 %v597
    %615 = vmatmul.f32.gmra.mxu0 %v549
    %v616 = vpop.f32.mrf.mxu0
    %v617 = vadd.f32 0.0, %v616
    %618 = vmatmul.f32.gmra.mxu0 %v552
    %v619 = vpop.f32.mrf.mxu0
    %v620 = vadd.f32 0.0, %v619
    %621 = vmatmul.f32.gmra.mxu0 %v555
    %v622 = vpop.f32.mrf.mxu0
    %v623 = vadd.f32 0.0, %v622
    %624 = vmatmul.f32.gmra.mxu0 %v558
    %v625 = vpop.f32.mrf.mxu0
    %v626 = vadd.f32 0.0, %v625
    %627 = vmatmul.f32.gmra.mxu0 %v561
    %v628 = vpop.f32.mrf.mxu0
    %v629 = vadd.f32 0.0, %v628
    %630 = vmatmul.f32.gmra.mxu0 %v564
    %v631 = vpop.f32.mrf.mxu0
    %v632 = vadd.f32 0.0, %v631
    %633 = vmatmul.f32.gmra.mxu0 %v567
    %v634 = vpop.f32.mrf.mxu0
    %v635 = vadd.f32 0.0, %v634
    %636 = vmatmul.f32.gmra.mxu0 %v570
    %v637 = vpop.f32.mrf.mxu0
    %v638 = vadd.f32 0.0, %v637
    %639 = vmatmul.f32.gmra.mxu0 %v573
    %v640 = vpop.f32.mrf.mxu0
    %v641 = vadd.f32 0.0, %v640
    %642 = vmatmul.f32.gmra.mxu0 %v576
    %v643 = vpop.f32.mrf.mxu0
    %v644 = vadd.f32 0.0, %v643
    %645 = vmatmul.f32.gmra.mxu0 %v579
    %v646 = vpop.f32.mrf.mxu0
    %v647 = vadd.f32 0.0, %v646
    %648 = vmatmul.f32.gmra.mxu0 %v582
    %v649 = vpop.f32.mrf.mxu0
    %v650 = vadd.f32 0.0, %v649
    %651 = vmatmul.f32.gmra.mxu0 %v585
    %v652 = vpop.f32.mrf.mxu0
    %v653 = vadd.f32 0.0, %v652
    %654 = vmatmul.f32.gmra.mxu0 %v588
    %v655 = vpop.f32.mrf.mxu0
    %v656 = vadd.f32 0.0, %v655
    %657 = vmatmul.f32.gmra.mxu0 %v591
    %v658 = vpop.f32.mrf.mxu0
    %v659 = vadd.f32 0.0, %v658
    %660 = vmatmul.f32.gmra.mxu0 %v594
    %v661 = vpop.f32.mrf.mxu0
    %v662 = vadd.f32 0.0, %v661
    %663 = vdwg.mxu0
    %v664 = vadd.f32 %v514, %v617
    %v665 = vadd.f32 %v515, %v620
    %v666 = vadd.f32 %v516, %v623
    %v667 = vadd.f32 %v517, %v626
    %v668 = vadd.f32 %v518, %v629
    %v669 = vadd.f32 %v519, %v632
    %v670 = vadd.f32 %v520, %v635
    %v671 = vadd.f32 %v521, %v638
    %v672 = vadd.f32 %v522, %v641
    %v673 = vadd.f32 %v523, %v644
    %v674 = vadd.f32 %v524, %v647
    %v675 = vadd.f32 %v525, %v650
    %v676 = vadd.f32 %v526, %v653
    %v677 = vadd.f32 %v527, %v656
    %v678 = vadd.f32 %v528, %v659
    %v679 = vadd.f32 %v529, %v662
    %v680 = vld [vmem:[%s94 + $0x1] sm:$0xff]
    %v681 = vld [vmem:[%s94 + $0x11] sm:$0xff]
    %v682 = vld [vmem:[%s94 + $0x21] sm:$0xff]
    %v683 = vld [vmem:[%s94 + $0x31] sm:$0xff]
    %v684 = vld [vmem:[%s94 + $0x41] sm:$0xff]
    %v685 = vld [vmem:[%s94 + $0x51] sm:$0xff]
    %v686 = vld [vmem:[%s94 + $0x61] sm:$0xff]
    %v687 = vld [vmem:[%s94 + $0x71] sm:$0xff]
    %v688 = vld [vmem:[%s94 + $0xa1] sm:$0xff]
    %v689 = vld [vmem:[%s94 + $0xb1] sm:$0xff]
    %v690 = vld [vmem:[%s94 + $0xc1] sm:$0xff]
    %v691 = vld [vmem:[%s94 + $0xd1] sm:$0xff]
    %v692 = vld [vmem:[%s94 + $0xe1] sm:$0xff]
    %v693 = vld [vmem:[%s94 + $0xf1] sm:$0xff]
    %v694 = vld [vmem:[%s94 + $0x101] sm:$0xff]
    %v695 = vld [vmem:[%s94 + $0x111] sm:$0xff]
    %s696 = scalar_lea.vmem %s1, 16
    %v697 = vld [vmem:[%s696] sm:$0xf]
    %v699 = vsel %vm95, %v680, 0
    %v702 = vsel %vm95, %v681, 0
    %v705 = vsel %vm95, %v682, 0
    %v708 = vsel %vm95, %v683, 0
    %v711 = vsel %vm95, %v684, 0
    %v714 = vsel %vm95, %v685, 0
    %v717 = vsel %vm95, %v686, 0
    %v720 = vsel %vm95, %v687, 0
    %v723 = vsel %vm95, %v688, 0
    %v726 = vsel %vm95, %v689, 0
    %v729 = vsel %vm95, %v690, 0
    %v732 = vsel %vm95, %v691, 0
    %v735 = vsel %vm95, %v692, 0
    %v738 = vsel %vm95, %v693, 0
    %v741 = vsel %vm95, %v694, 0
    %v744 = vsel %vm95, %v695, 0
    %v747 = vsel %vm195, %v697, 0
    %749 = vmatpush.msra.mxu0 0.0
    %750 = vmatpush.msra.mxu0 0.0
    %751 = vmatpush.msra.mxu0 0.0
    %752 = vmatpush.msra.mxu0 0.0
    %753 = vmatpush.msra.mxu0 0.0
    %754 = vmatpush.msra.mxu0 0.0
    %755 = vmatpush.msra.mxu0 0.0
    %756 = vmatpush.msra.mxu0 0.0
    %757 = vmatpush.msra.mxu0 0.0
    %758 = vmatpush.msra.mxu0 0.0
    %759 = vmatpush.msra.mxu0 0.0
    %760 = vmatpush.msra.mxu0 0.0
    %761 = vmatpush.msra.mxu0 0.0
    %762 = vmatpush.msra.mxu0 0.0
    %763 = vmatpush.msra.mxu0 0.0
    %764 = vmatpush.msra.mxu0 %v747
    %765 = vmatmul.f32.gmra.mxu0 %v699
    %v766 = vpop.f32.mrf.mxu0
    %v767 = vadd.f32 0.0, %v766
    %768 = vmatmul.f32.gmra.mxu0 %v702
    %v769 = vpop.f32.mrf.mxu0
    %v770 = vadd.f32 0.0, %v769
    %771 = vmatmul.f32.gmra.mxu0 %v705
    %v772 = vpop.f32.mrf.mxu0
    %v773 = vadd.f32 0.0, %v772
    %774 = vmatmul.f32.gmra.mxu0 %v708
    %v775 = vpop.f32.mrf.mxu0
    %v776 = vadd.f32 0.0, %v775
    %777 = vmatmul.f32.gmra.mxu0 %v711
    %v778 = vpop.f32.mrf.mxu0
    %v779 = vadd.f32 0.0, %v778
    %780 = vmatmul.f32.gmra.mxu0 %v714
    %v781 = vpop.f32.mrf.mxu0
    %v782 = vadd.f32 0.0, %v781
    %783 = vmatmul.f32.gmra.mxu0 %v717
    %v784 = vpop.f32.mrf.mxu0
    %v785 = vadd.f32 0.0, %v784
    %786 = vmatmul.f32.gmra.mxu0 %v720
    %v787 = vpop.f32.mrf.mxu0
    %v788 = vadd.f32 0.0, %v787
    %789 = vmatmul.f32.gmra.mxu0 %v723
    %v790 = vpop.f32.mrf.mxu0
    %v791 = vadd.f32 0.0, %v790
    %792 = vmatmul.f32.gmra.mxu0 %v726
    %v793 = vpop.f32.mrf.mxu0
    %v794 = vadd.f32 0.0, %v793
    %795 = vmatmul.f32.gmra.mxu0 %v729
    %v796 = vpop.f32.mrf.mxu0
    %v797 = vadd.f32 0.0, %v796
    %798 = vmatmul.f32.gmra.mxu0 %v732
    %v799 = vpop.f32.mrf.mxu0
    %v800 = vadd.f32 0.0, %v799
    %801 = vmatmul.f32.gmra.mxu0 %v735
    %v802 = vpop.f32.mrf.mxu0
    %v803 = vadd.f32 0.0, %v802
    %804 = vmatmul.f32.gmra.mxu0 %v738
    %v805 = vpop.f32.mrf.mxu0
    %v806 = vadd.f32 0.0, %v805
    %807 = vmatmul.f32.gmra.mxu0 %v741
    %v808 = vpop.f32.mrf.mxu0
    %v809 = vadd.f32 0.0, %v808
    %810 = vmatmul.f32.gmra.mxu0 %v744
    %v811 = vpop.f32.mrf.mxu0
    %v812 = vadd.f32 0.0, %v811
    %813 = vdwg.mxu0
    %v814 = vadd.f32 %v664, %v767
    %v815 = vadd.f32 %v665, %v770
    %v816 = vadd.f32 %v666, %v773
    %v817 = vadd.f32 %v667, %v776
    %v818 = vadd.f32 %v668, %v779
    %v819 = vadd.f32 %v669, %v782
    %v820 = vadd.f32 %v670, %v785
    %v821 = vadd.f32 %v671, %v788
    %v822 = vadd.f32 %v672, %v791
    %v823 = vadd.f32 %v673, %v794
    %v824 = vadd.f32 %v674, %v797
    %v825 = vadd.f32 %v675, %v800
    %v826 = vadd.f32 %v676, %v803
    %v827 = vadd.f32 %v677, %v806
    %v828 = vadd.f32 %v678, %v809
    %v829 = vadd.f32 %v679, %v812
    %v830 = vld [vmem:[%s94 + $0x2] sm:$0xff]
    %v831 = vld [vmem:[%s94 + $0x12] sm:$0xff]
    %v832 = vld [vmem:[%s94 + $0x22] sm:$0xff]
    %v833 = vld [vmem:[%s94 + $0x32] sm:$0xff]
    %v834 = vld [vmem:[%s94 + $0x42] sm:$0xff]
    %v835 = vld [vmem:[%s94 + $0x52] sm:$0xff]
    %v836 = vld [vmem:[%s94 + $0x62] sm:$0xff]
    %v837 = vld [vmem:[%s94 + $0x72] sm:$0xff]
    %v838 = vld [vmem:[%s94 + $0xa2] sm:$0xff]
    %v839 = vld [vmem:[%s94 + $0xb2] sm:$0xff]
    %v840 = vld [vmem:[%s94 + $0xc2] sm:$0xff]
    %v841 = vld [vmem:[%s94 + $0xd2] sm:$0xff]
    %v842 = vld [vmem:[%s94 + $0xe2] sm:$0xff]
    %v843 = vld [vmem:[%s94 + $0xf2] sm:$0xff]
    %v844 = vld [vmem:[%s94 + $0x102] sm:$0xff]
    %v845 = vld [vmem:[%s94 + $0x112] sm:$0xff]
    %s846 = scalar_lea.vmem %s1, 20
    %v847 = vld [vmem:[%s846] sm:$0xf]
    %v849 = vsel %vm95, %v830, 0
    %v852 = vsel %vm95, %v831, 0
    %v855 = vsel %vm95, %v832, 0
    %v858 = vsel %vm95, %v833, 0
    %v861 = vsel %vm95, %v834, 0
    %v864 = vsel %vm95, %v835, 0
    %v867 = vsel %vm95, %v836, 0
    %v870 = vsel %vm95, %v837, 0
    %v873 = vsel %vm95, %v838, 0
    %v876 = vsel %vm95, %v839, 0
    %v879 = vsel %vm95, %v840, 0
    %v882 = vsel %vm95, %v841, 0
    %v885 = vsel %vm95, %v842, 0
    %v888 = vsel %vm95, %v843, 0
    %v891 = vsel %vm95, %v844, 0
    %v894 = vsel %vm95, %v845, 0
    %v897 = vsel %vm195, %v847, 0
    %899 = vmatpush.msra.mxu0 0.0
    %900 = vmatpush.msra.mxu0 0.0
    %901 = vmatpush.msra.mxu0 0.0
    %902 = vmatpush.msra.mxu0 0.0
    %903 = vmatpush.msra.mxu0 0.0
    %904 = vmatpush.msra.mxu0 0.0
    %905 = vmatpush.msra.mxu0 0.0
    %906 = vmatpush.msra.mxu0 0.0
    %907 = vmatpush.msra.mxu0 0.0
    %908 = vmatpush.msra.mxu0 0.0
    %909 = vmatpush.msra.mxu0 0.0
    %910 = vmatpush.msra.mxu0 0.0
    %911 = vmatpush.msra.mxu0 0.0
    %912 = vmatpush.msra.mxu0 0.0
    %913 = vmatpush.msra.mxu0 0.0
    %914 = vmatpush.msra.mxu0 %v897
    %915 = vmatmul.f32.gmra.mxu0 %v849
    %v916 = vpop.f32.mrf.mxu0
    %v917 = vadd.f32 0.0, %v916
    %918 = vmatmul.f32.gmra.mxu0 %v852
    %v919 = vpop.f32.mrf.mxu0
    %v920 = vadd.f32 0.0, %v919
    %921 = vmatmul.f32.gmra.mxu0 %v855
    %v922 = vpop.f32.mrf.mxu0
    %v923 = vadd.f32 0.0, %v922
    %924 = vmatmul.f32.gmra.mxu0 %v858
    %v925 = vpop.f32.mrf.mxu0
    %v926 = vadd.f32 0.0, %v925
    %927 = vmatmul.f32.gmra.mxu0 %v861
    %v928 = vpop.f32.mrf.mxu0
    %v929 = vadd.f32 0.0, %v928
    %930 = vmatmul.f32.gmra.mxu0 %v864
    %v931 = vpop.f32.mrf.mxu0
    %v932 = vadd.f32 0.0, %v931
    %933 = vmatmul.f32.gmra.mxu0 %v867
    %v934 = vpop.f32.mrf.mxu0
    %v935 = vadd.f32 0.0, %v934
    %936 = vmatmul.f32.gmra.mxu0 %v870
    %v937 = vpop.f32.mrf.mxu0
    %v938 = vadd.f32 0.0, %v937
    %939 = vmatmul.f32.gmra.mxu0 %v873
    %v940 = vpop.f32.mrf.mxu0
    %v941 = vadd.f32 0.0, %v940
    %942 = vmatmul.f32.gmra.mxu0 %v876
    %v943 = vpop.f32.mrf.mxu0
    %v944 = vadd.f32 0.0, %v943
    %945 = vmatmul.f32.gmra.mxu0 %v879
    %v946 = vpop.f32.mrf.mxu0
    %v947 = vadd.f32 0.0, %v946
    %948 = vmatmul.f32.gmra.mxu0 %v882
    %v949 = vpop.f32.mrf.mxu0
    %v950 = vadd.f32 0.0, %v949
    %951 = vmatmul.f32.gmra.mxu0 %v885
    %v952 = vpop.f32.mrf.mxu0
    %v953 = vadd.f32 0.0, %v952
    %954 = vmatmul.f32.gmra.mxu0 %v888
    %v955 = vpop.f32.mrf.mxu0
    %v956 = vadd.f32 0.0, %v955
    %957 = vmatmul.f32.gmra.mxu0 %v891
    %v958 = vpop.f32.mrf.mxu0
    %v959 = vadd.f32 0.0, %v958
    %960 = vmatmul.f32.gmra.mxu0 %v894
    %v961 = vpop.f32.mrf.mxu0
    %v962 = vadd.f32 0.0, %v961
    %963 = vdwg.mxu0
    %v964 = vadd.f32 %v814, %v917
    %v965 = vadd.f32 %v815, %v920
    %v966 = vadd.f32 %v816, %v923
    %v967 = vadd.f32 %v817, %v926
    %v968 = vadd.f32 %v818, %v929
    %v969 = vadd.f32 %v819, %v932
    %v970 = vadd.f32 %v820, %v935
    %v971 = vadd.f32 %v821, %v938
    %v972 = vadd.f32 %v822, %v941
    %v973 = vadd.f32 %v823, %v944
    %v974 = vadd.f32 %v824, %v947
    %v975 = vadd.f32 %v825, %v950
    %v976 = vadd.f32 %v826, %v953
    %v977 = vadd.f32 %v827, %v956
    %v978 = vadd.f32 %v828, %v959
    %v979 = vadd.f32 %v829, %v962
    %s980 = scalar_lea.vmem [#allocation2], 32
    %v981 = vld [vmem:[%s980] sm:$0xff]
    %v982 = vld [vmem:[%s980 + $0x10] sm:$0xff]
    %v983 = vld [vmem:[%s980 + $0x20] sm:$0xff]
    %v984 = vld [vmem:[%s980 + $0x30] sm:$0xff]
    %v985 = vld [vmem:[%s980 + $0x40] sm:$0xff]
    %v986 = vld [vmem:[%s980 + $0x50] sm:$0xff]
    %v987 = vld [vmem:[%s980 + $0x60] sm:$0xff]
    %v988 = vld [vmem:[%s980 + $0x70] sm:$0xff]
    %v989 = vld [vmem:[%s980 + $0xa0] sm:$0xff]
    %v990 = vld [vmem:[%s980 + $0xb0] sm:$0xff]
    %v991 = vld [vmem:[%s980 + $0xc0] sm:$0xff]
    %v992 = vld [vmem:[%s980 + $0xd0] sm:$0xff]
    %v993 = vld [vmem:[%s980 + $0xe0] sm:$0xff]
    %v994 = vld [vmem:[%s980 + $0xf0] sm:$0xff]
    %v995 = vld [vmem:[%s980 + $0x100] sm:$0xff]
    %v996 = vld [vmem:[%s980 + $0x110] sm:$0xff]
    %s997 = scalar_lea.vmem %s1, 24
    %v998 = vld [vmem:[%s997] sm:$0xf]
    %v1000 = vsel %vm95, %v981, 0
    %v1003 = vsel %vm95, %v982, 0
    %v1006 = vsel %vm95, %v983, 0
    %v1009 = vsel %vm95, %v984, 0
    %v1012 = vsel %vm95, %v985, 0
    %v1015 = vsel %vm95, %v986, 0
    %v1018 = vsel %vm95, %v987, 0
    %v1021 = vsel %vm95, %v988, 0
    %v1024 = vsel %vm95, %v989, 0
    %v1027 = vsel %vm95, %v990, 0
    %v1030 = vsel %vm95, %v991, 0
    %v1033 = vsel %vm95, %v992, 0
    %v1036 = vsel %vm95, %v993, 0
    %v1039 = vsel %vm95, %v994, 0
    %v1042 = vsel %vm95, %v995, 0
    %v1045 = vsel %vm95, %v996, 0
    %v1048 = vsel %vm195, %v998, 0
    %1050 = vmatpush.msra.mxu0 0.0
    %1051 = vmatpush.msra.mxu0 0.0
    %1052 = vmatpush.msra.mxu0 0.0
    %1053 = vmatpush.msra.mxu0 0.0
    %1054 = vmatpush.msra.mxu0 0.0
    %1055 = vmatpush.msra.mxu0 0.0
    %1056 = vmatpush.msra.mxu0 0.0
    %1057 = vmatpush.msra.mxu0 0.0
    %1058 = vmatpush.msra.mxu0 0.0
    %1059 = vmatpush.msra.mxu0 0.0
    %1060 = vmatpush.msra.mxu0 0.0
    %1061 = vmatpush.msra.mxu0 0.0
    %1062 = vmatpush.msra.mxu0 0.0
    %1063 = vmatpush.msra.mxu0 0.0
    %1064 = vmatpush.msra.mxu0 0.0
    %1065 = vmatpush.msra.mxu0 %v1048
    %1066 = vmatmul.f32.gmra.mxu0 %v1000
    %v1067 = vpop.f32.mrf.mxu0
    %v1068 = vadd.f32 0.0, %v1067
    %1069 = vmatmul.f32.gmra.mxu0 %v1003
    %v1070 = vpop.f32.mrf.mxu0
    %v1071 = vadd.f32 0.0, %v1070
    %1072 = vmatmul.f32.gmra.mxu0 %v1006
    %v1073 = vpop.f32.mrf.mxu0
    %v1074 = vadd.f32 0.0, %v1073
    %1075 = vmatmul.f32.gmra.mxu0 %v1009
    %v1076 = vpop.f32.mrf.mxu0
    %v1077 = vadd.f32 0.0, %v1076
    %1078 = vmatmul.f32.gmra.mxu0 %v1012
    %v1079 = vpop.f32.mrf.mxu0
    %v1080 = vadd.f32 0.0, %v1079
    %1081 = vmatmul.f32.gmra.mxu0 %v1015
    %v1082 = vpop.f32.mrf.mxu0
    %v1083 = vadd.f32 0.0, %v1082
    %1084 = vmatmul.f32.gmra.mxu0 %v1018
    %v1085 = vpop.f32.mrf.mxu0
    %v1086 = vadd.f32 0.0, %v1085
    %1087 = vmatmul.f32.gmra.mxu0 %v1021
    %v1088 = vpop.f32.mrf.mxu0
    %v1089 = vadd.f32 0.0, %v1088
    %1090 = vmatmul.f32.gmra.mxu0 %v1024
    %v1091 = vpop.f32.mrf.mxu0
    %v1092 = vadd.f32 0.0, %v1091
    %1093 = vmatmul.f32.gmra.mxu0 %v1027
    %v1094 = vpop.f32.mrf.mxu0
    %v1095 = vadd.f32 0.0, %v1094
    %1096 = vmatmul.f32.gmra.mxu0 %v1030
    %v1097 = vpop.f32.mrf.mxu0
    %v1098 = vadd.f32 0.0, %v1097
    %1099 = vmatmul.f32.gmra.mxu0 %v1033
    %v1100 = vpop.f32.mrf.mxu0
    %v1101 = vadd.f32 0.0, %v1100
    %1102 = vmatmul.f32.gmra.mxu0 %v1036
    %v1103 = vpop.f32.mrf.mxu0
    %v1104 = vadd.f32 0.0, %v1103
    %1105 = vmatmul.f32.gmra.mxu0 %v1039
    %v1106 = vpop.f32.mrf.mxu0
    %v1107 = vadd.f32 0.0, %v1106
    %1108 = vmatmul.f32.gmra.mxu0 %v1042
    %v1109 = vpop.f32.mrf.mxu0
    %v1110 = vadd.f32 0.0, %v1109
    %1111 = vmatmul.f32.gmra.mxu0 %v1045
    %v1112 = vpop.f32.mrf.mxu0
    %v1113 = vadd.f32 0.0, %v1112
    %1114 = vdwg.mxu0
    %v1115 = vadd.f32 %v964, %v1068
    %v1116 = vadd.f32 %v965, %v1071
    %v1117 = vadd.f32 %v966, %v1074
    %v1118 = vadd.f32 %v967, %v1077
    %v1119 = vadd.f32 %v968, %v1080
    %v1120 = vadd.f32 %v969, %v1083
    %v1121 = vadd.f32 %v970, %v1086
    %v1122 = vadd.f32 %v971, %v1089
    %v1123 = vadd.f32 %v972, %v1092
    %v1124 = vadd.f32 %v973, %v1095
    %v1125 = vadd.f32 %v974, %v1098
    %v1126 = vadd.f32 %v975, %v1101
    %v1127 = vadd.f32 %v976, %v1104
    %v1128 = vadd.f32 %v977, %v1107
    %v1129 = vadd.f32 %v978, %v1110
    %v1130 = vadd.f32 %v979, %v1113
    %v1131 = vld [vmem:[%s980 + $0x1] sm:$0xff]
    %v1132 = vld [vmem:[%s980 + $0x11] sm:$0xff]
    %v1133 = vld [vmem:[%s980 + $0x21] sm:$0xff]
    %v1134 = vld [vmem:[%s980 + $0x31] sm:$0xff]
    %v1135 = vld [vmem:[%s980 + $0x41] sm:$0xff]
    %v1136 = vld [vmem:[%s980 + $0x51] sm:$0xff]
    %v1137 = vld [vmem:[%s980 + $0x61] sm:$0xff]
    %v1138 = vld [vmem:[%s980 + $0x71] sm:$0xff]
    %v1139 = vld [vmem:[%s980 + $0xa1] sm:$0xff]
    %v1140 = vld [vmem:[%s980 + $0xb1] sm:$0xff]
    %v1141 = vld [vmem:[%s980 + $0xc1] sm:$0xff]
    %v1142 = vld [vmem:[%s980 + $0xd1] sm:$0xff]
    %v1143 = vld [vmem:[%s980 + $0xe1] sm:$0xff]
    %v1144 = vld [vmem:[%s980 + $0xf1] sm:$0xff]
    %v1145 = vld [vmem:[%s980 + $0x101] sm:$0xff]
    %v1146 = vld [vmem:[%s980 + $0x111] sm:$0xff]
    %s1147 = scalar_lea.vmem %s1, 28
    %v1148 = vld [vmem:[%s1147] sm:$0xf]
    %v1150 = vsel %vm95, %v1131, 0
    %v1153 = vsel %vm95, %v1132, 0
    %v1156 = vsel %vm95, %v1133, 0
    %v1159 = vsel %vm95, %v1134, 0
    %v1162 = vsel %vm95, %v1135, 0
    %v1165 = vsel %vm95, %v1136, 0
    %v1168 = vsel %vm95, %v1137, 0
    %v1171 = vsel %vm95, %v1138, 0
    %v1174 = vsel %vm95, %v1139, 0
    %v1177 = vsel %vm95, %v1140, 0
    %v1180 = vsel %vm95, %v1141, 0
    %v1183 = vsel %vm95, %v1142, 0
    %v1186 = vsel %vm95, %v1143, 0
    %v1189 = vsel %vm95, %v1144, 0
    %v1192 = vsel %vm95, %v1145, 0
    %v1195 = vsel %vm95, %v1146, 0
    %v1198 = vsel %vm195, %v1148, 0
    %1200 = vmatpush.msra.mxu0 0.0
    %1201 = vmatpush.msra.mxu0 0.0
    %1202 = vmatpush.msra.mxu0 0.0
    %1203 = vmatpush.msra.mxu0 0.0
    %1204 = vmatpush.msra.mxu0 0.0
    %1205 = vmatpush.msra.mxu0 0.0
    %1206 = vmatpush.msra.mxu0 0.0
    %1207 = vmatpush.msra.mxu0 0.0
    %1208 = vmatpush.msra.mxu0 0.0
    %1209 = vmatpush.msra.mxu0 0.0
    %1210 = vmatpush.msra.mxu0 0.0
    %1211 = vmatpush.msra.mxu0 0.0
    %1212 = vmatpush.msra.mxu0 0.0
    %1213 = vmatpush.msra.mxu0 0.0
    %1214 = vmatpush.msra.mxu0 0.0
    %1215 = vmatpush.msra.mxu0 %v1198
    %1216 = vmatmul.f32.gmra.mxu0 %v1150
    %v1217 = vpop.f32.mrf.mxu0
    %v1218 = vadd.f32 0.0, %v1217
    %1219 = vmatmul.f32.gmra.mxu0 %v1153
    %v1220 = vpop.f32.mrf.mxu0
    %v1221 = vadd.f32 0.0, %v1220
    %1222 = vmatmul.f32.gmra.mxu0 %v1156
    %v1223 = vpop.f32.mrf.mxu0
    %v1224 = vadd.f32 0.0, %v1223
    %1225 = vmatmul.f32.gmra.mxu0 %v1159
    %v1226 = vpop.f32.mrf.mxu0
    %v1227 = vadd.f32 0.0, %v1226
    %1228 = vmatmul.f32.gmra.mxu0 %v1162
    %v1229 = vpop.f32.mrf.mxu0
    %v1230 = vadd.f32 0.0, %v1229
    %1231 = vmatmul.f32.gmra.mxu0 %v1165
    %v1232 = vpop.f32.mrf.mxu0
    %v1233 = vadd.f32 0.0, %v1232
    %1234 = vmatmul.f32.gmra.mxu0 %v1168
    %v1235 = vpop.f32.mrf.mxu0
    %v1236 = vadd.f32 0.0, %v1235
    %1237 = vmatmul.f32.gmra.mxu0 %v1171
    %v1238 = vpop.f32.mrf.mxu0
    %v1239 = vadd.f32 0.0, %v1238
    %1240 = vmatmul.f32.gmra.mxu0 %v1174
    %v1241 = vpop.f32.mrf.mxu0
    %v1242 = vadd.f32 0.0, %v1241
    %1243 = vmatmul.f32.gmra.mxu0 %v1177
    %v1244 = vpop.f32.mrf.mxu0
    %v1245 = vadd.f32 0.0, %v1244
    %1246 = vmatmul.f32.gmra.mxu0 %v1180
    %v1247 = vpop.f32.mrf.mxu0
    %v1248 = vadd.f32 0.0, %v1247
    %1249 = vmatmul.f32.gmra.mxu0 %v1183
    %v1250 = vpop.f32.mrf.mxu0
    %v1251 = vadd.f32 0.0, %v1250
    %1252 = vmatmul.f32.gmra.mxu0 %v1186
    %v1253 = vpop.f32.mrf.mxu0
    %v1254 = vadd.f32 0.0, %v1253
    %1255 = vmatmul.f32.gmra.mxu0 %v1189
    %v1256 = vpop.f32.mrf.mxu0
    %v1257 = vadd.f32 0.0, %v1256
    %1258 = vmatmul.f32.gmra.mxu0 %v1192
    %v1259 = vpop.f32.mrf.mxu0
    %v1260 = vadd.f32 0.0, %v1259
    %1261 = vmatmul.f32.gmra.mxu0 %v1195
    %v1262 = vpop.f32.mrf.mxu0
    %v1263 = vadd.f32 0.0, %v1262
    %1264 = vdwg.mxu0
    %v1265 = vadd.f32 %v1115, %v1218
    %v1266 = vadd.f32 %v1116, %v1221
    %v1267 = vadd.f32 %v1117, %v1224
    %v1268 = vadd.f32 %v1118, %v1227
    %v1269 = vadd.f32 %v1119, %v1230
    %v1270 = vadd.f32 %v1120, %v1233
    %v1271 = vadd.f32 %v1121, %v1236
    %v1272 = vadd.f32 %v1122, %v1239
    %v1273 = vadd.f32 %v1123, %v1242
    %v1274 = vadd.f32 %v1124, %v1245
    %v1275 = vadd.f32 %v1125, %v1248
    %v1276 = vadd.f32 %v1126, %v1251
    %v1277 = vadd.f32 %v1127, %v1254
    %v1278 = vadd.f32 %v1128, %v1257
    %v1279 = vadd.f32 %v1129, %v1260
    %v1280 = vadd.f32 %v1130, %v1263
    %v1281 = vld [vmem:[%s980 + $0x2] sm:$0xff]
    %v1282 = vld [vmem:[%s980 + $0x12] sm:$0xff]
    %v1283 = vld [vmem:[%s980 + $0x22] sm:$0xff]
    %v1284 = vld [vmem:[%s980 + $0x32] sm:$0xff]
    %v1285 = vld [vmem:[%s980 + $0x42] sm:$0xff]
    %v1286 = vld [vmem:[%s980 + $0x52] sm:$0xff]
    %v1287 = vld [vmem:[%s980 + $0x62] sm:$0xff]
    %v1288 = vld [vmem:[%s980 + $0x72] sm:$0xff]
    %v1289 = vld [vmem:[%s980 + $0xa2] sm:$0xff]
    %v1290 = vld [vmem:[%s980 + $0xb2] sm:$0xff]
    %v1291 = vld [vmem:[%s980 + $0xc2] sm:$0xff]
    %v1292 = vld [vmem:[%s980 + $0xd2] sm:$0xff]
    %v1293 = vld [vmem:[%s980 + $0xe2] sm:$0xff]
    %v1294 = vld [vmem:[%s980 + $0xf2] sm:$0xff]
    %v1295 = vld [vmem:[%s980 + $0x102] sm:$0xff]
    %v1296 = vld [vmem:[%s980 + $0x112] sm:$0xff]
    %s1297 = scalar_lea.vmem %s1, 32
    %v1298 = vld [vmem:[%s1297] sm:$0xf]
    %v1300 = vsel %vm95, %v1281, 0
    %v1303 = vsel %vm95, %v1282, 0
    %v1306 = vsel %vm95, %v1283, 0
    %v1309 = vsel %vm95, %v1284, 0
    %v1312 = vsel %vm95, %v1285, 0
    %v1315 = vsel %vm95, %v1286, 0
    %v1318 = vsel %vm95, %v1287, 0
    %v1321 = vsel %vm95, %v1288, 0
    %v1324 = vsel %vm95, %v1289, 0
    %v1327 = vsel %vm95, %v1290, 0
    %v1330 = vsel %vm95, %v1291, 0
    %v1333 = vsel %vm95, %v1292, 0
    %v1336 = vsel %vm95, %v1293, 0
    %v1339 = vsel %vm95, %v1294, 0
    %v1342 = vsel %vm95, %v1295, 0
    %v1345 = vsel %vm95, %v1296, 0
    %v1348 = vsel %vm195, %v1298, 0
    %1350 = vmatpush.msra.mxu0 0.0
    %1351 = vmatpush.msra.mxu0 0.0
    %1352 = vmatpush.msra.mxu0 0.0
    %1353 = vmatpush.msra.mxu0 0.0
    %1354 = vmatpush.msra.mxu0 0.0
    %1355 = vmatpush.msra.mxu0 0.0
    %1356 = vmatpush.msra.mxu0 0.0
    %1357 = vmatpush.msra.mxu0 0.0
    %1358 = vmatpush.msra.mxu0 0.0
    %1359 = vmatpush.msra.mxu0 0.0
    %1360 = vmatpush.msra.mxu0 0.0
    %1361 = vmatpush.msra.mxu0 0.0
    %1362 = vmatpush.msra.mxu0 0.0
    %1363 = vmatpush.msra.mxu0 0.0
    %1364 = vmatpush.msra.mxu0 0.0
    %1365 = vmatpush.msra.mxu0 %v1348
    %1366 = vmatmul.f32.gmra.mxu0 %v1300
    %v1367 = vpop.f32.mrf.mxu0
    %v1368 = vadd.f32 0.0, %v1367
    %1369 = vmatmul.f32.gmra.mxu0 %v1303
    %v1370 = vpop.f32.mrf.mxu0
    %v1371 = vadd.f32 0.0, %v1370
    %1372 = vmatmul.f32.gmra.mxu0 %v1306
    %v1373 = vpop.f32.mrf.mxu0
    %v1374 = vadd.f32 0.0, %v1373
    %1375 = vmatmul.f32.gmra.mxu0 %v1309
    %v1376 = vpop.f32.mrf.mxu0
    %v1377 = vadd.f32 0.0, %v1376
    %1378 = vmatmul.f32.gmra.mxu0 %v1312
    %v1379 = vpop.f32.mrf.mxu0
    %v1380 = vadd.f32 0.0, %v1379
    %1381 = vmatmul.f32.gmra.mxu0 %v1315
    %v1382 = vpop.f32.mrf.mxu0
    %v1383 = vadd.f32 0.0, %v1382
    %1384 = vmatmul.f32.gmra.mxu0 %v1318
    %v1385 = vpop.f32.mrf.mxu0
    %v1386 = vadd.f32 0.0, %v1385
    %1387 = vmatmul.f32.gmra.mxu0 %v1321
    %v1388 = vpop.f32.mrf.mxu0
    %v1389 = vadd.f32 0.0, %v1388
    %1390 = vmatmul.f32.gmra.mxu0 %v1324
    %v1391 = vpop.f32.mrf.mxu0
    %v1392 = vadd.f32 0.0, %v1391
    %1393 = vmatmul.f32.gmra.mxu0 %v1327
    %v1394 = vpop.f32.mrf.mxu0
    %v1395 = vadd.f32 0.0, %v1394
    %1396 = vmatmul.f32.gmra.mxu0 %v1330
    %v1397 = vpop.f32.mrf.mxu0
    %v1398 = vadd.f32 0.0, %v1397
    %1399 = vmatmul.f32.gmra.mxu0 %v1333
    %v1400 = vpop.f32.mrf.mxu0
    %v1401 = vadd.f32 0.0, %v1400
    %1402 = vmatmul.f32.gmra.mxu0 %v1336
    %v1403 = vpop.f32.mrf.mxu0
    %v1404 = vadd.f32 0.0, %v1403
    %1405 = vmatmul.f32.gmra.mxu0 %v1339
    %v1406 = vpop.f32.mrf.mxu0
    %v1407 = vadd.f32 0.0, %v1406
    %1408 = vmatmul.f32.gmra.mxu0 %v1342
    %v1409 = vpop.f32.mrf.mxu0
    %v1410 = vadd.f32 0.0, %v1409
    %1411 = vmatmul.f32.gmra.mxu0 %v1345
    %v1412 = vpop.f32.mrf.mxu0
    %v1413 = vadd.f32 0.0, %v1412
    %1414 = vdwg.mxu0
    %v1415 = vadd.f32 %v1265, %v1368
    %v1416 = vadd.f32 %v1266, %v1371
    %v1417 = vadd.f32 %v1267, %v1374
    %v1418 = vadd.f32 %v1268, %v1377
    %v1419 = vadd.f32 %v1269, %v1380
    %v1420 = vadd.f32 %v1270, %v1383
    %v1421 = vadd.f32 %v1271, %v1386
    %v1422 = vadd.f32 %v1272, %v1389
    %v1423 = vadd.f32 %v1273, %v1392
    %v1424 = vadd.f32 %v1274, %v1395
    %v1425 = vadd.f32 %v1275, %v1398
    %v1426 = vadd.f32 %v1276, %v1401
    %v1427 = vadd.f32 %v1277, %v1404
    %v1428 = vadd.f32 %v1278, %v1407
    %v1429 = vadd.f32 %v1279, %v1410
    %v1430 = vadd.f32 %v1280, %v1413
    %v1431 = vld [vmem:[%s3] sm:$0x1]
    %v1433 = vperm.slane %v1431, 0
    %v1435 = vmul.f32 %v1415, %v1433
    %v1436 = vmul.f32 %v1416, %v1433
    %v1437 = vmul.f32 %v1417, %v1433
    %v1438 = vmul.f32 %v1418, %v1433
    %v1439 = vmul.f32 %v1419, %v1433
    %v1440 = vmul.f32 %v1420, %v1433
    %v1441 = vmul.f32 %v1421, %v1433
    %v1442 = vmul.f32 %v1422, %v1433
    %v1443 = vmul.f32 %v1423, %v1433
    %v1444 = vmul.f32 %v1424, %v1433
    %v1445 = vmul.f32 %v1425, %v1433
    %v1446 = vmul.f32 %v1426, %v1433
    %v1447 = vmul.f32 %v1427, %v1433
    %v1448 = vmul.f32 %v1428, %v1433
    %v1449 = vmul.f32 %v1429, %v1433
    %v1450 = vmul.f32 %v1430, %v1433
    %v1451 = vld [vmem:[%s4] sm:$0x1]
    %v1453 = vperm.slane %v1451, 0
    %v1455 = vadd.f32 %v1435, %v1453
    %v1456 = vadd.f32 %v1436, %v1453
    %v1457 = vadd.f32 %v1437, %v1453
    %v1458 = vadd.f32 %v1438, %v1453
    %v1459 = vadd.f32 %v1439, %v1453
    %v1460 = vadd.f32 %v1440, %v1453
    %v1461 = vadd.f32 %v1441, %v1453
    %v1462 = vadd.f32 %v1442, %v1453
    %v1463 = vadd.f32 %v1443, %v1453
    %v1464 = vadd.f32 %v1444, %v1453
    %v1465 = vadd.f32 %v1445, %v1453
    %v1466 = vadd.f32 %v1446, %v1453
    %v1467 = vadd.f32 %v1447, %v1453
    %v1468 = vadd.f32 %v1448, %v1453
    %v1469 = vadd.f32 %v1449, %v1453
    %v1470 = vadd.f32 %v1450, %v1453
    %v1471 = vmax.f32 %v1455, 0.0
    %v1472 = vmax.f32 %v1456, 0.0
    %v1473 = vmax.f32 %v1457, 0.0
    %v1474 = vmax.f32 %v1458, 0.0
    %v1475 = vmax.f32 %v1459, 0.0
    %v1476 = vmax.f32 %v1460, 0.0
    %v1477 = vmax.f32 %v1461, 0.0
    %v1478 = vmax.f32 %v1462, 0.0
    %v1479 = vmax.f32 %v1463, 0.0
    %v1480 = vmax.f32 %v1464, 0.0
    %v1481 = vmax.f32 %v1465, 0.0
    %v1482 = vmax.f32 %v1466, 0.0
    %v1483 = vmax.f32 %v1467, 0.0
    %v1484 = vmax.f32 %v1468, 0.0
    %v1485 = vmax.f32 %v1469, 0.0
    %v1486 = vmax.f32 %v1470, 0.0
    %1487 = vst.msk [vmem:[%s94 + $0x1] sm:$0xff] %vm36, %v1471
    %1488 = vst.msk [vmem:[%s94 + $0x11] sm:$0xff] %vm36, %v1472
    %1489 = vst.msk [vmem:[%s94 + $0x21] sm:$0xff] %vm36, %v1473
    %1490 = vst.msk [vmem:[%s94 + $0x31] sm:$0xff] %vm36, %v1474
    %1491 = vst.msk [vmem:[%s94 + $0x41] sm:$0xff] %vm36, %v1475
    %1492 = vst.msk [vmem:[%s94 + $0x51] sm:$0xff] %vm36, %v1476
    %1493 = vst.msk [vmem:[%s94 + $0x61] sm:$0xff] %vm36, %v1477
    %1494 = vst.msk [vmem:[%s94 + $0x71] sm:$0xff] %vm36, %v1478
    %1495 = vst.msk [vmem:[%s94 + $0xa1] sm:$0xff] %vm36, %v1479
    %1496 = vst.msk [vmem:[%s94 + $0xb1] sm:$0xff] %vm36, %v1480
    %1497 = vst.msk [vmem:[%s94 + $0xc1] sm:$0xff] %vm36, %v1481
    %1498 = vst.msk [vmem:[%s94 + $0xd1] sm:$0xff] %vm36, %v1482
    %1499 = vst.msk [vmem:[%s94 + $0xe1] sm:$0xff] %vm36, %v1483
    %1500 = vst.msk [vmem:[%s94 + $0xf1] sm:$0xff] %vm36, %v1484
    %1501 = vst.msk [vmem:[%s94 + $0x101] sm:$0xff] %vm36, %v1485
    %1502 = vst.msk [vmem:[%s94 + $0x111] sm:$0xff] %vm36, %v1486
    %v1503 = vld [vmem:[#allocation2] sm:$0xff]
    %v1504 = vld [vmem:[#allocation2 + $0x10] sm:$0xff]
    %v1505 = vld [vmem:[#allocation2 + $0x20] sm:$0xff]
    %v1506 = vld [vmem:[#allocation2 + $0x30] sm:$0xff]
    %v1507 = vld [vmem:[#allocation2 + $0x40] sm:$0xff]
    %v1508 = vld [vmem:[#allocation2 + $0x50] sm:$0xff]
    %v1509 = vld [vmem:[#allocation2 + $0x60] sm:$0xff]
    %v1510 = vld [vmem:[#allocation2 + $0x70] sm:$0xff]
    %v1511 = vld [vmem:[#allocation2 + $0xa0] sm:$0xff]
    %v1512 = vld [vmem:[#allocation2 + $0xb0] sm:$0xff]
    %v1513 = vld [vmem:[#allocation2 + $0xc0] sm:$0xff]
    %v1514 = vld [vmem:[#allocation2 + $0xd0] sm:$0xff]
    %v1515 = vld [vmem:[#allocation2 + $0xe0] sm:$0xff]
    %v1516 = vld [vmem:[#allocation2 + $0xf0] sm:$0xff]
    %v1517 = vld [vmem:[#allocation2 + $0x100] sm:$0xff]
    %v1518 = vld [vmem:[#allocation2 + $0x110] sm:$0xff]
    %v1519 = vld [vmem:[#allocation3] sm:$0xff]
    %v1520 = vld [vmem:[#allocation3 + $0x8] sm:$0xff]
    %v1521 = vld [vmem:[#allocation3 + $0x10] sm:$0xff]
    %v1522 = vld [vmem:[#allocation3 + $0x18] sm:$0xff]
    %v1523 = vld [vmem:[#allocation2 + $0x1] sm:$0xff]
    %v1524 = vld [vmem:[#allocation2 + $0x11] sm:$0xff]
    %v1525 = vld [vmem:[#allocation2 + $0x21] sm:$0xff]
    %v1526 = vld [vmem:[#allocation2 + $0x31] sm:$0xff]
    %v1527 = vld [vmem:[#allocation2 + $0x41] sm:$0xff]
    %v1528 = vld [vmem:[#allocation2 + $0x51] sm:$0xff]
    %v1529 = vld [vmem:[#allocation2 + $0x61] sm:$0xff]
    %v1530 = vld [vmem:[#allocation2 + $0x71] sm:$0xff]
    %v1531 = vld [vmem:[#allocation2 + $0xa1] sm:$0xff]
    %v1532 = vld [vmem:[#allocation2 + $0xb1] sm:$0xff]
    %v1533 = vld [vmem:[#allocation2 + $0xc1] sm:$0xff]
    %v1534 = vld [vmem:[#allocation2 + $0xd1] sm:$0xff]
    %v1535 = vld [vmem:[#allocation2 + $0xe1] sm:$0xff]
    %v1536 = vld [vmem:[#allocation2 + $0xf1] sm:$0xff]
    %v1537 = vld [vmem:[#allocation2 + $0x101] sm:$0xff]
    %v1538 = vld [vmem:[#allocation2 + $0x111] sm:$0xff]
    %s1539 = scalar_lea.vmem [#allocation3], 32
    %v1540 = vld [vmem:[%s1539] sm:$0xff]
    %v1541 = vld [vmem:[%s1539 + $0x8] sm:$0xff]
    %v1542 = vld [vmem:[%s1539 + $0x10] sm:$0xff]
    %v1543 = vld [vmem:[%s1539 + $0x18] sm:$0xff]
    %v1545 = vsel %vm36, %v1523, 0
    %v1548 = vsel %vm36, %v1524, 0
    %v1551 = vsel %vm36, %v1525, 0
    %v1554 = vsel %vm36, %v1526, 0
    %v1557 = vsel %vm36, %v1527, 0
    %v1560 = vsel %vm36, %v1528, 0
    %v1563 = vsel %vm36, %v1529, 0
    %v1566 = vsel %vm36, %v1530, 0
    %v1569 = vsel %vm36, %v1531, 0
    %v1572 = vsel %vm36, %v1532, 0
    %v1575 = vsel %vm36, %v1533, 0
    %v1578 = vsel %vm36, %v1534, 0
    %v1581 = vsel %vm36, %v1535, 0
    %v1584 = vsel %vm36, %v1536, 0
    %v1587 = vsel %vm36, %v1537, 0
    %v1590 = vsel %vm36, %v1538, 0
    %1592 = vmatpush.msra.mxu0 0.0
    %1593 = vmatpush.msra.mxu0 0.0
    %1594 = vmatpush.msra.mxu0 0.0
    %1595 = vmatpush.msra.mxu0 0.0
    %1596 = vmatpush.msra.mxu0 0.0
    %1597 = vmatpush.msra.mxu0 0.0
    %1598 = vmatpush.msra.mxu0 0.0
    %1599 = vmatpush.msra.mxu0 0.0
    %1600 = vmatpush.msra.mxu0 0.0
    %1601 = vmatpush.msra.mxu0 0.0
    %1602 = vmatpush.msra.mxu0 0.0
    %1603 = vmatpush.msra.mxu0 0.0
    %1604 = vmatpush.msra.mxu0 %v1543
    %1605 = vmatpush.msra.mxu0 %v1542
    %1606 = vmatpush.msra.mxu0 %v1541
    %1607 = vmatpush.msra.mxu0 %v1540
    %1608 = vmatmul.f32.gmra.mxu0 %v1545
    %v1609 = vpop.f32.mrf.mxu0
    %v1610 = vadd.f32 0.0, %v1609
    %1611 = vmatmul.f32.gmra.mxu0 %v1548
    %v1612 = vpop.f32.mrf.mxu0
    %v1613 = vadd.f32 0.0, %v1612
    %1614 = vmatmul.f32.gmra.mxu0 %v1551
    %v1615 = vpop.f32.mrf.mxu0
    %v1616 = vadd.f32 0.0, %v1615
    %1617 = vmatmul.f32.gmra.mxu0 %v1554
    %v1618 = vpop.f32.mrf.mxu0
    %v1619 = vadd.f32 0.0, %v1618
    %1620 = vmatmul.f32.gmra.mxu0 %v1557
    %v1621 = vpop.f32.mrf.mxu0
    %v1622 = vadd.f32 0.0, %v1621
    %1623 = vmatmul.f32.gmra.mxu0 %v1560
    %v1624 = vpop.f32.mrf.mxu0
    %v1625 = vadd.f32 0.0, %v1624
    %1626 = vmatmul.f32.gmra.mxu0 %v1563
    %v1627 = vpop.f32.mrf.mxu0
    %v1628 = vadd.f32 0.0, %v1627
    %1629 = vmatmul.f32.gmra.mxu0 %v1566
    %v1630 = vpop.f32.mrf.mxu0
    %v1631 = vadd.f32 0.0, %v1630
    %1632 = vmatmul.f32.gmra.mxu0 %v1569
    %v1633 = vpop.f32.mrf.mxu0
    %v1634 = vadd.f32 0.0, %v1633
    %1635 = vmatmul.f32.gmra.mxu0 %v1572
    %v1636 = vpop.f32.mrf.mxu0
    %v1637 = vadd.f32 0.0, %v1636
    %1638 = vmatmul.f32.gmra.mxu0 %v1575
    %v1639 = vpop.f32.mrf.mxu0
    %v1640 = vadd.f32 0.0, %v1639
    %1641 = vmatmul.f32.gmra.mxu0 %v1578
    %v1642 = vpop.f32.mrf.mxu0
    %v1643 = vadd.f32 0.0, %v1642
    %1644 = vmatmul.f32.gmra.mxu0 %v1581
    %v1645 = vpop.f32.mrf.mxu0
    %v1646 = vadd.f32 0.0, %v1645
    %1647 = vmatmul.f32.gmra.mxu0 %v1584
    %v1648 = vpop.f32.mrf.mxu0
    %v1649 = vadd.f32 0.0, %v1648
    %1650 = vmatmul.f32.gmra.mxu0 %v1587
    %v1651 = vpop.f32.mrf.mxu0
    %v1652 = vadd.f32 0.0, %v1651
    %1653 = vmatmul.f32.gmra.mxu0 %v1590
    %v1654 = vpop.f32.mrf.mxu0
    %v1655 = vadd.f32 0.0, %v1654
    %1656 = vdwg.mxu0
    %v1658 = vsel %vm36, %v1503, 0
    %v1661 = vsel %vm36, %v1504, 0
    %v1664 = vsel %vm36, %v1505, 0
    %v1667 = vsel %vm36, %v1506, 0
    %v1670 = vsel %vm36, %v1507, 0
    %v1673 = vsel %vm36, %v1508, 0
    %v1676 = vsel %vm36, %v1509, 0
    %v1679 = vsel %vm36, %v1510, 0
    %v1682 = vsel %vm36, %v1511, 0
    %v1685 = vsel %vm36, %v1512, 0
    %v1688 = vsel %vm36, %v1513, 0
    %v1691 = vsel %vm36, %v1514, 0
    %v1694 = vsel %vm36, %v1515, 0
    %v1697 = vsel %vm36, %v1516, 0
    %v1700 = vsel %vm36, %v1517, 0
    %v1703 = vsel %vm36, %v1518, 0
    %1705 = vmatpush.msra.mxu0 0.0
    %1706 = vmatpush.msra.mxu0 0.0
    %1707 = vmatpush.msra.mxu0 0.0
    %1708 = vmatpush.msra.mxu0 0.0
    %1709 = vmatpush.msra.mxu0 0.0
    %1710 = vmatpush.msra.mxu0 0.0
    %1711 = vmatpush.msra.mxu0 0.0
    %1712 = vmatpush.msra.mxu0 0.0
    %1713 = vmatpush.msra.mxu0 0.0
    %1714 = vmatpush.msra.mxu0 0.0
    %1715 = vmatpush.msra.mxu0 0.0
    %1716 = vmatpush.msra.mxu0 0.0
    %1717 = vmatpush.msra.mxu0 %v1522
    %1718 = vmatpush.msra.mxu0 %v1521
    %1719 = vmatpush.msra.mxu0 %v1520
    %1720 = vmatpush.msra.mxu0 %v1519
    %1721 = vmatmul.f32.gmra.mxu0 %v1658
    %v1722 = vpop.f32.mrf.mxu0
    %v1723 = vadd.f32 %v1610, %v1722
    %1724 = vmatmul.f32.gmra.mxu0 %v1661
    %v1725 = vpop.f32.mrf.mxu0
    %v1726 = vadd.f32 %v1613, %v1725
    %1727 = vmatmul.f32.gmra.mxu0 %v1664
    %v1728 = vpop.f32.mrf.mxu0
    %v1729 = vadd.f32 %v1616, %v1728
    %1730 = vmatmul.f32.gmra.mxu0 %v1667
    %v1731 = vpop.f32.mrf.mxu0
    %v1732 = vadd.f32 %v1619, %v1731
    %1733 = vmatmul.f32.gmra.mxu0 %v1670
    %v1734 = vpop.f32.mrf.mxu0
    %v1735 = vadd.f32 %v1622, %v1734
    %1736 = vmatmul.f32.gmra.mxu0 %v1673
    %v1737 = vpop.f32.mrf.mxu0
    %v1738 = vadd.f32 %v1625, %v1737
    %1739 = vmatmul.f32.gmra.mxu0 %v1676
    %v1740 = vpop.f32.mrf.mxu0
    %v1741 = vadd.f32 %v1628, %v1740
    %1742 = vmatmul.f32.gmra.mxu0 %v1679
    %v1743 = vpop.f32.mrf.mxu0
    %v1744 = vadd.f32 %v1631, %v1743
    %1745 = vmatmul.f32.gmra.mxu0 %v1682
    %v1746 = vpop.f32.mrf.mxu0
    %v1747 = vadd.f32 %v1634, %v1746
    %1748 = vmatmul.f32.gmra.mxu0 %v1685
    %v1749 = vpop.f32.mrf.mxu0
    %v1750 = vadd.f32 %v1637, %v1749
    %1751 = vmatmul.f32.gmra.mxu0 %v1688
    %v1752 = vpop.f32.mrf.mxu0
    %v1753 = vadd.f32 %v1640, %v1752
    %1754 = vmatmul.f32.gmra.mxu0 %v1691
    %v1755 = vpop.f32.mrf.mxu0
    %v1756 = vadd.f32 %v1643, %v1755
    %1757 = vmatmul.f32.gmra.mxu0 %v1694
    %v1758 = vpop.f32.mrf.mxu0
    %v1759 = vadd.f32 %v1646, %v1758
    %1760 = vmatmul.f32.gmra.mxu0 %v1697
    %v1761 = vpop.f32.mrf.mxu0
    %v1762 = vadd.f32 %v1649, %v1761
    %1763 = vmatmul.f32.gmra.mxu0 %v1700
    %v1764 = vpop.f32.mrf.mxu0
    %v1765 = vadd.f32 %v1652, %v1764
    %1766 = vmatmul.f32.gmra.mxu0 %v1703
    %v1767 = vpop.f32.mrf.mxu0
    %v1768 = vadd.f32 %v1655, %v1767
    %1769 = vdwg.mxu0
    %v1770 = vld [vmem:[#allocation2 + $0x2] sm:$0xff]
    %v1771 = vld [vmem:[#allocation2 + $0x12] sm:$0xff]
    %v1772 = vld [vmem:[#allocation2 + $0x22] sm:$0xff]
    %v1773 = vld [vmem:[#allocation2 + $0x32] sm:$0xff]
    %v1774 = vld [vmem:[#allocation2 + $0x42] sm:$0xff]
    %v1775 = vld [vmem:[#allocation2 + $0x52] sm:$0xff]
    %v1776 = vld [vmem:[#allocation2 + $0x62] sm:$0xff]
    %v1777 = vld [vmem:[#allocation2 + $0x72] sm:$0xff]
    %v1778 = vld [vmem:[#allocation2 + $0xa2] sm:$0xff]
    %v1779 = vld [vmem:[#allocation2 + $0xb2] sm:$0xff]
    %v1780 = vld [vmem:[#allocation2 + $0xc2] sm:$0xff]
    %v1781 = vld [vmem:[#allocation2 + $0xd2] sm:$0xff]
    %v1782 = vld [vmem:[#allocation2 + $0xe2] sm:$0xff]
    %v1783 = vld [vmem:[#allocation2 + $0xf2] sm:$0xff]
    %v1784 = vld [vmem:[#allocation2 + $0x102] sm:$0xff]
    %v1785 = vld [vmem:[#allocation2 + $0x112] sm:$0xff]
    %s1786 = scalar_lea.vmem [#allocation3], 64
    %v1787 = vld [vmem:[%s1786] sm:$0xff]
    %v1788 = vld [vmem:[%s1786 + $0x8] sm:$0xff]
    %v1789 = vld [vmem:[%s1786 + $0x10] sm:$0xff]
    %v1790 = vld [vmem:[%s1786 + $0x18] sm:$0xff]
    %v1792 = vsel %vm36, %v1770, 0
    %v1795 = vsel %vm36, %v1771, 0
    %v1798 = vsel %vm36, %v1772, 0
    %v1801 = vsel %vm36, %v1773, 0
    %v1804 = vsel %vm36, %v1774, 0
    %v1807 = vsel %vm36, %v1775, 0
    %v1810 = vsel %vm36, %v1776, 0
    %v1813 = vsel %vm36, %v1777, 0
    %v1816 = vsel %vm36, %v1778, 0
    %v1819 = vsel %vm36, %v1779, 0
    %v1822 = vsel %vm36, %v1780, 0
    %v1825 = vsel %vm36, %v1781, 0
    %v1828 = vsel %vm36, %v1782, 0
    %v1831 = vsel %vm36, %v1783, 0
    %v1834 = vsel %vm36, %v1784, 0
    %v1837 = vsel %vm36, %v1785, 0
    %1839 = vmatpush.msra.mxu0 0.0
    %1840 = vmatpush.msra.mxu0 0.0
    %1841 = vmatpush.msra.mxu0 0.0
    %1842 = vmatpush.msra.mxu0 0.0
    %1843 = vmatpush.msra.mxu0 0.0
    %1844 = vmatpush.msra.mxu0 0.0
    %1845 = vmatpush.msra.mxu0 0.0
    %1846 = vmatpush.msra.mxu0 0.0
    %1847 = vmatpush.msra.mxu0 0.0
    %1848 = vmatpush.msra.mxu0 0.0
    %1849 = vmatpush.msra.mxu0 0.0
    %1850 = vmatpush.msra.mxu0 0.0
    %1851 = vmatpush.msra.mxu0 %v1790
    %1852 = vmatpush.msra.mxu0 %v1789
    %1853 = vmatpush.msra.mxu0 %v1788
    %1854 = vmatpush.msra.mxu0 %v1787
    %1855 = vmatmul.f32.gmra.mxu0 %v1792
    %v1856 = vpop.f32.mrf.mxu0
    %v1857 = vadd.f32 0.0, %v1856
    %1858 = vmatmul.f32.gmra.mxu0 %v1795
    %v1859 = vpop.f32.mrf.mxu0
    %v1860 = vadd.f32 0.0, %v1859
    %1861 = vmatmul.f32.gmra.mxu0 %v1798
    %v1862 = vpop.f32.mrf.mxu0
    %v1863 = vadd.f32 0.0, %v1862
    %1864 = vmatmul.f32.gmra.mxu0 %v1801
    %v1865 = vpop.f32.mrf.mxu0
    %v1866 = vadd.f32 0.0, %v1865
    %1867 = vmatmul.f32.gmra.mxu0 %v1804
    %v1868 = vpop.f32.mrf.mxu0
    %v1869 = vadd.f32 0.0, %v1868
    %1870 = vmatmul.f32.gmra.mxu0 %v1807
    %v1871 = vpop.f32.mrf.mxu0
    %v1872 = vadd.f32 0.0, %v1871
    %1873 = vmatmul.f32.gmra.mxu0 %v1810
    %v1874 = vpop.f32.mrf.mxu0
    %v1875 = vadd.f32 0.0, %v1874
    %1876 = vmatmul.f32.gmra.mxu0 %v1813
    %v1877 = vpop.f32.mrf.mxu0
    %v1878 = vadd.f32 0.0, %v1877
    %1879 = vmatmul.f32.gmra.mxu0 %v1816
    %v1880 = vpop.f32.mrf.mxu0
    %v1881 = vadd.f32 0.0, %v1880
    %1882 = vmatmul.f32.gmra.mxu0 %v1819
    %v1883 = vpop.f32.mrf.mxu0
    %v1884 = vadd.f32 0.0, %v1883
    %1885 = vmatmul.f32.gmra.mxu0 %v1822
    %v1886 = vpop.f32.mrf.mxu0
    %v1887 = vadd.f32 0.0, %v1886
    %1888 = vmatmul.f32.gmra.mxu0 %v1825
    %v1889 = vpop.f32.mrf.mxu0
    %v1890 = vadd.f32 0.0, %v1889
    %1891 = vmatmul.f32.gmra.mxu0 %v1828
    %v1892 = vpop.f32.mrf.mxu0
    %v1893 = vadd.f32 0.0, %v1892
    %1894 = vmatmul.f32.gmra.mxu0 %v1831
    %v1895 = vpop.f32.mrf.mxu0
    %v1896 = vadd.f32 0.0, %v1895
    %1897 = vmatmul.f32.gmra.mxu0 %v1834
    %v1898 = vpop.f32.mrf.mxu0
    %v1899 = vadd.f32 0.0, %v1898
    %1900 = vmatmul.f32.gmra.mxu0 %v1837
    %v1901 = vpop.f32.mrf.mxu0
    %v1902 = vadd.f32 0.0, %v1901
    %1903 = vdwg.mxu0
    %v1904 = vadd.f32 %v1723, %v1857
    %v1905 = vadd.f32 %v1726, %v1860
    %v1906 = vadd.f32 %v1729, %v1863
    %v1907 = vadd.f32 %v1732, %v1866
    %v1908 = vadd.f32 %v1735, %v1869
    %v1909 = vadd.f32 %v1738, %v1872
    %v1910 = vadd.f32 %v1741, %v1875
    %v1911 = vadd.f32 %v1744, %v1878
    %v1912 = vadd.f32 %v1747, %v1881
    %v1913 = vadd.f32 %v1750, %v1884
    %v1914 = vadd.f32 %v1753, %v1887
    %v1915 = vadd.f32 %v1756, %v1890
    %v1916 = vadd.f32 %v1759, %v1893
    %v1917 = vadd.f32 %v1762, %v1896
    %v1918 = vadd.f32 %v1765, %v1899
    %v1919 = vadd.f32 %v1768, %v1902
    %v1920 = vld [vmem:[%s94] sm:$0xff]
    %v1921 = vld [vmem:[%s94 + $0x10] sm:$0xff]
    %v1922 = vld [vmem:[%s94 + $0x20] sm:$0xff]
    %v1923 = vld [vmem:[%s94 + $0x30] sm:$0xff]
    %v1924 = vld [vmem:[%s94 + $0x40] sm:$0xff]
    %v1925 = vld [vmem:[%s94 + $0x50] sm:$0xff]
    %v1926 = vld [vmem:[%s94 + $0x60] sm:$0xff]
    %v1927 = vld [vmem:[%s94 + $0x70] sm:$0xff]
    %v1928 = vld [vmem:[%s94 + $0xa0] sm:$0xff]
    %v1929 = vld [vmem:[%s94 + $0xb0] sm:$0xff]
    %v1930 = vld [vmem:[%s94 + $0xc0] sm:$0xff]
    %v1931 = vld [vmem:[%s94 + $0xd0] sm:$0xff]
    %v1932 = vld [vmem:[%s94 + $0xe0] sm:$0xff]
    %v1933 = vld [vmem:[%s94 + $0xf0] sm:$0xff]
    %v1934 = vld [vmem:[%s94 + $0x100] sm:$0xff]
    %v1935 = vld [vmem:[%s94 + $0x110] sm:$0xff]
    %s1936 = scalar_lea.vmem [#allocation3], 96
    %v1937 = vld [vmem:[%s1936] sm:$0xff]
    %v1938 = vld [vmem:[%s1936 + $0x8] sm:$0xff]
    %v1939 = vld [vmem:[%s1936 + $0x10] sm:$0xff]
    %v1940 = vld [vmem:[%s1936 + $0x18] sm:$0xff]
    %v1942 = vsel %vm36, %v1920, 0
    %v1945 = vsel %vm36, %v1921, 0
    %v1948 = vsel %vm36, %v1922, 0
    %v1951 = vsel %vm36, %v1923, 0
    %v1954 = vsel %vm36, %v1924, 0
    %v1957 = vsel %vm36, %v1925, 0
    %v1960 = vsel %vm36, %v1926, 0
    %v1963 = vsel %vm36, %v1927, 0
    %v1966 = vsel %vm36, %v1928, 0
    %v1969 = vsel %vm36, %v1929, 0
    %v1972 = vsel %vm36, %v1930, 0
    %v1975 = vsel %vm36, %v1931, 0
    %v1978 = vsel %vm36, %v1932, 0
    %v1981 = vsel %vm36, %v1933, 0
    %v1984 = vsel %vm36, %v1934, 0
    %v1987 = vsel %vm36, %v1935, 0
    %1989 = vmatpush.msra.mxu0 0.0
    %1990 = vmatpush.msra.mxu0 0.0
    %1991 = vmatpush.msra.mxu0 0.0
    %1992 = vmatpush.msra.mxu0 0.0
    %1993 = vmatpush.msra.mxu0 0.0
    %1994 = vmatpush.msra.mxu0 0.0
    %1995 = vmatpush.msra.mxu0 0.0
    %1996 = vmatpush.msra.mxu0 0.0
    %1997 = vmatpush.msra.mxu0 0.0
    %1998 = vmatpush.msra.mxu0 0.0
    %1999 = vmatpush.msra.mxu0 0.0
    %2000 = vmatpush.msra.mxu0 0.0
    %2001 = vmatpush.msra.mxu0 %v1940
    %2002 = vmatpush.msra.mxu0 %v1939
    %2003 = vmatpush.msra.mxu0 %v1938
    %2004 = vmatpush.msra.mxu0 %v1937
    %2005 = vmatmul.f32.gmra.mxu0 %v1942
    %v2006 = vpop.f32.mrf.mxu0
    %v2007 = vadd.f32 0.0, %v2006
    %2008 = vmatmul.f32.gmra.mxu0 %v1945
    %v2009 = vpop.f32.mrf.mxu0
    %v2010 = vadd.f32 0.0, %v2009
    %2011 = vmatmul.f32.gmra.mxu0 %v1948
    %v2012 = vpop.f32.mrf.mxu0
    %v2013 = vadd.f32 0.0, %v2012
    %2014 = vmatmul.f32.gmra.mxu0 %v1951
    %v2015 = vpop.f32.mrf.mxu0
    %v2016 = vadd.f32 0.0, %v2015
    %2017 = vmatmul.f32.gmra.mxu0 %v1954
    %v2018 = vpop.f32.mrf.mxu0
    %v2019 = vadd.f32 0.0, %v2018
    %2020 = vmatmul.f32.gmra.mxu0 %v1957
    %v2021 = vpop.f32.mrf.mxu0
    %v2022 = vadd.f32 0.0, %v2021
    %2023 = vmatmul.f32.gmra.mxu0 %v1960
    %v2024 = vpop.f32.mrf.mxu0
    %v2025 = vadd.f32 0.0, %v2024
    %2026 = vmatmul.f32.gmra.mxu0 %v1963
    %v2027 = vpop.f32.mrf.mxu0
    %v2028 = vadd.f32 0.0, %v2027
    %2029 = vmatmul.f32.gmra.mxu0 %v1966
    %v2030 = vpop.f32.mrf.mxu0
    %v2031 = vadd.f32 0.0, %v2030
    %2032 = vmatmul.f32.gmra.mxu0 %v1969
    %v2033 = vpop.f32.mrf.mxu0
    %v2034 = vadd.f32 0.0, %v2033
    %2035 = vmatmul.f32.gmra.mxu0 %v1972
    %v2036 = vpop.f32.mrf.mxu0
    %v2037 = vadd.f32 0.0, %v2036
    %2038 = vmatmul.f32.gmra.mxu0 %v1975
    %v2039 = vpop.f32.mrf.mxu0
    %v2040 = vadd.f32 0.0, %v2039
    %2041 = vmatmul.f32.gmra.mxu0 %v1978
    %v2042 = vpop.f32.mrf.mxu0
    %v2043 = vadd.f32 0.0, %v2042
    %2044 = vmatmul.f32.gmra.mxu0 %v1981
    %v2045 = vpop.f32.mrf.mxu0
    %v2046 = vadd.f32 0.0, %v2045
    %2047 = vmatmul.f32.gmra.mxu0 %v1984
    %v2048 = vpop.f32.mrf.mxu0
    %v2049 = vadd.f32 0.0, %v2048
    %2050 = vmatmul.f32.gmra.mxu0 %v1987
    %v2051 = vpop.f32.mrf.mxu0
    %v2052 = vadd.f32 0.0, %v2051
    %2053 = vdwg.mxu0
    %v2054 = vadd.f32 %v1904, %v2007
    %v2055 = vadd.f32 %v1905, %v2010
    %v2056 = vadd.f32 %v1906, %v2013
    %v2057 = vadd.f32 %v1907, %v2016
    %v2058 = vadd.f32 %v1908, %v2019
    %v2059 = vadd.f32 %v1909, %v2022
    %v2060 = vadd.f32 %v1910, %v2025
    %v2061 = vadd.f32 %v1911, %v2028
    %v2062 = vadd.f32 %v1912, %v2031
    %v2063 = vadd.f32 %v1913, %v2034
    %v2064 = vadd.f32 %v1914, %v2037
    %v2065 = vadd.f32 %v1915, %v2040
    %v2066 = vadd.f32 %v1916, %v2043
    %v2067 = vadd.f32 %v1917, %v2046
    %v2068 = vadd.f32 %v1918, %v2049
    %v2069 = vadd.f32 %v1919, %v2052
    %v2070 = vld [vmem:[%s94 + $0x1] sm:$0xff]
    %v2071 = vld [vmem:[%s94 + $0x11] sm:$0xff]
    %v2072 = vld [vmem:[%s94 + $0x21] sm:$0xff]
    %v2073 = vld [vmem:[%s94 + $0x31] sm:$0xff]
    %v2074 = vld [vmem:[%s94 + $0x41] sm:$0xff]
    %v2075 = vld [vmem:[%s94 + $0x51] sm:$0xff]
    %v2076 = vld [vmem:[%s94 + $0x61] sm:$0xff]
    %v2077 = vld [vmem:[%s94 + $0x71] sm:$0xff]
    %v2078 = vld [vmem:[%s94 + $0xa1] sm:$0xff]
    %v2079 = vld [vmem:[%s94 + $0xb1] sm:$0xff]
    %v2080 = vld [vmem:[%s94 + $0xc1] sm:$0xff]
    %v2081 = vld [vmem:[%s94 + $0xd1] sm:$0xff]
    %v2082 = vld [vmem:[%s94 + $0xe1] sm:$0xff]
    %v2083 = vld [vmem:[%s94 + $0xf1] sm:$0xff]
    %v2084 = vld [vmem:[%s94 + $0x101] sm:$0xff]
    %v2085 = vld [vmem:[%s94 + $0x111] sm:$0xff]
    %s2086 = scalar_lea.vmem [#allocation3], 128
    %v2087 = vld [vmem:[%s2086] sm:$0xff]
    %v2088 = vld [vmem:[%s2086 + $0x8] sm:$0xff]
    %v2089 = vld [vmem:[%s2086 + $0x10] sm:$0xff]
    %v2090 = vld [vmem:[%s2086 + $0x18] sm:$0xff]
    %v2092 = vsel %vm36, %v2070, 0
    %v2095 = vsel %vm36, %v2071, 0
    %v2098 = vsel %vm36, %v2072, 0
    %v2101 = vsel %vm36, %v2073, 0
    %v2104 = vsel %vm36, %v2074, 0
    %v2107 = vsel %vm36, %v2075, 0
    %v2110 = vsel %vm36, %v2076, 0
    %v2113 = vsel %vm36, %v2077, 0
    %v2116 = vsel %vm36, %v2078, 0
    %v2119 = vsel %vm36, %v2079, 0
    %v2122 = vsel %vm36, %v2080, 0
    %v2125 = vsel %vm36, %v2081, 0
    %v2128 = vsel %vm36, %v2082, 0
    %v2131 = vsel %vm36, %v2083, 0
    %v2134 = vsel %vm36, %v2084, 0
    %v2137 = vsel %vm36, %v2085, 0
    %2139 = vmatpush.msra.mxu0 0.0
    %2140 = vmatpush.msra.mxu0 0.0
    %2141 = vmatpush.msra.mxu0 0.0
    %2142 = vmatpush.msra.mxu0 0.0
    %2143 = vmatpush.msra.mxu0 0.0
    %2144 = vmatpush.msra.mxu0 0.0
    %2145 = vmatpush.msra.mxu0 0.0
    %2146 = vmatpush.msra.mxu0 0.0
    %2147 = vmatpush.msra.mxu0 0.0
    %2148 = vmatpush.msra.mxu0 0.0
    %2149 = vmatpush.msra.mxu0 0.0
    %2150 = vmatpush.msra.mxu0 0.0
    %2151 = vmatpush.msra.mxu0 %v2090
    %2152 = vmatpush.msra.mxu0 %v2089
    %2153 = vmatpush.msra.mxu0 %v2088
    %2154 = vmatpush.msra.mxu0 %v2087
    %2155 = vmatmul.f32.gmra.mxu0 %v2092
    %v2156 = vpop.f32.mrf.mxu0
    %v2157 = vadd.f32 0.0, %v2156
    %2158 = vmatmul.f32.gmra.mxu0 %v2095
    %v2159 = vpop.f32.mrf.mxu0
    %v2160 = vadd.f32 0.0, %v2159
    %2161 = vmatmul.f32.gmra.mxu0 %v2098
    %v2162 = vpop.f32.mrf.mxu0
    %v2163 = vadd.f32 0.0, %v2162
    %2164 = vmatmul.f32.gmra.mxu0 %v2101
    %v2165 = vpop.f32.mrf.mxu0
    %v2166 = vadd.f32 0.0, %v2165
    %2167 = vmatmul.f32.gmra.mxu0 %v2104
    %v2168 = vpop.f32.mrf.mxu0
    %v2169 = vadd.f32 0.0, %v2168
    %2170 = vmatmul.f32.gmra.mxu0 %v2107
    %v2171 = vpop.f32.mrf.mxu0
    %v2172 = vadd.f32 0.0, %v2171
    %2173 = vmatmul.f32.gmra.mxu0 %v2110
    %v2174 = vpop.f32.mrf.mxu0
    %v2175 = vadd.f32 0.0, %v2174
    %2176 = vmatmul.f32.gmra.mxu0 %v2113
    %v2177 = vpop.f32.mrf.mxu0
    %v2178 = vadd.f32 0.0, %v2177
    %2179 = vmatmul.f32.gmra.mxu0 %v2116
    %v2180 = vpop.f32.mrf.mxu0
    %v2181 = vadd.f32 0.0, %v2180
    %2182 = vmatmul.f32.gmra.mxu0 %v2119
    %v2183 = vpop.f32.mrf.mxu0
    %v2184 = vadd.f32 0.0, %v2183
    %2185 = vmatmul.f32.gmra.mxu0 %v2122
    %v2186 = vpop.f32.mrf.mxu0
    %v2187 = vadd.f32 0.0, %v2186
    %2188 = vmatmul.f32.gmra.mxu0 %v2125
    %v2189 = vpop.f32.mrf.mxu0
    %v2190 = vadd.f32 0.0, %v2189
    %2191 = vmatmul.f32.gmra.mxu0 %v2128
    %v2192 = vpop.f32.mrf.mxu0
    %v2193 = vadd.f32 0.0, %v2192
    %2194 = vmatmul.f32.gmra.mxu0 %v2131
    %v2195 = vpop.f32.mrf.mxu0
    %v2196 = vadd.f32 0.0, %v2195
    %2197 = vmatmul.f32.gmra.mxu0 %v2134
    %v2198 = vpop.f32.mrf.mxu0
    %v2199 = vadd.f32 0.0, %v2198
    %2200 = vmatmul.f32.gmra.mxu0 %v2137
    %v2201 = vpop.f32.mrf.mxu0
    %v2202 = vadd.f32 0.0, %v2201
    %2203 = vdwg.mxu0
    %v2204 = vadd.f32 %v2054, %v2157
    %v2205 = vadd.f32 %v2055, %v2160
    %v2206 = vadd.f32 %v2056, %v2163
    %v2207 = vadd.f32 %v2057, %v2166
    %v2208 = vadd.f32 %v2058, %v2169
    %v2209 = vadd.f32 %v2059, %v2172
    %v2210 = vadd.f32 %v2060, %v2175
    %v2211 = vadd.f32 %v2061, %v2178
    %v2212 = vadd.f32 %v2062, %v2181
    %v2213 = vadd.f32 %v2063, %v2184
    %v2214 = vadd.f32 %v2064, %v2187
    %v2215 = vadd.f32 %v2065, %v2190
    %v2216 = vadd.f32 %v2066, %v2193
    %v2217 = vadd.f32 %v2067, %v2196
    %v2218 = vadd.f32 %v2068, %v2199
    %v2219 = vadd.f32 %v2069, %v2202
    %v2220 = vld [vmem:[%s94 + $0x2] sm:$0xff]
    %v2221 = vld [vmem:[%s94 + $0x12] sm:$0xff]
    %v2222 = vld [vmem:[%s94 + $0x22] sm:$0xff]
    %v2223 = vld [vmem:[%s94 + $0x32] sm:$0xff]
    %v2224 = vld [vmem:[%s94 + $0x42] sm:$0xff]
    %v2225 = vld [vmem:[%s94 + $0x52] sm:$0xff]
    %v2226 = vld [vmem:[%s94 + $0x62] sm:$0xff]
    %v2227 = vld [vmem:[%s94 + $0x72] sm:$0xff]
    %v2228 = vld [vmem:[%s94 + $0xa2] sm:$0xff]
    %v2229 = vld [vmem:[%s94 + $0xb2] sm:$0xff]
    %v2230 = vld [vmem:[%s94 + $0xc2] sm:$0xff]
    %v2231 = vld [vmem:[%s94 + $0xd2] sm:$0xff]
    %v2232 = vld [vmem:[%s94 + $0xe2] sm:$0xff]
    %v2233 = vld [vmem:[%s94 + $0xf2] sm:$0xff]
    %v2234 = vld [vmem:[%s94 + $0x102] sm:$0xff]
    %v2235 = vld [vmem:[%s94 + $0x112] sm:$0xff]
    %s2236 = scalar_lea.vmem [#allocation3], 160
    %v2237 = vld [vmem:[%s2236] sm:$0xff]
    %v2238 = vld [vmem:[%s2236 + $0x8] sm:$0xff]
    %v2239 = vld [vmem:[%s2236 + $0x10] sm:$0xff]
    %v2240 = vld [vmem:[%s2236 + $0x18] sm:$0xff]
    %v2242 = vsel %vm36, %v2220, 0
    %v2245 = vsel %vm36, %v2221, 0
    %v2248 = vsel %vm36, %v2222, 0
    %v2251 = vsel %vm36, %v2223, 0
    %v2254 = vsel %vm36, %v2224, 0
    %v2257 = vsel %vm36, %v2225, 0
    %v2260 = vsel %vm36, %v2226, 0
    %v2263 = vsel %vm36, %v2227, 0
    %v2266 = vsel %vm36, %v2228, 0
    %v2269 = vsel %vm36, %v2229, 0
    %v2272 = vsel %vm36, %v2230, 0
    %v2275 = vsel %vm36, %v2231, 0
    %v2278 = vsel %vm36, %v2232, 0
    %v2281 = vsel %vm36, %v2233, 0
    %v2284 = vsel %vm36, %v2234, 0
    %v2287 = vsel %vm36, %v2235, 0
    %2289 = vmatpush.msra.mxu0 0.0
    %2290 = vmatpush.msra.mxu0 0.0
    %2291 = vmatpush.msra.mxu0 0.0
    %2292 = vmatpush.msra.mxu0 0.0
    %2293 = vmatpush.msra.mxu0 0.0
    %2294 = vmatpush.msra.mxu0 0.0
    %2295 = vmatpush.msra.mxu0 0.0
    %2296 = vmatpush.msra.mxu0 0.0
    %2297 = vmatpush.msra.mxu0 0.0
    %2298 = vmatpush.msra.mxu0 0.0
    %2299 = vmatpush.msra.mxu0 0.0
    %2300 = vmatpush.msra.mxu0 0.0
    %2301 = vmatpush.msra.mxu0 %v2240
    %2302 = vmatpush.msra.mxu0 %v2239
    %2303 = vmatpush.msra.mxu0 %v2238
    %2304 = vmatpush.msra.mxu0 %v2237
    %2305 = vmatmul.f32.gmra.mxu0 %v2242
    %v2306 = vpop.f32.mrf.mxu0
    %v2307 = vadd.f32 0.0, %v2306
    %2308 = vmatmul.f32.gmra.mxu0 %v2245
    %v2309 = vpop.f32.mrf.mxu0
    %v2310 = vadd.f32 0.0, %v2309
    %2311 = vmatmul.f32.gmra.mxu0 %v2248
    %v2312 = vpop.f32.mrf.mxu0
    %v2313 = vadd.f32 0.0, %v2312
    %2314 = vmatmul.f32.gmra.mxu0 %v2251
    %v2315 = vpop.f32.mrf.mxu0
    %v2316 = vadd.f32 0.0, %v2315
    %2317 = vmatmul.f32.gmra.mxu0 %v2254
    %v2318 = vpop.f32.mrf.mxu0
    %v2319 = vadd.f32 0.0, %v2318
    %2320 = vmatmul.f32.gmra.mxu0 %v2257
    %v2321 = vpop.f32.mrf.mxu0
    %v2322 = vadd.f32 0.0, %v2321
    %2323 = vmatmul.f32.gmra.mxu0 %v2260
    %v2324 = vpop.f32.mrf.mxu0
    %v2325 = vadd.f32 0.0, %v2324
    %2326 = vmatmul.f32.gmra.mxu0 %v2263
    %v2327 = vpop.f32.mrf.mxu0
    %v2328 = vadd.f32 0.0, %v2327
    %2329 = vmatmul.f32.gmra.mxu0 %v2266
    %v2330 = vpop.f32.mrf.mxu0
    %v2331 = vadd.f32 0.0, %v2330
    %2332 = vmatmul.f32.gmra.mxu0 %v2269
    %v2333 = vpop.f32.mrf.mxu0
    %v2334 = vadd.f32 0.0, %v2333
    %2335 = vmatmul.f32.gmra.mxu0 %v2272
    %v2336 = vpop.f32.mrf.mxu0
    %v2337 = vadd.f32 0.0, %v2336
    %2338 = vmatmul.f32.gmra.mxu0 %v2275
    %v2339 = vpop.f32.mrf.mxu0
    %v2340 = vadd.f32 0.0, %v2339
    %2341 = vmatmul.f32.gmra.mxu0 %v2278
    %v2342 = vpop.f32.mrf.mxu0
    %v2343 = vadd.f32 0.0, %v2342
    %2344 = vmatmul.f32.gmra.mxu0 %v2281
    %v2345 = vpop.f32.mrf.mxu0
    %v2346 = vadd.f32 0.0, %v2345
    %2347 = vmatmul.f32.gmra.mxu0 %v2284
    %v2348 = vpop.f32.mrf.mxu0
    %v2349 = vadd.f32 0.0, %v2348
    %2350 = vmatmul.f32.gmra.mxu0 %v2287
    %v2351 = vpop.f32.mrf.mxu0
    %v2352 = vadd.f32 0.0, %v2351
    %2353 = vdwg.mxu0
    %v2354 = vadd.f32 %v2204, %v2307
    %v2355 = vadd.f32 %v2205, %v2310
    %v2356 = vadd.f32 %v2206, %v2313
    %v2357 = vadd.f32 %v2207, %v2316
    %v2358 = vadd.f32 %v2208, %v2319
    %v2359 = vadd.f32 %v2209, %v2322
    %v2360 = vadd.f32 %v2210, %v2325
    %v2361 = vadd.f32 %v2211, %v2328
    %v2362 = vadd.f32 %v2212, %v2331
    %v2363 = vadd.f32 %v2213, %v2334
    %v2364 = vadd.f32 %v2214, %v2337
    %v2365 = vadd.f32 %v2215, %v2340
    %v2366 = vadd.f32 %v2216, %v2343
    %v2367 = vadd.f32 %v2217, %v2346
    %v2368 = vadd.f32 %v2218, %v2349
    %v2369 = vadd.f32 %v2219, %v2352
    %v2370 = vld [vmem:[%s980] sm:$0xff]
    %v2371 = vld [vmem:[%s980 + $0x10] sm:$0xff]
    %v2372 = vld [vmem:[%s980 + $0x20] sm:$0xff]
    %v2373 = vld [vmem:[%s980 + $0x30] sm:$0xff]
    %v2374 = vld [vmem:[%s980 + $0x40] sm:$0xff]
    %v2375 = vld [vmem:[%s980 + $0x50] sm:$0xff]
    %v2376 = vld [vmem:[%s980 + $0x60] sm:$0xff]
    %v2377 = vld [vmem:[%s980 + $0x70] sm:$0xff]
    %v2378 = vld [vmem:[%s980 + $0xa0] sm:$0xff]
    %v2379 = vld [vmem:[%s980 + $0xb0] sm:$0xff]
    %v2380 = vld [vmem:[%s980 + $0xc0] sm:$0xff]
    %v2381 = vld [vmem:[%s980 + $0xd0] sm:$0xff]
    %v2382 = vld [vmem:[%s980 + $0xe0] sm:$0xff]
    %v2383 = vld [vmem:[%s980 + $0xf0] sm:$0xff]
    %v2384 = vld [vmem:[%s980 + $0x100] sm:$0xff]
    %v2385 = vld [vmem:[%s980 + $0x110] sm:$0xff]
    %s2386 = scalar_lea.vmem [#allocation3], 192
    %v2387 = vld [vmem:[%s2386] sm:$0xff]
    %v2388 = vld [vmem:[%s2386 + $0x8] sm:$0xff]
    %v2389 = vld [vmem:[%s2386 + $0x10] sm:$0xff]
    %v2390 = vld [vmem:[%s2386 + $0x18] sm:$0xff]
    %v2392 = vsel %vm36, %v2370, 0
    %v2395 = vsel %vm36, %v2371, 0
    %v2398 = vsel %vm36, %v2372, 0
    %v2401 = vsel %vm36, %v2373, 0
    %v2404 = vsel %vm36, %v2374, 0
    %v2407 = vsel %vm36, %v2375, 0
    %v2410 = vsel %vm36, %v2376, 0
    %v2413 = vsel %vm36, %v2377, 0
    %v2416 = vsel %vm36, %v2378, 0
    %v2419 = vsel %vm36, %v2379, 0
    %v2422 = vsel %vm36, %v2380, 0
    %v2425 = vsel %vm36, %v2381, 0
    %v2428 = vsel %vm36, %v2382, 0
    %v2431 = vsel %vm36, %v2383, 0
    %v2434 = vsel %vm36, %v2384, 0
    %v2437 = vsel %vm36, %v2385, 0
    %2439 = vmatpush.msra.mxu0 0.0
    %2440 = vmatpush.msra.mxu0 0.0
    %2441 = vmatpush.msra.mxu0 0.0
    %2442 = vmatpush.msra.mxu0 0.0
    %2443 = vmatpush.msra.mxu0 0.0
    %2444 = vmatpush.msra.mxu0 0.0
    %2445 = vmatpush.msra.mxu0 0.0
    %2446 = vmatpush.msra.mxu0 0.0
    %2447 = vmatpush.msra.mxu0 0.0
    %2448 = vmatpush.msra.mxu0 0.0
    %2449 = vmatpush.msra.mxu0 0.0
    %2450 = vmatpush.msra.mxu0 0.0
    %2451 = vmatpush.msra.mxu0 %v2390
    %2452 = vmatpush.msra.mxu0 %v2389
    %2453 = vmatpush.msra.mxu0 %v2388
    %2454 = vmatpush.msra.mxu0 %v2387
    %2455 = vmatmul.f32.gmra.mxu0 %v2392
    %v2456 = vpop.f32.mrf.mxu0
    %v2457 = vadd.f32 0.0, %v2456
    %2458 = vmatmul.f32.gmra.mxu0 %v2395
    %v2459 = vpop.f32.mrf.mxu0
    %v2460 = vadd.f32 0.0, %v2459
    %2461 = vmatmul.f32.gmra.mxu0 %v2398
    %v2462 = vpop.f32.mrf.mxu0
    %v2463 = vadd.f32 0.0, %v2462
    %2464 = vmatmul.f32.gmra.mxu0 %v2401
    %v2465 = vpop.f32.mrf.mxu0
    %v2466 = vadd.f32 0.0, %v2465
    %2467 = vmatmul.f32.gmra.mxu0 %v2404
    %v2468 = vpop.f32.mrf.mxu0
    %v2469 = vadd.f32 0.0, %v2468
    %2470 = vmatmul.f32.gmra.mxu0 %v2407
    %v2471 = vpop.f32.mrf.mxu0
    %v2472 = vadd.f32 0.0, %v2471
    %2473 = vmatmul.f32.gmra.mxu0 %v2410
    %v2474 = vpop.f32.mrf.mxu0
    %v2475 = vadd.f32 0.0, %v2474
    %2476 = vmatmul.f32.gmra.mxu0 %v2413
    %v2477 = vpop.f32.mrf.mxu0
    %v2478 = vadd.f32 0.0, %v2477
    %2479 = vmatmul.f32.gmra.mxu0 %v2416
    %v2480 = vpop.f32.mrf.mxu0
    %v2481 = vadd.f32 0.0, %v2480
    %2482 = vmatmul.f32.gmra.mxu0 %v2419
    %v2483 = vpop.f32.mrf.mxu0
    %v2484 = vadd.f32 0.0, %v2483
    %2485 = vmatmul.f32.gmra.mxu0 %v2422
    %v2486 = vpop.f32.mrf.mxu0
    %v2487 = vadd.f32 0.0, %v2486
    %2488 = vmatmul.f32.gmra.mxu0 %v2425
    %v2489 = vpop.f32.mrf.mxu0
    %v2490 = vadd.f32 0.0, %v2489
    %2491 = vmatmul.f32.gmra.mxu0 %v2428
    %v2492 = vpop.f32.mrf.mxu0
    %v2493 = vadd.f32 0.0, %v2492
    %2494 = vmatmul.f32.gmra.mxu0 %v2431
    %v2495 = vpop.f32.mrf.mxu0
    %v2496 = vadd.f32 0.0, %v2495
    %2497 = vmatmul.f32.gmra.mxu0 %v2434
    %v2498 = vpop.f32.mrf.mxu0
    %v2499 = vadd.f32 0.0, %v2498
    %2500 = vmatmul.f32.gmra.mxu0 %v2437
    %v2501 = vpop.f32.mrf.mxu0
    %v2502 = vadd.f32 0.0, %v2501
    %2503 = vdwg.mxu0
    %v2504 = vadd.f32 %v2354, %v2457
    %v2505 = vadd.f32 %v2355, %v2460
    %v2506 = vadd.f32 %v2356, %v2463
    %v2507 = vadd.f32 %v2357, %v2466
    %v2508 = vadd.f32 %v2358, %v2469
    %v2509 = vadd.f32 %v2359, %v2472
    %v2510 = vadd.f32 %v2360, %v2475
    %v2511 = vadd.f32 %v2361, %v2478
    %v2512 = vadd.f32 %v2362, %v2481
    %v2513 = vadd.f32 %v2363, %v2484
    %v2514 = vadd.f32 %v2364, %v2487
    %v2515 = vadd.f32 %v2365, %v2490
    %v2516 = vadd.f32 %v2366, %v2493
    %v2517 = vadd.f32 %v2367, %v2496
    %v2518 = vadd.f32 %v2368, %v2499
    %v2519 = vadd.f32 %v2369, %v2502
    %v2520 = vld [vmem:[%s980 + $0x1] sm:$0xff]
    %v2521 = vld [vmem:[%s980 + $0x11] sm:$0xff]
    %v2522 = vld [vmem:[%s980 + $0x21] sm:$0xff]
    %v2523 = vld [vmem:[%s980 + $0x31] sm:$0xff]
    %v2524 = vld [vmem:[%s980 + $0x41] sm:$0xff]
    %v2525 = vld [vmem:[%s980 + $0x51] sm:$0xff]
    %v2526 = vld [vmem:[%s980 + $0x61] sm:$0xff]
    %v2527 = vld [vmem:[%s980 + $0x71] sm:$0xff]
    %v2528 = vld [vmem:[%s980 + $0xa1] sm:$0xff]
    %v2529 = vld [vmem:[%s980 + $0xb1] sm:$0xff]
    %v2530 = vld [vmem:[%s980 + $0xc1] sm:$0xff]
    %v2531 = vld [vmem:[%s980 + $0xd1] sm:$0xff]
    %v2532 = vld [vmem:[%s980 + $0xe1] sm:$0xff]
    %v2533 = vld [vmem:[%s980 + $0xf1] sm:$0xff]
    %v2534 = vld [vmem:[%s980 + $0x101] sm:$0xff]
    %v2535 = vld [vmem:[%s980 + $0x111] sm:$0xff]
    %s2536 = scalar_lea.vmem [#allocation3], 224
    %v2537 = vld [vmem:[%s2536] sm:$0xff]
    %v2538 = vld [vmem:[%s2536 + $0x8] sm:$0xff]
    %v2539 = vld [vmem:[%s2536 + $0x10] sm:$0xff]
    %v2540 = vld [vmem:[%s2536 + $0x18] sm:$0xff]
    %v2542 = vsel %vm36, %v2520, 0
    %v2545 = vsel %vm36, %v2521, 0
    %v2548 = vsel %vm36, %v2522, 0
    %v2551 = vsel %vm36, %v2523, 0
    %v2554 = vsel %vm36, %v2524, 0
    %v2557 = vsel %vm36, %v2525, 0
    %v2560 = vsel %vm36, %v2526, 0
    %v2563 = vsel %vm36, %v2527, 0
    %v2566 = vsel %vm36, %v2528, 0
    %v2569 = vsel %vm36, %v2529, 0
    %v2572 = vsel %vm36, %v2530, 0
    %v2575 = vsel %vm36, %v2531, 0
    %v2578 = vsel %vm36, %v2532, 0
    %v2581 = vsel %vm36, %v2533, 0
    %v2584 = vsel %vm36, %v2534, 0
    %v2587 = vsel %vm36, %v2535, 0
    %2589 = vmatpush.msra.mxu0 0.0
    %2590 = vmatpush.msra.mxu0 0.0
    %2591 = vmatpush.msra.mxu0 0.0
    %2592 = vmatpush.msra.mxu0 0.0
    %2593 = vmatpush.msra.mxu0 0.0
    %2594 = vmatpush.msra.mxu0 0.0
    %2595 = vmatpush.msra.mxu0 0.0
    %2596 = vmatpush.msra.mxu0 0.0
    %2597 = vmatpush.msra.mxu0 0.0
    %2598 = vmatpush.msra.mxu0 0.0
    %2599 = vmatpush.msra.mxu0 0.0
    %2600 = vmatpush.msra.mxu0 0.0
    %2601 = vmatpush.msra.mxu0 %v2540
    %2602 = vmatpush.msra.mxu0 %v2539
    %2603 = vmatpush.msra.mxu0 %v2538
    %2604 = vmatpush.msra.mxu0 %v2537
    %2605 = vmatmul.f32.gmra.mxu0 %v2542
    %v2606 = vpop.f32.mrf.mxu0
    %v2607 = vadd.f32 0.0, %v2606
    %2608 = vmatmul.f32.gmra.mxu0 %v2545
    %v2609 = vpop.f32.mrf.mxu0
    %v2610 = vadd.f32 0.0, %v2609
    %2611 = vmatmul.f32.gmra.mxu0 %v2548
    %v2612 = vpop.f32.mrf.mxu0
    %v2613 = vadd.f32 0.0, %v2612
    %2614 = vmatmul.f32.gmra.mxu0 %v2551
    %v2615 = vpop.f32.mrf.mxu0
    %v2616 = vadd.f32 0.0, %v2615
    %2617 = vmatmul.f32.gmra.mxu0 %v2554
    %v2618 = vpop.f32.mrf.mxu0
    %v2619 = vadd.f32 0.0, %v2618
    %2620 = vmatmul.f32.gmra.mxu0 %v2557
    %v2621 = vpop.f32.mrf.mxu0
    %v2622 = vadd.f32 0.0, %v2621
    %2623 = vmatmul.f32.gmra.mxu0 %v2560
    %v2624 = vpop.f32.mrf.mxu0
    %v2625 = vadd.f32 0.0, %v2624
    %2626 = vmatmul.f32.gmra.mxu0 %v2563
    %v2627 = vpop.f32.mrf.mxu0
    %v2628 = vadd.f32 0.0, %v2627
    %2629 = vmatmul.f32.gmra.mxu0 %v2566
    %v2630 = vpop.f32.mrf.mxu0
    %v2631 = vadd.f32 0.0, %v2630
    %2632 = vmatmul.f32.gmra.mxu0 %v2569
    %v2633 = vpop.f32.mrf.mxu0
    %v2634 = vadd.f32 0.0, %v2633
    %2635 = vmatmul.f32.gmra.mxu0 %v2572
    %v2636 = vpop.f32.mrf.mxu0
    %v2637 = vadd.f32 0.0, %v2636
    %2638 = vmatmul.f32.gmra.mxu0 %v2575
    %v2639 = vpop.f32.mrf.mxu0
    %v2640 = vadd.f32 0.0, %v2639
    %2641 = vmatmul.f32.gmra.mxu0 %v2578
    %v2642 = vpop.f32.mrf.mxu0
    %v2643 = vadd.f32 0.0, %v2642
    %2644 = vmatmul.f32.gmra.mxu0 %v2581
    %v2645 = vpop.f32.mrf.mxu0
    %v2646 = vadd.f32 0.0, %v2645
    %2647 = vmatmul.f32.gmra.mxu0 %v2584
    %v2648 = vpop.f32.mrf.mxu0
    %v2649 = vadd.f32 0.0, %v2648
    %2650 = vmatmul.f32.gmra.mxu0 %v2587
    %v2651 = vpop.f32.mrf.mxu0
    %v2652 = vadd.f32 0.0, %v2651
    %2653 = vdwg.mxu0
    %v2654 = vadd.f32 %v2504, %v2607
    %v2655 = vadd.f32 %v2505, %v2610
    %v2656 = vadd.f32 %v2506, %v2613
    %v2657 = vadd.f32 %v2507, %v2616
    %v2658 = vadd.f32 %v2508, %v2619
    %v2659 = vadd.f32 %v2509, %v2622
    %v2660 = vadd.f32 %v2510, %v2625
    %v2661 = vadd.f32 %v2511, %v2628
    %v2662 = vadd.f32 %v2512, %v2631
    %v2663 = vadd.f32 %v2513, %v2634
    %v2664 = vadd.f32 %v2514, %v2637
    %v2665 = vadd.f32 %v2515, %v2640
    %v2666 = vadd.f32 %v2516, %v2643
    %v2667 = vadd.f32 %v2517, %v2646
    %v2668 = vadd.f32 %v2518, %v2649
    %v2669 = vadd.f32 %v2519, %v2652
    %v2670 = vld [vmem:[%s980 + $0x2] sm:$0xff]
    %v2671 = vld [vmem:[%s980 + $0x12] sm:$0xff]
    %v2672 = vld [vmem:[%s980 + $0x22] sm:$0xff]
    %v2673 = vld [vmem:[%s980 + $0x32] sm:$0xff]
    %v2674 = vld [vmem:[%s980 + $0x42] sm:$0xff]
    %v2675 = vld [vmem:[%s980 + $0x52] sm:$0xff]
    %v2676 = vld [vmem:[%s980 + $0x62] sm:$0xff]
    %v2677 = vld [vmem:[%s980 + $0x72] sm:$0xff]
    %v2678 = vld [vmem:[%s980 + $0xa2] sm:$0xff]
    %v2679 = vld [vmem:[%s980 + $0xb2] sm:$0xff]
    %v2680 = vld [vmem:[%s980 + $0xc2] sm:$0xff]
    %v2681 = vld [vmem:[%s980 + $0xd2] sm:$0xff]
    %v2682 = vld [vmem:[%s980 + $0xe2] sm:$0xff]
    %v2683 = vld [vmem:[%s980 + $0xf2] sm:$0xff]
    %v2684 = vld [vmem:[%s980 + $0x102] sm:$0xff]
    %v2685 = vld [vmem:[%s980 + $0x112] sm:$0xff]
    %s2686 = scalar_lea.vmem [#allocation3], 256
    %v2687 = vld [vmem:[%s2686] sm:$0xff]
    %v2688 = vld [vmem:[%s2686 + $0x8] sm:$0xff]
    %v2689 = vld [vmem:[%s2686 + $0x10] sm:$0xff]
    %v2690 = vld [vmem:[%s2686 + $0x18] sm:$0xff]
    %v2692 = vsel %vm36, %v2670, 0
    %v2695 = vsel %vm36, %v2671, 0
    %v2698 = vsel %vm36, %v2672, 0
    %v2701 = vsel %vm36, %v2673, 0
    %v2704 = vsel %vm36, %v2674, 0
    %v2707 = vsel %vm36, %v2675, 0
    %v2710 = vsel %vm36, %v2676, 0
    %v2713 = vsel %vm36, %v2677, 0
    %v2716 = vsel %vm36, %v2678, 0
    %v2719 = vsel %vm36, %v2679, 0
    %v2722 = vsel %vm36, %v2680, 0
    %v2725 = vsel %vm36, %v2681, 0
    %v2728 = vsel %vm36, %v2682, 0
    %v2731 = vsel %vm36, %v2683, 0
    %v2734 = vsel %vm36, %v2684, 0
    %v2737 = vsel %vm36, %v2685, 0
    %2739 = vmatpush.msra.mxu0 0.0
    %2740 = vmatpush.msra.mxu0 0.0
    %2741 = vmatpush.msra.mxu0 0.0
    %2742 = vmatpush.msra.mxu0 0.0
    %2743 = vmatpush.msra.mxu0 0.0
    %2744 = vmatpush.msra.mxu0 0.0
    %2745 = vmatpush.msra.mxu0 0.0
    %2746 = vmatpush.msra.mxu0 0.0
    %2747 = vmatpush.msra.mxu0 0.0
    %2748 = vmatpush.msra.mxu0 0.0
    %2749 = vmatpush.msra.mxu0 0.0
    %2750 = vmatpush.msra.mxu0 0.0
    %2751 = vmatpush.msra.mxu0 %v2690
    %2752 = vmatpush.msra.mxu0 %v2689
    %2753 = vmatpush.msra.mxu0 %v2688
    %2754 = vmatpush.msra.mxu0 %v2687
    %2755 = vmatmul.f32.gmra.mxu0 %v2692
    %v2756 = vpop.f32.mrf.mxu0
    %v2757 = vadd.f32 0.0, %v2756
    %2758 = vmatmul.f32.gmra.mxu0 %v2695
    %v2759 = vpop.f32.mrf.mxu0
    %v2760 = vadd.f32 0.0, %v2759
    %2761 = vmatmul.f32.gmra.mxu0 %v2698
    %v2762 = vpop.f32.mrf.mxu0
    %v2763 = vadd.f32 0.0, %v2762
    %2764 = vmatmul.f32.gmra.mxu0 %v2701
    %v2765 = vpop.f32.mrf.mxu0
    %v2766 = vadd.f32 0.0, %v2765
    %2767 = vmatmul.f32.gmra.mxu0 %v2704
    %v2768 = vpop.f32.mrf.mxu0
    %v2769 = vadd.f32 0.0, %v2768
    %2770 = vmatmul.f32.gmra.mxu0 %v2707
    %v2771 = vpop.f32.mrf.mxu0
    %v2772 = vadd.f32 0.0, %v2771
    %2773 = vmatmul.f32.gmra.mxu0 %v2710
    %v2774 = vpop.f32.mrf.mxu0
    %v2775 = vadd.f32 0.0, %v2774
    %2776 = vmatmul.f32.gmra.mxu0 %v2713
    %v2777 = vpop.f32.mrf.mxu0
    %v2778 = vadd.f32 0.0, %v2777
    %2779 = vmatmul.f32.gmra.mxu0 %v2716
    %v2780 = vpop.f32.mrf.mxu0
    %v2781 = vadd.f32 0.0, %v2780
    %2782 = vmatmul.f32.gmra.mxu0 %v2719
    %v2783 = vpop.f32.mrf.mxu0
    %v2784 = vadd.f32 0.0, %v2783
    %2785 = vmatmul.f32.gmra.mxu0 %v2722
    %v2786 = vpop.f32.mrf.mxu0
    %v2787 = vadd.f32 0.0, %v2786
    %2788 = vmatmul.f32.gmra.mxu0 %v2725
    %v2789 = vpop.f32.mrf.mxu0
    %v2790 = vadd.f32 0.0, %v2789
    %2791 = vmatmul.f32.gmra.mxu0 %v2728
    %v2792 = vpop.f32.mrf.mxu0
    %v2793 = vadd.f32 0.0, %v2792
    %2794 = vmatmul.f32.gmra.mxu0 %v2731
    %v2795 = vpop.f32.mrf.mxu0
    %v2796 = vadd.f32 0.0, %v2795
    %2797 = vmatmul.f32.gmra.mxu0 %v2734
    %v2798 = vpop.f32.mrf.mxu0
    %v2799 = vadd.f32 0.0, %v2798
    %2800 = vmatmul.f32.gmra.mxu0 %v2737
    %v2801 = vpop.f32.mrf.mxu0
    %v2802 = vadd.f32 0.0, %v2801
    %2803 = vdwg.mxu0
    %v2804 = vadd.f32 %v2654, %v2757
    %v2805 = vadd.f32 %v2655, %v2760
    %v2806 = vadd.f32 %v2656, %v2763
    %v2807 = vadd.f32 %v2657, %v2766
    %v2808 = vadd.f32 %v2658, %v2769
    %v2809 = vadd.f32 %v2659, %v2772
    %v2810 = vadd.f32 %v2660, %v2775
    %v2811 = vadd.f32 %v2661, %v2778
    %v2812 = vadd.f32 %v2662, %v2781
    %v2813 = vadd.f32 %v2663, %v2784
    %v2814 = vadd.f32 %v2664, %v2787
    %v2815 = vadd.f32 %v2665, %v2790
    %v2816 = vadd.f32 %v2666, %v2793
    %v2817 = vadd.f32 %v2667, %v2796
    %v2818 = vadd.f32 %v2668, %v2799
    %v2819 = vadd.f32 %v2669, %v2802
    %s2820 = scalar_lea.vmem %s3, 1
    %v2821 = vld [vmem:[%s2820] sm:$0x1]
    %v2823 = vperm.slane %v2821, 0
    %v2825 = vmul.f32 %v2804, %v2823
    %v2826 = vmul.f32 %v2805, %v2823
    %v2827 = vmul.f32 %v2806, %v2823
    %v2828 = vmul.f32 %v2807, %v2823
    %v2829 = vmul.f32 %v2808, %v2823
    %v2830 = vmul.f32 %v2809, %v2823
    %v2831 = vmul.f32 %v2810, %v2823
    %v2832 = vmul.f32 %v2811, %v2823
    %v2833 = vmul.f32 %v2812, %v2823
    %v2834 = vmul.f32 %v2813, %v2823
    %v2835 = vmul.f32 %v2814, %v2823
    %v2836 = vmul.f32 %v2815, %v2823
    %v2837 = vmul.f32 %v2816, %v2823
    %v2838 = vmul.f32 %v2817, %v2823
    %v2839 = vmul.f32 %v2818, %v2823
    %v2840 = vmul.f32 %v2819, %v2823
    %s2841 = scalar_lea.vmem %s4, 1
    %v2842 = vld [vmem:[%s2841] sm:$0x1]
    %v2844 = vperm.slane %v2842, 0
    %v2846 = vadd.f32 %v2825, %v2844
    %v2847 = vadd.f32 %v2826, %v2844
    %v2848 = vadd.f32 %v2827, %v2844
    %v2849 = vadd.f32 %v2828, %v2844
    %v2850 = vadd.f32 %v2829, %v2844
    %v2851 = vadd.f32 %v2830, %v2844
    %v2852 = vadd.f32 %v2831, %v2844
    %v2853 = vadd.f32 %v2832, %v2844
    %v2854 = vadd.f32 %v2833, %v2844
    %v2855 = vadd.f32 %v2834, %v2844
    %v2856 = vadd.f32 %v2835, %v2844
    %v2857 = vadd.f32 %v2836, %v2844
    %v2858 = vadd.f32 %v2837, %v2844
    %v2859 = vadd.f32 %v2838, %v2844
    %v2860 = vadd.f32 %v2839, %v2844
    %v2861 = vadd.f32 %v2840, %v2844
    %v2862 = vmax.f32 %v2846, 0.0
    %v2863 = vmax.f32 %v2847, 0.0
    %v2864 = vmax.f32 %v2848, 0.0
    %v2865 = vmax.f32 %v2849, 0.0
    %v2866 = vmax.f32 %v2850, 0.0
    %v2867 = vmax.f32 %v2851, 0.0
    %v2868 = vmax.f32 %v2852, 0.0
    %v2869 = vmax.f32 %v2853, 0.0
    %v2870 = vmax.f32 %v2854, 0.0
    %v2871 = vmax.f32 %v2855, 0.0
    %v2872 = vmax.f32 %v2856, 0.0
    %v2873 = vmax.f32 %v2857, 0.0
    %v2874 = vmax.f32 %v2858, 0.0
    %v2875 = vmax.f32 %v2859, 0.0
    %v2876 = vmax.f32 %v2860, 0.0
    %v2877 = vmax.f32 %v2861, 0.0
    %2878 = vst.msk [vmem:[%s5] sm:$0xff] %vm36, %v2862
    %2879 = vst.msk [vmem:[%s5 + $0x8] sm:$0xff] %vm36, %v2863
    %2880 = vst.msk [vmem:[%s5 + $0x10] sm:$0xff] %vm36, %v2864
    %2881 = vst.msk [vmem:[%s5 + $0x18] sm:$0xff] %vm36, %v2865
    %2882 = vst.msk [vmem:[%s5 + $0x20] sm:$0xff] %vm36, %v2866
    %2883 = vst.msk [vmem:[%s5 + $0x28] sm:$0xff] %vm36, %v2867
    %2884 = vst.msk [vmem:[%s5 + $0x30] sm:$0xff] %vm36, %v2868
    %2885 = vst.msk [vmem:[%s5 + $0x38] sm:$0xff] %vm36, %v2869
    %2886 = vst.msk [vmem:[%s5 + $0x40] sm:$0xff] %vm36, %v2870
    %2887 = vst.msk [vmem:[%s5 + $0x48] sm:$0xff] %vm36, %v2871
    %2888 = vst.msk [vmem:[%s5 + $0x50] sm:$0xff] %vm36, %v2872
    %2889 = vst.msk [vmem:[%s5 + $0x58] sm:$0xff] %vm36, %v2873
    %2890 = vst.msk [vmem:[%s5 + $0x60] sm:$0xff] %vm36, %v2874
    %2891 = vst.msk [vmem:[%s5 + $0x68] sm:$0xff] %vm36, %v2875
    %2892 = vst.msk [vmem:[%s5 + $0x70] sm:$0xff] %vm36, %v2876
    %2893 = vst.msk [vmem:[%s5 + $0x78] sm:$0xff] %vm36, %v2877
    // Predicated region
    $region26: #{text_recognition_head_attention_forward.2} parent=1 // pred_check
      _
    $region27: #{text_recognition_head_attention_forward.2} parent=1 // pred_check_branch
      %2895 = sbr.rel (0) target = $region29
    $region28: #{text_recognition_head_attention_forward.2} parent=1 // pred_region
      _
    $region29: #{text_recognition_head_attention_forward.2} parent=1 // pred_fallthru
      _
    // Predicated region
    $region30: #{text_recognition_head_attention_forward.2} parent=1 // pred_check
      _
    $region31: #{text_recognition_head_attention_forward.2} parent=1 // pred_check_branch
      %2897 = sbr.rel (0) target = $region33
    $region32: #{text_recognition_head_attention_forward.2} parent=1 // pred_region
      _
    $region33: #{text_recognition_head_attention_forward.2} parent=1 // pred_fallthru
      _
    %2898 = vsyncpa [#allocation4], 1

// kernel: text_recognition_head_attention_forward.3
$region0: #{text_recognition_head_attention_forward.3}
  #allocation0 [shape = 'u32[]', space=smem, size = 0x4, offset = 0x4, fixed_abs, tag = 'smem constant byte address 0x4 - core index']
  #allocation1 [shape = 'u32[72,128]{1,0:T(1,128)}', space=vmem, size = 0x9000, scoped, tag = 'internal scratch']
  #allocation2 [shape = 'f32[2,64,32]{2,1,0:T(8,128)}', space=vmem, size = 0x10000, scoped, tag = 'scratch operand']
  %s0 = inlined_call_operand.hbm [shape: f32[16,32], index: 0, kind: input, shape index: {}]
  %s1 = inlined_call_operand.vmem [shape: f32[2,64,32], index: 1, kind: input, shape index: {}]
  %s2 = inlined_call_operand.hbm [shape: f32[32,32], index: 2, kind: input, shape index: {}]
  %s3 = inlined_call_operand.vmem [shape: f32[1,32], index: 3, kind: input, shape index: {}]
  %s4 = inlined_call_operand.hbm [shape: f32[32,32], index: 4, kind: input, shape index: {}]
  %s5 = inlined_call_operand.hbm [shape: f32[1,32], index: 5, kind: input, shape index: {}]
  %s6 = inlined_call_operand.hbm [shape: f32[1,32], index: 6, kind: input, shape index: {}]
  %s7 = inlined_call_operand.hbm [shape: f32[32,32], index: 7, kind: input, shape index: {}]
  %s8 = inlined_call_operand.hbm [shape: f32[32,32], index: 8, kind: input, shape index: {}]
  %s9 = inlined_call_operand.vmem [shape: f32[1,32], index: 9, kind: input, shape index: {}]
  %s10 = inlined_call_operand.vmem [shape: f32[3,32,32], index: 10, kind: input, shape index: {}]
  %s11 = inlined_call_operand.vmem [shape: f32[3,32,32], index: 11, kind: input, shape index: {}]
  %s12 = inlined_call_operand.hbm [shape: f32[3,1,32], index: 12, kind: input, shape index: {}]
  %s13 = inlined_call_operand.hbm [shape: f32[3,1,32], index: 13, kind: input, shape index: {}]
  %s14 = inlined_call_operand.vmem [shape: f32[32,16], index: 14, kind: input, shape index: {}]
  %s15 = inlined_call_operand.hbm [shape: f32[1,16], index: 15, kind: input, shape index: {}]
  %s16 = inlined_call_operand.vmem [shape: f32[2,5,16], index: 16, kind: output, shape index: {}]
  %s17 = sld [smem:[#allocation0]]
  $region114: #{text_recognition_head_attention_forward.3} parent=0
    _
  %s19 = ssub.s32 1, %s17
  %s20 = scalar_select 0, %s19, %s17
  $region1: #{text_recognition_head_attention_forward.3} parent=0
    #allocation3 [shape = 'u8[8192]{0}', space=vmem, size = 0x2000, scoped, tag = 'input window, operand 0, single buffered']
    #allocation4 [shape = 's32[1]{0}', space=sflag, size = 0x4, scoped, tag = 'scoped memory for text_recognition_head_attention_forward.3']
    #allocation5 [shape = 'u8[16384]{0}', space=vmem, size = 0x4000, scoped, tag = 'input window, operand 2, single buffered']
    #allocation6 [shape = 's32[1]{0}', space=sflag, size = 0x4, scoped, tag = 'scoped memory for text_recognition_head_attention_forward.3']
    #allocation7 [shape = 'u8[16384]{0}', space=vmem, size = 0x4000, scoped, tag = 'input window, operand 4, single buffered']
    #allocation8 [shape = 'u8[512]{0}', space=vmem, size = 0x400, scoped, tag = 'input window, operand 5, single buffered']
    #allocation9 [shape = 's32[1]{0}', space=sflag, size = 0x4, scoped, tag = 'scoped memory for text_recognition_head_attention_forward.3']
    #allocation10 [shape = 'u8[512]{0}', space=vmem, size = 0x400, scoped, tag = 'input window, operand 6, single buffered']
    #allocation11 [shape = 'u8[16384]{0}', space=vmem, size = 0x4000, scoped, tag = 'input window, operand 7, single buffered']
    #allocation12 [shape = 's32[1]{0}', space=sflag, size = 0x4, scoped, tag = 'scoped memory for text_recognition_head_attention_forward.3']
    #allocation13 [shape = 'u8[16384]{0}', space=vmem, size = 0x4000, scoped, tag = 'input window, operand 8, single buffered']
    #allocation14 [shape = 'u8[1536]{0}', space=vmem, size = 0x800, scoped, tag = 'input window, operand 12, single buffered']
    #allocation15 [shape = 's32[1]{0}', space=sflag, size = 0x4, scoped, tag = 'scoped memory for text_recognition_head_attention_forward.3']
    #allocation16 [shape = 'u8[1536]{0}', space=vmem, size = 0x800, scoped, tag = 'input window, operand 13, single buffered']
    #allocation17 [shape = 'u8[512]{0}', space=vmem, size = 0x400, scoped, tag = 'input window, operand 15, single buffered']
    #allocation18 [shape = 's32[1]{0}', space=sflag, size = 0x4, scoped, tag = 'scoped memory for text_recognition_head_attention_forward.3']
    %21 = vsyncpa [#allocation4], 0
    %22 = vsyncpa [#allocation6], 0
    %23 = vsyncpa [#allocation9], 0
    %24 = vsyncpa [#allocation12], 0
    %25 = vsyncpa [#allocation15], 0
    %26 = vsyncpa [#allocation18], 0
    // Predicated region
    $region2: #{text_recognition_head_attention_forward.3} parent=1 // pred_check
      _
    $region3: #{text_recognition_head_attention_forward.3} parent=1 // pred_check_branch
      %28 = sbr.rel (0) target = $region5
    $region4: #{text_recognition_head_attention_forward.3} parent=1 // pred_region
      %30 = vsyncadd [#allocation4], 0
      %s31 = sshll.u32 %s0, 4
      %s32 = int_to_ptr.hbm [resolvable:$true] %s31
      %s33 = sshll.u32 [#allocation3], 4
      %s34 = int_to_ptr.vmem [resolvable:$true] %s33
      %39 = dma.hbm_to_vmem [thread:$0]  %s32, 256, %s34, [#allocation4], 128, 128, 8
    $region5: #{text_recognition_head_attention_forward.3} parent=1 // pred_fallthru
      _
    // Predicated region
    $region6: #{text_recognition_head_attention_forward.3} parent=1 // pred_check
      _
    $region7: #{text_recognition_head_attention_forward.3} parent=1 // pred_check_branch
      %41 = sbr.rel (0) target = $region9
    $region8: #{text_recognition_head_attention_forward.3} parent=1 // pred_region
      _
    $region9: #{text_recognition_head_attention_forward.3} parent=1 // pred_fallthru
      _
    // Predicated region
    $region10: #{text_recognition_head_attention_forward.3} parent=1 // pred_check
      _
    $region11: #{text_recognition_head_attention_forward.3} parent=1 // pred_check_branch
      %43 = sbr.rel (0) target = $region13
    $region12: #{text_recognition_head_attention_forward.3} parent=1 // pred_region
      %45 = vsyncadd [#allocation6], 0
      %s46 = sshll.u32 %s2, 4
      %s47 = int_to_ptr.hbm [resolvable:$true] %s46
      %s48 = sshll.u32 [#allocation5], 4
      %s49 = int_to_ptr.vmem [resolvable:$true] %s48
      %54 = dma.hbm_to_vmem [thread:$0]  %s47, 512, %s49, [#allocation6], 128, 128, 8
    $region13: #{text_recognition_head_attention_forward.3} parent=1 // pred_fallthru
      _
    // Predicated region
    $region14: #{text_recognition_head_attention_forward.3} parent=1 // pred_check
      _
    $region15: #{text_recognition_head_attention_forward.3} parent=1 // pred_check_branch
      %56 = sbr.rel (0) target = $region17
    $region16: #{text_recognition_head_attention_forward.3} parent=1 // pred_region
      _
    $region17: #{text_recognition_head_attention_forward.3} parent=1 // pred_fallthru
      _
    // Predicated region
    $region18: #{text_recognition_head_attention_forward.3} parent=1 // pred_check
      _
    $region19: #{text_recognition_head_attention_forward.3} parent=1 // pred_check_branch
      %58 = sbr.rel (0) target = $region21
    $region20: #{text_recognition_head_attention_forward.3} parent=1 // pred_region
      %60 = vsyncadd [#allocation6], 0
      %s61 = sshll.u32 %s4, 4
      %s62 = int_to_ptr.hbm [resolvable:$true] %s61
      %s63 = sshll.u32 [#allocation7], 4
      %s64 = int_to_ptr.vmem [resolvable:$true] %s63
      %69 = dma.hbm_to_vmem [thread:$0]  %s62, 512, %s64, [#allocation6], 128, 128, 8
    $region21: #{text_recognition_head_attention_forward.3} parent=1 // pred_fallthru
      _
    // Predicated region
    $region22: #{text_recognition_head_attention_forward.3} parent=1 // pred_check
      _
    $region23: #{text_recognition_head_attention_forward.3} parent=1 // pred_check_branch
      %71 = sbr.rel (0) target = $region25
    $region24: #{text_recognition_head_attention_forward.3} parent=1 // pred_region
      %73 = vsyncadd [#allocation9], 0
      %s75 = sshll.u32 %s5, 4
      %s76 = int_to_ptr.hbm [resolvable:$true] %s75
      %s77 = sshll.u32 [#allocation8], 4
      %s78 = int_to_ptr.vmem [resolvable:$true] %s77
      %80 = dma.hbm_to_vmem [thread:$0]  %s76, 16, %s78, [#allocation9]
    $region25: #{text_recognition_head_attention_forward.3} parent=1 // pred_fallthru
      _
    // Predicated region
    $region26: #{text_recognition_head_attention_forward.3} parent=1 // pred_check
      _
    $region27: #{text_recognition_head_attention_forward.3} parent=1 // pred_check_branch
      %82 = sbr.rel (0) target = $region29
    $region28: #{text_recognition_head_attention_forward.3} parent=1 // pred_region
      %84 = vsyncadd [#allocation9], 0
      %s86 = sshll.u32 %s6, 4
      %s87 = int_to_ptr.hbm [resolvable:$true] %s86
      %s88 = sshll.u32 [#allocation10], 4
      %s89 = int_to_ptr.vmem [resolvable:$true] %s88
      %91 = dma.hbm_to_vmem [thread:$0]  %s87, 16, %s89, [#allocation9]
    $region29: #{text_recognition_head_attention_forward.3} parent=1 // pred_fallthru
      _
    // Predicated region
    $region30: #{text_recognition_head_attention_forward.3} parent=1 // pred_check
      _
    $region31: #{text_recognition_head_attention_forward.3} parent=1 // pred_check_branch
      %93 = sbr.rel (0) target = $region33
    $region32: #{text_recognition_head_attention_forward.3} parent=1 // pred_region
      %95 = vsyncadd [#allocation12], 0
      %s96 = sshll.u32 %s7, 4
      %s97 = int_to_ptr.hbm [resolvable:$true] %s96
      %s98 = sshll.u32 [#allocation11], 4
      %s99 = int_to_ptr.vmem [resolvable:$true] %s98
      %104 = dma.hbm_to_vmem [thread:$0]  %s97, 512, %s99, [#allocation12], 128, 128, 8
    $region33: #{text_recognition_head_attention_forward.3} parent=1 // pred_fallthru
      _
    // Predicated region
    $region34: #{text_recognition_head_attention_forward.3} parent=1 // pred_check
      _
    $region35: #{text_recognition_head_attention_forward.3} parent=1 // pred_check_branch
      %106 = sbr.rel (0) target = $region37
    $region36: #{text_recognition_head_attention_forward.3} parent=1 // pred_region
      %108 = vsyncadd [#allocation12], 0
      %s109 = sshll.u32 %s8, 4
      %s110 = int_to_ptr.hbm [resolvable:$true] %s109
      %s111 = sshll.u32 [#allocation13], 4
      %s112 = int_to_ptr.vmem [resolvable:$true] %s111
      %117 = dma.hbm_to_vmem [thread:$0]  %s110, 512, %s112, [#allocation12], 128, 128, 8
    $region37: #{text_recognition_head_attention_forward.3} parent=1 // pred_fallthru
      _
    // Predicated region
    $region38: #{text_recognition_head_attention_forward.3} parent=1 // pred_check
      _
    $region39: #{text_recognition_head_attention_forward.3} parent=1 // pred_check_branch
      %119 = sbr.rel (0) target = $region41
    $region40: #{text_recognition_head_attention_forward.3} parent=1 // pred_region
      _
    $region41: #{text_recognition_head_attention_forward.3} parent=1 // pred_fallthru
      _
    // Predicated region
    $region42: #{text_recognition_head_attention_forward.3} parent=1 // pred_check
      _
    $region43: #{text_recognition_head_attention_forward.3} parent=1 // pred_check_branch
      %121 = sbr.rel (0) target = $region45
    $region44: #{text_recognition_head_attention_forward.3} parent=1 // pred_region
      _
    $region45: #{text_recognition_head_attention_forward.3} parent=1 // pred_fallthru
      _
    // Predicated region
    $region46: #{text_recognition_head_attention_forward.3} parent=1 // pred_check
      _
    $region47: #{text_recognition_head_attention_forward.3} parent=1 // pred_check_branch
      %123 = sbr.rel (0) target = $region49
    $region48: #{text_recognition_head_attention_forward.3} parent=1 // pred_region
      _
    $region49: #{text_recognition_head_attention_forward.3} parent=1 // pred_fallthru
      _
    // Predicated region
    $region50: #{text_recognition_head_attention_forward.3} parent=1 // pred_check
      _
    $region51: #{text_recognition_head_attention_forward.3} parent=1 // pred_check_branch
      %125 = sbr.rel (0) target = $region53
    $region52: #{text_recognition_head_attention_forward.3} parent=1 // pred_region
      %127 = vsyncadd [#allocation15], 0
      %s128 = sshll.u32 %s12, 4
      %s129 = int_to_ptr.hbm [resolvable:$true] %s128
      %s130 = sshll.u32 [#allocation14], 4
      %s131 = int_to_ptr.vmem [resolvable:$true] %s130
      %136 = dma.hbm_to_vmem [thread:$0]  %s129, 48, %s131, [#allocation15], 16, 16, 1
    $region53: #{text_recognition_head_attention_forward.3} parent=1 // pred_fallthru
      _
    // Predicated region
    $region54: #{text_recognition_head_attention_forward.3} parent=1 // pred_check
      _
    $region55: #{text_recognition_head_attention_forward.3} parent=1 // pred_check_branch
      %138 = sbr.rel (0) target = $region57
    $region56: #{text_recognition_head_attention_forward.3} parent=1 // pred_region
      %140 = vsyncadd [#allocation15], 0
      %s141 = sshll.u32 %s13, 4
      %s142 = int_to_ptr.hbm [resolvable:$true] %s141
      %s143 = sshll.u32 [#allocation16], 4
      %s144 = int_to_ptr.vmem [resolvable:$true] %s143
      %149 = dma.hbm_to_vmem [thread:$0]  %s142, 48, %s144, [#allocation15], 16, 16, 1
    $region57: #{text_recognition_head_attention_forward.3} parent=1 // pred_fallthru
      _
    // Predicated region
    $region58: #{text_recognition_head_attention_forward.3} parent=1 // pred_check
      _
    $region59: #{text_recognition_head_attention_forward.3} parent=1 // pred_check_branch
      %151 = sbr.rel (0) target = $region61
    $region60: #{text_recognition_head_attention_forward.3} parent=1 // pred_region
      _
    $region61: #{text_recognition_head_attention_forward.3} parent=1 // pred_fallthru
      _
    // Predicated region
    $region62: #{text_recognition_head_attention_forward.3} parent=1 // pred_check
      _
    $region63: #{text_recognition_head_attention_forward.3} parent=1 // pred_check_branch
      %153 = sbr.rel (0) target = $region65
    $region64: #{text_recognition_head_attention_forward.3} parent=1 // pred_region
      %155 = vsyncadd [#allocation18], 0
      %s157 = sshll.u32 %s15, 4
      %s158 = int_to_ptr.hbm [resolvable:$true] %s157
      %s159 = sshll.u32 [#allocation17], 4
      %s160 = int_to_ptr.vmem [resolvable:$true] %s159
      %162 = dma.hbm_to_vmem [thread:$0]  %s158, 16, %s160, [#allocation18]
    $region65: #{text_recognition_head_attention_forward.3} parent=1 // pred_fallthru
      _
    // Predicated region
    $region66: #{text_recognition_head_attention_forward.3} parent=1 // pred_check
      _
    $region67: #{text_recognition_head_attention_forward.3} parent=1 // pred_check_branch
      %164 = sbr.rel (0) target = $region69
    $region68: #{text_recognition_head_attention_forward.3} parent=1 // pred_region
      %166 = dma.done [#allocation4], 256
    $region69: #{text_recognition_head_attention_forward.3} parent=1 // pred_fallthru
      _
    // Predicated region
    $region70: #{text_recognition_head_attention_forward.3} parent=1 // pred_check
      _
    $region71: #{text_recognition_head_attention_forward.3} parent=1 // pred_check_branch
      %168 = sbr.rel (0) target = $region73
    $region72: #{text_recognition_head_attention_forward.3} parent=1 // pred_region
      %170 = dma.done [#allocation6], 512
    $region73: #{text_recognition_head_attention_forward.3} parent=1 // pred_fallthru
      _
    // Predicated region
    $region74: #{text_recognition_head_attention_forward.3} parent=1 // pred_check
      _
    $region75: #{text_recognition_head_attention_forward.3} parent=1 // pred_check_branch
      %172 = sbr.rel (0) target = $region77
    $region76: #{text_recognition_head_attention_forward.3} parent=1 // pred_region
      %174 = dma.done [#allocation6], 512
    $region77: #{text_recognition_head_attention_forward.3} parent=1 // pred_fallthru
      _
    // Predicated region
    $region78: #{text_recognition_head_attention_forward.3} parent=1 // pred_check
      _
    $region79: #{text_recognition_head_attention_forward.3} parent=1 // pred_check_branch
      %176 = sbr.rel (0) target = $region81
    $region80: #{text_recognition_head_attention_forward.3} parent=1 // pred_region
      %178 = dma.done [#allocation9], 16
    $region81: #{text_recognition_head_attention_forward.3} parent=1 // pred_fallthru
      _
    // Predicated region
    $region82: #{text_recognition_head_attention_forward.3} parent=1 // pred_check
      _
    $region83: #{text_recognition_head_attention_forward.3} parent=1 // pred_check_branch
      %180 = sbr.rel (0) target = $region85
    $region84: #{text_recognition_head_attention_forward.3} parent=1 // pred_region
      %182 = dma.done [#allocation9], 16
    $region85: #{text_recognition_head_attention_forward.3} parent=1 // pred_fallthru
      _
    // Predicated region
    $region86: #{text_recognition_head_attention_forward.3} parent=1 // pred_check
      _
    $region87: #{text_recognition_head_attention_forward.3} parent=1 // pred_check_branch
      %184 = sbr.rel (0) target = $region89
    $region88: #{text_recognition_head_attention_forward.3} parent=1 // pred_region
      %186 = dma.done [#allocation12], 512
    $region89: #{text_recognition_head_attention_forward.3} parent=1 // pred_fallthru
      _
    // Predicated region
    $region90: #{text_recognition_head_attention_forward.3} parent=1 // pred_check
      _
    $region91: #{text_recognition_head_attention_forward.3} parent=1 // pred_check_branch
      %188 = sbr.rel (0) target = $region93
    $region92: #{text_recognition_head_attention_forward.3} parent=1 // pred_region
      %190 = dma.done [#allocation12], 512
    $region93: #{text_recognition_head_attention_forward.3} parent=1 // pred_fallthru
      _
    // Predicated region
    $region94: #{text_recognition_head_attention_forward.3} parent=1 // pred_check
      _
    $region95: #{text_recognition_head_attention_forward.3} parent=1 // pred_check_branch
      %192 = sbr.rel (0) target = $region97
    $region96: #{text_recognition_head_attention_forward.3} parent=1 // pred_region
      %194 = dma.done [#allocation15], 48
    $region97: #{text_recognition_head_attention_forward.3} parent=1 // pred_fallthru
      _
    // Predicated region
    $region98: #{text_recognition_head_attention_forward.3} parent=1 // pred_check
      _
    $region99: #{text_recognition_head_attention_forward.3} parent=1 // pred_check_branch
      %196 = sbr.rel (0) target = $region101
    $region100: #{text_recognition_head_attention_forward.3} parent=1 // pred_region
      %198 = dma.done [#allocation15], 48
    $region101: #{text_recognition_head_attention_forward.3} parent=1 // pred_fallthru
      _
    // Predicated region
    $region102: #{text_recognition_head_attention_forward.3} parent=1 // pred_check
      _
    $region103: #{text_recognition_head_attention_forward.3} parent=1 // pred_check_branch
      %200 = sbr.rel (0) target = $region105
    $region104: #{text_recognition_head_attention_forward.3} parent=1 // pred_region
      %202 = dma.done [#allocation18], 16
    $region105: #{text_recognition_head_attention_forward.3} parent=1 // pred_fallthru
      _
    %v203 = vld [vmem:[%s1] sm:$0xff]
    %v204 = vld [vmem:[%s1 + $0x8] sm:$0xff]
    %v205 = vld [vmem:[%s1 + $0x10] sm:$0xff]
    %v206 = vld [vmem:[%s1 + $0x18] sm:$0xff]
    %v207 = vld [vmem:[%s1 + $0x20] sm:$0xff]
    %v208 = vld [vmem:[%s1 + $0x28] sm:$0xff]
    %v209 = vld [vmem:[%s1 + $0x30] sm:$0xff]
    %v210 = vld [vmem:[%s1 + $0x38] sm:$0xff]
    %v211 = vld [vmem:[%s1 + $0x40] sm:$0xff]
    %v212 = vld [vmem:[%s1 + $0x48] sm:$0xff]
    %v213 = vld [vmem:[%s1 + $0x50] sm:$0xff]
    %v214 = vld [vmem:[%s1 + $0x58] sm:$0xff]
    %v215 = vld [vmem:[%s1 + $0x60] sm:$0xff]
    %v216 = vld [vmem:[%s1 + $0x68] sm:$0xff]
    %v217 = vld [vmem:[%s1 + $0x70] sm:$0xff]
    %v218 = vld [vmem:[%s1 + $0x78] sm:$0xff]
    %v219 = vld [vmem:[#allocation5] sm:$0xff]
    %v220 = vld [vmem:[#allocation5 + $0x8] sm:$0xff]
    %v221 = vld [vmem:[#allocation5 + $0x10] sm:$0xff]
    %v222 = vld [vmem:[#allocation5 + $0x18] sm:$0xff]
    %v223 = vld [vmem:[%s3] sm:$0x1]
    %v225 = vperm.slane %v223, 0
    %vm227 = vcmask 261120
    %v229 = vsel %vm227, %v203, 0
    %v232 = vsel %vm227, %v204, 0
    %v235 = vsel %vm227, %v205, 0
    %v238 = vsel %vm227, %v206, 0
    %v241 = vsel %vm227, %v207, 0
    %v244 = vsel %vm227, %v208, 0
    %v247 = vsel %vm227, %v209, 0
    %v250 = vsel %vm227, %v210, 0
    %v253 = vsel %vm227, %v211, 0
    %v256 = vsel %vm227, %v212, 0
    %v259 = vsel %vm227, %v213, 0
    %v262 = vsel %vm227, %v214, 0
    %v265 = vsel %vm227, %v215, 0
    %v268 = vsel %vm227, %v216, 0
    %v271 = vsel %vm227, %v217, 0
    %v274 = vsel %vm227, %v218, 0
    %276 = vmatpush.msra.mxu0 0.0
    %277 = vmatpush.msra.mxu0 0.0
    %278 = vmatpush.msra.mxu0 0.0
    %279 = vmatpush.msra.mxu0 0.0
    %280 = vmatpush.msra.mxu0 0.0
    %281 = vmatpush.msra.mxu0 0.0
    %282 = vmatpush.msra.mxu0 0.0
    %283 = vmatpush.msra.mxu0 0.0
    %284 = vmatpush.msra.mxu0 0.0
    %285 = vmatpush.msra.mxu0 0.0
    %286 = vmatpush.msra.mxu0 0.0
    %287 = vmatpush.msra.mxu0 0.0
    %288 = vmatpush.msra.mxu0 %v222
    %289 = vmatpush.msra.mxu0 %v221
    %290 = vmatpush.msra.mxu0 %v220
    %291 = vmatpush.msra.mxu0 %v219
    %292 = vmatmul.f32.gmra.mxu0 %v229
    %v293 = vpop.f32.mrf.mxu0
    %v294 = vadd.f32 %v225, %v293
    %295 = vmatmul.f32.gmra.mxu0 %v232
    %v296 = vpop.f32.mrf.mxu0
    %v297 = vadd.f32 %v225, %v296
    %298 = vmatmul.f32.gmra.mxu0 %v235
    %v299 = vpop.f32.mrf.mxu0
    %v300 = vadd.f32 %v225, %v299
    %301 = vmatmul.f32.gmra.mxu0 %v238
    %v302 = vpop.f32.mrf.mxu0
    %v303 = vadd.f32 %v225, %v302
    %304 = vmatmul.f32.gmra.mxu0 %v241
    %v305 = vpop.f32.mrf.mxu0
    %v306 = vadd.f32 %v225, %v305
    %307 = vmatmul.f32.gmra.mxu0 %v244
    %v308 = vpop.f32.mrf.mxu0
    %v309 = vadd.f32 %v225, %v308
    %310 = vmatmul.f32.gmra.mxu0 %v247
    %v311 = vpop.f32.mrf.mxu0
    %v312 = vadd.f32 %v225, %v311
    %313 = vmatmul.f32.gmra.mxu0 %v250
    %v314 = vpop.f32.mrf.mxu0
    %v315 = vadd.f32 %v225, %v314
    %316 = vmatmul.f32.gmra.mxu0 %v253
    %v317 = vpop.f32.mrf.mxu0
    %v318 = vadd.f32 %v225, %v317
    %319 = vmatmul.f32.gmra.mxu0 %v256
    %v320 = vpop.f32.mrf.mxu0
    %v321 = vadd.f32 %v225, %v320
    %322 = vmatmul.f32.gmra.mxu0 %v259
    %v323 = vpop.f32.mrf.mxu0
    %v324 = vadd.f32 %v225, %v323
    %325 = vmatmul.f32.gmra.mxu0 %v262
    %v326 = vpop.f32.mrf.mxu0
    %v327 = vadd.f32 %v225, %v326
    %328 = vmatmul.f32.gmra.mxu0 %v265
    %v329 = vpop.f32.mrf.mxu0
    %v330 = vadd.f32 %v225, %v329
    %331 = vmatmul.f32.gmra.mxu0 %v268
    %v332 = vpop.f32.mrf.mxu0
    %v333 = vadd.f32 %v225, %v332
    %334 = vmatmul.f32.gmra.mxu0 %v271
    %v335 = vpop.f32.mrf.mxu0
    %v336 = vadd.f32 %v225, %v335
    %337 = vmatmul.f32.gmra.mxu0 %v274
    %v338 = vpop.f32.mrf.mxu0
    %v339 = vadd.f32 %v225, %v338
    %340 = vdwg.mxu0
    %341 = vst.msk [vmem:[#allocation2] sm:$0xff] %vm227, %v294
    %342 = vst.msk [vmem:[#allocation2 + $0x8] sm:$0xff] %vm227, %v297
    %343 = vst.msk [vmem:[#allocation2 + $0x10] sm:$0xff] %vm227, %v300
    %344 = vst.msk [vmem:[#allocation2 + $0x18] sm:$0xff] %vm227, %v303
    %345 = vst.msk [vmem:[#allocation2 + $0x20] sm:$0xff] %vm227, %v306
    %346 = vst.msk [vmem:[#allocation2 + $0x28] sm:$0xff] %vm227, %v309
    %347 = vst.msk [vmem:[#allocation2 + $0x30] sm:$0xff] %vm227, %v312
    %348 = vst.msk [vmem:[#allocation2 + $0x38] sm:$0xff] %vm227, %v315
    %349 = vst.msk [vmem:[#allocation2 + $0x40] sm:$0xff] %vm227, %v318
    %350 = vst.msk [vmem:[#allocation2 + $0x48] sm:$0xff] %vm227, %v321
    %351 = vst.msk [vmem:[#allocation2 + $0x50] sm:$0xff] %vm227, %v324
    %352 = vst.msk [vmem:[#allocation2 + $0x58] sm:$0xff] %vm227, %v327
    %353 = vst.msk [vmem:[#allocation2 + $0x60] sm:$0xff] %vm227, %v330
    %354 = vst.msk [vmem:[#allocation2 + $0x68] sm:$0xff] %vm227, %v333
    %355 = vst.msk [vmem:[#allocation2 + $0x70] sm:$0xff] %vm227, %v336
    %356 = vst.msk [vmem:[#allocation2 + $0x78] sm:$0xff] %vm227, %v339
    %v357 = vlaneseq
    %v358 = vand.u32 %v357, 127
    %v359 = vcvt.s32.f32 %v358
    %v360 = vsub.f32 0.0, %v359
    %vm361 = vcmp.eq.s32.totalorder %v358, 1
    %v362 = vsel %vm361, 1, 0
    %v363 = vcvt.s32.f32 %v362
    %v364 = vld [vmem:[#allocation3] sm:$0xff]
    %v365 = vld [vmem:[#allocation3 + $0x8] sm:$0xff]
    %vm366 = vcmask 130048
    %v368 = vsel %vm366, %v363, 0
    %370 = vmatpush.msra.mxu0 0.0
    %371 = vmatpush.msra.mxu0 0.0
    %372 = vmatpush.msra.mxu0 0.0
    %373 = vmatpush.msra.mxu0 0.0
    %374 = vmatpush.msra.mxu0 0.0
    %375 = vmatpush.msra.mxu0 0.0
    %376 = vmatpush.msra.mxu0 0.0
    %377 = vmatpush.msra.mxu0 0.0
    %378 = vmatpush.msra.mxu0 0.0
    %379 = vmatpush.msra.mxu0 0.0
    %380 = vmatpush.msra.mxu0 0.0
    %381 = vmatpush.msra.mxu0 0.0
    %382 = vmatpush.msra.mxu0 0.0
    %383 = vmatpush.msra.mxu0 0.0
    %384 = vmatpush.msra.mxu0 %v365
    %385 = vmatpush.msra.mxu0 %v364
    %386 = vmatmul.f32.gmra.mxu0 %v368
    %v387 = vpop.f32.mrf.mxu0
    %v388 = vadd.f32 0.0, %v387
    %389 = vdwg.mxu0
    %v390 = vld [vmem:[#allocation7] sm:$0xff]
    %v391 = vld [vmem:[#allocation7 + $0x8] sm:$0xff]
    %v392 = vld [vmem:[#allocation7 + $0x10] sm:$0xff]
    %v393 = vld [vmem:[#allocation7 + $0x18] sm:$0xff]
    %v394 = vld [vmem:[#allocation8] sm:$0x1]
    %v396 = vperm.slane %v394, 0
    %v399 = vsel %vm227, 0.0, 0
    %401 = vmatpush.msra.mxu0 0.0
    %402 = vmatpush.msra.mxu0 0.0
    %403 = vmatpush.msra.mxu0 0.0
    %404 = vmatpush.msra.mxu0 0.0
    %405 = vmatpush.msra.mxu0 0.0
    %406 = vmatpush.msra.mxu0 0.0
    %407 = vmatpush.msra.mxu0 0.0
    %408 = vmatpush.msra.mxu0 0.0
    %409 = vmatpush.msra.mxu0 0.0
    %410 = vmatpush.msra.mxu0 0.0
    %411 = vmatpush.msra.mxu0 0.0
    %412 = vmatpush.msra.mxu0 0.0
    %413 = vmatpush.msra.mxu0 %v393
    %414 = vmatpush.msra.mxu0 %v392
    %415 = vmatpush.msra.mxu0 %v391
    %416 = vmatpush.msra.mxu0 %v390
    %417 = vmatmul.f32.gmra.mxu0 %v399
    %v418 = vpop.f32.mrf.mxu0
    %v419 = vadd.f32 %v396, %v418
    %420 = vdwg.mxu0
    %v421 = vld [vmem:[#allocation2] sm:$0xff]
    %v422 = vld [vmem:[#allocation2 + $0x8] sm:$0xff]
    %v423 = vld [vmem:[#allocation2 + $0x10] sm:$0xff]
    %v424 = vld [vmem:[#allocation2 + $0x18] sm:$0xff]
    %v425 = vld [vmem:[#allocation2 + $0x20] sm:$0xff]
    %v426 = vld [vmem:[#allocation2 + $0x28] sm:$0xff]
    %v427 = vld [vmem:[#allocation2 + $0x30] sm:$0xff]
    %v428 = vld [vmem:[#allocation2 + $0x38] sm:$0xff]
    %v429 = vld [vmem:[#allocation2 + $0x40] sm:$0xff]
    %v430 = vld [vmem:[#allocation2 + $0x48] sm:$0xff]
    %v431 = vld [vmem:[#allocation2 + $0x50] sm:$0xff]
    %v432 = vld [vmem:[#allocation2 + $0x58] sm:$0xff]
    %v433 = vld [vmem:[#allocation2 + $0x60] sm:$0xff]
    %v434 = vld [vmem:[#allocation2 + $0x68] sm:$0xff]
    %v435 = vld [vmem:[#allocation2 + $0x70] sm:$0xff]
    %v436 = vld [vmem:[#allocation2 + $0x78] sm:$0xff]
    %v438 = vrot.slane %v419, 1
    %v439 = vperm.slane %v419, 0
    %v440 = vperm.slane %v438, 0
    %v443 = vadd.f32 %v421, %v439
    %v444 = vadd.f32 %v422, %v439
    %v445 = vadd.f32 %v423, %v439
    %v446 = vadd.f32 %v424, %v439
    %v447 = vadd.f32 %v425, %v439
    %v448 = vadd.f32 %v426, %v439
    %v449 = vadd.f32 %v427, %v439
    %v450 = vadd.f32 %v428, %v439
    %v451 = vadd.f32 %v429, %v440
    %v452 = vadd.f32 %v430, %v440
    %v453 = vadd.f32 %v431, %v440
    %v454 = vadd.f32 %v432, %v440
    %v455 = vadd.f32 %v433, %v440
    %v456 = vadd.f32 %v434, %v440
    %v457 = vadd.f32 %v435, %v440
    %v458 = vadd.f32 %v436, %v440
    %v459 = vtanh.pop %v443
    %v460 = vtanh.pop %v444
    %v461 = vtanh.pop %v445
    %v462 = vtanh.pop %v446
    %v463 = vtanh.pop %v447
    %v464 = vtanh.pop %v448
    %v465 = vtanh.pop %v449
    %v466 = vtanh.pop %v450
    %v467 = vtanh.pop %v451
    %v468 = vtanh.pop %v452
    %v469 = vtanh.pop %v453
    %v470 = vtanh.pop %v454
    %v471 = vtanh.pop %v455
    %v472 = vtanh.pop %v456
    %v473 = vtanh.pop %v457
    %v474 = vtanh.pop %v458
    %v475 = vld [vmem:[#allocation10] sm:$0x1]
    %v477 = vperm.slane %v475, 0
    %v479 = vmul.f32 %v459, %v477
    %v480 = vmul.f32 %v460, %v477
    %v481 = vmul.f32 %v461, %v477
    %v482 = vmul.f32 %v462, %v477
    %v483 = vmul.f32 %v463, %v477
    %v484 = vmul.f32 %v464, %v477
    %v485 = vmul.f32 %v465, %v477
    %v486 = vmul.f32 %v466, %v477
    %v487 = vmul.f32 %v467, %v477
    %v488 = vmul.f32 %v468, %v477
    %v489 = vmul.f32 %v469, %v477
    %v490 = vmul.f32 %v470, %v477
    %v491 = vmul.f32 %v471, %v477
    %v492 = vmul.f32 %v472, %v477
    %v493 = vmul.f32 %v473, %v477
    %v494 = vmul.f32 %v474, %v477
    %v495 = vsel %vm227, %v479, 0.0
    %496 = vadd.xlane.f32.xlu0 %v495
    %v497 = vpop.xlane.xlu0 %496
    %v498 = vsel %vm227, %v480, 0.0
    %499 = vadd.xlane.f32.xlu0 %v498
    %v500 = vpop.xlane.xlu0 %499
    %v501 = vsel %vm227, %v481, 0.0
    %502 = vadd.xlane.f32.xlu0 %v501
    %v503 = vpop.xlane.xlu0 %502
    %v504 = vsel %vm227, %v482, 0.0
    %505 = vadd.xlane.f32.xlu0 %v504
    %v506 = vpop.xlane.xlu0 %505
    %v507 = vsel %vm227, %v483, 0.0
    %508 = vadd.xlane.f32.xlu0 %v507
    %v509 = vpop.xlane.xlu0 %508
    %v510 = vsel %vm227, %v484, 0.0
    %511 = vadd.xlane.f32.xlu0 %v510
    %v512 = vpop.xlane.xlu0 %511
    %v513 = vsel %vm227, %v485, 0.0
    %514 = vadd.xlane.f32.xlu0 %v513
    %v515 = vpop.xlane.xlu0 %514
    %v516 = vsel %vm227, %v486, 0.0
    %517 = vadd.xlane.f32.xlu0 %v516
    %v518 = vpop.xlane.xlu0 %517
    %v519 = vsel %vm227, %v487, 0.0
    %520 = vadd.xlane.f32.xlu0 %v519
    %v521 = vpop.xlane.xlu0 %520
    %v522 = vsel %vm227, %v488, 0.0
    %523 = vadd.xlane.f32.xlu0 %v522
    %v524 = vpop.xlane.xlu0 %523
    %v525 = vsel %vm227, %v489, 0.0
    %526 = vadd.xlane.f32.xlu0 %v525
    %v527 = vpop.xlane.xlu0 %526
    %v528 = vsel %vm227, %v490, 0.0
    %529 = vadd.xlane.f32.xlu0 %v528
    %v530 = vpop.xlane.xlu0 %529
    %v531 = vsel %vm227, %v491, 0.0
    %532 = vadd.xlane.f32.xlu0 %v531
    %v533 = vpop.xlane.xlu0 %532
    %v534 = vsel %vm227, %v492, 0.0
    %535 = vadd.xlane.f32.xlu0 %v534
    %v536 = vpop.xlane.xlu0 %535
    %v537 = vsel %vm227, %v493, 0.0
    %538 = vadd.xlane.f32.xlu0 %v537
    %v539 = vpop.xlane.xlu0 %538
    %v540 = vsel %vm227, %v494, 0.0
    %541 = vadd.xlane.f32.xlu0 %v540
    %v542 = vpop.xlane.xlu0 %541
    %v559 = vperm.slane %v497, %v358
    %v560 = vadd.s32 %v358, 4294967288
    %v561 = vperm.slane %v500, %v560
    %vm562 = vcmask 130112
    %v563 = vsel %vm562, %v561, %v559
    %v564 = vadd.s32 %v358, 4294967280
    %v565 = vperm.slane %v503, %v564
    %vm566 = vcmask 195712
    %v567 = vsel %vm566, %v565, %v563
    %v568 = vadd.s32 %v358, 4294967272
    %v569 = vperm.slane %v506, %v568
    %vm570 = vcmask 261312
    %v571 = vsel %vm570, %v569, %v567
    %v572 = vadd.s32 %v358, 4294967264
    %v573 = vperm.slane %v509, %v572
    %vm574 = vcmask 326912
    %v575 = vsel %vm574, %v573, %v571
    %v576 = vadd.s32 %v358, 4294967256
    %v577 = vperm.slane %v512, %v576
    %vm578 = vcmask 392512
    %v579 = vsel %vm578, %v577, %v575
    %v580 = vadd.s32 %v358, 4294967248
    %v581 = vperm.slane %v515, %v580
    %vm582 = vcmask 458112
    %v583 = vsel %vm582, %v581, %v579
    %v584 = vadd.s32 %v358, 4294967240
    %v585 = vperm.slane %v518, %v584
    %vm586 = vcmask 523712
    %v587 = vsel %vm586, %v585, %v583
    %v588 = vperm.slane %v521, %v358
    %v589 = vperm.slane %v524, %v560
    %v590 = vsel %vm562, %v589, %v588
    %v591 = vperm.slane %v527, %v564
    %v592 = vsel %vm566, %v591, %v590
    %v593 = vperm.slane %v530, %v568
    %v594 = vsel %vm570, %v593, %v592
    %v595 = vperm.slane %v533, %v572
    %v596 = vsel %vm574, %v595, %v594
    %v597 = vperm.slane %v536, %v576
    %v598 = vsel %vm578, %v597, %v596
    %v599 = vperm.slane %v539, %v580
    %v600 = vsel %vm582, %v599, %v598
    %v601 = vperm.slane %v542, %v584
    %v602 = vsel %vm586, %v601, %v600
    %vm603 = vcmask 1041409
    %v604 = vsel %vm603, %v602, %v587
    %vm606 = vcmask 517120
    %v607 = vsel %vm606, %v604, -inf
    %608 = vmax.xlane.f32.xlu0 %v607
    %v609 = vpop.xlane.xlu0 %608
    %v611 = vperm.slane %v609, 0
    %v612 = vperm.slane %v609, 1
    %v615 = vsub.f32 %v497, %v611
    %v616 = vsub.f32 %v500, %v611
    %v617 = vsub.f32 %v503, %v611
    %v618 = vsub.f32 %v506, %v611
    %v619 = vsub.f32 %v509, %v611
    %v620 = vsub.f32 %v512, %v611
    %v621 = vsub.f32 %v515, %v611
    %v622 = vsub.f32 %v518, %v611
    %v623 = vsub.f32 %v521, %v612
    %v624 = vsub.f32 %v524, %v612
    %v625 = vsub.f32 %v527, %v612
    %v626 = vsub.f32 %v530, %v612
    %v627 = vsub.f32 %v533, %v612
    %v628 = vsub.f32 %v536, %v612
    %v629 = vsub.f32 %v539, %v612
    %v630 = vsub.f32 %v542, %v612
    %v631 = vmul.f32 %v615, 1.442695
    %v632 = vpow.pop %v631
    %v633 = vmul.f32 %v616, 1.442695
    %v634 = vpow.pop %v633
    %v635 = vmul.f32 %v617, 1.442695
    %v636 = vpow.pop %v635
    %v637 = vmul.f32 %v618, 1.442695
    %v638 = vpow.pop %v637
    %v639 = vmul.f32 %v619, 1.442695
    %v640 = vpow.pop %v639
    %v641 = vmul.f32 %v620, 1.442695
    %v642 = vpow.pop %v641
    %v643 = vmul.f32 %v621, 1.442695
    %v644 = vpow.pop %v643
    %v645 = vmul.f32 %v622, 1.442695
    %v646 = vpow.pop %v645
    %v647 = vmul.f32 %v623, 1.442695
    %v648 = vpow.pop %v647
    %v649 = vmul.f32 %v624, 1.442695
    %v650 = vpow.pop %v649
    %v651 = vmul.f32 %v625, 1.442695
    %v652 = vpow.pop %v651
    %v653 = vmul.f32 %v626, 1.442695
    %v654 = vpow.pop %v653
    %v655 = vmul.f32 %v627, 1.442695
    %v656 = vpow.pop %v655
    %v657 = vmul.f32 %v628, 1.442695
    %v658 = vpow.pop %v657
    %v659 = vmul.f32 %v629, 1.442695
    %v660 = vpow.pop %v659
    %v661 = vmul.f32 %v630, 1.442695
    %v662 = vpow.pop %v661
    %679 = vset.pattern.permute.xlu0 0
    %680 = vperm.xlu0 %679, %v632
    %v681 = vpop.permute.xlu0 %680
    %682 = vset.pattern.permute.xlu0 0
    %683 = vperm.xlu0 %682, %v634
    %v684 = vpop.permute.xlu0 %683
    %685 = vset.pattern.permute.xlu0 0
    %686 = vperm.xlu0 %685, %v636
    %v687 = vpop.permute.xlu0 %686
    %688 = vset.pattern.permute.xlu0 0
    %689 = vperm.xlu0 %688, %v638
    %v690 = vpop.permute.xlu0 %689
    %691 = vset.pattern.permute.xlu0 0
    %692 = vperm.xlu0 %691, %v640
    %v693 = vpop.permute.xlu0 %692
    %694 = vset.pattern.permute.xlu0 0
    %695 = vperm.xlu0 %694, %v642
    %v696 = vpop.permute.xlu0 %695
    %697 = vset.pattern.permute.xlu0 0
    %698 = vperm.xlu0 %697, %v644
    %v699 = vpop.permute.xlu0 %698
    %700 = vset.pattern.permute.xlu0 0
    %701 = vperm.xlu0 %700, %v646
    %v702 = vpop.permute.xlu0 %701
    %703 = vset.pattern.permute.xlu0 0
    %704 = vperm.xlu0 %703, %v648
    %v705 = vpop.permute.xlu0 %704
    %706 = vset.pattern.permute.xlu0 0
    %707 = vperm.xlu0 %706, %v650
    %v708 = vpop.permute.xlu0 %707
    %709 = vset.pattern.permute.xlu0 0
    %710 = vperm.xlu0 %709, %v652
    %v711 = vpop.permute.xlu0 %710
    %712 = vset.pattern.permute.xlu0 0
    %713 = vperm.xlu0 %712, %v654
    %v714 = vpop.permute.xlu0 %713
    %715 = vset.pattern.permute.xlu0 0
    %716 = vperm.xlu0 %715, %v656
    %v717 = vpop.permute.xlu0 %716
    %718 = vset.pattern.permute.xlu0 0
    %719 = vperm.xlu0 %718, %v658
    %v720 = vpop.permute.xlu0 %719
    %721 = vset.pattern.permute.xlu0 0
    %722 = vperm.xlu0 %721, %v660
    %v723 = vpop.permute.xlu0 %722
    %724 = vset.pattern.permute.xlu0 0
    %725 = vperm.xlu0 %724, %v662
    %v726 = vpop.permute.xlu0 %725
    %v727 = vperm.slane %v681, %v358
    %v728 = vperm.slane %v684, %v560
    %v729 = vsel %vm562, %v728, %v727
    %v730 = vperm.slane %v687, %v564
    %v731 = vsel %vm566, %v730, %v729
    %v732 = vperm.slane %v690, %v568
    %v733 = vsel %vm570, %v732, %v731
    %v734 = vperm.slane %v693, %v572
    %v735 = vsel %vm574, %v734, %v733
    %v736 = vperm.slane %v696, %v576
    %v737 = vsel %vm578, %v736, %v735
    %v738 = vperm.slane %v699, %v580
    %v739 = vsel %vm582, %v738, %v737
    %v740 = vperm.slane %v702, %v584
    %v741 = vsel %vm586, %v740, %v739
    %v742 = vperm.slane %v705, %v358
    %v743 = vperm.slane %v708, %v560
    %v744 = vsel %vm562, %v743, %v742
    %v745 = vperm.slane %v711, %v564
    %v746 = vsel %vm566, %v745, %v744
    %v747 = vperm.slane %v714, %v568
    %v748 = vsel %vm570, %v747, %v746
    %v749 = vperm.slane %v717, %v572
    %v750 = vsel %vm574, %v749, %v748
    %v751 = vperm.slane %v720, %v576
    %v752 = vsel %vm578, %v751, %v750
    %v753 = vperm.slane %v723, %v580
    %v754 = vsel %vm582, %v753, %v752
    %v755 = vperm.slane %v726, %v584
    %v756 = vsel %vm586, %v755, %v754
    %v757 = vsel %vm603, %v756, %v741
    %v759 = vsel %vm606, %v757, 0.0
    %760 = vadd.xlane.f32.xlu0 %v759
    %v761 = vpop.xlane.xlu0 %760
    %v763 = vperm.slane %v761, 0
    %v764 = vperm.slane %v761, 1
    %v767 = vrcp.pop %v763
    %v768 = vmul.f32 %v763, %v767
    %v769 = vsub.f32 1.0, %v768
    %v770 = vmul.f32 %v767, %v769
    %v771 = vadd.f32 %v767, %v770
    %vm772 = vweird.f32 %v763
    %vm773 = vweird.f32 %v767
    %vm774 = vmor %vm772, %vm773
    %v775 = vsel %vm774, %v767, %v771
    %v776 = vand.u32 2147483647, %v763
    %vm777 = vcmp.eq.f32.partialorder %v776, 8.507059e+37
    %v778 = vand.u32 %v763, 2147483648
    %v779 = vor.u32 1.1754944e-38, %v778
    %v780 = vsel %vm777, %v779, %v775
    %v781 = vmul.f32 %v632, %v780
    %v782 = vmul.f32 %v634, %v780
    %v783 = vmul.f32 %v636, %v780
    %v784 = vmul.f32 %v638, %v780
    %v785 = vmul.f32 %v640, %v780
    %v786 = vmul.f32 %v642, %v780
    %v787 = vmul.f32 %v644, %v780
    %v788 = vmul.f32 %v646, %v780
    %v789 = vrcp.pop %v764
    %v790 = vmul.f32 %v764, %v789
    %v791 = vsub.f32 1.0, %v790
    %v792 = vmul.f32 %v789, %v791
    %v793 = vadd.f32 %v789, %v792
    %vm794 = vweird.f32 %v764
    %vm795 = vweird.f32 %v789
    %vm796 = vmor %vm794, %vm795
    %v797 = vsel %vm796, %v789, %v793
    %v798 = vand.u32 2147483647, %v764
    %vm799 = vcmp.eq.f32.partialorder %v798, 8.507059e+37
    %v800 = vand.u32 %v764, 2147483648
    %v801 = vor.u32 1.1754944e-38, %v800
    %v802 = vsel %vm799, %v801, %v797
    %v803 = vmul.f32 %v648, %v802
    %v804 = vmul.f32 %v650, %v802
    %v805 = vmul.f32 %v652, %v802
    %v806 = vmul.f32 %v654, %v802
    %v807 = vmul.f32 %v656, %v802
    %v808 = vmul.f32 %v658, %v802
    %v809 = vmul.f32 %v660, %v802
    %v810 = vmul.f32 %v662, %v802
    %v811 = vld [vmem:[%s1] sm:$0xff]
    %v812 = vld [vmem:[%s1 + $0x8] sm:$0xff]
    %v813 = vld [vmem:[%s1 + $0x10] sm:$0xff]
    %v814 = vld [vmem:[%s1 + $0x18] sm:$0xff]
    %v815 = vld [vmem:[%s1 + $0x20] sm:$0xff]
    %v816 = vld [vmem:[%s1 + $0x28] sm:$0xff]
    %v817 = vld [vmem:[%s1 + $0x30] sm:$0xff]
    %v818 = vld [vmem:[%s1 + $0x38] sm:$0xff]
    %v819 = vld [vmem:[%s1 + $0x40] sm:$0xff]
    %v820 = vld [vmem:[%s1 + $0x48] sm:$0xff]
    %v821 = vld [vmem:[%s1 + $0x50] sm:$0xff]
    %v822 = vld [vmem:[%s1 + $0x58] sm:$0xff]
    %v823 = vld [vmem:[%s1 + $0x60] sm:$0xff]
    %v824 = vld [vmem:[%s1 + $0x68] sm:$0xff]
    %v825 = vld [vmem:[%s1 + $0x70] sm:$0xff]
    %v826 = vld [vmem:[%s1 + $0x78] sm:$0xff]
    %828 = vset.pattern.permute.xlu0 0
    %829 = vperm.xlu0 %828, %v781
    %v830 = vpop.permute.xlu0 %829
    %833 = vset.pattern.permute.xlu0 0
    %834 = vperm.xlu0 %833, %v782
    %v835 = vpop.permute.xlu0 %834
    %838 = vset.pattern.permute.xlu0 0
    %839 = vperm.xlu0 %838, %v783
    %v840 = vpop.permute.xlu0 %839
    %843 = vset.pattern.permute.xlu0 0
    %844 = vperm.xlu0 %843, %v784
    %v845 = vpop.permute.xlu0 %844
    %848 = vset.pattern.permute.xlu0 0
    %849 = vperm.xlu0 %848, %v785
    %v850 = vpop.permute.xlu0 %849
    %853 = vset.pattern.permute.xlu0 0
    %854 = vperm.xlu0 %853, %v786
    %v855 = vpop.permute.xlu0 %854
    %858 = vset.pattern.permute.xlu0 0
    %859 = vperm.xlu0 %858, %v787
    %v860 = vpop.permute.xlu0 %859
    %863 = vset.pattern.permute.xlu0 0
    %864 = vperm.xlu0 %863, %v788
    %v865 = vpop.permute.xlu0 %864
    %868 = vset.pattern.permute.xlu0 0
    %869 = vperm.xlu0 %868, %v803
    %v870 = vpop.permute.xlu0 %869
    %873 = vset.pattern.permute.xlu0 0
    %874 = vperm.xlu0 %873, %v804
    %v875 = vpop.permute.xlu0 %874
    %878 = vset.pattern.permute.xlu0 0
    %879 = vperm.xlu0 %878, %v805
    %v880 = vpop.permute.xlu0 %879
    %883 = vset.pattern.permute.xlu0 0
    %884 = vperm.xlu0 %883, %v806
    %v885 = vpop.permute.xlu0 %884
    %888 = vset.pattern.permute.xlu0 0
    %889 = vperm.xlu0 %888, %v807
    %v890 = vpop.permute.xlu0 %889
    %893 = vset.pattern.permute.xlu0 0
    %894 = vperm.xlu0 %893, %v808
    %v895 = vpop.permute.xlu0 %894
    %898 = vset.pattern.permute.xlu0 0
    %899 = vperm.xlu0 %898, %v809
    %v900 = vpop.permute.xlu0 %899
    %903 = vset.pattern.permute.xlu0 0
    %904 = vperm.xlu0 %903, %v810
    %v905 = vpop.permute.xlu0 %904
    %v907 = vmul.f32 %v830, %v811
    %v908 = vmul.f32 %v835, %v812
    %v909 = vmul.f32 %v840, %v813
    %v910 = vmul.f32 %v845, %v814
    %v911 = vmul.f32 %v850, %v815
    %v912 = vmul.f32 %v855, %v816
    %v913 = vmul.f32 %v860, %v817
    %v914 = vmul.f32 %v865, %v818
    %v915 = vmul.f32 %v870, %v819
    %v916 = vmul.f32 %v875, %v820
    %v917 = vmul.f32 %v880, %v821
    %v918 = vmul.f32 %v885, %v822
    %v919 = vmul.f32 %v890, %v823
    %v920 = vmul.f32 %v895, %v824
    %v921 = vmul.f32 %v900, %v825
    %v922 = vmul.f32 %v905, %v826
    %v923 = vsel %vm227, %v907, 0.0
    %v924 = vsel %vm227, %v908, 0.0
    %v925 = vadd.f32 %v923, %v924
    %v926 = vsel %vm227, %v909, 0.0
    %v927 = vadd.f32 %v925, %v926
    %v928 = vsel %vm227, %v910, 0.0
    %v929 = vadd.f32 %v927, %v928
    %v930 = vsel %vm227, %v911, 0.0
    %v931 = vadd.f32 %v929, %v930
    %v932 = vsel %vm227, %v912, 0.0
    %v933 = vadd.f32 %v931, %v932
    %v934 = vsel %vm227, %v913, 0.0
    %v935 = vadd.f32 %v933, %v934
    %v936 = vsel %vm227, %v914, 0.0
    %v937 = vadd.f32 %v935, %v936
    %v938 = vrot.slane %v937, 4
    %v939 = vadd.f32 %v937, %v938
    %v940 = vrot.slane %v939, 2
    %v941 = vadd.f32 %v939, %v940
    %v942 = vrot.slane %v941, 1
    %v943 = vadd.f32 %v941, %v942
    %v944 = vsel %vm227, %v915, 0.0
    %v945 = vsel %vm227, %v916, 0.0
    %v946 = vadd.f32 %v944, %v945
    %v947 = vsel %vm227, %v917, 0.0
    %v948 = vadd.f32 %v946, %v947
    %v949 = vsel %vm227, %v918, 0.0
    %v950 = vadd.f32 %v948, %v949
    %v951 = vsel %vm227, %v919, 0.0
    %v952 = vadd.f32 %v950, %v951
    %v953 = vsel %vm227, %v920, 0.0
    %v954 = vadd.f32 %v952, %v953
    %v955 = vsel %vm227, %v921, 0.0
    %v956 = vadd.f32 %v954, %v955
    %v957 = vsel %vm227, %v922, 0.0
    %v958 = vadd.f32 %v956, %v957
    %v959 = vrot.slane %v958, 4
    %v960 = vadd.f32 %v958, %v959
    %v961 = vrot.slane %v960, 2
    %v962 = vadd.f32 %v960, %v961
    %v963 = vrot.slane %v962, 1
    %v964 = vadd.f32 %v962, %v963
    %v965 = vld [vmem:[#allocation11] sm:$0xff]
    %v966 = vld [vmem:[#allocation11 + $0x8] sm:$0xff]
    %v967 = vld [vmem:[#allocation11 + $0x10] sm:$0xff]
    %v968 = vld [vmem:[#allocation11 + $0x18] sm:$0xff]
    %v969 = vld [vmem:[#allocation13] sm:$0xff]
    %v970 = vld [vmem:[#allocation13 + $0x8] sm:$0xff]
    %v971 = vld [vmem:[#allocation13 + $0x10] sm:$0xff]
    %v972 = vld [vmem:[#allocation13 + $0x18] sm:$0xff]
    %v975 = vsel %vm603, %v964, %v943
    %v976 = vsel %vm227, %v975, 0
    %978 = vmatpush.msra.mxu0 0.0
    %979 = vmatpush.msra.mxu0 0.0
    %980 = vmatpush.msra.mxu0 0.0
    %981 = vmatpush.msra.mxu0 0.0
    %982 = vmatpush.msra.mxu0 0.0
    %983 = vmatpush.msra.mxu0 0.0
    %984 = vmatpush.msra.mxu0 0.0
    %985 = vmatpush.msra.mxu0 0.0
    %986 = vmatpush.msra.mxu0 0.0
    %987 = vmatpush.msra.mxu0 0.0
    %988 = vmatpush.msra.mxu0 0.0
    %989 = vmatpush.msra.mxu0 0.0
    %990 = vmatpush.msra.mxu0 %v972
    %991 = vmatpush.msra.mxu0 %v971
    %992 = vmatpush.msra.mxu0 %v970
    %993 = vmatpush.msra.mxu0 %v969
    %994 = vmatmul.f32.gmra.mxu0 %v976
    %v995 = vpop.f32.mrf.mxu0
    %v996 = vadd.f32 0.0, %v995
    %997 = vdwg.mxu0
    %v999 = vsel %vm227, %v388, 0
    %1001 = vmatpush.msra.mxu0 0.0
    %1002 = vmatpush.msra.mxu0 0.0
    %1003 = vmatpush.msra.mxu0 0.0
    %1004 = vmatpush.msra.mxu0 0.0
    %1005 = vmatpush.msra.mxu0 0.0
    %1006 = vmatpush.msra.mxu0 0.0
    %1007 = vmatpush.msra.mxu0 0.0
    %1008 = vmatpush.msra.mxu0 0.0
    %1009 = vmatpush.msra.mxu0 0.0
    %1010 = vmatpush.msra.mxu0 0.0
    %1011 = vmatpush.msra.mxu0 0.0
    %1012 = vmatpush.msra.mxu0 0.0
    %1013 = vmatpush.msra.mxu0 %v968
    %1014 = vmatpush.msra.mxu0 %v967
    %1015 = vmatpush.msra.mxu0 %v966
    %1016 = vmatpush.msra.mxu0 %v965
    %1017 = vmatmul.f32.gmra.mxu0 %v999
    %v1018 = vpop.f32.mrf.mxu0
    %v1019 = vadd.f32 %v996, %v1018
    %1020 = vdwg.mxu0
    %v1021 = vld [vmem:[%s9] sm:$0x1]
    %v1023 = vperm.slane %v1021, 0
    %v1025 = vadd.f32 %v1019, %v1023
    %v1026 = vmax.f32 %v1025, 0.0
    %v1027 = vld [vmem:[%s10] sm:$0xff]
    %v1028 = vld [vmem:[%s10 + $0x8] sm:$0xff]
    %v1029 = vld [vmem:[%s10 + $0x10] sm:$0xff]
    %v1030 = vld [vmem:[%s10 + $0x18] sm:$0xff]
    %v1031 = vld [vmem:[#allocation14] sm:$0x1]
    %v1033 = vperm.slane %v1031, 0
    %v1036 = vsel %vm227, %v1026, 0
    %1038 = vmatpush.msra.mxu0 0.0
    %1039 = vmatpush.msra.mxu0 0.0
    %1040 = vmatpush.msra.mxu0 0.0
    %1041 = vmatpush.msra.mxu0 0.0
    %1042 = vmatpush.msra.mxu0 0.0
    %1043 = vmatpush.msra.mxu0 0.0
    %1044 = vmatpush.msra.mxu0 0.0
    %1045 = vmatpush.msra.mxu0 0.0
    %1046 = vmatpush.msra.mxu0 0.0
    %1047 = vmatpush.msra.mxu0 0.0
    %1048 = vmatpush.msra.mxu0 0.0
    %1049 = vmatpush.msra.mxu0 0.0
    %1050 = vmatpush.msra.mxu0 %v1030
    %1051 = vmatpush.msra.mxu0 %v1029
    %1052 = vmatpush.msra.mxu0 %v1028
    %1053 = vmatpush.msra.mxu0 %v1027
    %1054 = vmatmul.f32.gmra.mxu0 %v1036
    %v1055 = vpop.f32.mrf.mxu0
    %v1056 = vadd.f32 %v1033, %v1055
    %1057 = vdwg.mxu0
    %s1058 = scalar_lea.vmem %s10, 32
    %v1059 = vld [vmem:[%s1058] sm:$0xff]
    %v1060 = vld [vmem:[%s1058 + $0x8] sm:$0xff]
    %v1061 = vld [vmem:[%s1058 + $0x10] sm:$0xff]
    %v1062 = vld [vmem:[%s1058 + $0x18] sm:$0xff]
    %s1063 = scalar_lea.vmem [#allocation14], 1
    %v1064 = vld [vmem:[%s1063] sm:$0x1]
    %v1066 = vperm.slane %v1064, 0
    %1068 = vmatpush.msra.mxu0 0.0
    %1069 = vmatpush.msra.mxu0 0.0
    %1070 = vmatpush.msra.mxu0 0.0
    %1071 = vmatpush.msra.mxu0 0.0
    %1072 = vmatpush.msra.mxu0 0.0
    %1073 = vmatpush.msra.mxu0 0.0
    %1074 = vmatpush.msra.mxu0 0.0
    %1075 = vmatpush.msra.mxu0 0.0
    %1076 = vmatpush.msra.mxu0 0.0
    %1077 = vmatpush.msra.mxu0 0.0
    %1078 = vmatpush.msra.mxu0 0.0
    %1079 = vmatpush.msra.mxu0 0.0
    %1080 = vmatpush.msra.mxu0 %v1062
    %1081 = vmatpush.msra.mxu0 %v1061
    %1082 = vmatpush.msra.mxu0 %v1060
    %1083 = vmatpush.msra.mxu0 %v1059
    %1084 = vmatmul.f32.gmra.mxu0 %v1036
    %v1085 = vpop.f32.mrf.mxu0
    %v1086 = vadd.f32 %v1066, %v1085
    %1087 = vdwg.mxu0
    %s1088 = scalar_lea.vmem %s10, 64
    %v1089 = vld [vmem:[%s1088] sm:$0xff]
    %v1090 = vld [vmem:[%s1088 + $0x8] sm:$0xff]
    %v1091 = vld [vmem:[%s1088 + $0x10] sm:$0xff]
    %v1092 = vld [vmem:[%s1088 + $0x18] sm:$0xff]
    %s1093 = scalar_lea.vmem [#allocation14], 2
    %v1094 = vld [vmem:[%s1093] sm:$0x1]
    %v1096 = vperm.slane %v1094, 0
    %1098 = vmatpush.msra.mxu0 0.0
    %1099 = vmatpush.msra.mxu0 0.0
    %1100 = vmatpush.msra.mxu0 0.0
    %1101 = vmatpush.msra.mxu0 0.0
    %1102 = vmatpush.msra.mxu0 0.0
    %1103 = vmatpush.msra.mxu0 0.0
    %1104 = vmatpush.msra.mxu0 0.0
    %1105 = vmatpush.msra.mxu0 0.0
    %1106 = vmatpush.msra.mxu0 0.0
    %1107 = vmatpush.msra.mxu0 0.0
    %1108 = vmatpush.msra.mxu0 0.0
    %1109 = vmatpush.msra.mxu0 0.0
    %1110 = vmatpush.msra.mxu0 %v1092
    %1111 = vmatpush.msra.mxu0 %v1091
    %1112 = vmatpush.msra.mxu0 %v1090
    %1113 = vmatpush.msra.mxu0 %v1089
    %1114 = vmatmul.f32.gmra.mxu0 %v1036
    %v1115 = vpop.f32.mrf.mxu0
    %v1116 = vadd.f32 %v1096, %v1115
    %1117 = vdwg.mxu0
    %v1118 = vld [vmem:[%s11] sm:$0xff]
    %v1119 = vld [vmem:[%s11 + $0x8] sm:$0xff]
    %v1120 = vld [vmem:[%s11 + $0x10] sm:$0xff]
    %v1121 = vld [vmem:[%s11 + $0x18] sm:$0xff]
    %v1122 = vld [vmem:[#allocation16] sm:$0x1]
    %v1124 = vperm.slane %v1122, 0
    %1126 = vmatpush.msra.mxu0 0.0
    %1127 = vmatpush.msra.mxu0 0.0
    %1128 = vmatpush.msra.mxu0 0.0
    %1129 = vmatpush.msra.mxu0 0.0
    %1130 = vmatpush.msra.mxu0 0.0
    %1131 = vmatpush.msra.mxu0 0.0
    %1132 = vmatpush.msra.mxu0 0.0
    %1133 = vmatpush.msra.mxu0 0.0
    %1134 = vmatpush.msra.mxu0 0.0
    %1135 = vmatpush.msra.mxu0 0.0
    %1136 = vmatpush.msra.mxu0 0.0
    %1137 = vmatpush.msra.mxu0 0.0
    %1138 = vmatpush.msra.mxu0 %v1121
    %1139 = vmatpush.msra.mxu0 %v1120
    %1140 = vmatpush.msra.mxu0 %v1119
    %1141 = vmatpush.msra.mxu0 %v1118
    %1142 = vmatmul.f32.gmra.mxu0 %v399
    %v1143 = vpop.f32.mrf.mxu0
    %v1144 = vadd.f32 %v1124, %v1143
    %1145 = vdwg.mxu0
    %s1146 = scalar_lea.vmem %s11, 32
    %v1147 = vld [vmem:[%s1146] sm:$0xff]
    %v1148 = vld [vmem:[%s1146 + $0x8] sm:$0xff]
    %v1149 = vld [vmem:[%s1146 + $0x10] sm:$0xff]
    %v1150 = vld [vmem:[%s1146 + $0x18] sm:$0xff]
    %s1151 = scalar_lea.vmem [#allocation16], 1
    %v1152 = vld [vmem:[%s1151] sm:$0x1]
    %v1154 = vperm.slane %v1152, 0
    %1156 = vmatpush.msra.mxu0 0.0
    %1157 = vmatpush.msra.mxu0 0.0
    %1158 = vmatpush.msra.mxu0 0.0
    %1159 = vmatpush.msra.mxu0 0.0
    %1160 = vmatpush.msra.mxu0 0.0
    %1161 = vmatpush.msra.mxu0 0.0
    %1162 = vmatpush.msra.mxu0 0.0
    %1163 = vmatpush.msra.mxu0 0.0
    %1164 = vmatpush.msra.mxu0 0.0
    %1165 = vmatpush.msra.mxu0 0.0
    %1166 = vmatpush.msra.mxu0 0.0
    %1167 = vmatpush.msra.mxu0 0.0
    %1168 = vmatpush.msra.mxu0 %v1150
    %1169 = vmatpush.msra.mxu0 %v1149
    %1170 = vmatpush.msra.mxu0 %v1148
    %1171 = vmatpush.msra.mxu0 %v1147
    %1172 = vmatmul.f32.gmra.mxu0 %v399
    %v1173 = vpop.f32.mrf.mxu0
    %v1174 = vadd.f32 %v1154, %v1173
    %1175 = vdwg.mxu0
    %s1176 = scalar_lea.vmem %s11, 64
    %v1177 = vld [vmem:[%s1176] sm:$0xff]
    %v1178 = vld [vmem:[%s1176 + $0x8] sm:$0xff]
    %v1179 = vld [vmem:[%s1176 + $0x10] sm:$0xff]
    %v1180 = vld [vmem:[%s1176 + $0x18] sm:$0xff]
    %s1181 = scalar_lea.vmem [#allocation16], 2
    %v1182 = vld [vmem:[%s1181] sm:$0x1]
    %v1184 = vperm.slane %v1182, 0
    %1186 = vmatpush.msra.mxu0 0.0
    %1187 = vmatpush.msra.mxu0 0.0
    %1188 = vmatpush.msra.mxu0 0.0
    %1189 = vmatpush.msra.mxu0 0.0
    %1190 = vmatpush.msra.mxu0 0.0
    %1191 = vmatpush.msra.mxu0 0.0
    %1192 = vmatpush.msra.mxu0 0.0
    %1193 = vmatpush.msra.mxu0 0.0
    %1194 = vmatpush.msra.mxu0 0.0
    %1195 = vmatpush.msra.mxu0 0.0
    %1196 = vmatpush.msra.mxu0 0.0
    %1197 = vmatpush.msra.mxu0 0.0
    %1198 = vmatpush.msra.mxu0 %v1180
    %1199 = vmatpush.msra.mxu0 %v1179
    %1200 = vmatpush.msra.mxu0 %v1178
    %1201 = vmatpush.msra.mxu0 %v1177
    %1202 = vmatmul.f32.gmra.mxu0 %v399
    %v1203 = vpop.f32.mrf.mxu0
    %v1204 = vadd.f32 %v1184, %v1203
    %1205 = vdwg.mxu0
    %v1206 = vadd.f32 %v1056, %v1144
    %v1207 = vxor.u32 %v1206, 2147483648
    %v1208 = vmul.f32 %v1207, 1.442695
    %v1209 = vpow.pop %v1208
    %v1210 = vadd.f32 %v1209, 1.0
    %v1211 = vrcp.pop %v1210
    %v1212 = vmul.f32 %v1210, %v1211
    %v1213 = vsub.f32 1.0, %v1212
    %v1214 = vmul.f32 %v1211, %v1213
    %v1215 = vadd.f32 %v1211, %v1214
    %vm1216 = vweird.f32 %v1210
    %vm1217 = vweird.f32 %v1211
    %vm1218 = vmor %vm1216, %vm1217
    %v1219 = vsel %vm1218, %v1211, %v1215
    %v1220 = vand.u32 2147483647, %v1210
    %vm1221 = vcmp.eq.f32.partialorder %v1220, 8.507059e+37
    %v1222 = vand.u32 %v1210, 2147483648
    %v1223 = vor.u32 1.1754944e-38, %v1222
    %v1224 = vsel %vm1221, %v1223, %v1219
    %v1225 = vmul.f32 1.0, %v1224
    %v1226 = vadd.f32 %v1086, %v1174
    %v1227 = vxor.u32 %v1226, 2147483648
    %v1228 = vmul.f32 %v1227, 1.442695
    %v1229 = vpow.pop %v1228
    %v1230 = vadd.f32 %v1229, 1.0
    %v1231 = vrcp.pop %v1230
    %v1232 = vmul.f32 %v1230, %v1231
    %v1233 = vsub.f32 1.0, %v1232
    %v1234 = vmul.f32 %v1231, %v1233
    %v1235 = vadd.f32 %v1231, %v1234
    %vm1236 = vweird.f32 %v1230
    %vm1237 = vweird.f32 %v1231
    %vm1238 = vmor %vm1236, %vm1237
    %v1239 = vsel %vm1238, %v1231, %v1235
    %v1240 = vand.u32 2147483647, %v1230
    %vm1241 = vcmp.eq.f32.partialorder %v1240, 8.507059e+37
    %v1242 = vand.u32 %v1230, 2147483648
    %v1243 = vor.u32 1.1754944e-38, %v1242
    %v1244 = vsel %vm1241, %v1243, %v1239
    %v1245 = vmul.f32 1.0, %v1244
    %v1246 = vmul.f32 %v1225, %v1204
    %v1247 = vadd.f32 %v1116, %v1246
    %v1248 = vtanh.pop %v1247
    %v1249 = vsub.f32 1.0, %v1245
    %v1250 = vmul.f32 %v1249, %v1248
    %v1251 = vmul.f32 %v1245, 0.0
    %v1252 = vadd.f32 %v1250, %v1251
    %v1253 = vld [vmem:[%s14] sm:$0xff]
    %v1254 = vld [vmem:[%s14 + $0x8] sm:$0xff]
    %v1255 = vld [vmem:[%s14 + $0x10] sm:$0xff]
    %v1256 = vld [vmem:[%s14 + $0x18] sm:$0xff]
    %v1257 = vld [vmem:[#allocation17] sm:$0x1]
    %v1259 = vperm.slane %v1257, 0
    %v1262 = vsel %vm227, %v1252, 0
    %1264 = vmatpush.msra.mxu0 0.0
    %1265 = vmatpush.msra.mxu0 0.0
    %1266 = vmatpush.msra.mxu0 0.0
    %1267 = vmatpush.msra.mxu0 0.0
    %1268 = vmatpush.msra.mxu0 0.0
    %1269 = vmatpush.msra.mxu0 0.0
    %1270 = vmatpush.msra.mxu0 0.0
    %1271 = vmatpush.msra.mxu0 0.0
    %1272 = vmatpush.msra.mxu0 0.0
    %1273 = vmatpush.msra.mxu0 0.0
    %1274 = vmatpush.msra.mxu0 0.0
    %1275 = vmatpush.msra.mxu0 0.0
    %1276 = vmatpush.msra.mxu0 %v1256
    %1277 = vmatpush.msra.mxu0 %v1255
    %1278 = vmatpush.msra.mxu0 %v1254
    %1279 = vmatpush.msra.mxu0 %v1253
    %1280 = vmatmul.f32.gmra.mxu0 %v1262
    %v1281 = vpop.f32.mrf.mxu0
    %v1282 = vadd.f32 %v1259, %v1281
    %1283 = vdwg.mxu0
    %v1285 = vrot.slane %v1282, 1
    %vm1287 = vcmask 122880
    %1288 = vst.msk [vmem:[%s16] sm:$0x1] %vm1287, %v1282
    %1289 = vst.msk [vmem:[%s16 + $0x8] sm:$0x1] %vm1287, %v1285
    %vm1290 = vcmask 123904
    %v1291 = vsel %vm1290, %v1282, -inf
    %1292 = vmax.xlane.f32.xlu0 %v1291
    %v1293 = vpop.xlane.xlu0 %1292
    %vm1294 = vcmp.eq.f32.partialorder %v1282, %v1293
    %v1295 = vsel %vm1294, %v360, -16.0
    %v1296 = vsel %vm1290, %v1295, -inf
    %1297 = vmax.xlane.f32.xlu0 %v1296
    %v1298 = vpop.xlane.xlu0 %1297
    %vm1299 = vcmp.eq.f32.partialorder %v360, %v1298
    %v1300 = vsel %vm1299, 1, 0
    %v1301 = vcvt.s32.f32 %v1300
    %v1302 = vld [vmem:[#allocation3] sm:$0xff]
    %v1303 = vld [vmem:[#allocation3 + $0x8] sm:$0xff]
    %v1305 = vsel %vm366, %v1301, 0
    %1307 = vmatpush.msra.mxu0 0.0
    %1308 = vmatpush.msra.mxu0 0.0
    %1309 = vmatpush.msra.mxu0 0.0
    %1310 = vmatpush.msra.mxu0 0.0
    %1311 = vmatpush.msra.mxu0 0.0
    %1312 = vmatpush.msra.mxu0 0.0
    %1313 = vmatpush.msra.mxu0 0.0
    %1314 = vmatpush.msra.mxu0 0.0
    %1315 = vmatpush.msra.mxu0 0.0
    %1316 = vmatpush.msra.mxu0 0.0
    %1317 = vmatpush.msra.mxu0 0.0
    %1318 = vmatpush.msra.mxu0 0.0
    %1319 = vmatpush.msra.mxu0 0.0
    %1320 = vmatpush.msra.mxu0 0.0
    %1321 = vmatpush.msra.mxu0 %v1303
    %1322 = vmatpush.msra.mxu0 %v1302
    %1323 = vmatmul.f32.gmra.mxu0 %v1305
    %v1324 = vpop.f32.mrf.mxu0
    %v1325 = vadd.f32 0.0, %v1324
    %1326 = vdwg.mxu0
    %v1327 = vld [vmem:[#allocation7] sm:$0xff]
    %v1328 = vld [vmem:[#allocation7 + $0x8] sm:$0xff]
    %v1329 = vld [vmem:[#allocation7 + $0x10] sm:$0xff]
    %v1330 = vld [vmem:[#allocation7 + $0x18] sm:$0xff]
    %v1331 = vld [vmem:[#allocation8] sm:$0x1]
    %v1333 = vperm.slane %v1331, 0
    %1335 = vmatpush.msra.mxu0 0.0
    %1336 = vmatpush.msra.mxu0 0.0
    %1337 = vmatpush.msra.mxu0 0.0
    %1338 = vmatpush.msra.mxu0 0.0
    %1339 = vmatpush.msra.mxu0 0.0
    %1340 = vmatpush.msra.mxu0 0.0
    %1341 = vmatpush.msra.mxu0 0.0
    %1342 = vmatpush.msra.mxu0 0.0
    %1343 = vmatpush.msra.mxu0 0.0
    %1344 = vmatpush.msra.mxu0 0.0
    %1345 = vmatpush.msra.mxu0 0.0
    %1346 = vmatpush.msra.mxu0 0.0
    %1347 = vmatpush.msra.mxu0 %v1330
    %1348 = vmatpush.msra.mxu0 %v1329
    %1349 = vmatpush.msra.mxu0 %v1328
    %1350 = vmatpush.msra.mxu0 %v1327
    %1351 = vmatmul.f32.gmra.mxu0 %v1262
    %v1352 = vpop.f32.mrf.mxu0
    %v1353 = vadd.f32 %v1333, %v1352
    %1354 = vdwg.mxu0
    %v1355 = vld [vmem:[#allocation2] sm:$0xff]
    %v1356 = vld [vmem:[#allocation2 + $0x8] sm:$0xff]
    %v1357 = vld [vmem:[#allocation2 + $0x10] sm:$0xff]
    %v1358 = vld [vmem:[#allocation2 + $0x18] sm:$0xff]
    %v1359 = vld [vmem:[#allocation2 + $0x20] sm:$0xff]
    %v1360 = vld [vmem:[#allocation2 + $0x28] sm:$0xff]
    %v1361 = vld [vmem:[#allocation2 + $0x30] sm:$0xff]
    %v1362 = vld [vmem:[#allocation2 + $0x38] sm:$0xff]
    %v1363 = vld [vmem:[#allocation2 + $0x40] sm:$0xff]
    %v1364 = vld [vmem:[#allocation2 + $0x48] sm:$0xff]
    %v1365 = vld [vmem:[#allocation2 + $0x50] sm:$0xff]
    %v1366 = vld [vmem:[#allocation2 + $0x58] sm:$0xff]
    %v1367 = vld [vmem:[#allocation2 + $0x60] sm:$0xff]
    %v1368 = vld [vmem:[#allocation2 + $0x68] sm:$0xff]
    %v1369 = vld [vmem:[#allocation2 + $0x70] sm:$0xff]
    %v1370 = vld [vmem:[#allocation2 + $0x78] sm:$0xff]
    %v1372 = vrot.slane %v1353, 1
    %v1373 = vperm.slane %v1353, 0
    %v1374 = vperm.slane %v1372, 0
    %v1377 = vadd.f32 %v1355, %v1373
    %v1378 = vadd.f32 %v1356, %v1373
    %v1379 = vadd.f32 %v1357, %v1373
    %v1380 = vadd.f32 %v1358, %v1373
    %v1381 = vadd.f32 %v1359, %v1373
    %v1382 = vadd.f32 %v1360, %v1373
    %v1383 = vadd.f32 %v1361, %v1373
    %v1384 = vadd.f32 %v1362, %v1373
    %v1385 = vadd.f32 %v1363, %v1374
    %v1386 = vadd.f32 %v1364, %v1374
    %v1387 = vadd.f32 %v1365, %v1374
    %v1388 = vadd.f32 %v1366, %v1374
    %v1389 = vadd.f32 %v1367, %v1374
    %v1390 = vadd.f32 %v1368, %v1374
    %v1391 = vadd.f32 %v1369, %v1374
    %v1392 = vadd.f32 %v1370, %v1374
    %v1393 = vtanh.pop %v1377
    %v1394 = vtanh.pop %v1378
    %v1395 = vtanh.pop %v1379
    %v1396 = vtanh.pop %v1380
    %v1397 = vtanh.pop %v1381
    %v1398 = vtanh.pop %v1382
    %v1399 = vtanh.pop %v1383
    %v1400 = vtanh.pop %v1384
    %v1401 = vtanh.pop %v1385
    %v1402 = vtanh.pop %v1386
    %v1403 = vtanh.pop %v1387
    %v1404 = vtanh.pop %v1388
    %v1405 = vtanh.pop %v1389
    %v1406 = vtanh.pop %v1390
    %v1407 = vtanh.pop %v1391
    %v1408 = vtanh.pop %v1392
    %v1409 = vld [vmem:[#allocation10] sm:$0x1]
    %v1411 = vperm.slane %v1409, 0
    %v1413 = vmul.f32 %v1393, %v1411
    %v1414 = vmul.f32 %v1394, %v1411
    %v1415 = vmul.f32 %v1395, %v1411
    %v1416 = vmul.f32 %v1396, %v1411
    %v1417 = vmul.f32 %v1397, %v1411
    %v1418 = vmul.f32 %v1398, %v1411
    %v1419 = vmul.f32 %v1399, %v1411
    %v1420 = vmul.f32 %v1400, %v1411
    %v1421 = vmul.f32 %v1401, %v1411
    %v1422 = vmul.f32 %v1402, %v1411
    %v1423 = vmul.f32 %v1403, %v1411
    %v1424 = vmul.f32 %v1404, %v1411
    %v1425 = vmul.f32 %v1405, %v1411
    %v1426 = vmul.f32 %v1406, %v1411
    %v1427 = vmul.f32 %v1407, %v1411
    %v1428 = vmul.f32 %v1408, %v1411
    %v1429 = vsel %vm227, %v1413, 0.0
    %1430 = vadd.xlane.f32.xlu0 %v1429
    %v1431 = vpop.xlane.xlu0 %1430
    %v1432 = vsel %vm227, %v1414, 0.0
    %1433 = vadd.xlane.f32.xlu0 %v1432
    %v1434 = vpop.xlane.xlu0 %1433
    %v1435 = vsel %vm227, %v1415, 0.0
    %1436 = vadd.xlane.f32.xlu0 %v1435
    %v1437 = vpop.xlane.xlu0 %1436
    %v1438 = vsel %vm227, %v1416, 0.0
    %1439 = vadd.xlane.f32.xlu0 %v1438
    %v1440 = vpop.xlane.xlu0 %1439
    %v1441 = vsel %vm227, %v1417, 0.0
    %1442 = vadd.xlane.f32.xlu0 %v1441
    %v1443 = vpop.xlane.xlu0 %1442
    %v1444 = vsel %vm227, %v1418, 0.0
    %1445 = vadd.xlane.f32.xlu0 %v1444
    %v1446 = vpop.xlane.xlu0 %1445
    %v1447 = vsel %vm227, %v1419, 0.0
    %1448 = vadd.xlane.f32.xlu0 %v1447
    %v1449 = vpop.xlane.xlu0 %1448
    %v1450 = vsel %vm227, %v1420, 0.0
    %1451 = vadd.xlane.f32.xlu0 %v1450
    %v1452 = vpop.xlane.xlu0 %1451
    %v1453 = vsel %vm227, %v1421, 0.0
    %1454 = vadd.xlane.f32.xlu0 %v1453
    %v1455 = vpop.xlane.xlu0 %1454
    %v1456 = vsel %vm227, %v1422, 0.0
    %1457 = vadd.xlane.f32.xlu0 %v1456
    %v1458 = vpop.xlane.xlu0 %1457
    %v1459 = vsel %vm227, %v1423, 0.0
    %1460 = vadd.xlane.f32.xlu0 %v1459
    %v1461 = vpop.xlane.xlu0 %1460
    %v1462 = vsel %vm227, %v1424, 0.0
    %1463 = vadd.xlane.f32.xlu0 %v1462
    %v1464 = vpop.xlane.xlu0 %1463
    %v1465 = vsel %vm227, %v1425, 0.0
    %1466 = vadd.xlane.f32.xlu0 %v1465
    %v1467 = vpop.xlane.xlu0 %1466
    %v1468 = vsel %vm227, %v1426, 0.0
    %1469 = vadd.xlane.f32.xlu0 %v1468
    %v1470 = vpop.xlane.xlu0 %1469
    %v1471 = vsel %vm227, %v1427, 0.0
    %1472 = vadd.xlane.f32.xlu0 %v1471
    %v1473 = vpop.xlane.xlu0 %1472
    %v1474 = vsel %vm227, %v1428, 0.0
    %1475 = vadd.xlane.f32.xlu0 %v1474
    %v1476 = vpop.xlane.xlu0 %1475
    %v1493 = vperm.slane %v1431, %v358
    %v1494 = vperm.slane %v1434, %v560
    %v1495 = vsel %vm562, %v1494, %v1493
    %v1496 = vperm.slane %v1437, %v564
    %v1497 = vsel %vm566, %v1496, %v1495
    %v1498 = vperm.slane %v1440, %v568
    %v1499 = vsel %vm570, %v1498, %v1497
    %v1500 = vperm.slane %v1443, %v572
    %v1501 = vsel %vm574, %v1500, %v1499
    %v1502 = vperm.slane %v1446, %v576
    %v1503 = vsel %vm578, %v1502, %v1501
    %v1504 = vperm.slane %v1449, %v580
    %v1505 = vsel %vm582, %v1504, %v1503
    %v1506 = vperm.slane %v1452, %v584
    %v1507 = vsel %vm586, %v1506, %v1505
    %v1508 = vperm.slane %v1455, %v358
    %v1509 = vperm.slane %v1458, %v560
    %v1510 = vsel %vm562, %v1509, %v1508
    %v1511 = vperm.slane %v1461, %v564
    %v1512 = vsel %vm566, %v1511, %v1510
    %v1513 = vperm.slane %v1464, %v568
    %v1514 = vsel %vm570, %v1513, %v1512
    %v1515 = vperm.slane %v1467, %v572
    %v1516 = vsel %vm574, %v1515, %v1514
    %v1517 = vperm.slane %v1470, %v576
    %v1518 = vsel %vm578, %v1517, %v1516
    %v1519 = vperm.slane %v1473, %v580
    %v1520 = vsel %vm582, %v1519, %v1518
    %v1521 = vperm.slane %v1476, %v584
    %v1522 = vsel %vm586, %v1521, %v1520
    %v1523 = vsel %vm603, %v1522, %v1507
    %v1525 = vsel %vm606, %v1523, -inf
    %1526 = vmax.xlane.f32.xlu0 %v1525
    %v1527 = vpop.xlane.xlu0 %1526
    %v1529 = vperm.slane %v1527, 0
    %v1530 = vperm.slane %v1527, 1
    %v1533 = vsub.f32 %v1431, %v1529
    %v1534 = vsub.f32 %v1434, %v1529
    %v1535 = vsub.f32 %v1437, %v1529
    %v1536 = vsub.f32 %v1440, %v1529
    %v1537 = vsub.f32 %v1443, %v1529
    %v1538 = vsub.f32 %v1446, %v1529
    %v1539 = vsub.f32 %v1449, %v1529
    %v1540 = vsub.f32 %v1452, %v1529
    %v1541 = vsub.f32 %v1455, %v1530
    %v1542 = vsub.f32 %v1458, %v1530
    %v1543 = vsub.f32 %v1461, %v1530
    %v1544 = vsub.f32 %v1464, %v1530
    %v1545 = vsub.f32 %v1467, %v1530
    %v1546 = vsub.f32 %v1470, %v1530
    %v1547 = vsub.f32 %v1473, %v1530
    %v1548 = vsub.f32 %v1476, %v1530
    %v1549 = vmul.f32 %v1533, 1.442695
    %v1550 = vpow.pop %v1549
    %v1551 = vmul.f32 %v1534, 1.442695
    %v1552 = vpow.pop %v1551
    %v1553 = vmul.f32 %v1535, 1.442695
    %v1554 = vpow.pop %v1553
    %v1555 = vmul.f32 %v1536, 1.442695
    %v1556 = vpow.pop %v1555
    %v1557 = vmul.f32 %v1537, 1.442695
    %v1558 = vpow.pop %v1557
    %v1559 = vmul.f32 %v1538, 1.442695
    %v1560 = vpow.pop %v1559
    %v1561 = vmul.f32 %v1539, 1.442695
    %v1562 = vpow.pop %v1561
    %v1563 = vmul.f32 %v1540, 1.442695
    %v1564 = vpow.pop %v1563
    %v1565 = vmul.f32 %v1541, 1.442695
    %v1566 = vpow.pop %v1565
    %v1567 = vmul.f32 %v1542, 1.442695
    %v1568 = vpow.pop %v1567
    %v1569 = vmul.f32 %v1543, 1.442695
    %v1570 = vpow.pop %v1569
    %v1571 = vmul.f32 %v1544, 1.442695
    %v1572 = vpow.pop %v1571
    %v1573 = vmul.f32 %v1545, 1.442695
    %v1574 = vpow.pop %v1573
    %v1575 = vmul.f32 %v1546, 1.442695
    %v1576 = vpow.pop %v1575
    %v1577 = vmul.f32 %v1547, 1.442695
    %v1578 = vpow.pop %v1577
    %v1579 = vmul.f32 %v1548, 1.442695
    %v1580 = vpow.pop %v1579
    %1597 = vset.pattern.permute.xlu0 0
    %1598 = vperm.xlu0 %1597, %v1550
    %v1599 = vpop.permute.xlu0 %1598
    %1600 = vset.pattern.permute.xlu0 0
    %1601 = vperm.xlu0 %1600, %v1552
    %v1602 = vpop.permute.xlu0 %1601
    %1603 = vset.pattern.permute.xlu0 0
    %1604 = vperm.xlu0 %1603, %v1554
    %v1605 = vpop.permute.xlu0 %1604
    %1606 = vset.pattern.permute.xlu0 0
    %1607 = vperm.xlu0 %1606, %v1556
    %v1608 = vpop.permute.xlu0 %1607
    %1609 = vset.pattern.permute.xlu0 0
    %1610 = vperm.xlu0 %1609, %v1558
    %v1611 = vpop.permute.xlu0 %1610
    %1612 = vset.pattern.permute.xlu0 0
    %1613 = vperm.xlu0 %1612, %v1560
    %v1614 = vpop.permute.xlu0 %1613
    %1615 = vset.pattern.permute.xlu0 0
    %1616 = vperm.xlu0 %1615, %v1562
    %v1617 = vpop.permute.xlu0 %1616
    %1618 = vset.pattern.permute.xlu0 0
    %1619 = vperm.xlu0 %1618, %v1564
    %v1620 = vpop.permute.xlu0 %1619
    %1621 = vset.pattern.permute.xlu0 0
    %1622 = vperm.xlu0 %1621, %v1566
    %v1623 = vpop.permute.xlu0 %1622
    %1624 = vset.pattern.permute.xlu0 0
    %1625 = vperm.xlu0 %1624, %v1568
    %v1626 = vpop.permute.xlu0 %1625
    %1627 = vset.pattern.permute.xlu0 0
    %1628 = vperm.xlu0 %1627, %v1570
    %v1629 = vpop.permute.xlu0 %1628
    %1630 = vset.pattern.permute.xlu0 0
    %1631 = vperm.xlu0 %1630, %v1572
    %v1632 = vpop.permute.xlu0 %1631
    %1633 = vset.pattern.permute.xlu0 0
    %1634 = vperm.xlu0 %1633, %v1574
    %v1635 = vpop.permute.xlu0 %1634
    %1636 = vset.pattern.permute.xlu0 0
    %1637 = vperm.xlu0 %1636, %v1576
    %v1638 = vpop.permute.xlu0 %1637
    %1639 = vset.pattern.permute.xlu0 0
    %1640 = vperm.xlu0 %1639, %v1578
    %v1641 = vpop.permute.xlu0 %1640
    %1642 = vset.pattern.permute.xlu0 0
    %1643 = vperm.xlu0 %1642, %v1580
    %v1644 = vpop.permute.xlu0 %1643
    %v1645 = vperm.slane %v1599, %v358
    %v1646 = vperm.slane %v1602, %v560
    %v1647 = vsel %vm562, %v1646, %v1645
    %v1648 = vperm.slane %v1605, %v564
    %v1649 = vsel %vm566, %v1648, %v1647
    %v1650 = vperm.slane %v1608, %v568
    %v1651 = vsel %vm570, %v1650, %v1649
    %v1652 = vperm.slane %v1611, %v572
    %v1653 = vsel %vm574, %v1652, %v1651
    %v1654 = vperm.slane %v1614, %v576
    %v1655 = vsel %vm578, %v1654, %v1653
    %v1656 = vperm.slane %v1617, %v580
    %v1657 = vsel %vm582, %v1656, %v1655
    %v1658 = vperm.slane %v1620, %v584
    %v1659 = vsel %vm586, %v1658, %v1657
    %v1660 = vperm.slane %v1623, %v358
    %v1661 = vperm.slane %v1626, %v560
    %v1662 = vsel %vm562, %v1661, %v1660
    %v1663 = vperm.slane %v1629, %v564
    %v1664 = vsel %vm566, %v1663, %v1662
    %v1665 = vperm.slane %v1632, %v568
    %v1666 = vsel %vm570, %v1665, %v1664
    %v1667 = vperm.slane %v1635, %v572
    %v1668 = vsel %vm574, %v1667, %v1666
    %v1669 = vperm.slane %v1638, %v576
    %v1670 = vsel %vm578, %v1669, %v1668
    %v1671 = vperm.slane %v1641, %v580
    %v1672 = vsel %vm582, %v1671, %v1670
    %v1673 = vperm.slane %v1644, %v584
    %v1674 = vsel %vm586, %v1673, %v1672
    %v1675 = vsel %vm603, %v1674, %v1659
    %v1677 = vsel %vm606, %v1675, 0.0
    %1678 = vadd.xlane.f32.xlu0 %v1677
    %v1679 = vpop.xlane.xlu0 %1678
    %v1681 = vperm.slane %v1679, 0
    %v1682 = vperm.slane %v1679, 1
    %v1685 = vrcp.pop %v1681
    %v1686 = vmul.f32 %v1681, %v1685
    %v1687 = vsub.f32 1.0, %v1686
    %v1688 = vmul.f32 %v1685, %v1687
    %v1689 = vadd.f32 %v1685, %v1688
    %vm1690 = vweird.f32 %v1681
    %vm1691 = vweird.f32 %v1685
    %vm1692 = vmor %vm1690, %vm1691
    %v1693 = vsel %vm1692, %v1685, %v1689
    %v1694 = vand.u32 2147483647, %v1681
    %vm1695 = vcmp.eq.f32.partialorder %v1694, 8.507059e+37
    %v1696 = vand.u32 %v1681, 2147483648
    %v1697 = vor.u32 1.1754944e-38, %v1696
    %v1698 = vsel %vm1695, %v1697, %v1693
    %v1699 = vmul.f32 %v1550, %v1698
    %v1700 = vmul.f32 %v1552, %v1698
    %v1701 = vmul.f32 %v1554, %v1698
    %v1702 = vmul.f32 %v1556, %v1698
    %v1703 = vmul.f32 %v1558, %v1698
    %v1704 = vmul.f32 %v1560, %v1698
    %v1705 = vmul.f32 %v1562, %v1698
    %v1706 = vmul.f32 %v1564, %v1698
    %v1707 = vrcp.pop %v1682
    %v1708 = vmul.f32 %v1682, %v1707
    %v1709 = vsub.f32 1.0, %v1708
    %v1710 = vmul.f32 %v1707, %v1709
    %v1711 = vadd.f32 %v1707, %v1710
    %vm1712 = vweird.f32 %v1682
    %vm1713 = vweird.f32 %v1707
    %vm1714 = vmor %vm1712, %vm1713
    %v1715 = vsel %vm1714, %v1707, %v1711
    %v1716 = vand.u32 2147483647, %v1682
    %vm1717 = vcmp.eq.f32.partialorder %v1716, 8.507059e+37
    %v1718 = vand.u32 %v1682, 2147483648
    %v1719 = vor.u32 1.1754944e-38, %v1718
    %v1720 = vsel %vm1717, %v1719, %v1715
    %v1721 = vmul.f32 %v1566, %v1720
    %v1722 = vmul.f32 %v1568, %v1720
    %v1723 = vmul.f32 %v1570, %v1720
    %v1724 = vmul.f32 %v1572, %v1720
    %v1725 = vmul.f32 %v1574, %v1720
    %v1726 = vmul.f32 %v1576, %v1720
    %v1727 = vmul.f32 %v1578, %v1720
    %v1728 = vmul.f32 %v1580, %v1720
    %v1729 = vld [vmem:[%s1] sm:$0xff]
    %v1730 = vld [vmem:[%s1 + $0x8] sm:$0xff]
    %v1731 = vld [vmem:[%s1 + $0x10] sm:$0xff]
    %v1732 = vld [vmem:[%s1 + $0x18] sm:$0xff]
    %v1733 = vld [vmem:[%s1 + $0x20] sm:$0xff]
    %v1734 = vld [vmem:[%s1 + $0x28] sm:$0xff]
    %v1735 = vld [vmem:[%s1 + $0x30] sm:$0xff]
    %v1736 = vld [vmem:[%s1 + $0x38] sm:$0xff]
    %v1737 = vld [vmem:[%s1 + $0x40] sm:$0xff]
    %v1738 = vld [vmem:[%s1 + $0x48] sm:$0xff]
    %v1739 = vld [vmem:[%s1 + $0x50] sm:$0xff]
    %v1740 = vld [vmem:[%s1 + $0x58] sm:$0xff]
    %v1741 = vld [vmem:[%s1 + $0x60] sm:$0xff]
    %v1742 = vld [vmem:[%s1 + $0x68] sm:$0xff]
    %v1743 = vld [vmem:[%s1 + $0x70] sm:$0xff]
    %v1744 = vld [vmem:[%s1 + $0x78] sm:$0xff]
    %1746 = vset.pattern.permute.xlu0 0
    %1747 = vperm.xlu0 %1746, %v1699
    %v1748 = vpop.permute.xlu0 %1747
    %1751 = vset.pattern.permute.xlu0 0
    %1752 = vperm.xlu0 %1751, %v1700
    %v1753 = vpop.permute.xlu0 %1752
    %1756 = vset.pattern.permute.xlu0 0
    %1757 = vperm.xlu0 %1756, %v1701
    %v1758 = vpop.permute.xlu0 %1757
    %1761 = vset.pattern.permute.xlu0 0
    %1762 = vperm.xlu0 %1761, %v1702
    %v1763 = vpop.permute.xlu0 %1762
    %1766 = vset.pattern.permute.xlu0 0
    %1767 = vperm.xlu0 %1766, %v1703
    %v1768 = vpop.permute.xlu0 %1767
    %1771 = vset.pattern.permute.xlu0 0
    %1772 = vperm.xlu0 %1771, %v1704
    %v1773 = vpop.permute.xlu0 %1772
    %1776 = vset.pattern.permute.xlu0 0
    %1777 = vperm.xlu0 %1776, %v1705
    %v1778 = vpop.permute.xlu0 %1777
    %1781 = vset.pattern.permute.xlu0 0
    %1782 = vperm.xlu0 %1781, %v1706
    %v1783 = vpop.permute.xlu0 %1782
    %1786 = vset.pattern.permute.xlu0 0
    %1787 = vperm.xlu0 %1786, %v1721
    %v1788 = vpop.permute.xlu0 %1787
    %1791 = vset.pattern.permute.xlu0 0
    %1792 = vperm.xlu0 %1791, %v1722
    %v1793 = vpop.permute.xlu0 %1792
    %1796 = vset.pattern.permute.xlu0 0
    %1797 = vperm.xlu0 %1796, %v1723
    %v1798 = vpop.permute.xlu0 %1797
    %1801 = vset.pattern.permute.xlu0 0
    %1802 = vperm.xlu0 %1801, %v1724
    %v1803 = vpop.permute.xlu0 %1802
    %1806 = vset.pattern.permute.xlu0 0
    %1807 = vperm.xlu0 %1806, %v1725
    %v1808 = vpop.permute.xlu0 %1807
    %1811 = vset.pattern.permute.xlu0 0
    %1812 = vperm.xlu0 %1811, %v1726
    %v1813 = vpop.permute.xlu0 %1812
    %1816 = vset.pattern.permute.xlu0 0
    %1817 = vperm.xlu0 %1816, %v1727
    %v1818 = vpop.permute.xlu0 %1817
    %1821 = vset.pattern.permute.xlu0 0
    %1822 = vperm.xlu0 %1821, %v1728
    %v1823 = vpop.permute.xlu0 %1822
    %v1825 = vmul.f32 %v1748, %v1729
    %v1826 = vmul.f32 %v1753, %v1730
    %v1827 = vmul.f32 %v1758, %v1731
    %v1828 = vmul.f32 %v1763, %v1732
    %v1829 = vmul.f32 %v1768, %v1733
    %v1830 = vmul.f32 %v1773, %v1734
    %v1831 = vmul.f32 %v1778, %v1735
    %v1832 = vmul.f32 %v1783, %v1736
    %v1833 = vmul.f32 %v1788, %v1737
    %v1834 = vmul.f32 %v1793, %v1738
    %v1835 = vmul.f32 %v1798, %v1739
    %v1836 = vmul.f32 %v1803, %v1740
    %v1837 = vmul.f32 %v1808, %v1741
    %v1838 = vmul.f32 %v1813, %v1742
    %v1839 = vmul.f32 %v1818, %v1743
    %v1840 = vmul.f32 %v1823, %v1744
    %v1841 = vsel %vm227, %v1825, 0.0
    %v1842 = vsel %vm227, %v1826, 0.0
    %v1843 = vadd.f32 %v1841, %v1842
    %v1844 = vsel %vm227, %v1827, 0.0
    %v1845 = vadd.f32 %v1843, %v1844
    %v1846 = vsel %vm227, %v1828, 0.0
    %v1847 = vadd.f32 %v1845, %v1846
    %v1848 = vsel %vm227, %v1829, 0.0
    %v1849 = vadd.f32 %v1847, %v1848
    %v1850 = vsel %vm227, %v1830, 0.0
    %v1851 = vadd.f32 %v1849, %v1850
    %v1852 = vsel %vm227, %v1831, 0.0
    %v1853 = vadd.f32 %v1851, %v1852
    %v1854 = vsel %vm227, %v1832, 0.0
    %v1855 = vadd.f32 %v1853, %v1854
    %v1856 = vrot.slane %v1855, 4
    %v1857 = vadd.f32 %v1855, %v1856
    %v1858 = vrot.slane %v1857, 2
    %v1859 = vadd.f32 %v1857, %v1858
    %v1860 = vrot.slane %v1859, 1
    %v1861 = vadd.f32 %v1859, %v1860
    %v1862 = vsel %vm227, %v1833, 0.0
    %v1863 = vsel %vm227, %v1834, 0.0
    %v1864 = vadd.f32 %v1862, %v1863
    %v1865 = vsel %vm227, %v1835, 0.0
    %v1866 = vadd.f32 %v1864, %v1865
    %v1867 = vsel %vm227, %v1836, 0.0
    %v1868 = vadd.f32 %v1866, %v1867
    %v1869 = vsel %vm227, %v1837, 0.0
    %v1870 = vadd.f32 %v1868, %v1869
    %v1871 = vsel %vm227, %v1838, 0.0
    %v1872 = vadd.f32 %v1870, %v1871
    %v1873 = vsel %vm227, %v1839, 0.0
    %v1874 = vadd.f32 %v1872, %v1873
    %v1875 = vsel %vm227, %v1840, 0.0
    %v1876 = vadd.f32 %v1874, %v1875
    %v1877 = vrot.slane %v1876, 4
    %v1878 = vadd.f32 %v1876, %v1877
    %v1879 = vrot.slane %v1878, 2
    %v1880 = vadd.f32 %v1878, %v1879
    %v1881 = vrot.slane %v1880, 1
    %v1882 = vadd.f32 %v1880, %v1881
    %v1883 = vld [vmem:[#allocation11] sm:$0xff]
    %v1884 = vld [vmem:[#allocation11 + $0x8] sm:$0xff]
    %v1885 = vld [vmem:[#allocation11 + $0x10] sm:$0xff]
    %v1886 = vld [vmem:[#allocation11 + $0x18] sm:$0xff]
    %v1887 = vld [vmem:[#allocation13] sm:$0xff]
    %v1888 = vld [vmem:[#allocation13 + $0x8] sm:$0xff]
    %v1889 = vld [vmem:[#allocation13 + $0x10] sm:$0xff]
    %v1890 = vld [vmem:[#allocation13 + $0x18] sm:$0xff]
    %v1893 = vsel %vm603, %v1882, %v1861
    %v1894 = vsel %vm227, %v1893, 0
    %1896 = vmatpush.msra.mxu0 0.0
    %1897 = vmatpush.msra.mxu0 0.0
    %1898 = vmatpush.msra.mxu0 0.0
    %1899 = vmatpush.msra.mxu0 0.0
    %1900 = vmatpush.msra.mxu0 0.0
    %1901 = vmatpush.msra.mxu0 0.0
    %1902 = vmatpush.msra.mxu0 0.0
    %1903 = vmatpush.msra.mxu0 0.0
    %1904 = vmatpush.msra.mxu0 0.0
    %1905 = vmatpush.msra.mxu0 0.0
    %1906 = vmatpush.msra.mxu0 0.0
    %1907 = vmatpush.msra.mxu0 0.0
    %1908 = vmatpush.msra.mxu0 %v1890
    %1909 = vmatpush.msra.mxu0 %v1889
    %1910 = vmatpush.msra.mxu0 %v1888
    %1911 = vmatpush.msra.mxu0 %v1887
    %1912 = vmatmul.f32.gmra.mxu0 %v1894
    %v1913 = vpop.f32.mrf.mxu0
    %v1914 = vadd.f32 0.0, %v1913
    %1915 = vdwg.mxu0
    %v1917 = vsel %vm227, %v1325, 0
    %1919 = vmatpush.msra.mxu0 0.0
    %1920 = vmatpush.msra.mxu0 0.0
    %1921 = vmatpush.msra.mxu0 0.0
    %1922 = vmatpush.msra.mxu0 0.0
    %1923 = vmatpush.msra.mxu0 0.0
    %1924 = vmatpush.msra.mxu0 0.0
    %1925 = vmatpush.msra.mxu0 0.0
    %1926 = vmatpush.msra.mxu0 0.0
    %1927 = vmatpush.msra.mxu0 0.0
    %1928 = vmatpush.msra.mxu0 0.0
    %1929 = vmatpush.msra.mxu0 0.0
    %1930 = vmatpush.msra.mxu0 0.0
    %1931 = vmatpush.msra.mxu0 %v1886
    %1932 = vmatpush.msra.mxu0 %v1885
    %1933 = vmatpush.msra.mxu0 %v1884
    %1934 = vmatpush.msra.mxu0 %v1883
    %1935 = vmatmul.f32.gmra.mxu0 %v1917
    %v1936 = vpop.f32.mrf.mxu0
    %v1937 = vadd.f32 %v1914, %v1936
    %1938 = vdwg.mxu0
    %v1939 = vld [vmem:[%s9] sm:$0x1]
    %v1941 = vperm.slane %v1939, 0
    %v1943 = vadd.f32 %v1937, %v1941
    %v1944 = vmax.f32 %v1943, 0.0
    %v1945 = vld [vmem:[%s10] sm:$0xff]
    %v1946 = vld [vmem:[%s10 + $0x8] sm:$0xff]
    %v1947 = vld [vmem:[%s10 + $0x10] sm:$0xff]
    %v1948 = vld [vmem:[%s10 + $0x18] sm:$0xff]
    %v1949 = vld [vmem:[#allocation14] sm:$0x1]
    %v1951 = vperm.slane %v1949, 0
    %v1954 = vsel %vm227, %v1944, 0
    %1956 = vmatpush.msra.mxu0 0.0
    %1957 = vmatpush.msra.mxu0 0.0
    %1958 = vmatpush.msra.mxu0 0.0
    %1959 = vmatpush.msra.mxu0 0.0
    %1960 = vmatpush.msra.mxu0 0.0
    %1961 = vmatpush.msra.mxu0 0.0
    %1962 = vmatpush.msra.mxu0 0.0
    %1963 = vmatpush.msra.mxu0 0.0
    %1964 = vmatpush.msra.mxu0 0.0
    %1965 = vmatpush.msra.mxu0 0.0
    %1966 = vmatpush.msra.mxu0 0.0
    %1967 = vmatpush.msra.mxu0 0.0
    %1968 = vmatpush.msra.mxu0 %v1948
    %1969 = vmatpush.msra.mxu0 %v1947
    %1970 = vmatpush.msra.mxu0 %v1946
    %1971 = vmatpush.msra.mxu0 %v1945
    %1972 = vmatmul.f32.gmra.mxu0 %v1954
    %v1973 = vpop.f32.mrf.mxu0
    %v1974 = vadd.f32 %v1951, %v1973
    %1975 = vdwg.mxu0
    %v1976 = vld [vmem:[%s1058] sm:$0xff]
    %v1977 = vld [vmem:[%s1058 + $0x8] sm:$0xff]
    %v1978 = vld [vmem:[%s1058 + $0x10] sm:$0xff]
    %v1979 = vld [vmem:[%s1058 + $0x18] sm:$0xff]
    %v1980 = vld [vmem:[%s1063] sm:$0x1]
    %v1982 = vperm.slane %v1980, 0
    %1984 = vmatpush.msra.mxu0 0.0
    %1985 = vmatpush.msra.mxu0 0.0
    %1986 = vmatpush.msra.mxu0 0.0
    %1987 = vmatpush.msra.mxu0 0.0
    %1988 = vmatpush.msra.mxu0 0.0
    %1989 = vmatpush.msra.mxu0 0.0
    %1990 = vmatpush.msra.mxu0 0.0
    %1991 = vmatpush.msra.mxu0 0.0
    %1992 = vmatpush.msra.mxu0 0.0
    %1993 = vmatpush.msra.mxu0 0.0
    %1994 = vmatpush.msra.mxu0 0.0
    %1995 = vmatpush.msra.mxu0 0.0
    %1996 = vmatpush.msra.mxu0 %v1979
    %1997 = vmatpush.msra.mxu0 %v1978
    %1998 = vmatpush.msra.mxu0 %v1977
    %1999 = vmatpush.msra.mxu0 %v1976
    %2000 = vmatmul.f32.gmra.mxu0 %v1954
    %v2001 = vpop.f32.mrf.mxu0
    %v2002 = vadd.f32 %v1982, %v2001
    %2003 = vdwg.mxu0
    %v2004 = vld [vmem:[%s1088] sm:$0xff]
    %v2005 = vld [vmem:[%s1088 + $0x8] sm:$0xff]
    %v2006 = vld [vmem:[%s1088 + $0x10] sm:$0xff]
    %v2007 = vld [vmem:[%s1088 + $0x18] sm:$0xff]
    %v2008 = vld [vmem:[%s1093] sm:$0x1]
    %v2010 = vperm.slane %v2008, 0
    %2012 = vmatpush.msra.mxu0 0.0
    %2013 = vmatpush.msra.mxu0 0.0
    %2014 = vmatpush.msra.mxu0 0.0
    %2015 = vmatpush.msra.mxu0 0.0
    %2016 = vmatpush.msra.mxu0 0.0
    %2017 = vmatpush.msra.mxu0 0.0
    %2018 = vmatpush.msra.mxu0 0.0
    %2019 = vmatpush.msra.mxu0 0.0
    %2020 = vmatpush.msra.mxu0 0.0
    %2021 = vmatpush.msra.mxu0 0.0
    %2022 = vmatpush.msra.mxu0 0.0
    %2023 = vmatpush.msra.mxu0 0.0
    %2024 = vmatpush.msra.mxu0 %v2007
    %2025 = vmatpush.msra.mxu0 %v2006
    %2026 = vmatpush.msra.mxu0 %v2005
    %2027 = vmatpush.msra.mxu0 %v2004
    %2028 = vmatmul.f32.gmra.mxu0 %v1954
    %v2029 = vpop.f32.mrf.mxu0
    %v2030 = vadd.f32 %v2010, %v2029
    %2031 = vdwg.mxu0
    %v2032 = vld [vmem:[%s11] sm:$0xff]
    %v2033 = vld [vmem:[%s11 + $0x8] sm:$0xff]
    %v2034 = vld [vmem:[%s11 + $0x10] sm:$0xff]
    %v2035 = vld [vmem:[%s11 + $0x18] sm:$0xff]
    %v2036 = vld [vmem:[#allocation16] sm:$0x1]
    %v2038 = vperm.slane %v2036, 0
    %2040 = vmatpush.msra.mxu0 0.0
    %2041 = vmatpush.msra.mxu0 0.0
    %2042 = vmatpush.msra.mxu0 0.0
    %2043 = vmatpush.msra.mxu0 0.0
    %2044 = vmatpush.msra.mxu0 0.0
    %2045 = vmatpush.msra.mxu0 0.0
    %2046 = vmatpush.msra.mxu0 0.0
    %2047 = vmatpush.msra.mxu0 0.0
    %2048 = vmatpush.msra.mxu0 0.0
    %2049 = vmatpush.msra.mxu0 0.0
    %2050 = vmatpush.msra.mxu0 0.0
    %2051 = vmatpush.msra.mxu0 0.0
    %2052 = vmatpush.msra.mxu0 %v2035
    %2053 = vmatpush.msra.mxu0 %v2034
    %2054 = vmatpush.msra.mxu0 %v2033
    %2055 = vmatpush.msra.mxu0 %v2032
    %2056 = vmatmul.f32.gmra.mxu0 %v1262
    %v2057 = vpop.f32.mrf.mxu0
    %v2058 = vadd.f32 %v2038, %v2057
    %2059 = vdwg.mxu0
    %v2060 = vld [vmem:[%s1146] sm:$0xff]
    %v2061 = vld [vmem:[%s1146 + $0x8] sm:$0xff]
    %v2062 = vld [vmem:[%s1146 + $0x10] sm:$0xff]
    %v2063 = vld [vmem:[%s1146 + $0x18] sm:$0xff]
    %v2064 = vld [vmem:[%s1151] sm:$0x1]
    %v2066 = vperm.slane %v2064, 0
    %2068 = vmatpush.msra.mxu0 0.0
    %2069 = vmatpush.msra.mxu0 0.0
    %2070 = vmatpush.msra.mxu0 0.0
    %2071 = vmatpush.msra.mxu0 0.0
    %2072 = vmatpush.msra.mxu0 0.0
    %2073 = vmatpush.msra.mxu0 0.0
    %2074 = vmatpush.msra.mxu0 0.0
    %2075 = vmatpush.msra.mxu0 0.0
    %2076 = vmatpush.msra.mxu0 0.0
    %2077 = vmatpush.msra.mxu0 0.0
    %2078 = vmatpush.msra.mxu0 0.0
    %2079 = vmatpush.msra.mxu0 0.0
    %2080 = vmatpush.msra.mxu0 %v2063
    %2081 = vmatpush.msra.mxu0 %v2062
    %2082 = vmatpush.msra.mxu0 %v2061
    %2083 = vmatpush.msra.mxu0 %v2060
    %2084 = vmatmul.f32.gmra.mxu0 %v1262
    %v2085 = vpop.f32.mrf.mxu0
    %v2086 = vadd.f32 %v2066, %v2085
    %2087 = vdwg.mxu0
    %v2088 = vld [vmem:[%s1176] sm:$0xff]
    %v2089 = vld [vmem:[%s1176 + $0x8] sm:$0xff]
    %v2090 = vld [vmem:[%s1176 + $0x10] sm:$0xff]
    %v2091 = vld [vmem:[%s1176 + $0x18] sm:$0xff]
    %v2092 = vld [vmem:[%s1181] sm:$0x1]
    %v2094 = vperm.slane %v2092, 0
    %2096 = vmatpush.msra.mxu0 0.0
    %2097 = vmatpush.msra.mxu0 0.0
    %2098 = vmatpush.msra.mxu0 0.0
    %2099 = vmatpush.msra.mxu0 0.0
    %2100 = vmatpush.msra.mxu0 0.0
    %2101 = vmatpush.msra.mxu0 0.0
    %2102 = vmatpush.msra.mxu0 0.0
    %2103 = vmatpush.msra.mxu0 0.0
    %2104 = vmatpush.msra.mxu0 0.0
    %2105 = vmatpush.msra.mxu0 0.0
    %2106 = vmatpush.msra.mxu0 0.0
    %2107 = vmatpush.msra.mxu0 0.0
    %2108 = vmatpush.msra.mxu0 %v2091
    %2109 = vmatpush.msra.mxu0 %v2090
    %2110 = vmatpush.msra.mxu0 %v2089
    %2111 = vmatpush.msra.mxu0 %v2088
    %2112 = vmatmul.f32.gmra.mxu0 %v1262
    %v2113 = vpop.f32.mrf.mxu0
    %v2114 = vadd.f32 %v2094, %v2113
    %2115 = vdwg.mxu0
    %v2116 = vadd.f32 %v1974, %v2058
    %v2117 = vxor.u32 %v2116, 2147483648
    %v2118 = vmul.f32 %v2117, 1.442695
    %v2119 = vpow.pop %v2118
    %v2120 = vadd.f32 %v2119, 1.0
    %v2121 = vrcp.pop %v2120
    %v2122 = vmul.f32 %v2120, %v2121
    %v2123 = vsub.f32 1.0, %v2122
    %v2124 = vmul.f32 %v2121, %v2123
    %v2125 = vadd.f32 %v2121, %v2124
    %vm2126 = vweird.f32 %v2120
    %vm2127 = vweird.f32 %v2121
    %vm2128 = vmor %vm2126, %vm2127
    %v2129 = vsel %vm2128, %v2121, %v2125
    %v2130 = vand.u32 2147483647, %v2120
    %vm2131 = vcmp.eq.f32.partialorder %v2130, 8.507059e+37
    %v2132 = vand.u32 %v2120, 2147483648
    %v2133 = vor.u32 1.1754944e-38, %v2132
    %v2134 = vsel %vm2131, %v2133, %v2129
    %v2135 = vmul.f32 1.0, %v2134
    %v2136 = vadd.f32 %v2002, %v2086
    %v2137 = vxor.u32 %v2136, 2147483648
    %v2138 = vmul.f32 %v2137, 1.442695
    %v2139 = vpow.pop %v2138
    %v2140 = vadd.f32 %v2139, 1.0
    %v2141 = vrcp.pop %v2140
    %v2142 = vmul.f32 %v2140, %v2141
    %v2143 = vsub.f32 1.0, %v2142
    %v2144 = vmul.f32 %v2141, %v2143
    %v2145 = vadd.f32 %v2141, %v2144
    %vm2146 = vweird.f32 %v2140
    %vm2147 = vweird.f32 %v2141
    %vm2148 = vmor %vm2146, %vm2147
    %v2149 = vsel %vm2148, %v2141, %v2145
    %v2150 = vand.u32 2147483647, %v2140
    %vm2151 = vcmp.eq.f32.partialorder %v2150, 8.507059e+37
    %v2152 = vand.u32 %v2140, 2147483648
    %v2153 = vor.u32 1.1754944e-38, %v2152
    %v2154 = vsel %vm2151, %v2153, %v2149
    %v2155 = vmul.f32 1.0, %v2154
    %v2156 = vmul.f32 %v2135, %v2114
    %v2157 = vadd.f32 %v2030, %v2156
    %v2158 = vtanh.pop %v2157
    %v2159 = vsub.f32 1.0, %v2155
    %v2160 = vmul.f32 %v2159, %v2158
    %v2161 = vmul.f32 %v2155, %v1252
    %v2162 = vadd.f32 %v2160, %v2161
    %v2163 = vld [vmem:[%s14] sm:$0xff]
    %v2164 = vld [vmem:[%s14 + $0x8] sm:$0xff]
    %v2165 = vld [vmem:[%s14 + $0x10] sm:$0xff]
    %v2166 = vld [vmem:[%s14 + $0x18] sm:$0xff]
    %v2167 = vld [vmem:[#allocation17] sm:$0x1]
    %v2169 = vperm.slane %v2167, 0
    %v2172 = vsel %vm227, %v2162, 0
    %2174 = vmatpush.msra.mxu0 0.0
    %2175 = vmatpush.msra.mxu0 0.0
    %2176 = vmatpush.msra.mxu0 0.0
    %2177 = vmatpush.msra.mxu0 0.0
    %2178 = vmatpush.msra.mxu0 0.0
    %2179 = vmatpush.msra.mxu0 0.0
    %2180 = vmatpush.msra.mxu0 0.0
    %2181 = vmatpush.msra.mxu0 0.0
    %2182 = vmatpush.msra.mxu0 0.0
    %2183 = vmatpush.msra.mxu0 0.0
    %2184 = vmatpush.msra.mxu0 0.0
    %2185 = vmatpush.msra.mxu0 0.0
    %2186 = vmatpush.msra.mxu0 %v2166
    %2187 = vmatpush.msra.mxu0 %v2165
    %2188 = vmatpush.msra.mxu0 %v2164
    %2189 = vmatpush.msra.mxu0 %v2163
    %2190 = vmatmul.f32.gmra.mxu0 %v2172
    %v2191 = vpop.f32.mrf.mxu0
    %v2192 = vadd.f32 %v2169, %v2191
    %2193 = vdwg.mxu0
    %v2195 = vrot.slane %v2192, 1
    %2197 = vst.msk [vmem:[%s16 + $0x1] sm:$0x1] %vm1287, %v2192
    %2198 = vst.msk [vmem:[%s16 + $0x9] sm:$0x1] %vm1287, %v2195
    %v2199 = vsel %vm1290, %v2192, -inf
    %2200 = vmax.xlane.f32.xlu0 %v2199
    %v2201 = vpop.xlane.xlu0 %2200
    %vm2202 = vcmp.eq.f32.partialorder %v2192, %v2201
    %v2203 = vsel %vm2202, %v360, -16.0
    %v2204 = vsel %vm1290, %v2203, -inf
    %2205 = vmax.xlane.f32.xlu0 %v2204
    %v2206 = vpop.xlane.xlu0 %2205
    %vm2207 = vcmp.eq.f32.partialorder %v360, %v2206
    %v2208 = vsel %vm2207, 1, 0
    %v2209 = vcvt.s32.f32 %v2208
    %v2210 = vld [vmem:[#allocation3] sm:$0xff]
    %v2211 = vld [vmem:[#allocation3 + $0x8] sm:$0xff]
    %v2213 = vsel %vm366, %v2209, 0
    %2215 = vmatpush.msra.mxu0 0.0
    %2216 = vmatpush.msra.mxu0 0.0
    %2217 = vmatpush.msra.mxu0 0.0
    %2218 = vmatpush.msra.mxu0 0.0
    %2219 = vmatpush.msra.mxu0 0.0
    %2220 = vmatpush.msra.mxu0 0.0
    %2221 = vmatpush.msra.mxu0 0.0
    %2222 = vmatpush.msra.mxu0 0.0
    %2223 = vmatpush.msra.mxu0 0.0
    %2224 = vmatpush.msra.mxu0 0.0
    %2225 = vmatpush.msra.mxu0 0.0
    %2226 = vmatpush.msra.mxu0 0.0
    %2227 = vmatpush.msra.mxu0 0.0
    %2228 = vmatpush.msra.mxu0 0.0
    %2229 = vmatpush.msra.mxu0 %v2211
    %2230 = vmatpush.msra.mxu0 %v2210
    %2231 = vmatmul.f32.gmra.mxu0 %v2213
    %v2232 = vpop.f32.mrf.mxu0
    %v2233 = vadd.f32 0.0, %v2232
    %2234 = vdwg.mxu0
    %v2235 = vld [vmem:[#allocation7] sm:$0xff]
    %v2236 = vld [vmem:[#allocation7 + $0x8] sm:$0xff]
    %v2237 = vld [vmem:[#allocation7 + $0x10] sm:$0xff]
    %v2238 = vld [vmem:[#allocation7 + $0x18] sm:$0xff]
    %v2239 = vld [vmem:[#allocation8] sm:$0x1]
    %v2241 = vperm.slane %v2239, 0
    %2243 = vmatpush.msra.mxu0 0.0
    %2244 = vmatpush.msra.mxu0 0.0
    %2245 = vmatpush.msra.mxu0 0.0
    %2246 = vmatpush.msra.mxu0 0.0
    %2247 = vmatpush.msra.mxu0 0.0
    %2248 = vmatpush.msra.mxu0 0.0
    %2249 = vmatpush.msra.mxu0 0.0
    %2250 = vmatpush.msra.mxu0 0.0
    %2251 = vmatpush.msra.mxu0 0.0
    %2252 = vmatpush.msra.mxu0 0.0
    %2253 = vmatpush.msra.mxu0 0.0
    %2254 = vmatpush.msra.mxu0 0.0
    %2255 = vmatpush.msra.mxu0 %v2238
    %2256 = vmatpush.msra.mxu0 %v2237
    %2257 = vmatpush.msra.mxu0 %v2236
    %2258 = vmatpush.msra.mxu0 %v2235
    %2259 = vmatmul.f32.gmra.mxu0 %v2172
    %v2260 = vpop.f32.mrf.mxu0
    %v2261 = vadd.f32 %v2241, %v2260
    %2262 = vdwg.mxu0
    %v2263 = vld [vmem:[#allocation2] sm:$0xff]
    %v2264 = vld [vmem:[#allocation2 + $0x8] sm:$0xff]
    %v2265 = vld [vmem:[#allocation2 + $0x10] sm:$0xff]
    %v2266 = vld [vmem:[#allocation2 + $0x18] sm:$0xff]
    %v2267 = vld [vmem:[#allocation2 + $0x20] sm:$0xff]
    %v2268 = vld [vmem:[#allocation2 + $0x28] sm:$0xff]
    %v2269 = vld [vmem:[#allocation2 + $0x30] sm:$0xff]
    %v2270 = vld [vmem:[#allocation2 + $0x38] sm:$0xff]
    %v2271 = vld [vmem:[#allocation2 + $0x40] sm:$0xff]
    %v2272 = vld [vmem:[#allocation2 + $0x48] sm:$0xff]
    %v2273 = vld [vmem:[#allocation2 + $0x50] sm:$0xff]
    %v2274 = vld [vmem:[#allocation2 + $0x58] sm:$0xff]
    %v2275 = vld [vmem:[#allocation2 + $0x60] sm:$0xff]
    %v2276 = vld [vmem:[#allocation2 + $0x68] sm:$0xff]
    %v2277 = vld [vmem:[#allocation2 + $0x70] sm:$0xff]
    %v2278 = vld [vmem:[#allocation2 + $0x78] sm:$0xff]
    %v2280 = vrot.slane %v2261, 1
    %v2281 = vperm.slane %v2261, 0
    %v2282 = vperm.slane %v2280, 0
    %v2285 = vadd.f32 %v2263, %v2281
    %v2286 = vadd.f32 %v2264, %v2281
    %v2287 = vadd.f32 %v2265, %v2281
    %v2288 = vadd.f32 %v2266, %v2281
    %v2289 = vadd.f32 %v2267, %v2281
    %v2290 = vadd.f32 %v2268, %v2281
    %v2291 = vadd.f32 %v2269, %v2281
    %v2292 = vadd.f32 %v2270, %v2281
    %v2293 = vadd.f32 %v2271, %v2282
    %v2294 = vadd.f32 %v2272, %v2282
    %v2295 = vadd.f32 %v2273, %v2282
    %v2296 = vadd.f32 %v2274, %v2282
    %v2297 = vadd.f32 %v2275, %v2282
    %v2298 = vadd.f32 %v2276, %v2282
    %v2299 = vadd.f32 %v2277, %v2282
    %v2300 = vadd.f32 %v2278, %v2282
    %v2301 = vtanh.pop %v2285
    %v2302 = vtanh.pop %v2286
    %v2303 = vtanh.pop %v2287
    %v2304 = vtanh.pop %v2288
    %v2305 = vtanh.pop %v2289
    %v2306 = vtanh.pop %v2290
    %v2307 = vtanh.pop %v2291
    %v2308 = vtanh.pop %v2292
    %v2309 = vtanh.pop %v2293
    %v2310 = vtanh.pop %v2294
    %v2311 = vtanh.pop %v2295
    %v2312 = vtanh.pop %v2296
    %v2313 = vtanh.pop %v2297
    %v2314 = vtanh.pop %v2298
    %v2315 = vtanh.pop %v2299
    %v2316 = vtanh.pop %v2300
    %v2317 = vld [vmem:[#allocation10] sm:$0x1]
    %v2319 = vperm.slane %v2317, 0
    %v2321 = vmul.f32 %v2301, %v2319
    %v2322 = vmul.f32 %v2302, %v2319
    %v2323 = vmul.f32 %v2303, %v2319
    %v2324 = vmul.f32 %v2304, %v2319
    %v2325 = vmul.f32 %v2305, %v2319
    %v2326 = vmul.f32 %v2306, %v2319
    %v2327 = vmul.f32 %v2307, %v2319
    %v2328 = vmul.f32 %v2308, %v2319
    %v2329 = vmul.f32 %v2309, %v2319
    %v2330 = vmul.f32 %v2310, %v2319
    %v2331 = vmul.f32 %v2311, %v2319
    %v2332 = vmul.f32 %v2312, %v2319
    %v2333 = vmul.f32 %v2313, %v2319
    %v2334 = vmul.f32 %v2314, %v2319
    %v2335 = vmul.f32 %v2315, %v2319
    %v2336 = vmul.f32 %v2316, %v2319
    %v2337 = vsel %vm227, %v2321, 0.0
    %2338 = vadd.xlane.f32.xlu0 %v2337
    %v2339 = vpop.xlane.xlu0 %2338
    %v2340 = vsel %vm227, %v2322, 0.0
    %2341 = vadd.xlane.f32.xlu0 %v2340
    %v2342 = vpop.xlane.xlu0 %2341
    %v2343 = vsel %vm227, %v2323, 0.0
    %2344 = vadd.xlane.f32.xlu0 %v2343
    %v2345 = vpop.xlane.xlu0 %2344
    %v2346 = vsel %vm227, %v2324, 0.0
    %2347 = vadd.xlane.f32.xlu0 %v2346
    %v2348 = vpop.xlane.xlu0 %2347
    %v2349 = vsel %vm227, %v2325, 0.0
    %2350 = vadd.xlane.f32.xlu0 %v2349
    %v2351 = vpop.xlane.xlu0 %2350
    %v2352 = vsel %vm227, %v2326, 0.0
    %2353 = vadd.xlane.f32.xlu0 %v2352
    %v2354 = vpop.xlane.xlu0 %2353
    %v2355 = vsel %vm227, %v2327, 0.0
    %2356 = vadd.xlane.f32.xlu0 %v2355
    %v2357 = vpop.xlane.xlu0 %2356
    %v2358 = vsel %vm227, %v2328, 0.0
    %2359 = vadd.xlane.f32.xlu0 %v2358
    %v2360 = vpop.xlane.xlu0 %2359
    %v2361 = vsel %vm227, %v2329, 0.0
    %2362 = vadd.xlane.f32.xlu0 %v2361
    %v2363 = vpop.xlane.xlu0 %2362
    %v2364 = vsel %vm227, %v2330, 0.0
    %2365 = vadd.xlane.f32.xlu0 %v2364
    %v2366 = vpop.xlane.xlu0 %2365
    %v2367 = vsel %vm227, %v2331, 0.0
    %2368 = vadd.xlane.f32.xlu0 %v2367
    %v2369 = vpop.xlane.xlu0 %2368
    %v2370 = vsel %vm227, %v2332, 0.0
    %2371 = vadd.xlane.f32.xlu0 %v2370
    %v2372 = vpop.xlane.xlu0 %2371
    %v2373 = vsel %vm227, %v2333, 0.0
    %2374 = vadd.xlane.f32.xlu0 %v2373
    %v2375 = vpop.xlane.xlu0 %2374
    %v2376 = vsel %vm227, %v2334, 0.0
    %2377 = vadd.xlane.f32.xlu0 %v2376
    %v2378 = vpop.xlane.xlu0 %2377
    %v2379 = vsel %vm227, %v2335, 0.0
    %2380 = vadd.xlane.f32.xlu0 %v2379
    %v2381 = vpop.xlane.xlu0 %2380
    %v2382 = vsel %vm227, %v2336, 0.0
    %2383 = vadd.xlane.f32.xlu0 %v2382
    %v2384 = vpop.xlane.xlu0 %2383
    %v2401 = vperm.slane %v2339, %v358
    %v2402 = vperm.slane %v2342, %v560
    %v2403 = vsel %vm562, %v2402, %v2401
    %v2404 = vperm.slane %v2345, %v564
    %v2405 = vsel %vm566, %v2404, %v2403
    %v2406 = vperm.slane %v2348, %v568
    %v2407 = vsel %vm570, %v2406, %v2405
    %v2408 = vperm.slane %v2351, %v572
    %v2409 = vsel %vm574, %v2408, %v2407
    %v2410 = vperm.slane %v2354, %v576
    %v2411 = vsel %vm578, %v2410, %v2409
    %v2412 = vperm.slane %v2357, %v580
    %v2413 = vsel %vm582, %v2412, %v2411
    %v2414 = vperm.slane %v2360, %v584
    %v2415 = vsel %vm586, %v2414, %v2413
    %v2416 = vperm.slane %v2363, %v358
    %v2417 = vperm.slane %v2366, %v560
    %v2418 = vsel %vm562, %v2417, %v2416
    %v2419 = vperm.slane %v2369, %v564
    %v2420 = vsel %vm566, %v2419, %v2418
    %v2421 = vperm.slane %v2372, %v568
    %v2422 = vsel %vm570, %v2421, %v2420
    %v2423 = vperm.slane %v2375, %v572
    %v2424 = vsel %vm574, %v2423, %v2422
    %v2425 = vperm.slane %v2378, %v576
    %v2426 = vsel %vm578, %v2425, %v2424
    %v2427 = vperm.slane %v2381, %v580
    %v2428 = vsel %vm582, %v2427, %v2426
    %v2429 = vperm.slane %v2384, %v584
    %v2430 = vsel %vm586, %v2429, %v2428
    %v2431 = vsel %vm603, %v2430, %v2415
    %v2433 = vsel %vm606, %v2431, -inf
    %2434 = vmax.xlane.f32.xlu0 %v2433
    %v2435 = vpop.xlane.xlu0 %2434
    %v2437 = vperm.slane %v2435, 0
    %v2438 = vperm.slane %v2435, 1
    %v2441 = vsub.f32 %v2339, %v2437
    %v2442 = vsub.f32 %v2342, %v2437
    %v2443 = vsub.f32 %v2345, %v2437
    %v2444 = vsub.f32 %v2348, %v2437
    %v2445 = vsub.f32 %v2351, %v2437
    %v2446 = vsub.f32 %v2354, %v2437
    %v2447 = vsub.f32 %v2357, %v2437
    %v2448 = vsub.f32 %v2360, %v2437
    %v2449 = vsub.f32 %v2363, %v2438
    %v2450 = vsub.f32 %v2366, %v2438
    %v2451 = vsub.f32 %v2369, %v2438
    %v2452 = vsub.f32 %v2372, %v2438
    %v2453 = vsub.f32 %v2375, %v2438
    %v2454 = vsub.f32 %v2378, %v2438
    %v2455 = vsub.f32 %v2381, %v2438
    %v2456 = vsub.f32 %v2384, %v2438
    %v2457 = vmul.f32 %v2441, 1.442695
    %v2458 = vpow.pop %v2457
    %v2459 = vmul.f32 %v2442, 1.442695
    %v2460 = vpow.pop %v2459
    %v2461 = vmul.f32 %v2443, 1.442695
    %v2462 = vpow.pop %v2461
    %v2463 = vmul.f32 %v2444, 1.442695
    %v2464 = vpow.pop %v2463
    %v2465 = vmul.f32 %v2445, 1.442695
    %v2466 = vpow.pop %v2465
    %v2467 = vmul.f32 %v2446, 1.442695
    %v2468 = vpow.pop %v2467
    %v2469 = vmul.f32 %v2447, 1.442695
    %v2470 = vpow.pop %v2469
    %v2471 = vmul.f32 %v2448, 1.442695
    %v2472 = vpow.pop %v2471
    %v2473 = vmul.f32 %v2449, 1.442695
    %v2474 = vpow.pop %v2473
    %v2475 = vmul.f32 %v2450, 1.442695
    %v2476 = vpow.pop %v2475
    %v2477 = vmul.f32 %v2451, 1.442695
    %v2478 = vpow.pop %v2477
    %v2479 = vmul.f32 %v2452, 1.442695
    %v2480 = vpow.pop %v2479
    %v2481 = vmul.f32 %v2453, 1.442695
    %v2482 = vpow.pop %v2481
    %v2483 = vmul.f32 %v2454, 1.442695
    %v2484 = vpow.pop %v2483
    %v2485 = vmul.f32 %v2455, 1.442695
    %v2486 = vpow.pop %v2485
    %v2487 = vmul.f32 %v2456, 1.442695
    %v2488 = vpow.pop %v2487
    %2505 = vset.pattern.permute.xlu0 0
    %2506 = vperm.xlu0 %2505, %v2458
    %v2507 = vpop.permute.xlu0 %2506
    %2508 = vset.pattern.permute.xlu0 0
    %2509 = vperm.xlu0 %2508, %v2460
    %v2510 = vpop.permute.xlu0 %2509
    %2511 = vset.pattern.permute.xlu0 0
    %2512 = vperm.xlu0 %2511, %v2462
    %v2513 = vpop.permute.xlu0 %2512
    %2514 = vset.pattern.permute.xlu0 0
    %2515 = vperm.xlu0 %2514, %v2464
    %v2516 = vpop.permute.xlu0 %2515
    %2517 = vset.pattern.permute.xlu0 0
    %2518 = vperm.xlu0 %2517, %v2466
    %v2519 = vpop.permute.xlu0 %2518
    %2520 = vset.pattern.permute.xlu0 0
    %2521 = vperm.xlu0 %2520, %v2468
    %v2522 = vpop.permute.xlu0 %2521
    %2523 = vset.pattern.permute.xlu0 0
    %2524 = vperm.xlu0 %2523, %v2470
    %v2525 = vpop.permute.xlu0 %2524
    %2526 = vset.pattern.permute.xlu0 0
    %2527 = vperm.xlu0 %2526, %v2472
    %v2528 = vpop.permute.xlu0 %2527
    %2529 = vset.pattern.permute.xlu0 0
    %2530 = vperm.xlu0 %2529, %v2474
    %v2531 = vpop.permute.xlu0 %2530
    %2532 = vset.pattern.permute.xlu0 0
    %2533 = vperm.xlu0 %2532, %v2476
    %v2534 = vpop.permute.xlu0 %2533
    %2535 = vset.pattern.permute.xlu0 0
    %2536 = vperm.xlu0 %2535, %v2478
    %v2537 = vpop.permute.xlu0 %2536
    %2538 = vset.pattern.permute.xlu0 0
    %2539 = vperm.xlu0 %2538, %v2480
    %v2540 = vpop.permute.xlu0 %2539
    %2541 = vset.pattern.permute.xlu0 0
    %2542 = vperm.xlu0 %2541, %v2482
    %v2543 = vpop.permute.xlu0 %2542
    %2544 = vset.pattern.permute.xlu0 0
    %2545 = vperm.xlu0 %2544, %v2484
    %v2546 = vpop.permute.xlu0 %2545
    %2547 = vset.pattern.permute.xlu0 0
    %2548 = vperm.xlu0 %2547, %v2486
    %v2549 = vpop.permute.xlu0 %2548
    %2550 = vset.pattern.permute.xlu0 0
    %2551 = vperm.xlu0 %2550, %v2488
    %v2552 = vpop.permute.xlu0 %2551
    %v2553 = vperm.slane %v2507, %v358
    %v2554 = vperm.slane %v2510, %v560
    %v2555 = vsel %vm562, %v2554, %v2553
    %v2556 = vperm.slane %v2513, %v564
    %v2557 = vsel %vm566, %v2556, %v2555
    %v2558 = vperm.slane %v2516, %v568
    %v2559 = vsel %vm570, %v2558, %v2557
    %v2560 = vperm.slane %v2519, %v572
    %v2561 = vsel %vm574, %v2560, %v2559
    %v2562 = vperm.slane %v2522, %v576
    %v2563 = vsel %vm578, %v2562, %v2561
    %v2564 = vperm.slane %v2525, %v580
    %v2565 = vsel %vm582, %v2564, %v2563
    %v2566 = vperm.slane %v2528, %v584
    %v2567 = vsel %vm586, %v2566, %v2565
    %v2568 = vperm.slane %v2531, %v358
    %v2569 = vperm.slane %v2534, %v560
    %v2570 = vsel %vm562, %v2569, %v2568
    %v2571 = vperm.slane %v2537, %v564
    %v2572 = vsel %vm566, %v2571, %v2570
    %v2573 = vperm.slane %v2540, %v568
    %v2574 = vsel %vm570, %v2573, %v2572
    %v2575 = vperm.slane %v2543, %v572
    %v2576 = vsel %vm574, %v2575, %v2574
    %v2577 = vperm.slane %v2546, %v576
    %v2578 = vsel %vm578, %v2577, %v2576
    %v2579 = vperm.slane %v2549, %v580
    %v2580 = vsel %vm582, %v2579, %v2578
    %v2581 = vperm.slane %v2552, %v584
    %v2582 = vsel %vm586, %v2581, %v2580
    %v2583 = vsel %vm603, %v2582, %v2567
    %v2585 = vsel %vm606, %v2583, 0.0
    %2586 = vadd.xlane.f32.xlu0 %v2585
    %v2587 = vpop.xlane.xlu0 %2586
    %v2589 = vperm.slane %v2587, 0
    %v2590 = vperm.slane %v2587, 1
    %v2593 = vrcp.pop %v2589
    %v2594 = vmul.f32 %v2589, %v2593
    %v2595 = vsub.f32 1.0, %v2594
    %v2596 = vmul.f32 %v2593, %v2595
    %v2597 = vadd.f32 %v2593, %v2596
    %vm2598 = vweird.f32 %v2589
    %vm2599 = vweird.f32 %v2593
    %vm2600 = vmor %vm2598, %vm2599
    %v2601 = vsel %vm2600, %v2593, %v2597
    %v2602 = vand.u32 2147483647, %v2589
    %vm2603 = vcmp.eq.f32.partialorder %v2602, 8.507059e+37
    %v2604 = vand.u32 %v2589, 2147483648
    %v2605 = vor.u32 1.1754944e-38, %v2604
    %v2606 = vsel %vm2603, %v2605, %v2601
    %v2607 = vmul.f32 %v2458, %v2606
    %v2608 = vmul.f32 %v2460, %v2606
    %v2609 = vmul.f32 %v2462, %v2606
    %v2610 = vmul.f32 %v2464, %v2606
    %v2611 = vmul.f32 %v2466, %v2606
    %v2612 = vmul.f32 %v2468, %v2606
    %v2613 = vmul.f32 %v2470, %v2606
    %v2614 = vmul.f32 %v2472, %v2606
    %v2615 = vrcp.pop %v2590
    %v2616 = vmul.f32 %v2590, %v2615
    %v2617 = vsub.f32 1.0, %v2616
    %v2618 = vmul.f32 %v2615, %v2617
    %v2619 = vadd.f32 %v2615, %v2618
    %vm2620 = vweird.f32 %v2590
    %vm2621 = vweird.f32 %v2615
    %vm2622 = vmor %vm2620, %vm2621
    %v2623 = vsel %vm2622, %v2615, %v2619
    %v2624 = vand.u32 2147483647, %v2590
    %vm2625 = vcmp.eq.f32.partialorder %v2624, 8.507059e+37
    %v2626 = vand.u32 %v2590, 2147483648
    %v2627 = vor.u32 1.1754944e-38, %v2626
    %v2628 = vsel %vm2625, %v2627, %v2623
    %v2629 = vmul.f32 %v2474, %v2628
    %v2630 = vmul.f32 %v2476, %v2628
    %v2631 = vmul.f32 %v2478, %v2628
    %v2632 = vmul.f32 %v2480, %v2628
    %v2633 = vmul.f32 %v2482, %v2628
    %v2634 = vmul.f32 %v2484, %v2628
    %v2635 = vmul.f32 %v2486, %v2628
    %v2636 = vmul.f32 %v2488, %v2628
    %v2637 = vld [vmem:[%s1] sm:$0xff]
    %v2638 = vld [vmem:[%s1 + $0x8] sm:$0xff]
    %v2639 = vld [vmem:[%s1 + $0x10] sm:$0xff]
    %v2640 = vld [vmem:[%s1 + $0x18] sm:$0xff]
    %v2641 = vld [vmem:[%s1 + $0x20] sm:$0xff]
    %v2642 = vld [vmem:[%s1 + $0x28] sm:$0xff]
    %v2643 = vld [vmem:[%s1 + $0x30] sm:$0xff]
    %v2644 = vld [vmem:[%s1 + $0x38] sm:$0xff]
    %v2645 = vld [vmem:[%s1 + $0x40] sm:$0xff]
    %v2646 = vld [vmem:[%s1 + $0x48] sm:$0xff]
    %v2647 = vld [vmem:[%s1 + $0x50] sm:$0xff]
    %v2648 = vld [vmem:[%s1 + $0x58] sm:$0xff]
    %v2649 = vld [vmem:[%s1 + $0x60] sm:$0xff]
    %v2650 = vld [vmem:[%s1 + $0x68] sm:$0xff]
    %v2651 = vld [vmem:[%s1 + $0x70] sm:$0xff]
    %v2652 = vld [vmem:[%s1 + $0x78] sm:$0xff]
    %2654 = vset.pattern.permute.xlu0 0
    %2655 = vperm.xlu0 %2654, %v2607
    %v2656 = vpop.permute.xlu0 %2655
    %2659 = vset.pattern.permute.xlu0 0
    %2660 = vperm.xlu0 %2659, %v2608
    %v2661 = vpop.permute.xlu0 %2660
    %2664 = vset.pattern.permute.xlu0 0
    %2665 = vperm.xlu0 %2664, %v2609
    %v2666 = vpop.permute.xlu0 %2665
    %2669 = vset.pattern.permute.xlu0 0
    %2670 = vperm.xlu0 %2669, %v2610
    %v2671 = vpop.permute.xlu0 %2670
    %2674 = vset.pattern.permute.xlu0 0
    %2675 = vperm.xlu0 %2674, %v2611
    %v2676 = vpop.permute.xlu0 %2675
    %2679 = vset.pattern.permute.xlu0 0
    %2680 = vperm.xlu0 %2679, %v2612
    %v2681 = vpop.permute.xlu0 %2680
    %2684 = vset.pattern.permute.xlu0 0
    %2685 = vperm.xlu0 %2684, %v2613
    %v2686 = vpop.permute.xlu0 %2685
    %2689 = vset.pattern.permute.xlu0 0
    %2690 = vperm.xlu0 %2689, %v2614
    %v2691 = vpop.permute.xlu0 %2690
    %2694 = vset.pattern.permute.xlu0 0
    %2695 = vperm.xlu0 %2694, %v2629
    %v2696 = vpop.permute.xlu0 %2695
    %2699 = vset.pattern.permute.xlu0 0
    %2700 = vperm.xlu0 %2699, %v2630
    %v2701 = vpop.permute.xlu0 %2700
    %2704 = vset.pattern.permute.xlu0 0
    %2705 = vperm.xlu0 %2704, %v2631
    %v2706 = vpop.permute.xlu0 %2705
    %2709 = vset.pattern.permute.xlu0 0
    %2710 = vperm.xlu0 %2709, %v2632
    %v2711 = vpop.permute.xlu0 %2710
    %2714 = vset.pattern.permute.xlu0 0
    %2715 = vperm.xlu0 %2714, %v2633
    %v2716 = vpop.permute.xlu0 %2715
    %2719 = vset.pattern.permute.xlu0 0
    %2720 = vperm.xlu0 %2719, %v2634
    %v2721 = vpop.permute.xlu0 %2720
    %2724 = vset.pattern.permute.xlu0 0
    %2725 = vperm.xlu0 %2724, %v2635
    %v2726 = vpop.permute.xlu0 %2725
    %2729 = vset.pattern.permute.xlu0 0
    %2730 = vperm.xlu0 %2729, %v2636
    %v2731 = vpop.permute.xlu0 %2730
    %v2733 = vmul.f32 %v2656, %v2637
    %v2734 = vmul.f32 %v2661, %v2638
    %v2735 = vmul.f32 %v2666, %v2639
    %v2736 = vmul.f32 %v2671, %v2640
    %v2737 = vmul.f32 %v2676, %v2641
    %v2738 = vmul.f32 %v2681, %v2642
    %v2739 = vmul.f32 %v2686, %v2643
    %v2740 = vmul.f32 %v2691, %v2644
    %v2741 = vmul.f32 %v2696, %v2645
    %v2742 = vmul.f32 %v2701, %v2646
    %v2743 = vmul.f32 %v2706, %v2647
    %v2744 = vmul.f32 %v2711, %v2648
    %v2745 = vmul.f32 %v2716, %v2649
    %v2746 = vmul.f32 %v2721, %v2650
    %v2747 = vmul.f32 %v2726, %v2651
    %v2748 = vmul.f32 %v2731, %v2652
    %v2749 = vsel %vm227, %v2733, 0.0
    %v2750 = vsel %vm227, %v2734, 0.0
    %v2751 = vadd.f32 %v2749, %v2750
    %v2752 = vsel %vm227, %v2735, 0.0
    %v2753 = vadd.f32 %v2751, %v2752
    %v2754 = vsel %vm227, %v2736, 0.0
    %v2755 = vadd.f32 %v2753, %v2754
    %v2756 = vsel %vm227, %v2737, 0.0
    %v2757 = vadd.f32 %v2755, %v2756
    %v2758 = vsel %vm227, %v2738, 0.0
    %v2759 = vadd.f32 %v2757, %v2758
    %v2760 = vsel %vm227, %v2739, 0.0
    %v2761 = vadd.f32 %v2759, %v2760
    %v2762 = vsel %vm227, %v2740, 0.0
    %v2763 = vadd.f32 %v2761, %v2762
    %v2764 = vrot.slane %v2763, 4
    %v2765 = vadd.f32 %v2763, %v2764
    %v2766 = vrot.slane %v2765, 2
    %v2767 = vadd.f32 %v2765, %v2766
    %v2768 = vrot.slane %v2767, 1
    %v2769 = vadd.f32 %v2767, %v2768
    %v2770 = vsel %vm227, %v2741, 0.0
    %v2771 = vsel %vm227, %v2742, 0.0
    %v2772 = vadd.f32 %v2770, %v2771
    %v2773 = vsel %vm227, %v2743, 0.0
    %v2774 = vadd.f32 %v2772, %v2773
    %v2775 = vsel %vm227, %v2744, 0.0
    %v2776 = vadd.f32 %v2774, %v2775
    %v2777 = vsel %vm227, %v2745, 0.0
    %v2778 = vadd.f32 %v2776, %v2777
    %v2779 = vsel %vm227, %v2746, 0.0
    %v2780 = vadd.f32 %v2778, %v2779
    %v2781 = vsel %vm227, %v2747, 0.0
    %v2782 = vadd.f32 %v2780, %v2781
    %v2783 = vsel %vm227, %v2748, 0.0
    %v2784 = vadd.f32 %v2782, %v2783
    %v2785 = vrot.slane %v2784, 4
    %v2786 = vadd.f32 %v2784, %v2785
    %v2787 = vrot.slane %v2786, 2
    %v2788 = vadd.f32 %v2786, %v2787
    %v2789 = vrot.slane %v2788, 1
    %v2790 = vadd.f32 %v2788, %v2789
    %v2791 = vld [vmem:[#allocation11] sm:$0xff]
    %v2792 = vld [vmem:[#allocation11 + $0x8] sm:$0xff]
    %v2793 = vld [vmem:[#allocation11 + $0x10] sm:$0xff]
    %v2794 = vld [vmem:[#allocation11 + $0x18] sm:$0xff]
    %v2795 = vld [vmem:[#allocation13] sm:$0xff]
    %v2796 = vld [vmem:[#allocation13 + $0x8] sm:$0xff]
    %v2797 = vld [vmem:[#allocation13 + $0x10] sm:$0xff]
    %v2798 = vld [vmem:[#allocation13 + $0x18] sm:$0xff]
    %v2801 = vsel %vm603, %v2790, %v2769
    %v2802 = vsel %vm227, %v2801, 0
    %2804 = vmatpush.msra.mxu0 0.0
    %2805 = vmatpush.msra.mxu0 0.0
    %2806 = vmatpush.msra.mxu0 0.0
    %2807 = vmatpush.msra.mxu0 0.0
    %2808 = vmatpush.msra.mxu0 0.0
    %2809 = vmatpush.msra.mxu0 0.0
    %2810 = vmatpush.msra.mxu0 0.0
    %2811 = vmatpush.msra.mxu0 0.0
    %2812 = vmatpush.msra.mxu0 0.0
    %2813 = vmatpush.msra.mxu0 0.0
    %2814 = vmatpush.msra.mxu0 0.0
    %2815 = vmatpush.msra.mxu0 0.0
    %2816 = vmatpush.msra.mxu0 %v2798
    %2817 = vmatpush.msra.mxu0 %v2797
    %2818 = vmatpush.msra.mxu0 %v2796
    %2819 = vmatpush.msra.mxu0 %v2795
    %2820 = vmatmul.f32.gmra.mxu0 %v2802
    %v2821 = vpop.f32.mrf.mxu0
    %v2822 = vadd.f32 0.0, %v2821
    %2823 = vdwg.mxu0
    %v2825 = vsel %vm227, %v2233, 0
    %2827 = vmatpush.msra.mxu0 0.0
    %2828 = vmatpush.msra.mxu0 0.0
    %2829 = vmatpush.msra.mxu0 0.0
    %2830 = vmatpush.msra.mxu0 0.0
    %2831 = vmatpush.msra.mxu0 0.0
    %2832 = vmatpush.msra.mxu0 0.0
    %2833 = vmatpush.msra.mxu0 0.0
    %2834 = vmatpush.msra.mxu0 0.0
    %2835 = vmatpush.msra.mxu0 0.0
    %2836 = vmatpush.msra.mxu0 0.0
    %2837 = vmatpush.msra.mxu0 0.0
    %2838 = vmatpush.msra.mxu0 0.0
    %2839 = vmatpush.msra.mxu0 %v2794
    %2840 = vmatpush.msra.mxu0 %v2793
    %2841 = vmatpush.msra.mxu0 %v2792
    %2842 = vmatpush.msra.mxu0 %v2791
    %2843 = vmatmul.f32.gmra.mxu0 %v2825
    %v2844 = vpop.f32.mrf.mxu0
    %v2845 = vadd.f32 %v2822, %v2844
    %2846 = vdwg.mxu0
    %v2847 = vld [vmem:[%s9] sm:$0x1]
    %v2849 = vperm.slane %v2847, 0
    %v2851 = vadd.f32 %v2845, %v2849
    %v2852 = vmax.f32 %v2851, 0.0
    %v2853 = vld [vmem:[%s10] sm:$0xff]
    %v2854 = vld [vmem:[%s10 + $0x8] sm:$0xff]
    %v2855 = vld [vmem:[%s10 + $0x10] sm:$0xff]
    %v2856 = vld [vmem:[%s10 + $0x18] sm:$0xff]
    %v2857 = vld [vmem:[#allocation14] sm:$0x1]
    %v2859 = vperm.slane %v2857, 0
    %v2862 = vsel %vm227, %v2852, 0
    %2864 = vmatpush.msra.mxu0 0.0
    %2865 = vmatpush.msra.mxu0 0.0
    %2866 = vmatpush.msra.mxu0 0.0
    %2867 = vmatpush.msra.mxu0 0.0
    %2868 = vmatpush.msra.mxu0 0.0
    %2869 = vmatpush.msra.mxu0 0.0
    %2870 = vmatpush.msra.mxu0 0.0
    %2871 = vmatpush.msra.mxu0 0.0
    %2872 = vmatpush.msra.mxu0 0.0
    %2873 = vmatpush.msra.mxu0 0.0
    %2874 = vmatpush.msra.mxu0 0.0
    %2875 = vmatpush.msra.mxu0 0.0
    %2876 = vmatpush.msra.mxu0 %v2856
    %2877 = vmatpush.msra.mxu0 %v2855
    %2878 = vmatpush.msra.mxu0 %v2854
    %2879 = vmatpush.msra.mxu0 %v2853
    %2880 = vmatmul.f32.gmra.mxu0 %v2862
    %v2881 = vpop.f32.mrf.mxu0
    %v2882 = vadd.f32 %v2859, %v2881
    %2883 = vdwg.mxu0
    %v2884 = vld [vmem:[%s1058] sm:$0xff]
    %v2885 = vld [vmem:[%s1058 + $0x8] sm:$0xff]
    %v2886 = vld [vmem:[%s1058 + $0x10] sm:$0xff]
    %v2887 = vld [vmem:[%s1058 + $0x18] sm:$0xff]
    %v2888 = vld [vmem:[%s1063] sm:$0x1]
    %v2890 = vperm.slane %v2888, 0
    %2892 = vmatpush.msra.mxu0 0.0
    %2893 = vmatpush.msra.mxu0 0.0
    %2894 = vmatpush.msra.mxu0 0.0
    %2895 = vmatpush.msra.mxu0 0.0
    %2896 = vmatpush.msra.mxu0 0.0
    %2897 = vmatpush.msra.mxu0 0.0
    %2898 = vmatpush.msra.mxu0 0.0
    %2899 = vmatpush.msra.mxu0 0.0
    %2900 = vmatpush.msra.mxu0 0.0
    %2901 = vmatpush.msra.mxu0 0.0
    %2902 = vmatpush.msra.mxu0 0.0
    %2903 = vmatpush.msra.mxu0 0.0
    %2904 = vmatpush.msra.mxu0 %v2887
    %2905 = vmatpush.msra.mxu0 %v2886
    %2906 = vmatpush.msra.mxu0 %v2885
    %2907 = vmatpush.msra.mxu0 %v2884
    %2908 = vmatmul.f32.gmra.mxu0 %v2862
    %v2909 = vpop.f32.mrf.mxu0
    %v2910 = vadd.f32 %v2890, %v2909
    %2911 = vdwg.mxu0
    %v2912 = vld [vmem:[%s1088] sm:$0xff]
    %v2913 = vld [vmem:[%s1088 + $0x8] sm:$0xff]
    %v2914 = vld [vmem:[%s1088 + $0x10] sm:$0xff]
    %v2915 = vld [vmem:[%s1088 + $0x18] sm:$0xff]
    %v2916 = vld [vmem:[%s1093] sm:$0x1]
    %v2918 = vperm.slane %v2916, 0
    %2920 = vmatpush.msra.mxu0 0.0
    %2921 = vmatpush.msra.mxu0 0.0
    %2922 = vmatpush.msra.mxu0 0.0
    %2923 = vmatpush.msra.mxu0 0.0
    %2924 = vmatpush.msra.mxu0 0.0
    %2925 = vmatpush.msra.mxu0 0.0
    %2926 = vmatpush.msra.mxu0 0.0
    %2927 = vmatpush.msra.mxu0 0.0
    %2928 = vmatpush.msra.mxu0 0.0
    %2929 = vmatpush.msra.mxu0 0.0
    %2930 = vmatpush.msra.mxu0 0.0
    %2931 = vmatpush.msra.mxu0 0.0
    %2932 = vmatpush.msra.mxu0 %v2915
    %2933 = vmatpush.msra.mxu0 %v2914
    %2934 = vmatpush.msra.mxu0 %v2913
    %2935 = vmatpush.msra.mxu0 %v2912
    %2936 = vmatmul.f32.gmra.mxu0 %v2862
    %v2937 = vpop.f32.mrf.mxu0
    %v2938 = vadd.f32 %v2918, %v2937
    %2939 = vdwg.mxu0
    %v2940 = vld [vmem:[%s11] sm:$0xff]
    %v2941 = vld [vmem:[%s11 + $0x8] sm:$0xff]
    %v2942 = vld [vmem:[%s11 + $0x10] sm:$0xff]
    %v2943 = vld [vmem:[%s11 + $0x18] sm:$0xff]
    %v2944 = vld [vmem:[#allocation16] sm:$0x1]
    %v2946 = vperm.slane %v2944, 0
    %2948 = vmatpush.msra.mxu0 0.0
    %2949 = vmatpush.msra.mxu0 0.0
    %2950 = vmatpush.msra.mxu0 0.0
    %2951 = vmatpush.msra.mxu0 0.0
    %2952 = vmatpush.msra.mxu0 0.0
    %2953 = vmatpush.msra.mxu0 0.0
    %2954 = vmatpush.msra.mxu0 0.0
    %2955 = vmatpush.msra.mxu0 0.0
    %2956 = vmatpush.msra.mxu0 0.0
    %2957 = vmatpush.msra.mxu0 0.0
    %2958 = vmatpush.msra.mxu0 0.0
    %2959 = vmatpush.msra.mxu0 0.0
    %2960 = vmatpush.msra.mxu0 %v2943
    %2961 = vmatpush.msra.mxu0 %v2942
    %2962 = vmatpush.msra.mxu0 %v2941
    %2963 = vmatpush.msra.mxu0 %v2940
    %2964 = vmatmul.f32.gmra.mxu0 %v2172
    %v2965 = vpop.f32.mrf.mxu0
    %v2966 = vadd.f32 %v2946, %v2965
    %2967 = vdwg.mxu0
    %v2968 = vld [vmem:[%s1146] sm:$0xff]
    %v2969 = vld [vmem:[%s1146 + $0x8] sm:$0xff]
    %v2970 = vld [vmem:[%s1146 + $0x10] sm:$0xff]
    %v2971 = vld [vmem:[%s1146 + $0x18] sm:$0xff]
    %v2972 = vld [vmem:[%s1151] sm:$0x1]
    %v2974 = vperm.slane %v2972, 0
    %2976 = vmatpush.msra.mxu0 0.0
    %2977 = vmatpush.msra.mxu0 0.0
    %2978 = vmatpush.msra.mxu0 0.0
    %2979 = vmatpush.msra.mxu0 0.0
    %2980 = vmatpush.msra.mxu0 0.0
    %2981 = vmatpush.msra.mxu0 0.0
    %2982 = vmatpush.msra.mxu0 0.0
    %2983 = vmatpush.msra.mxu0 0.0
    %2984 = vmatpush.msra.mxu0 0.0
    %2985 = vmatpush.msra.mxu0 0.0
    %2986 = vmatpush.msra.mxu0 0.0
    %2987 = vmatpush.msra.mxu0 0.0
    %2988 = vmatpush.msra.mxu0 %v2971
    %2989 = vmatpush.msra.mxu0 %v2970
    %2990 = vmatpush.msra.mxu0 %v2969
    %2991 = vmatpush.msra.mxu0 %v2968
    %2992 = vmatmul.f32.gmra.mxu0 %v2172
    %v2993 = vpop.f32.mrf.mxu0
    %v2994 = vadd.f32 %v2974, %v2993
    %2995 = vdwg.mxu0
    %v2996 = vld [vmem:[%s1176] sm:$0xff]
    %v2997 = vld [vmem:[%s1176 + $0x8] sm:$0xff]
    %v2998 = vld [vmem:[%s1176 + $0x10] sm:$0xff]
    %v2999 = vld [vmem:[%s1176 + $0x18] sm:$0xff]
    %v3000 = vld [vmem:[%s1181] sm:$0x1]
    %v3002 = vperm.slane %v3000, 0
    %3004 = vmatpush.msra.mxu0 0.0
    %3005 = vmatpush.msra.mxu0 0.0
    %3006 = vmatpush.msra.mxu0 0.0
    %3007 = vmatpush.msra.mxu0 0.0
    %3008 = vmatpush.msra.mxu0 0.0
    %3009 = vmatpush.msra.mxu0 0.0
    %3010 = vmatpush.msra.mxu0 0.0
    %3011 = vmatpush.msra.mxu0 0.0
    %3012 = vmatpush.msra.mxu0 0.0
    %3013 = vmatpush.msra.mxu0 0.0
    %3014 = vmatpush.msra.mxu0 0.0
    %3015 = vmatpush.msra.mxu0 0.0
    %3016 = vmatpush.msra.mxu0 %v2999
    %3017 = vmatpush.msra.mxu0 %v2998
    %3018 = vmatpush.msra.mxu0 %v2997
    %3019 = vmatpush.msra.mxu0 %v2996
    %3020 = vmatmul.f32.gmra.mxu0 %v2172
    %v3021 = vpop.f32.mrf.mxu0
    %v3022 = vadd.f32 %v3002, %v3021
    %3023 = vdwg.mxu0
    %v3024 = vadd.f32 %v2882, %v2966
    %v3025 = vxor.u32 %v3024, 2147483648
    %v3026 = vmul.f32 %v3025, 1.442695
    %v3027 = vpow.pop %v3026
    %v3028 = vadd.f32 %v3027, 1.0
    %v3029 = vrcp.pop %v3028
    %v3030 = vmul.f32 %v3028, %v3029
    %v3031 = vsub.f32 1.0, %v3030
    %v3032 = vmul.f32 %v3029, %v3031
    %v3033 = vadd.f32 %v3029, %v3032
    %vm3034 = vweird.f32 %v3028
    %vm3035 = vweird.f32 %v3029
    %vm3036 = vmor %vm3034, %vm3035
    %v3037 = vsel %vm3036, %v3029, %v3033
    %v3038 = vand.u32 2147483647, %v3028
    %vm3039 = vcmp.eq.f32.partialorder %v3038, 8.507059e+37
    %v3040 = vand.u32 %v3028, 2147483648
    %v3041 = vor.u32 1.1754944e-38, %v3040
    %v3042 = vsel %vm3039, %v3041, %v3037
    %v3043 = vmul.f32 1.0, %v3042
    %v3044 = vadd.f32 %v2910, %v2994
    %v3045 = vxor.u32 %v3044, 2147483648
    %v3046 = vmul.f32 %v3045, 1.442695
    %v3047 = vpow.pop %v3046
    %v3048 = vadd.f32 %v3047, 1.0
    %v3049 = vrcp.pop %v3048
    %v3050 = vmul.f32 %v3048, %v3049
    %v3051 = vsub.f32 1.0, %v3050
    %v3052 = vmul.f32 %v3049, %v3051
    %v3053 = vadd.f32 %v3049, %v3052
    %vm3054 = vweird.f32 %v3048
    %vm3055 = vweird.f32 %v3049
    %vm3056 = vmor %vm3054, %vm3055
    %v3057 = vsel %vm3056, %v3049, %v3053
    %v3058 = vand.u32 2147483647, %v3048
    %vm3059 = vcmp.eq.f32.partialorder %v3058, 8.507059e+37
    %v3060 = vand.u32 %v3048, 2147483648
    %v3061 = vor.u32 1.1754944e-38, %v3060
    %v3062 = vsel %vm3059, %v3061, %v3057
    %v3063 = vmul.f32 1.0, %v3062
    %v3064 = vmul.f32 %v3043, %v3022
    %v3065 = vadd.f32 %v2938, %v3064
    %v3066 = vtanh.pop %v3065
    %v3067 = vsub.f32 1.0, %v3063
    %v3068 = vmul.f32 %v3067, %v3066
    %v3069 = vmul.f32 %v3063, %v2162
    %v3070 = vadd.f32 %v3068, %v3069
    %v3071 = vld [vmem:[%s14] sm:$0xff]
    %v3072 = vld [vmem:[%s14 + $0x8] sm:$0xff]
    %v3073 = vld [vmem:[%s14 + $0x10] sm:$0xff]
    %v3074 = vld [vmem:[%s14 + $0x18] sm:$0xff]
    %v3075 = vld [vmem:[#allocation17] sm:$0x1]
    %v3077 = vperm.slane %v3075, 0
    %v3080 = vsel %vm227, %v3070, 0
    %3082 = vmatpush.msra.mxu0 0.0
    %3083 = vmatpush.msra.mxu0 0.0
    %3084 = vmatpush.msra.mxu0 0.0
    %3085 = vmatpush.msra.mxu0 0.0
    %3086 = vmatpush.msra.mxu0 0.0
    %3087 = vmatpush.msra.mxu0 0.0
    %3088 = vmatpush.msra.mxu0 0.0
    %3089 = vmatpush.msra.mxu0 0.0
    %3090 = vmatpush.msra.mxu0 0.0
    %3091 = vmatpush.msra.mxu0 0.0
    %3092 = vmatpush.msra.mxu0 0.0
    %3093 = vmatpush.msra.mxu0 0.0
    %3094 = vmatpush.msra.mxu0 %v3074
    %3095 = vmatpush.msra.mxu0 %v3073
    %3096 = vmatpush.msra.mxu0 %v3072
    %3097 = vmatpush.msra.mxu0 %v3071
    %3098 = vmatmul.f32.gmra.mxu0 %v3080
    %v3099 = vpop.f32.mrf.mxu0
    %v3100 = vadd.f32 %v3077, %v3099
    %3101 = vdwg.mxu0
    %v3103 = vrot.slane %v3100, 1
    %3105 = vst.msk [vmem:[%s16 + $0x2] sm:$0x1] %vm1287, %v3100
    %3106 = vst.msk [vmem:[%s16 + $0xa] sm:$0x1] %vm1287, %v3103
    %v3107 = vsel %vm1290, %v3100, -inf
    %3108 = vmax.xlane.f32.xlu0 %v3107
    %v3109 = vpop.xlane.xlu0 %3108
    %vm3110 = vcmp.eq.f32.partialorder %v3100, %v3109
    %v3111 = vsel %vm3110, %v360, -16.0
    %v3112 = vsel %vm1290, %v3111, -inf
    %3113 = vmax.xlane.f32.xlu0 %v3112
    %v3114 = vpop.xlane.xlu0 %3113
    %vm3115 = vcmp.eq.f32.partialorder %v360, %v3114
    %v3116 = vsel %vm3115, 1, 0
    %v3117 = vcvt.s32.f32 %v3116
    %v3118 = vld [vmem:[#allocation3] sm:$0xff]
    %v3119 = vld [vmem:[#allocation3 + $0x8] sm:$0xff]
    %v3121 = vsel %vm366, %v3117, 0
    %3123 = vmatpush.msra.mxu0 0.0
    %3124 = vmatpush.msra.mxu0 0.0
    %3125 = vmatpush.msra.mxu0 0.0
    %3126 = vmatpush.msra.mxu0 0.0
    %3127 = vmatpush.msra.mxu0 0.0
    %3128 = vmatpush.msra.mxu0 0.0
    %3129 = vmatpush.msra.mxu0 0.0
    %3130 = vmatpush.msra.mxu0 0.0
    %3131 = vmatpush.msra.mxu0 0.0
    %3132 = vmatpush.msra.mxu0 0.0
    %3133 = vmatpush.msra.mxu0 0.0
    %3134 = vmatpush.msra.mxu0 0.0
    %3135 = vmatpush.msra.mxu0 0.0
    %3136 = vmatpush.msra.mxu0 0.0
    %3137 = vmatpush.msra.mxu0 %v3119
    %3138 = vmatpush.msra.mxu0 %v3118
    %3139 = vmatmul.f32.gmra.mxu0 %v3121
    %v3140 = vpop.f32.mrf.mxu0
    %v3141 = vadd.f32 0.0, %v3140
    %3142 = vdwg.mxu0
    %v3143 = vld [vmem:[#allocation7] sm:$0xff]
    %v3144 = vld [vmem:[#allocation7 + $0x8] sm:$0xff]
    %v3145 = vld [vmem:[#allocation7 + $0x10] sm:$0xff]
    %v3146 = vld [vmem:[#allocation7 + $0x18] sm:$0xff]
    %v3147 = vld [vmem:[#allocation8] sm:$0x1]
    %v3149 = vperm.slane %v3147, 0
    %3151 = vmatpush.msra.mxu0 0.0
    %3152 = vmatpush.msra.mxu0 0.0
    %3153 = vmatpush.msra.mxu0 0.0
    %3154 = vmatpush.msra.mxu0 0.0
    %3155 = vmatpush.msra.mxu0 0.0
    %3156 = vmatpush.msra.mxu0 0.0
    %3157 = vmatpush.msra.mxu0 0.0
    %3158 = vmatpush.msra.mxu0 0.0
    %3159 = vmatpush.msra.mxu0 0.0
    %3160 = vmatpush.msra.mxu0 0.0
    %3161 = vmatpush.msra.mxu0 0.0
    %3162 = vmatpush.msra.mxu0 0.0
    %3163 = vmatpush.msra.mxu0 %v3146
    %3164 = vmatpush.msra.mxu0 %v3145
    %3165 = vmatpush.msra.mxu0 %v3144
    %3166 = vmatpush.msra.mxu0 %v3143
    %3167 = vmatmul.f32.gmra.mxu0 %v3080
    %v3168 = vpop.f32.mrf.mxu0
    %v3169 = vadd.f32 %v3149, %v3168
    %3170 = vdwg.mxu0
    %v3171 = vld [vmem:[#allocation2] sm:$0xff]
    %v3172 = vld [vmem:[#allocation2 + $0x8] sm:$0xff]
    %v3173 = vld [vmem:[#allocation2 + $0x10] sm:$0xff]
    %v3174 = vld [vmem:[#allocation2 + $0x18] sm:$0xff]
    %v3175 = vld [vmem:[#allocation2 + $0x20] sm:$0xff]
    %v3176 = vld [vmem:[#allocation2 + $0x28] sm:$0xff]
    %v3177 = vld [vmem:[#allocation2 + $0x30] sm:$0xff]
    %v3178 = vld [vmem:[#allocation2 + $0x38] sm:$0xff]
    %v3179 = vld [vmem:[#allocation2 + $0x40] sm:$0xff]
    %v3180 = vld [vmem:[#allocation2 + $0x48] sm:$0xff]
    %v3181 = vld [vmem:[#allocation2 + $0x50] sm:$0xff]
    %v3182 = vld [vmem:[#allocation2 + $0x58] sm:$0xff]
    %v3183 = vld [vmem:[#allocation2 + $0x60] sm:$0xff]
    %v3184 = vld [vmem:[#allocation2 + $0x68] sm:$0xff]
    %v3185 = vld [vmem:[#allocation2 + $0x70] sm:$0xff]
    %v3186 = vld [vmem:[#allocation2 + $0x78] sm:$0xff]
    %v3188 = vrot.slane %v3169, 1
    %v3189 = vperm.slane %v3169, 0
    %v3190 = vperm.slane %v3188, 0
    %v3193 = vadd.f32 %v3171, %v3189
    %v3194 = vadd.f32 %v3172, %v3189
    %v3195 = vadd.f32 %v3173, %v3189
    %v3196 = vadd.f32 %v3174, %v3189
    %v3197 = vadd.f32 %v3175, %v3189
    %v3198 = vadd.f32 %v3176, %v3189
    %v3199 = vadd.f32 %v3177, %v3189
    %v3200 = vadd.f32 %v3178, %v3189
    %v3201 = vadd.f32 %v3179, %v3190
    %v3202 = vadd.f32 %v3180, %v3190
    %v3203 = vadd.f32 %v3181, %v3190
    %v3204 = vadd.f32 %v3182, %v3190
    %v3205 = vadd.f32 %v3183, %v3190
    %v3206 = vadd.f32 %v3184, %v3190
    %v3207 = vadd.f32 %v3185, %v3190
    %v3208 = vadd.f32 %v3186, %v3190
    %v3209 = vtanh.pop %v3193
    %v3210 = vtanh.pop %v3194
    %v3211 = vtanh.pop %v3195
    %v3212 = vtanh.pop %v3196
    %v3213 = vtanh.pop %v3197
    %v3214 = vtanh.pop %v3198
    %v3215 = vtanh.pop %v3199
    %v3216 = vtanh.pop %v3200
    %v3217 = vtanh.pop %v3201
    %v3218 = vtanh.pop %v3202
    %v3219 = vtanh.pop %v3203
    %v3220 = vtanh.pop %v3204
    %v3221 = vtanh.pop %v3205
    %v3222 = vtanh.pop %v3206
    %v3223 = vtanh.pop %v3207
    %v3224 = vtanh.pop %v3208
    %v3225 = vld [vmem:[#allocation10] sm:$0x1]
    %v3227 = vperm.slane %v3225, 0
    %v3229 = vmul.f32 %v3209, %v3227
    %v3230 = vmul.f32 %v3210, %v3227
    %v3231 = vmul.f32 %v3211, %v3227
    %v3232 = vmul.f32 %v3212, %v3227
    %v3233 = vmul.f32 %v3213, %v3227
    %v3234 = vmul.f32 %v3214, %v3227
    %v3235 = vmul.f32 %v3215, %v3227
    %v3236 = vmul.f32 %v3216, %v3227
    %v3237 = vmul.f32 %v3217, %v3227
    %v3238 = vmul.f32 %v3218, %v3227
    %v3239 = vmul.f32 %v3219, %v3227
    %v3240 = vmul.f32 %v3220, %v3227
    %v3241 = vmul.f32 %v3221, %v3227
    %v3242 = vmul.f32 %v3222, %v3227
    %v3243 = vmul.f32 %v3223, %v3227
    %v3244 = vmul.f32 %v3224, %v3227
    %v3245 = vsel %vm227, %v3229, 0.0
    %3246 = vadd.xlane.f32.xlu0 %v3245
    %v3247 = vpop.xlane.xlu0 %3246
    %v3248 = vsel %vm227, %v3230, 0.0
    %3249 = vadd.xlane.f32.xlu0 %v3248
    %v3250 = vpop.xlane.xlu0 %3249
    %v3251 = vsel %vm227, %v3231, 0.0
    %3252 = vadd.xlane.f32.xlu0 %v3251
    %v3253 = vpop.xlane.xlu0 %3252
    %v3254 = vsel %vm227, %v3232, 0.0
    %3255 = vadd.xlane.f32.xlu0 %v3254
    %v3256 = vpop.xlane.xlu0 %3255
    %v3257 = vsel %vm227, %v3233, 0.0
    %3258 = vadd.xlane.f32.xlu0 %v3257
    %v3259 = vpop.xlane.xlu0 %3258
    %v3260 = vsel %vm227, %v3234, 0.0
    %3261 = vadd.xlane.f32.xlu0 %v3260
    %v3262 = vpop.xlane.xlu0 %3261
    %v3263 = vsel %vm227, %v3235, 0.0
    %3264 = vadd.xlane.f32.xlu0 %v3263
    %v3265 = vpop.xlane.xlu0 %3264
    %v3266 = vsel %vm227, %v3236, 0.0
    %3267 = vadd.xlane.f32.xlu0 %v3266
    %v3268 = vpop.xlane.xlu0 %3267
    %v3269 = vsel %vm227, %v3237, 0.0
    %3270 = vadd.xlane.f32.xlu0 %v3269
    %v3271 = vpop.xlane.xlu0 %3270
    %v3272 = vsel %vm227, %v3238, 0.0
    %3273 = vadd.xlane.f32.xlu0 %v3272
    %v3274 = vpop.xlane.xlu0 %3273
    %v3275 = vsel %vm227, %v3239, 0.0
    %3276 = vadd.xlane.f32.xlu0 %v3275
    %v3277 = vpop.xlane.xlu0 %3276
    %v3278 = vsel %vm227, %v3240, 0.0
    %3279 = vadd.xlane.f32.xlu0 %v3278
    %v3280 = vpop.xlane.xlu0 %3279
    %v3281 = vsel %vm227, %v3241, 0.0
    %3282 = vadd.xlane.f32.xlu0 %v3281
    %v3283 = vpop.xlane.xlu0 %3282
    %v3284 = vsel %vm227, %v3242, 0.0
    %3285 = vadd.xlane.f32.xlu0 %v3284
    %v3286 = vpop.xlane.xlu0 %3285
    %v3287 = vsel %vm227, %v3243, 0.0
    %3288 = vadd.xlane.f32.xlu0 %v3287
    %v3289 = vpop.xlane.xlu0 %3288
    %v3290 = vsel %vm227, %v3244, 0.0
    %3291 = vadd.xlane.f32.xlu0 %v3290
    %v3292 = vpop.xlane.xlu0 %3291
    %v3309 = vperm.slane %v3247, %v358
    %v3310 = vperm.slane %v3250, %v560
    %v3311 = vsel %vm562, %v3310, %v3309
    %v3312 = vperm.slane %v3253, %v564
    %v3313 = vsel %vm566, %v3312, %v3311
    %v3314 = vperm.slane %v3256, %v568
    %v3315 = vsel %vm570, %v3314, %v3313
    %v3316 = vperm.slane %v3259, %v572
    %v3317 = vsel %vm574, %v3316, %v3315
    %v3318 = vperm.slane %v3262, %v576
    %v3319 = vsel %vm578, %v3318, %v3317
    %v3320 = vperm.slane %v3265, %v580
    %v3321 = vsel %vm582, %v3320, %v3319
    %v3322 = vperm.slane %v3268, %v584
    %v3323 = vsel %vm586, %v3322, %v3321
    %v3324 = vperm.slane %v3271, %v358
    %v3325 = vperm.slane %v3274, %v560
    %v3326 = vsel %vm562, %v3325, %v3324
    %v3327 = vperm.slane %v3277, %v564
    %v3328 = vsel %vm566, %v3327, %v3326
    %v3329 = vperm.slane %v3280, %v568
    %v3330 = vsel %vm570, %v3329, %v3328
    %v3331 = vperm.slane %v3283, %v572
    %v3332 = vsel %vm574, %v3331, %v3330
    %v3333 = vperm.slane %v3286, %v576
    %v3334 = vsel %vm578, %v3333, %v3332
    %v3335 = vperm.slane %v3289, %v580
    %v3336 = vsel %vm582, %v3335, %v3334
    %v3337 = vperm.slane %v3292, %v584
    %v3338 = vsel %vm586, %v3337, %v3336
    %v3339 = vsel %vm603, %v3338, %v3323
    %v3341 = vsel %vm606, %v3339, -inf
    %3342 = vmax.xlane.f32.xlu0 %v3341
    %v3343 = vpop.xlane.xlu0 %3342
    %v3345 = vperm.slane %v3343, 0
    %v3346 = vperm.slane %v3343, 1
    %v3349 = vsub.f32 %v3247, %v3345
    %v3350 = vsub.f32 %v3250, %v3345
    %v3351 = vsub.f32 %v3253, %v3345
    %v3352 = vsub.f32 %v3256, %v3345
    %v3353 = vsub.f32 %v3259, %v3345
    %v3354 = vsub.f32 %v3262, %v3345
    %v3355 = vsub.f32 %v3265, %v3345
    %v3356 = vsub.f32 %v3268, %v3345
    %v3357 = vsub.f32 %v3271, %v3346
    %v3358 = vsub.f32 %v3274, %v3346
    %v3359 = vsub.f32 %v3277, %v3346
    %v3360 = vsub.f32 %v3280, %v3346
    %v3361 = vsub.f32 %v3283, %v3346
    %v3362 = vsub.f32 %v3286, %v3346
    %v3363 = vsub.f32 %v3289, %v3346
    %v3364 = vsub.f32 %v3292, %v3346
    %v3365 = vmul.f32 %v3349, 1.442695
    %v3366 = vpow.pop %v3365
    %v3367 = vmul.f32 %v3350, 1.442695
    %v3368 = vpow.pop %v3367
    %v3369 = vmul.f32 %v3351, 1.442695
    %v3370 = vpow.pop %v3369
    %v3371 = vmul.f32 %v3352, 1.442695
    %v3372 = vpow.pop %v3371
    %v3373 = vmul.f32 %v3353, 1.442695
    %v3374 = vpow.pop %v3373
    %v3375 = vmul.f32 %v3354, 1.442695
    %v3376 = vpow.pop %v3375
    %v3377 = vmul.f32 %v3355, 1.442695
    %v3378 = vpow.pop %v3377
    %v3379 = vmul.f32 %v3356, 1.442695
    %v3380 = vpow.pop %v3379
    %v3381 = vmul.f32 %v3357, 1.442695
    %v3382 = vpow.pop %v3381
    %v3383 = vmul.f32 %v3358, 1.442695
    %v3384 = vpow.pop %v3383
    %v3385 = vmul.f32 %v3359, 1.442695
    %v3386 = vpow.pop %v3385
    %v3387 = vmul.f32 %v3360, 1.442695
    %v3388 = vpow.pop %v3387
    %v3389 = vmul.f32 %v3361, 1.442695
    %v3390 = vpow.pop %v3389
    %v3391 = vmul.f32 %v3362, 1.442695
    %v3392 = vpow.pop %v3391
    %v3393 = vmul.f32 %v3363, 1.442695
    %v3394 = vpow.pop %v3393
    %v3395 = vmul.f32 %v3364, 1.442695
    %v3396 = vpow.pop %v3395
    %3413 = vset.pattern.permute.xlu0 0
    %3414 = vperm.xlu0 %3413, %v3366
    %v3415 = vpop.permute.xlu0 %3414
    %3416 = vset.pattern.permute.xlu0 0
    %3417 = vperm.xlu0 %3416, %v3368
    %v3418 = vpop.permute.xlu0 %3417
    %3419 = vset.pattern.permute.xlu0 0
    %3420 = vperm.xlu0 %3419, %v3370
    %v3421 = vpop.permute.xlu0 %3420
    %3422 = vset.pattern.permute.xlu0 0
    %3423 = vperm.xlu0 %3422, %v3372
    %v3424 = vpop.permute.xlu0 %3423
    %3425 = vset.pattern.permute.xlu0 0
    %3426 = vperm.xlu0 %3425, %v3374
    %v3427 = vpop.permute.xlu0 %3426
    %3428 = vset.pattern.permute.xlu0 0
    %3429 = vperm.xlu0 %3428, %v3376
    %v3430 = vpop.permute.xlu0 %3429
    %3431 = vset.pattern.permute.xlu0 0
    %3432 = vperm.xlu0 %3431, %v3378
    %v3433 = vpop.permute.xlu0 %3432
    %3434 = vset.pattern.permute.xlu0 0
    %3435 = vperm.xlu0 %3434, %v3380
    %v3436 = vpop.permute.xlu0 %3435
    %3437 = vset.pattern.permute.xlu0 0
    %3438 = vperm.xlu0 %3437, %v3382
    %v3439 = vpop.permute.xlu0 %3438
    %3440 = vset.pattern.permute.xlu0 0
    %3441 = vperm.xlu0 %3440, %v3384
    %v3442 = vpop.permute.xlu0 %3441
    %3443 = vset.pattern.permute.xlu0 0
    %3444 = vperm.xlu0 %3443, %v3386
    %v3445 = vpop.permute.xlu0 %3444
    %3446 = vset.pattern.permute.xlu0 0
    %3447 = vperm.xlu0 %3446, %v3388
    %v3448 = vpop.permute.xlu0 %3447
    %3449 = vset.pattern.permute.xlu0 0
    %3450 = vperm.xlu0 %3449, %v3390
    %v3451 = vpop.permute.xlu0 %3450
    %3452 = vset.pattern.permute.xlu0 0
    %3453 = vperm.xlu0 %3452, %v3392
    %v3454 = vpop.permute.xlu0 %3453
    %3455 = vset.pattern.permute.xlu0 0
    %3456 = vperm.xlu0 %3455, %v3394
    %v3457 = vpop.permute.xlu0 %3456
    %3458 = vset.pattern.permute.xlu0 0
    %3459 = vperm.xlu0 %3458, %v3396
    %v3460 = vpop.permute.xlu0 %3459
    %v3461 = vperm.slane %v3415, %v358
    %v3462 = vperm.slane %v3418, %v560
    %v3463 = vsel %vm562, %v3462, %v3461
    %v3464 = vperm.slane %v3421, %v564
    %v3465 = vsel %vm566, %v3464, %v3463
    %v3466 = vperm.slane %v3424, %v568
    %v3467 = vsel %vm570, %v3466, %v3465
    %v3468 = vperm.slane %v3427, %v572
    %v3469 = vsel %vm574, %v3468, %v3467
    %v3470 = vperm.slane %v3430, %v576
    %v3471 = vsel %vm578, %v3470, %v3469
    %v3472 = vperm.slane %v3433, %v580
    %v3473 = vsel %vm582, %v3472, %v3471
    %v3474 = vperm.slane %v3436, %v584
    %v3475 = vsel %vm586, %v3474, %v3473
    %v3476 = vperm.slane %v3439, %v358
    %v3477 = vperm.slane %v3442, %v560
    %v3478 = vsel %vm562, %v3477, %v3476
    %v3479 = vperm.slane %v3445, %v564
    %v3480 = vsel %vm566, %v3479, %v3478
    %v3481 = vperm.slane %v3448, %v568
    %v3482 = vsel %vm570, %v3481, %v3480
    %v3483 = vperm.slane %v3451, %v572
    %v3484 = vsel %vm574, %v3483, %v3482
    %v3485 = vperm.slane %v3454, %v576
    %v3486 = vsel %vm578, %v3485, %v3484
    %v3487 = vperm.slane %v3457, %v580
    %v3488 = vsel %vm582, %v3487, %v3486
    %v3489 = vperm.slane %v3460, %v584
    %v3490 = vsel %vm586, %v3489, %v3488
    %v3491 = vsel %vm603, %v3490, %v3475
    %v3493 = vsel %vm606, %v3491, 0.0
    %3494 = vadd.xlane.f32.xlu0 %v3493
    %v3495 = vpop.xlane.xlu0 %3494
    %v3497 = vperm.slane %v3495, 0
    %v3498 = vperm.slane %v3495, 1
    %v3501 = vrcp.pop %v3497
    %v3502 = vmul.f32 %v3497, %v3501
    %v3503 = vsub.f32 1.0, %v3502
    %v3504 = vmul.f32 %v3501, %v3503
    %v3505 = vadd.f32 %v3501, %v3504
    %vm3506 = vweird.f32 %v3497
    %vm3507 = vweird.f32 %v3501
    %vm3508 = vmor %vm3506, %vm3507
    %v3509 = vsel %vm3508, %v3501, %v3505
    %v3510 = vand.u32 2147483647, %v3497
    %vm3511 = vcmp.eq.f32.partialorder %v3510, 8.507059e+37
    %v3512 = vand.u32 %v3497, 2147483648
    %v3513 = vor.u32 1.1754944e-38, %v3512
    %v3514 = vsel %vm3511, %v3513, %v3509
    %v3515 = vmul.f32 %v3366, %v3514
    %v3516 = vmul.f32 %v3368, %v3514
    %v3517 = vmul.f32 %v3370, %v3514
    %v3518 = vmul.f32 %v3372, %v3514
    %v3519 = vmul.f32 %v3374, %v3514
    %v3520 = vmul.f32 %v3376, %v3514
    %v3521 = vmul.f32 %v3378, %v3514
    %v3522 = vmul.f32 %v3380, %v3514
    %v3523 = vrcp.pop %v3498
    %v3524 = vmul.f32 %v3498, %v3523
    %v3525 = vsub.f32 1.0, %v3524
    %v3526 = vmul.f32 %v3523, %v3525
    %v3527 = vadd.f32 %v3523, %v3526
    %vm3528 = vweird.f32 %v3498
    %vm3529 = vweird.f32 %v3523
    %vm3530 = vmor %vm3528, %vm3529
    %v3531 = vsel %vm3530, %v3523, %v3527
    %v3532 = vand.u32 2147483647, %v3498
    %vm3533 = vcmp.eq.f32.partialorder %v3532, 8.507059e+37
    %v3534 = vand.u32 %v3498, 2147483648
    %v3535 = vor.u32 1.1754944e-38, %v3534
    %v3536 = vsel %vm3533, %v3535, %v3531
    %v3537 = vmul.f32 %v3382, %v3536
    %v3538 = vmul.f32 %v3384, %v3536
    %v3539 = vmul.f32 %v3386, %v3536
    %v3540 = vmul.f32 %v3388, %v3536
    %v3541 = vmul.f32 %v3390, %v3536
    %v3542 = vmul.f32 %v3392, %v3536
    %v3543 = vmul.f32 %v3394, %v3536
    %v3544 = vmul.f32 %v3396, %v3536
    %v3545 = vld [vmem:[%s1] sm:$0xff]
    %v3546 = vld [vmem:[%s1 + $0x8] sm:$0xff]
    %v3547 = vld [vmem:[%s1 + $0x10] sm:$0xff]
    %v3548 = vld [vmem:[%s1 + $0x18] sm:$0xff]
    %v3549 = vld [vmem:[%s1 + $0x20] sm:$0xff]
    %v3550 = vld [vmem:[%s1 + $0x28] sm:$0xff]
    %v3551 = vld [vmem:[%s1 + $0x30] sm:$0xff]
    %v3552 = vld [vmem:[%s1 + $0x38] sm:$0xff]
    %v3553 = vld [vmem:[%s1 + $0x40] sm:$0xff]
    %v3554 = vld [vmem:[%s1 + $0x48] sm:$0xff]
    %v3555 = vld [vmem:[%s1 + $0x50] sm:$0xff]
    %v3556 = vld [vmem:[%s1 + $0x58] sm:$0xff]
    %v3557 = vld [vmem:[%s1 + $0x60] sm:$0xff]
    %v3558 = vld [vmem:[%s1 + $0x68] sm:$0xff]
    %v3559 = vld [vmem:[%s1 + $0x70] sm:$0xff]
    %v3560 = vld [vmem:[%s1 + $0x78] sm:$0xff]
    %3562 = vset.pattern.permute.xlu0 0
    %3563 = vperm.xlu0 %3562, %v3515
    %v3564 = vpop.permute.xlu0 %3563
    %3567 = vset.pattern.permute.xlu0 0
    %3568 = vperm.xlu0 %3567, %v3516
    %v3569 = vpop.permute.xlu0 %3568
    %3572 = vset.pattern.permute.xlu0 0
    %3573 = vperm.xlu0 %3572, %v3517
    %v3574 = vpop.permute.xlu0 %3573
    %3577 = vset.pattern.permute.xlu0 0
    %3578 = vperm.xlu0 %3577, %v3518
    %v3579 = vpop.permute.xlu0 %3578
    %3582 = vset.pattern.permute.xlu0 0
    %3583 = vperm.xlu0 %3582, %v3519
    %v3584 = vpop.permute.xlu0 %3583
    %3587 = vset.pattern.permute.xlu0 0
    %3588 = vperm.xlu0 %3587, %v3520
    %v3589 = vpop.permute.xlu0 %3588
    %3592 = vset.pattern.permute.xlu0 0
    %3593 = vperm.xlu0 %3592, %v3521
    %v3594 = vpop.permute.xlu0 %3593
    %3597 = vset.pattern.permute.xlu0 0
    %3598 = vperm.xlu0 %3597, %v3522
    %v3599 = vpop.permute.xlu0 %3598
    %3602 = vset.pattern.permute.xlu0 0
    %3603 = vperm.xlu0 %3602, %v3537
    %v3604 = vpop.permute.xlu0 %3603
    %3607 = vset.pattern.permute.xlu0 0
    %3608 = vperm.xlu0 %3607, %v3538
    %v3609 = vpop.permute.xlu0 %3608
    %3612 = vset.pattern.permute.xlu0 0
    %3613 = vperm.xlu0 %3612, %v3539
    %v3614 = vpop.permute.xlu0 %3613
    %3617 = vset.pattern.permute.xlu0 0
    %3618 = vperm.xlu0 %3617, %v3540
    %v3619 = vpop.permute.xlu0 %3618
    %3622 = vset.pattern.permute.xlu0 0
    %3623 = vperm.xlu0 %3622, %v3541
    %v3624 = vpop.permute.xlu0 %3623
    %3627 = vset.pattern.permute.xlu0 0
    %3628 = vperm.xlu0 %3627, %v3542
    %v3629 = vpop.permute.xlu0 %3628
    %3632 = vset.pattern.permute.xlu0 0
    %3633 = vperm.xlu0 %3632, %v3543
    %v3634 = vpop.permute.xlu0 %3633
    %3637 = vset.pattern.permute.xlu0 0
    %3638 = vperm.xlu0 %3637, %v3544
    %v3639 = vpop.permute.xlu0 %3638
    %v3641 = vmul.f32 %v3564, %v3545
    %v3642 = vmul.f32 %v3569, %v3546
    %v3643 = vmul.f32 %v3574, %v3547
    %v3644 = vmul.f32 %v3579, %v3548
    %v3645 = vmul.f32 %v3584, %v3549
    %v3646 = vmul.f32 %v3589, %v3550
    %v3647 = vmul.f32 %v3594, %v3551
    %v3648 = vmul.f32 %v3599, %v3552
    %v3649 = vmul.f32 %v3604, %v3553
    %v3650 = vmul.f32 %v3609, %v3554
    %v3651 = vmul.f32 %v3614, %v3555
    %v3652 = vmul.f32 %v3619, %v3556
    %v3653 = vmul.f32 %v3624, %v3557
    %v3654 = vmul.f32 %v3629, %v3558
    %v3655 = vmul.f32 %v3634, %v3559
    %v3656 = vmul.f32 %v3639, %v3560
    %v3657 = vsel %vm227, %v3641, 0.0
    %v3658 = vsel %vm227, %v3642, 0.0
    %v3659 = vadd.f32 %v3657, %v3658
    %v3660 = vsel %vm227, %v3643, 0.0
    %v3661 = vadd.f32 %v3659, %v3660
    %v3662 = vsel %vm227, %v3644, 0.0
    %v3663 = vadd.f32 %v3661, %v3662
    %v3664 = vsel %vm227, %v3645, 0.0
    %v3665 = vadd.f32 %v3663, %v3664
    %v3666 = vsel %vm227, %v3646, 0.0
    %v3667 = vadd.f32 %v3665, %v3666
    %v3668 = vsel %vm227, %v3647, 0.0
    %v3669 = vadd.f32 %v3667, %v3668
    %v3670 = vsel %vm227, %v3648, 0.0
    %v3671 = vadd.f32 %v3669, %v3670
    %v3672 = vrot.slane %v3671, 4
    %v3673 = vadd.f32 %v3671, %v3672
    %v3674 = vrot.slane %v3673, 2
    %v3675 = vadd.f32 %v3673, %v3674
    %v3676 = vrot.slane %v3675, 1
    %v3677 = vadd.f32 %v3675, %v3676
    %v3678 = vsel %vm227, %v3649, 0.0
    %v3679 = vsel %vm227, %v3650, 0.0
    %v3680 = vadd.f32 %v3678, %v3679
    %v3681 = vsel %vm227, %v3651, 0.0
    %v3682 = vadd.f32 %v3680, %v3681
    %v3683 = vsel %vm227, %v3652, 0.0
    %v3684 = vadd.f32 %v3682, %v3683
    %v3685 = vsel %vm227, %v3653, 0.0
    %v3686 = vadd.f32 %v3684, %v3685
    %v3687 = vsel %vm227, %v3654, 0.0
    %v3688 = vadd.f32 %v3686, %v3687
    %v3689 = vsel %vm227, %v3655, 0.0
    %v3690 = vadd.f32 %v3688, %v3689
    %v3691 = vsel %vm227, %v3656, 0.0
    %v3692 = vadd.f32 %v3690, %v3691
    %v3693 = vrot.slane %v3692, 4
    %v3694 = vadd.f32 %v3692, %v3693
    %v3695 = vrot.slane %v3694, 2
    %v3696 = vadd.f32 %v3694, %v3695
    %v3697 = vrot.slane %v3696, 1
    %v3698 = vadd.f32 %v3696, %v3697
    %v3699 = vld [vmem:[#allocation11] sm:$0xff]
    %v3700 = vld [vmem:[#allocation11 + $0x8] sm:$0xff]
    %v3701 = vld [vmem:[#allocation11 + $0x10] sm:$0xff]
    %v3702 = vld [vmem:[#allocation11 + $0x18] sm:$0xff]
    %v3703 = vld [vmem:[#allocation13] sm:$0xff]
    %v3704 = vld [vmem:[#allocation13 + $0x8] sm:$0xff]
    %v3705 = vld [vmem:[#allocation13 + $0x10] sm:$0xff]
    %v3706 = vld [vmem:[#allocation13 + $0x18] sm:$0xff]
    %v3709 = vsel %vm603, %v3698, %v3677
    %v3710 = vsel %vm227, %v3709, 0
    %3712 = vmatpush.msra.mxu0 0.0
    %3713 = vmatpush.msra.mxu0 0.0
    %3714 = vmatpush.msra.mxu0 0.0
    %3715 = vmatpush.msra.mxu0 0.0
    %3716 = vmatpush.msra.mxu0 0.0
    %3717 = vmatpush.msra.mxu0 0.0
    %3718 = vmatpush.msra.mxu0 0.0
    %3719 = vmatpush.msra.mxu0 0.0
    %3720 = vmatpush.msra.mxu0 0.0
    %3721 = vmatpush.msra.mxu0 0.0
    %3722 = vmatpush.msra.mxu0 0.0
    %3723 = vmatpush.msra.mxu0 0.0
    %3724 = vmatpush.msra.mxu0 %v3706
    %3725 = vmatpush.msra.mxu0 %v3705
    %3726 = vmatpush.msra.mxu0 %v3704
    %3727 = vmatpush.msra.mxu0 %v3703
    %3728 = vmatmul.f32.gmra.mxu0 %v3710
    %v3729 = vpop.f32.mrf.mxu0
    %v3730 = vadd.f32 0.0, %v3729
    %3731 = vdwg.mxu0
    %v3733 = vsel %vm227, %v3141, 0
    %3735 = vmatpush.msra.mxu0 0.0
    %3736 = vmatpush.msra.mxu0 0.0
    %3737 = vmatpush.msra.mxu0 0.0
    %3738 = vmatpush.msra.mxu0 0.0
    %3739 = vmatpush.msra.mxu0 0.0
    %3740 = vmatpush.msra.mxu0 0.0
    %3741 = vmatpush.msra.mxu0 0.0
    %3742 = vmatpush.msra.mxu0 0.0
    %3743 = vmatpush.msra.mxu0 0.0
    %3744 = vmatpush.msra.mxu0 0.0
    %3745 = vmatpush.msra.mxu0 0.0
    %3746 = vmatpush.msra.mxu0 0.0
    %3747 = vmatpush.msra.mxu0 %v3702
    %3748 = vmatpush.msra.mxu0 %v3701
    %3749 = vmatpush.msra.mxu0 %v3700
    %3750 = vmatpush.msra.mxu0 %v3699
    %3751 = vmatmul.f32.gmra.mxu0 %v3733
    %v3752 = vpop.f32.mrf.mxu0
    %v3753 = vadd.f32 %v3730, %v3752
    %3754 = vdwg.mxu0
    %v3755 = vld [vmem:[%s9] sm:$0x1]
    %v3757 = vperm.slane %v3755, 0
    %v3759 = vadd.f32 %v3753, %v3757
    %v3760 = vmax.f32 %v3759, 0.0
    %v3761 = vld [vmem:[%s10] sm:$0xff]
    %v3762 = vld [vmem:[%s10 + $0x8] sm:$0xff]
    %v3763 = vld [vmem:[%s10 + $0x10] sm:$0xff]
    %v3764 = vld [vmem:[%s10 + $0x18] sm:$0xff]
    %v3765 = vld [vmem:[#allocation14] sm:$0x1]
    %v3767 = vperm.slane %v3765, 0
    %v3770 = vsel %vm227, %v3760, 0
    %3772 = vmatpush.msra.mxu0 0.0
    %3773 = vmatpush.msra.mxu0 0.0
    %3774 = vmatpush.msra.mxu0 0.0
    %3775 = vmatpush.msra.mxu0 0.0
    %3776 = vmatpush.msra.mxu0 0.0
    %3777 = vmatpush.msra.mxu0 0.0
    %3778 = vmatpush.msra.mxu0 0.0
    %3779 = vmatpush.msra.mxu0 0.0
    %3780 = vmatpush.msra.mxu0 0.0
    %3781 = vmatpush.msra.mxu0 0.0
    %3782 = vmatpush.msra.mxu0 0.0
    %3783 = vmatpush.msra.mxu0 0.0
    %3784 = vmatpush.msra.mxu0 %v3764
    %3785 = vmatpush.msra.mxu0 %v3763
    %3786 = vmatpush.msra.mxu0 %v3762
    %3787 = vmatpush.msra.mxu0 %v3761
    %3788 = vmatmul.f32.gmra.mxu0 %v3770
    %v3789 = vpop.f32.mrf.mxu0
    %v3790 = vadd.f32 %v3767, %v3789
    %3791 = vdwg.mxu0
    %v3792 = vld [vmem:[%s1058] sm:$0xff]
    %v3793 = vld [vmem:[%s1058 + $0x8] sm:$0xff]
    %v3794 = vld [vmem:[%s1058 + $0x10] sm:$0xff]
    %v3795 = vld [vmem:[%s1058 + $0x18] sm:$0xff]
    %v3796 = vld [vmem:[%s1063] sm:$0x1]
    %v3798 = vperm.slane %v3796, 0
    %3800 = vmatpush.msra.mxu0 0.0
    %3801 = vmatpush.msra.mxu0 0.0
    %3802 = vmatpush.msra.mxu0 0.0
    %3803 = vmatpush.msra.mxu0 0.0
    %3804 = vmatpush.msra.mxu0 0.0
    %3805 = vmatpush.msra.mxu0 0.0
    %3806 = vmatpush.msra.mxu0 0.0
    %3807 = vmatpush.msra.mxu0 0.0
    %3808 = vmatpush.msra.mxu0 0.0
    %3809 = vmatpush.msra.mxu0 0.0
    %3810 = vmatpush.msra.mxu0 0.0
    %3811 = vmatpush.msra.mxu0 0.0
    %3812 = vmatpush.msra.mxu0 %v3795
    %3813 = vmatpush.msra.mxu0 %v3794
    %3814 = vmatpush.msra.mxu0 %v3793
    %3815 = vmatpush.msra.mxu0 %v3792
    %3816 = vmatmul.f32.gmra.mxu0 %v3770
    %v3817 = vpop.f32.mrf.mxu0
    %v3818 = vadd.f32 %v3798, %v3817
    %3819 = vdwg.mxu0
    %v3820 = vld [vmem:[%s1088] sm:$0xff]
    %v3821 = vld [vmem:[%s1088 + $0x8] sm:$0xff]
    %v3822 = vld [vmem:[%s1088 + $0x10] sm:$0xff]
    %v3823 = vld [vmem:[%s1088 + $0x18] sm:$0xff]
    %v3824 = vld [vmem:[%s1093] sm:$0x1]
    %v3826 = vperm.slane %v3824, 0
    %3828 = vmatpush.msra.mxu0 0.0
    %3829 = vmatpush.msra.mxu0 0.0
    %3830 = vmatpush.msra.mxu0 0.0
    %3831 = vmatpush.msra.mxu0 0.0
    %3832 = vmatpush.msra.mxu0 0.0
    %3833 = vmatpush.msra.mxu0 0.0
    %3834 = vmatpush.msra.mxu0 0.0
    %3835 = vmatpush.msra.mxu0 0.0
    %3836 = vmatpush.msra.mxu0 0.0
    %3837 = vmatpush.msra.mxu0 0.0
    %3838 = vmatpush.msra.mxu0 0.0
    %3839 = vmatpush.msra.mxu0 0.0
    %3840 = vmatpush.msra.mxu0 %v3823
    %3841 = vmatpush.msra.mxu0 %v3822
    %3842 = vmatpush.msra.mxu0 %v3821
    %3843 = vmatpush.msra.mxu0 %v3820
    %3844 = vmatmul.f32.gmra.mxu0 %v3770
    %v3845 = vpop.f32.mrf.mxu0
    %v3846 = vadd.f32 %v3826, %v3845
    %3847 = vdwg.mxu0
    %v3848 = vld [vmem:[%s11] sm:$0xff]
    %v3849 = vld [vmem:[%s11 + $0x8] sm:$0xff]
    %v3850 = vld [vmem:[%s11 + $0x10] sm:$0xff]
    %v3851 = vld [vmem:[%s11 + $0x18] sm:$0xff]
    %v3852 = vld [vmem:[#allocation16] sm:$0x1]
    %v3854 = vperm.slane %v3852, 0
    %3856 = vmatpush.msra.mxu0 0.0
    %3857 = vmatpush.msra.mxu0 0.0
    %3858 = vmatpush.msra.mxu0 0.0
    %3859 = vmatpush.msra.mxu0 0.0
    %3860 = vmatpush.msra.mxu0 0.0
    %3861 = vmatpush.msra.mxu0 0.0
    %3862 = vmatpush.msra.mxu0 0.0
    %3863 = vmatpush.msra.mxu0 0.0
    %3864 = vmatpush.msra.mxu0 0.0
    %3865 = vmatpush.msra.mxu0 0.0
    %3866 = vmatpush.msra.mxu0 0.0
    %3867 = vmatpush.msra.mxu0 0.0
    %3868 = vmatpush.msra.mxu0 %v3851
    %3869 = vmatpush.msra.mxu0 %v3850
    %3870 = vmatpush.msra.mxu0 %v3849
    %3871 = vmatpush.msra.mxu0 %v3848
    %3872 = vmatmul.f32.gmra.mxu0 %v3080
    %v3873 = vpop.f32.mrf.mxu0
    %v3874 = vadd.f32 %v3854, %v3873
    %3875 = vdwg.mxu0
    %v3876 = vld [vmem:[%s1146] sm:$0xff]
    %v3877 = vld [vmem:[%s1146 + $0x8] sm:$0xff]
    %v3878 = vld [vmem:[%s1146 + $0x10] sm:$0xff]
    %v3879 = vld [vmem:[%s1146 + $0x18] sm:$0xff]
    %v3880 = vld [vmem:[%s1151] sm:$0x1]
    %v3882 = vperm.slane %v3880, 0
    %3884 = vmatpush.msra.mxu0 0.0
    %3885 = vmatpush.msra.mxu0 0.0
    %3886 = vmatpush.msra.mxu0 0.0
    %3887 = vmatpush.msra.mxu0 0.0
    %3888 = vmatpush.msra.mxu0 0.0
    %3889 = vmatpush.msra.mxu0 0.0
    %3890 = vmatpush.msra.mxu0 0.0
    %3891 = vmatpush.msra.mxu0 0.0
    %3892 = vmatpush.msra.mxu0 0.0
    %3893 = vmatpush.msra.mxu0 0.0
    %3894 = vmatpush.msra.mxu0 0.0
    %3895 = vmatpush.msra.mxu0 0.0
    %3896 = vmatpush.msra.mxu0 %v3879
    %3897 = vmatpush.msra.mxu0 %v3878
    %3898 = vmatpush.msra.mxu0 %v3877
    %3899 = vmatpush.msra.mxu0 %v3876
    %3900 = vmatmul.f32.gmra.mxu0 %v3080
    %v3901 = vpop.f32.mrf.mxu0
    %v3902 = vadd.f32 %v3882, %v3901
    %3903 = vdwg.mxu0
    %v3904 = vld [vmem:[%s1176] sm:$0xff]
    %v3905 = vld [vmem:[%s1176 + $0x8] sm:$0xff]
    %v3906 = vld [vmem:[%s1176 + $0x10] sm:$0xff]
    %v3907 = vld [vmem:[%s1176 + $0x18] sm:$0xff]
    %v3908 = vld [vmem:[%s1181] sm:$0x1]
    %v3910 = vperm.slane %v3908, 0
    %3912 = vmatpush.msra.mxu0 0.0
    %3913 = vmatpush.msra.mxu0 0.0
    %3914 = vmatpush.msra.mxu0 0.0
    %3915 = vmatpush.msra.mxu0 0.0
    %3916 = vmatpush.msra.mxu0 0.0
    %3917 = vmatpush.msra.mxu0 0.0
    %3918 = vmatpush.msra.mxu0 0.0
    %3919 = vmatpush.msra.mxu0 0.0
    %3920 = vmatpush.msra.mxu0 0.0
    %3921 = vmatpush.msra.mxu0 0.0
    %3922 = vmatpush.msra.mxu0 0.0
    %3923 = vmatpush.msra.mxu0 0.0
    %3924 = vmatpush.msra.mxu0 %v3907
    %3925 = vmatpush.msra.mxu0 %v3906
    %3926 = vmatpush.msra.mxu0 %v3905
    %3927 = vmatpush.msra.mxu0 %v3904
    %3928 = vmatmul.f32.gmra.mxu0 %v3080
    %v3929 = vpop.f32.mrf.mxu0
    %v3930 = vadd.f32 %v3910, %v3929
    %3931 = vdwg.mxu0
    %v3932 = vadd.f32 %v3790, %v3874
    %v3933 = vxor.u32 %v3932, 2147483648
    %v3934 = vmul.f32 %v3933, 1.442695
    %v3935 = vpow.pop %v3934
    %v3936 = vadd.f32 %v3935, 1.0
    %v3937 = vrcp.pop %v3936
    %v3938 = vmul.f32 %v3936, %v3937
    %v3939 = vsub.f32 1.0, %v3938
    %v3940 = vmul.f32 %v3937, %v3939
    %v3941 = vadd.f32 %v3937, %v3940
    %vm3942 = vweird.f32 %v3936
    %vm3943 = vweird.f32 %v3937
    %vm3944 = vmor %vm3942, %vm3943
    %v3945 = vsel %vm3944, %v3937, %v3941
    %v3946 = vand.u32 2147483647, %v3936
    %vm3947 = vcmp.eq.f32.partialorder %v3946, 8.507059e+37
    %v3948 = vand.u32 %v3936, 2147483648
    %v3949 = vor.u32 1.1754944e-38, %v3948
    %v3950 = vsel %vm3947, %v3949, %v3945
    %v3951 = vmul.f32 1.0, %v3950
    %v3952 = vadd.f32 %v3818, %v3902
    %v3953 = vxor.u32 %v3952, 2147483648
    %v3954 = vmul.f32 %v3953, 1.442695
    %v3955 = vpow.pop %v3954
    %v3956 = vadd.f32 %v3955, 1.0
    %v3957 = vrcp.pop %v3956
    %v3958 = vmul.f32 %v3956, %v3957
    %v3959 = vsub.f32 1.0, %v3958
    %v3960 = vmul.f32 %v3957, %v3959
    %v3961 = vadd.f32 %v3957, %v3960
    %vm3962 = vweird.f32 %v3956
    %vm3963 = vweird.f32 %v3957
    %vm3964 = vmor %vm3962, %vm3963
    %v3965 = vsel %vm3964, %v3957, %v3961
    %v3966 = vand.u32 2147483647, %v3956
    %vm3967 = vcmp.eq.f32.partialorder %v3966, 8.507059e+37
    %v3968 = vand.u32 %v3956, 2147483648
    %v3969 = vor.u32 1.1754944e-38, %v3968
    %v3970 = vsel %vm3967, %v3969, %v3965
    %v3971 = vmul.f32 1.0, %v3970
    %v3972 = vmul.f32 %v3951, %v3930
    %v3973 = vadd.f32 %v3846, %v3972
    %v3974 = vtanh.pop %v3973
    %v3975 = vsub.f32 1.0, %v3971
    %v3976 = vmul.f32 %v3975, %v3974
    %v3977 = vmul.f32 %v3971, %v3070
    %v3978 = vadd.f32 %v3976, %v3977
    %v3979 = vld [vmem:[%s14] sm:$0xff]
    %v3980 = vld [vmem:[%s14 + $0x8] sm:$0xff]
    %v3981 = vld [vmem:[%s14 + $0x10] sm:$0xff]
    %v3982 = vld [vmem:[%s14 + $0x18] sm:$0xff]
    %v3983 = vld [vmem:[#allocation17] sm:$0x1]
    %v3985 = vperm.slane %v3983, 0
    %v3988 = vsel %vm227, %v3978, 0
    %3990 = vmatpush.msra.mxu0 0.0
    %3991 = vmatpush.msra.mxu0 0.0
    %3992 = vmatpush.msra.mxu0 0.0
    %3993 = vmatpush.msra.mxu0 0.0
    %3994 = vmatpush.msra.mxu0 0.0
    %3995 = vmatpush.msra.mxu0 0.0
    %3996 = vmatpush.msra.mxu0 0.0
    %3997 = vmatpush.msra.mxu0 0.0
    %3998 = vmatpush.msra.mxu0 0.0
    %3999 = vmatpush.msra.mxu0 0.0
    %4000 = vmatpush.msra.mxu0 0.0
    %4001 = vmatpush.msra.mxu0 0.0
    %4002 = vmatpush.msra.mxu0 %v3982
    %4003 = vmatpush.msra.mxu0 %v3981
    %4004 = vmatpush.msra.mxu0 %v3980
    %4005 = vmatpush.msra.mxu0 %v3979
    %4006 = vmatmul.f32.gmra.mxu0 %v3988
    %v4007 = vpop.f32.mrf.mxu0
    %v4008 = vadd.f32 %v3985, %v4007
    %4009 = vdwg.mxu0
    %v4011 = vrot.slane %v4008, 1
    %4013 = vst.msk [vmem:[%s16 + $0x3] sm:$0x1] %vm1287, %v4008
    %4014 = vst.msk [vmem:[%s16 + $0xb] sm:$0x1] %vm1287, %v4011
    %v4015 = vsel %vm1290, %v4008, -inf
    %4016 = vmax.xlane.f32.xlu0 %v4015
    %v4017 = vpop.xlane.xlu0 %4016
    %vm4018 = vcmp.eq.f32.partialorder %v4008, %v4017
    %v4019 = vsel %vm4018, %v360, -16.0
    %v4020 = vsel %vm1290, %v4019, -inf
    %4021 = vmax.xlane.f32.xlu0 %v4020
    %v4022 = vpop.xlane.xlu0 %4021
    %vm4023 = vcmp.eq.f32.partialorder %v360, %v4022
    %v4024 = vsel %vm4023, 1, 0
    %v4025 = vcvt.s32.f32 %v4024
    %v4026 = vld [vmem:[#allocation3] sm:$0xff]
    %v4027 = vld [vmem:[#allocation3 + $0x8] sm:$0xff]
    %v4029 = vsel %vm366, %v4025, 0
    %4031 = vmatpush.msra.mxu0 0.0
    %4032 = vmatpush.msra.mxu0 0.0
    %4033 = vmatpush.msra.mxu0 0.0
    %4034 = vmatpush.msra.mxu0 0.0
    %4035 = vmatpush.msra.mxu0 0.0
    %4036 = vmatpush.msra.mxu0 0.0
    %4037 = vmatpush.msra.mxu0 0.0
    %4038 = vmatpush.msra.mxu0 0.0
    %4039 = vmatpush.msra.mxu0 0.0
    %4040 = vmatpush.msra.mxu0 0.0
    %4041 = vmatpush.msra.mxu0 0.0
    %4042 = vmatpush.msra.mxu0 0.0
    %4043 = vmatpush.msra.mxu0 0.0
    %4044 = vmatpush.msra.mxu0 0.0
    %4045 = vmatpush.msra.mxu0 %v4027
    %4046 = vmatpush.msra.mxu0 %v4026
    %4047 = vmatmul.f32.gmra.mxu0 %v4029
    %v4048 = vpop.f32.mrf.mxu0
    %v4049 = vadd.f32 0.0, %v4048
    %4050 = vdwg.mxu0
    %v4051 = vld [vmem:[#allocation7] sm:$0xff]
    %v4052 = vld [vmem:[#allocation7 + $0x8] sm:$0xff]
    %v4053 = vld [vmem:[#allocation7 + $0x10] sm:$0xff]
    %v4054 = vld [vmem:[#allocation7 + $0x18] sm:$0xff]
    %v4055 = vld [vmem:[#allocation8] sm:$0x1]
    %v4057 = vperm.slane %v4055, 0
    %4059 = vmatpush.msra.mxu0 0.0
    %4060 = vmatpush.msra.mxu0 0.0
    %4061 = vmatpush.msra.mxu0 0.0
    %4062 = vmatpush.msra.mxu0 0.0
    %4063 = vmatpush.msra.mxu0 0.0
    %4064 = vmatpush.msra.mxu0 0.0
    %4065 = vmatpush.msra.mxu0 0.0
    %4066 = vmatpush.msra.mxu0 0.0
    %4067 = vmatpush.msra.mxu0 0.0
    %4068 = vmatpush.msra.mxu0 0.0
    %4069 = vmatpush.msra.mxu0 0.0
    %4070 = vmatpush.msra.mxu0 0.0
    %4071 = vmatpush.msra.mxu0 %v4054
    %4072 = vmatpush.msra.mxu0 %v4053
    %4073 = vmatpush.msra.mxu0 %v4052
    %4074 = vmatpush.msra.mxu0 %v4051
    %4075 = vmatmul.f32.gmra.mxu0 %v3988
    %v4076 = vpop.f32.mrf.mxu0
    %v4077 = vadd.f32 %v4057, %v4076
    %4078 = vdwg.mxu0
    %v4079 = vld [vmem:[#allocation2] sm:$0xff]
    %v4080 = vld [vmem:[#allocation2 + $0x8] sm:$0xff]
    %v4081 = vld [vmem:[#allocation2 + $0x10] sm:$0xff]
    %v4082 = vld [vmem:[#allocation2 + $0x18] sm:$0xff]
    %v4083 = vld [vmem:[#allocation2 + $0x20] sm:$0xff]
    %v4084 = vld [vmem:[#allocation2 + $0x28] sm:$0xff]
    %v4085 = vld [vmem:[#allocation2 + $0x30] sm:$0xff]
    %v4086 = vld [vmem:[#allocation2 + $0x38] sm:$0xff]
    %v4087 = vld [vmem:[#allocation2 + $0x40] sm:$0xff]
    %v4088 = vld [vmem:[#allocation2 + $0x48] sm:$0xff]
    %v4089 = vld [vmem:[#allocation2 + $0x50] sm:$0xff]
    %v4090 = vld [vmem:[#allocation2 + $0x58] sm:$0xff]
    %v4091 = vld [vmem:[#allocation2 + $0x60] sm:$0xff]
    %v4092 = vld [vmem:[#allocation2 + $0x68] sm:$0xff]
    %v4093 = vld [vmem:[#allocation2 + $0x70] sm:$0xff]
    %v4094 = vld [vmem:[#allocation2 + $0x78] sm:$0xff]
    %v4096 = vrot.slane %v4077, 1
    %v4097 = vperm.slane %v4077, 0
    %v4098 = vperm.slane %v4096, 0
    %v4101 = vadd.f32 %v4079, %v4097
    %v4102 = vadd.f32 %v4080, %v4097
    %v4103 = vadd.f32 %v4081, %v4097
    %v4104 = vadd.f32 %v4082, %v4097
    %v4105 = vadd.f32 %v4083, %v4097
    %v4106 = vadd.f32 %v4084, %v4097
    %v4107 = vadd.f32 %v4085, %v4097
    %v4108 = vadd.f32 %v4086, %v4097
    %v4109 = vadd.f32 %v4087, %v4098
    %v4110 = vadd.f32 %v4088, %v4098
    %v4111 = vadd.f32 %v4089, %v4098
    %v4112 = vadd.f32 %v4090, %v4098
    %v4113 = vadd.f32 %v4091, %v4098
    %v4114 = vadd.f32 %v4092, %v4098
    %v4115 = vadd.f32 %v4093, %v4098
    %v4116 = vadd.f32 %v4094, %v4098
    %v4117 = vtanh.pop %v4101
    %v4118 = vtanh.pop %v4102
    %v4119 = vtanh.pop %v4103
    %v4120 = vtanh.pop %v4104
    %v4121 = vtanh.pop %v4105
    %v4122 = vtanh.pop %v4106
    %v4123 = vtanh.pop %v4107
    %v4124 = vtanh.pop %v4108
    %v4125 = vtanh.pop %v4109
    %v4126 = vtanh.pop %v4110
    %v4127 = vtanh.pop %v4111
    %v4128 = vtanh.pop %v4112
    %v4129 = vtanh.pop %v4113
    %v4130 = vtanh.pop %v4114
    %v4131 = vtanh.pop %v4115
    %v4132 = vtanh.pop %v4116
    %v4133 = vld [vmem:[#allocation10] sm:$0x1]
    %v4135 = vperm.slane %v4133, 0
    %v4137 = vmul.f32 %v4117, %v4135
    %v4138 = vmul.f32 %v4118, %v4135
    %v4139 = vmul.f32 %v4119, %v4135
    %v4140 = vmul.f32 %v4120, %v4135
    %v4141 = vmul.f32 %v4121, %v4135
    %v4142 = vmul.f32 %v4122, %v4135
    %v4143 = vmul.f32 %v4123, %v4135
    %v4144 = vmul.f32 %v4124, %v4135
    %v4145 = vmul.f32 %v4125, %v4135
    %v4146 = vmul.f32 %v4126, %v4135
    %v4147 = vmul.f32 %v4127, %v4135
    %v4148 = vmul.f32 %v4128, %v4135
    %v4149 = vmul.f32 %v4129, %v4135
    %v4150 = vmul.f32 %v4130, %v4135
    %v4151 = vmul.f32 %v4131, %v4135
    %v4152 = vmul.f32 %v4132, %v4135
    %v4153 = vsel %vm227, %v4137, 0.0
    %4154 = vadd.xlane.f32.xlu0 %v4153
    %v4155 = vpop.xlane.xlu0 %4154
    %v4156 = vsel %vm227, %v4138, 0.0
    %4157 = vadd.xlane.f32.xlu0 %v4156
    %v4158 = vpop.xlane.xlu0 %4157
    %v4159 = vsel %vm227, %v4139, 0.0
    %4160 = vadd.xlane.f32.xlu0 %v4159
    %v4161 = vpop.xlane.xlu0 %4160
    %v4162 = vsel %vm227, %v4140, 0.0
    %4163 = vadd.xlane.f32.xlu0 %v4162
    %v4164 = vpop.xlane.xlu0 %4163
    %v4165 = vsel %vm227, %v4141, 0.0
    %4166 = vadd.xlane.f32.xlu0 %v4165
    %v4167 = vpop.xlane.xlu0 %4166
    %v4168 = vsel %vm227, %v4142, 0.0
    %4169 = vadd.xlane.f32.xlu0 %v4168
    %v4170 = vpop.xlane.xlu0 %4169
    %v4171 = vsel %vm227, %v4143, 0.0
    %4172 = vadd.xlane.f32.xlu0 %v4171
    %v4173 = vpop.xlane.xlu0 %4172
    %v4174 = vsel %vm227, %v4144, 0.0
    %4175 = vadd.xlane.f32.xlu0 %v4174
    %v4176 = vpop.xlane.xlu0 %4175
    %v4177 = vsel %vm227, %v4145, 0.0
    %4178 = vadd.xlane.f32.xlu0 %v4177
    %v4179 = vpop.xlane.xlu0 %4178
    %v4180 = vsel %vm227, %v4146, 0.0
    %4181 = vadd.xlane.f32.xlu0 %v4180
    %v4182 = vpop.xlane.xlu0 %4181
    %v4183 = vsel %vm227, %v4147, 0.0
    %4184 = vadd.xlane.f32.xlu0 %v4183
    %v4185 = vpop.xlane.xlu0 %4184
    %v4186 = vsel %vm227, %v4148, 0.0
    %4187 = vadd.xlane.f32.xlu0 %v4186
    %v4188 = vpop.xlane.xlu0 %4187
    %v4189 = vsel %vm227, %v4149, 0.0
    %4190 = vadd.xlane.f32.xlu0 %v4189
    %v4191 = vpop.xlane.xlu0 %4190
    %v4192 = vsel %vm227, %v4150, 0.0
    %4193 = vadd.xlane.f32.xlu0 %v4192
    %v4194 = vpop.xlane.xlu0 %4193
    %v4195 = vsel %vm227, %v4151, 0.0
    %4196 = vadd.xlane.f32.xlu0 %v4195
    %v4197 = vpop.xlane.xlu0 %4196
    %v4198 = vsel %vm227, %v4152, 0.0
    %4199 = vadd.xlane.f32.xlu0 %v4198
    %v4200 = vpop.xlane.xlu0 %4199
    %v4217 = vperm.slane %v4155, %v358
    %v4218 = vperm.slane %v4158, %v560
    %v4219 = vsel %vm562, %v4218, %v4217
    %v4220 = vperm.slane %v4161, %v564
    %v4221 = vsel %vm566, %v4220, %v4219
    %v4222 = vperm.slane %v4164, %v568
    %v4223 = vsel %vm570, %v4222, %v4221
    %v4224 = vperm.slane %v4167, %v572
    %v4225 = vsel %vm574, %v4224, %v4223
    %v4226 = vperm.slane %v4170, %v576
    %v4227 = vsel %vm578, %v4226, %v4225
    %v4228 = vperm.slane %v4173, %v580
    %v4229 = vsel %vm582, %v4228, %v4227
    %v4230 = vperm.slane %v4176, %v584
    %v4231 = vsel %vm586, %v4230, %v4229
    %v4232 = vperm.slane %v4179, %v358
    %v4233 = vperm.slane %v4182, %v560
    %v4234 = vsel %vm562, %v4233, %v4232
    %v4235 = vperm.slane %v4185, %v564
    %v4236 = vsel %vm566, %v4235, %v4234
    %v4237 = vperm.slane %v4188, %v568
    %v4238 = vsel %vm570, %v4237, %v4236
    %v4239 = vperm.slane %v4191, %v572
    %v4240 = vsel %vm574, %v4239, %v4238
    %v4241 = vperm.slane %v4194, %v576
    %v4242 = vsel %vm578, %v4241, %v4240
    %v4243 = vperm.slane %v4197, %v580
    %v4244 = vsel %vm582, %v4243, %v4242
    %v4245 = vperm.slane %v4200, %v584
    %v4246 = vsel %vm586, %v4245, %v4244
    %v4247 = vsel %vm603, %v4246, %v4231
    %v4249 = vsel %vm606, %v4247, -inf
    %4250 = vmax.xlane.f32.xlu0 %v4249
    %v4251 = vpop.xlane.xlu0 %4250
    %v4253 = vperm.slane %v4251, 0
    %v4254 = vperm.slane %v4251, 1
    %v4257 = vsub.f32 %v4155, %v4253
    %v4258 = vsub.f32 %v4158, %v4253
    %v4259 = vsub.f32 %v4161, %v4253
    %v4260 = vsub.f32 %v4164, %v4253
    %v4261 = vsub.f32 %v4167, %v4253
    %v4262 = vsub.f32 %v4170, %v4253
    %v4263 = vsub.f32 %v4173, %v4253
    %v4264 = vsub.f32 %v4176, %v4253
    %v4265 = vsub.f32 %v4179, %v4254
    %v4266 = vsub.f32 %v4182, %v4254
    %v4267 = vsub.f32 %v4185, %v4254
    %v4268 = vsub.f32 %v4188, %v4254
    %v4269 = vsub.f32 %v4191, %v4254
    %v4270 = vsub.f32 %v4194, %v4254
    %v4271 = vsub.f32 %v4197, %v4254
    %v4272 = vsub.f32 %v4200, %v4254
    %v4273 = vmul.f32 %v4257, 1.442695
    %v4274 = vpow.pop %v4273
    %v4275 = vmul.f32 %v4258, 1.442695
    %v4276 = vpow.pop %v4275
    %v4277 = vmul.f32 %v4259, 1.442695
    %v4278 = vpow.pop %v4277
    %v4279 = vmul.f32 %v4260, 1.442695
    %v4280 = vpow.pop %v4279
    %v4281 = vmul.f32 %v4261, 1.442695
    %v4282 = vpow.pop %v4281
    %v4283 = vmul.f32 %v4262, 1.442695
    %v4284 = vpow.pop %v4283
    %v4285 = vmul.f32 %v4263, 1.442695
    %v4286 = vpow.pop %v4285
    %v4287 = vmul.f32 %v4264, 1.442695
    %v4288 = vpow.pop %v4287
    %v4289 = vmul.f32 %v4265, 1.442695
    %v4290 = vpow.pop %v4289
    %v4291 = vmul.f32 %v4266, 1.442695
    %v4292 = vpow.pop %v4291
    %v4293 = vmul.f32 %v4267, 1.442695
    %v4294 = vpow.pop %v4293
    %v4295 = vmul.f32 %v4268, 1.442695
    %v4296 = vpow.pop %v4295
    %v4297 = vmul.f32 %v4269, 1.442695
    %v4298 = vpow.pop %v4297
    %v4299 = vmul.f32 %v4270, 1.442695
    %v4300 = vpow.pop %v4299
    %v4301 = vmul.f32 %v4271, 1.442695
    %v4302 = vpow.pop %v4301
    %v4303 = vmul.f32 %v4272, 1.442695
    %v4304 = vpow.pop %v4303
    %4321 = vset.pattern.permute.xlu0 0
    %4322 = vperm.xlu0 %4321, %v4274
    %v4323 = vpop.permute.xlu0 %4322
    %4324 = vset.pattern.permute.xlu0 0
    %4325 = vperm.xlu0 %4324, %v4276
    %v4326 = vpop.permute.xlu0 %4325
    %4327 = vset.pattern.permute.xlu0 0
    %4328 = vperm.xlu0 %4327, %v4278
    %v4329 = vpop.permute.xlu0 %4328
    %4330 = vset.pattern.permute.xlu0 0
    %4331 = vperm.xlu0 %4330, %v4280
    %v4332 = vpop.permute.xlu0 %4331
    %4333 = vset.pattern.permute.xlu0 0
    %4334 = vperm.xlu0 %4333, %v4282
    %v4335 = vpop.permute.xlu0 %4334
    %4336 = vset.pattern.permute.xlu0 0
    %4337 = vperm.xlu0 %4336, %v4284
    %v4338 = vpop.permute.xlu0 %4337
    %4339 = vset.pattern.permute.xlu0 0
    %4340 = vperm.xlu0 %4339, %v4286
    %v4341 = vpop.permute.xlu0 %4340
    %4342 = vset.pattern.permute.xlu0 0
    %4343 = vperm.xlu0 %4342, %v4288
    %v4344 = vpop.permute.xlu0 %4343
    %4345 = vset.pattern.permute.xlu0 0
    %4346 = vperm.xlu0 %4345, %v4290
    %v4347 = vpop.permute.xlu0 %4346
    %4348 = vset.pattern.permute.xlu0 0
    %4349 = vperm.xlu0 %4348, %v4292
    %v4350 = vpop.permute.xlu0 %4349
    %4351 = vset.pattern.permute.xlu0 0
    %4352 = vperm.xlu0 %4351, %v4294
    %v4353 = vpop.permute.xlu0 %4352
    %4354 = vset.pattern.permute.xlu0 0
    %4355 = vperm.xlu0 %4354, %v4296
    %v4356 = vpop.permute.xlu0 %4355
    %4357 = vset.pattern.permute.xlu0 0
    %4358 = vperm.xlu0 %4357, %v4298
    %v4359 = vpop.permute.xlu0 %4358
    %4360 = vset.pattern.permute.xlu0 0
    %4361 = vperm.xlu0 %4360, %v4300
    %v4362 = vpop.permute.xlu0 %4361
    %4363 = vset.pattern.permute.xlu0 0
    %4364 = vperm.xlu0 %4363, %v4302
    %v4365 = vpop.permute.xlu0 %4364
    %4366 = vset.pattern.permute.xlu0 0
    %4367 = vperm.xlu0 %4366, %v4304
    %v4368 = vpop.permute.xlu0 %4367
    %v4369 = vperm.slane %v4323, %v358
    %v4370 = vperm.slane %v4326, %v560
    %v4371 = vsel %vm562, %v4370, %v4369
    %v4372 = vperm.slane %v4329, %v564
    %v4373 = vsel %vm566, %v4372, %v4371
    %v4374 = vperm.slane %v4332, %v568
    %v4375 = vsel %vm570, %v4374, %v4373
    %v4376 = vperm.slane %v4335, %v572
    %v4377 = vsel %vm574, %v4376, %v4375
    %v4378 = vperm.slane %v4338, %v576
    %v4379 = vsel %vm578, %v4378, %v4377
    %v4380 = vperm.slane %v4341, %v580
    %v4381 = vsel %vm582, %v4380, %v4379
    %v4382 = vperm.slane %v4344, %v584
    %v4383 = vsel %vm586, %v4382, %v4381
    %v4384 = vperm.slane %v4347, %v358
    %v4385 = vperm.slane %v4350, %v560
    %v4386 = vsel %vm562, %v4385, %v4384
    %v4387 = vperm.slane %v4353, %v564
    %v4388 = vsel %vm566, %v4387, %v4386
    %v4389 = vperm.slane %v4356, %v568
    %v4390 = vsel %vm570, %v4389, %v4388
    %v4391 = vperm.slane %v4359, %v572
    %v4392 = vsel %vm574, %v4391, %v4390
    %v4393 = vperm.slane %v4362, %v576
    %v4394 = vsel %vm578, %v4393, %v4392
    %v4395 = vperm.slane %v4365, %v580
    %v4396 = vsel %vm582, %v4395, %v4394
    %v4397 = vperm.slane %v4368, %v584
    %v4398 = vsel %vm586, %v4397, %v4396
    %v4399 = vsel %vm603, %v4398, %v4383
    %v4401 = vsel %vm606, %v4399, 0.0
    %4402 = vadd.xlane.f32.xlu0 %v4401
    %v4403 = vpop.xlane.xlu0 %4402
    %v4405 = vperm.slane %v4403, 0
    %v4406 = vperm.slane %v4403, 1
    %v4409 = vrcp.pop %v4405
    %v4410 = vmul.f32 %v4405, %v4409
    %v4411 = vsub.f32 1.0, %v4410
    %v4412 = vmul.f32 %v4409, %v4411
    %v4413 = vadd.f32 %v4409, %v4412
    %vm4414 = vweird.f32 %v4405
    %vm4415 = vweird.f32 %v4409
    %vm4416 = vmor %vm4414, %vm4415
    %v4417 = vsel %vm4416, %v4409, %v4413
    %v4418 = vand.u32 2147483647, %v4405
    %vm4419 = vcmp.eq.f32.partialorder %v4418, 8.507059e+37
    %v4420 = vand.u32 %v4405, 2147483648
    %v4421 = vor.u32 1.1754944e-38, %v4420
    %v4422 = vsel %vm4419, %v4421, %v4417
    %v4423 = vmul.f32 %v4274, %v4422
    %v4424 = vmul.f32 %v4276, %v4422
    %v4425 = vmul.f32 %v4278, %v4422
    %v4426 = vmul.f32 %v4280, %v4422
    %v4427 = vmul.f32 %v4282, %v4422
    %v4428 = vmul.f32 %v4284, %v4422
    %v4429 = vmul.f32 %v4286, %v4422
    %v4430 = vmul.f32 %v4288, %v4422
    %v4431 = vrcp.pop %v4406
    %v4432 = vmul.f32 %v4406, %v4431
    %v4433 = vsub.f32 1.0, %v4432
    %v4434 = vmul.f32 %v4431, %v4433
    %v4435 = vadd.f32 %v4431, %v4434
    %vm4436 = vweird.f32 %v4406
    %vm4437 = vweird.f32 %v4431
    %vm4438 = vmor %vm4436, %vm4437
    %v4439 = vsel %vm4438, %v4431, %v4435
    %v4440 = vand.u32 2147483647, %v4406
    %vm4441 = vcmp.eq.f32.partialorder %v4440, 8.507059e+37
    %v4442 = vand.u32 %v4406, 2147483648
    %v4443 = vor.u32 1.1754944e-38, %v4442
    %v4444 = vsel %vm4441, %v4443, %v4439
    %v4445 = vmul.f32 %v4290, %v4444
    %v4446 = vmul.f32 %v4292, %v4444
    %v4447 = vmul.f32 %v4294, %v4444
    %v4448 = vmul.f32 %v4296, %v4444
    %v4449 = vmul.f32 %v4298, %v4444
    %v4450 = vmul.f32 %v4300, %v4444
    %v4451 = vmul.f32 %v4302, %v4444
    %v4452 = vmul.f32 %v4304, %v4444
    %v4453 = vld [vmem:[%s1] sm:$0xff]
    %v4454 = vld [vmem:[%s1 + $0x8] sm:$0xff]
    %v4455 = vld [vmem:[%s1 + $0x10] sm:$0xff]
    %v4456 = vld [vmem:[%s1 + $0x18] sm:$0xff]
    %v4457 = vld [vmem:[%s1 + $0x20] sm:$0xff]
    %v4458 = vld [vmem:[%s1 + $0x28] sm:$0xff]
    %v4459 = vld [vmem:[%s1 + $0x30] sm:$0xff]
    %v4460 = vld [vmem:[%s1 + $0x38] sm:$0xff]
    %v4461 = vld [vmem:[%s1 + $0x40] sm:$0xff]
    %v4462 = vld [vmem:[%s1 + $0x48] sm:$0xff]
    %v4463 = vld [vmem:[%s1 + $0x50] sm:$0xff]
    %v4464 = vld [vmem:[%s1 + $0x58] sm:$0xff]
    %v4465 = vld [vmem:[%s1 + $0x60] sm:$0xff]
    %v4466 = vld [vmem:[%s1 + $0x68] sm:$0xff]
    %v4467 = vld [vmem:[%s1 + $0x70] sm:$0xff]
    %v4468 = vld [vmem:[%s1 + $0x78] sm:$0xff]
    %4470 = vset.pattern.permute.xlu0 0
    %4471 = vperm.xlu0 %4470, %v4423
    %v4472 = vpop.permute.xlu0 %4471
    %4475 = vset.pattern.permute.xlu0 0
    %4476 = vperm.xlu0 %4475, %v4424
    %v4477 = vpop.permute.xlu0 %4476
    %4480 = vset.pattern.permute.xlu0 0
    %4481 = vperm.xlu0 %4480, %v4425
    %v4482 = vpop.permute.xlu0 %4481
    %4485 = vset.pattern.permute.xlu0 0
    %4486 = vperm.xlu0 %4485, %v4426
    %v4487 = vpop.permute.xlu0 %4486
    %4490 = vset.pattern.permute.xlu0 0
    %4491 = vperm.xlu0 %4490, %v4427
    %v4492 = vpop.permute.xlu0 %4491
    %4495 = vset.pattern.permute.xlu0 0
    %4496 = vperm.xlu0 %4495, %v4428
    %v4497 = vpop.permute.xlu0 %4496
    %4500 = vset.pattern.permute.xlu0 0
    %4501 = vperm.xlu0 %4500, %v4429
    %v4502 = vpop.permute.xlu0 %4501
    %4505 = vset.pattern.permute.xlu0 0
    %4506 = vperm.xlu0 %4505, %v4430
    %v4507 = vpop.permute.xlu0 %4506
    %4510 = vset.pattern.permute.xlu0 0
    %4511 = vperm.xlu0 %4510, %v4445
    %v4512 = vpop.permute.xlu0 %4511
    %4515 = vset.pattern.permute.xlu0 0
    %4516 = vperm.xlu0 %4515, %v4446
    %v4517 = vpop.permute.xlu0 %4516
    %4520 = vset.pattern.permute.xlu0 0
    %4521 = vperm.xlu0 %4520, %v4447
    %v4522 = vpop.permute.xlu0 %4521
    %4525 = vset.pattern.permute.xlu0 0
    %4526 = vperm.xlu0 %4525, %v4448
    %v4527 = vpop.permute.xlu0 %4526
    %4530 = vset.pattern.permute.xlu0 0
    %4531 = vperm.xlu0 %4530, %v4449
    %v4532 = vpop.permute.xlu0 %4531
    %4535 = vset.pattern.permute.xlu0 0
    %4536 = vperm.xlu0 %4535, %v4450
    %v4537 = vpop.permute.xlu0 %4536
    %4540 = vset.pattern.permute.xlu0 0
    %4541 = vperm.xlu0 %4540, %v4451
    %v4542 = vpop.permute.xlu0 %4541
    %4545 = vset.pattern.permute.xlu0 0
    %4546 = vperm.xlu0 %4545, %v4452
    %v4547 = vpop.permute.xlu0 %4546
    %v4549 = vmul.f32 %v4472, %v4453
    %v4550 = vmul.f32 %v4477, %v4454
    %v4551 = vmul.f32 %v4482, %v4455
    %v4552 = vmul.f32 %v4487, %v4456
    %v4553 = vmul.f32 %v4492, %v4457
    %v4554 = vmul.f32 %v4497, %v4458
    %v4555 = vmul.f32 %v4502, %v4459
    %v4556 = vmul.f32 %v4507, %v4460
    %v4557 = vmul.f32 %v4512, %v4461
    %v4558 = vmul.f32 %v4517, %v4462
    %v4559 = vmul.f32 %v4522, %v4463
    %v4560 = vmul.f32 %v4527, %v4464
    %v4561 = vmul.f32 %v4532, %v4465
    %v4562 = vmul.f32 %v4537, %v4466
    %v4563 = vmul.f32 %v4542, %v4467
    %v4564 = vmul.f32 %v4547, %v4468
    %v4565 = vsel %vm227, %v4549, 0.0
    %v4566 = vsel %vm227, %v4550, 0.0
    %v4567 = vadd.f32 %v4565, %v4566
    %v4568 = vsel %vm227, %v4551, 0.0
    %v4569 = vadd.f32 %v4567, %v4568
    %v4570 = vsel %vm227, %v4552, 0.0
    %v4571 = vadd.f32 %v4569, %v4570
    %v4572 = vsel %vm227, %v4553, 0.0
    %v4573 = vadd.f32 %v4571, %v4572
    %v4574 = vsel %vm227, %v4554, 0.0
    %v4575 = vadd.f32 %v4573, %v4574
    %v4576 = vsel %vm227, %v4555, 0.0
    %v4577 = vadd.f32 %v4575, %v4576
    %v4578 = vsel %vm227, %v4556, 0.0
    %v4579 = vadd.f32 %v4577, %v4578
    %v4580 = vrot.slane %v4579, 4
    %v4581 = vadd.f32 %v4579, %v4580
    %v4582 = vrot.slane %v4581, 2
    %v4583 = vadd.f32 %v4581, %v4582
    %v4584 = vrot.slane %v4583, 1
    %v4585 = vadd.f32 %v4583, %v4584
    %v4586 = vsel %vm227, %v4557, 0.0
    %v4587 = vsel %vm227, %v4558, 0.0
    %v4588 = vadd.f32 %v4586, %v4587
    %v4589 = vsel %vm227, %v4559, 0.0
    %v4590 = vadd.f32 %v4588, %v4589
    %v4591 = vsel %vm227, %v4560, 0.0
    %v4592 = vadd.f32 %v4590, %v4591
    %v4593 = vsel %vm227, %v4561, 0.0
    %v4594 = vadd.f32 %v4592, %v4593
    %v4595 = vsel %vm227, %v4562, 0.0
    %v4596 = vadd.f32 %v4594, %v4595
    %v4597 = vsel %vm227, %v4563, 0.0
    %v4598 = vadd.f32 %v4596, %v4597
    %v4599 = vsel %vm227, %v4564, 0.0
    %v4600 = vadd.f32 %v4598, %v4599
    %v4601 = vrot.slane %v4600, 4
    %v4602 = vadd.f32 %v4600, %v4601
    %v4603 = vrot.slane %v4602, 2
    %v4604 = vadd.f32 %v4602, %v4603
    %v4605 = vrot.slane %v4604, 1
    %v4606 = vadd.f32 %v4604, %v4605
    %v4607 = vld [vmem:[#allocation11] sm:$0xff]
    %v4608 = vld [vmem:[#allocation11 + $0x8] sm:$0xff]
    %v4609 = vld [vmem:[#allocation11 + $0x10] sm:$0xff]
    %v4610 = vld [vmem:[#allocation11 + $0x18] sm:$0xff]
    %v4611 = vld [vmem:[#allocation13] sm:$0xff]
    %v4612 = vld [vmem:[#allocation13 + $0x8] sm:$0xff]
    %v4613 = vld [vmem:[#allocation13 + $0x10] sm:$0xff]
    %v4614 = vld [vmem:[#allocation13 + $0x18] sm:$0xff]
    %v4617 = vsel %vm603, %v4606, %v4585
    %v4618 = vsel %vm227, %v4617, 0
    %4620 = vmatpush.msra.mxu0 0.0
    %4621 = vmatpush.msra.mxu0 0.0
    %4622 = vmatpush.msra.mxu0 0.0
    %4623 = vmatpush.msra.mxu0 0.0
    %4624 = vmatpush.msra.mxu0 0.0
    %4625 = vmatpush.msra.mxu0 0.0
    %4626 = vmatpush.msra.mxu0 0.0
    %4627 = vmatpush.msra.mxu0 0.0
    %4628 = vmatpush.msra.mxu0 0.0
    %4629 = vmatpush.msra.mxu0 0.0
    %4630 = vmatpush.msra.mxu0 0.0
    %4631 = vmatpush.msra.mxu0 0.0
    %4632 = vmatpush.msra.mxu0 %v4614
    %4633 = vmatpush.msra.mxu0 %v4613
    %4634 = vmatpush.msra.mxu0 %v4612
    %4635 = vmatpush.msra.mxu0 %v4611
    %4636 = vmatmul.f32.gmra.mxu0 %v4618
    %v4637 = vpop.f32.mrf.mxu0
    %v4638 = vadd.f32 0.0, %v4637
    %4639 = vdwg.mxu0
    %v4641 = vsel %vm227, %v4049, 0
    %4643 = vmatpush.msra.mxu0 0.0
    %4644 = vmatpush.msra.mxu0 0.0
    %4645 = vmatpush.msra.mxu0 0.0
    %4646 = vmatpush.msra.mxu0 0.0
    %4647 = vmatpush.msra.mxu0 0.0
    %4648 = vmatpush.msra.mxu0 0.0
    %4649 = vmatpush.msra.mxu0 0.0
    %4650 = vmatpush.msra.mxu0 0.0
    %4651 = vmatpush.msra.mxu0 0.0
    %4652 = vmatpush.msra.mxu0 0.0
    %4653 = vmatpush.msra.mxu0 0.0
    %4654 = vmatpush.msra.mxu0 0.0
    %4655 = vmatpush.msra.mxu0 %v4610
    %4656 = vmatpush.msra.mxu0 %v4609
    %4657 = vmatpush.msra.mxu0 %v4608
    %4658 = vmatpush.msra.mxu0 %v4607
    %4659 = vmatmul.f32.gmra.mxu0 %v4641
    %v4660 = vpop.f32.mrf.mxu0
    %v4661 = vadd.f32 %v4638, %v4660
    %4662 = vdwg.mxu0
    %v4663 = vld [vmem:[%s9] sm:$0x1]
    %v4665 = vperm.slane %v4663, 0
    %v4667 = vadd.f32 %v4661, %v4665
    %v4668 = vmax.f32 %v4667, 0.0
    %v4669 = vld [vmem:[%s10] sm:$0xff]
    %v4670 = vld [vmem:[%s10 + $0x8] sm:$0xff]
    %v4671 = vld [vmem:[%s10 + $0x10] sm:$0xff]
    %v4672 = vld [vmem:[%s10 + $0x18] sm:$0xff]
    %v4673 = vld [vmem:[#allocation14] sm:$0x1]
    %v4675 = vperm.slane %v4673, 0
    %v4678 = vsel %vm227, %v4668, 0
    %4680 = vmatpush.msra.mxu0 0.0
    %4681 = vmatpush.msra.mxu0 0.0
    %4682 = vmatpush.msra.mxu0 0.0
    %4683 = vmatpush.msra.mxu0 0.0
    %4684 = vmatpush.msra.mxu0 0.0
    %4685 = vmatpush.msra.mxu0 0.0
    %4686 = vmatpush.msra.mxu0 0.0
    %4687 = vmatpush.msra.mxu0 0.0
    %4688 = vmatpush.msra.mxu0 0.0
    %4689 = vmatpush.msra.mxu0 0.0
    %4690 = vmatpush.msra.mxu0 0.0
    %4691 = vmatpush.msra.mxu0 0.0
    %4692 = vmatpush.msra.mxu0 %v4672
    %4693 = vmatpush.msra.mxu0 %v4671
    %4694 = vmatpush.msra.mxu0 %v4670
    %4695 = vmatpush.msra.mxu0 %v4669
    %4696 = vmatmul.f32.gmra.mxu0 %v4678
    %v4697 = vpop.f32.mrf.mxu0
    %v4698 = vadd.f32 %v4675, %v4697
    %4699 = vdwg.mxu0
    %v4700 = vld [vmem:[%s1058] sm:$0xff]
    %v4701 = vld [vmem:[%s1058 + $0x8] sm:$0xff]
    %v4702 = vld [vmem:[%s1058 + $0x10] sm:$0xff]
    %v4703 = vld [vmem:[%s1058 + $0x18] sm:$0xff]
    %v4704 = vld [vmem:[%s1063] sm:$0x1]
    %v4706 = vperm.slane %v4704, 0
    %4708 = vmatpush.msra.mxu0 0.0
    %4709 = vmatpush.msra.mxu0 0.0
    %4710 = vmatpush.msra.mxu0 0.0
    %4711 = vmatpush.msra.mxu0 0.0
    %4712 = vmatpush.msra.mxu0 0.0
    %4713 = vmatpush.msra.mxu0 0.0
    %4714 = vmatpush.msra.mxu0 0.0
    %4715 = vmatpush.msra.mxu0 0.0
    %4716 = vmatpush.msra.mxu0 0.0
    %4717 = vmatpush.msra.mxu0 0.0
    %4718 = vmatpush.msra.mxu0 0.0
    %4719 = vmatpush.msra.mxu0 0.0
    %4720 = vmatpush.msra.mxu0 %v4703
    %4721 = vmatpush.msra.mxu0 %v4702
    %4722 = vmatpush.msra.mxu0 %v4701
    %4723 = vmatpush.msra.mxu0 %v4700
    %4724 = vmatmul.f32.gmra.mxu0 %v4678
    %v4725 = vpop.f32.mrf.mxu0
    %v4726 = vadd.f32 %v4706, %v4725
    %4727 = vdwg.mxu0
    %v4728 = vld [vmem:[%s1088] sm:$0xff]
    %v4729 = vld [vmem:[%s1088 + $0x8] sm:$0xff]
    %v4730 = vld [vmem:[%s1088 + $0x10] sm:$0xff]
    %v4731 = vld [vmem:[%s1088 + $0x18] sm:$0xff]
    %v4732 = vld [vmem:[%s1093] sm:$0x1]
    %v4734 = vperm.slane %v4732, 0
    %4736 = vmatpush.msra.mxu0 0.0
    %4737 = vmatpush.msra.mxu0 0.0
    %4738 = vmatpush.msra.mxu0 0.0
    %4739 = vmatpush.msra.mxu0 0.0
    %4740 = vmatpush.msra.mxu0 0.0
    %4741 = vmatpush.msra.mxu0 0.0
    %4742 = vmatpush.msra.mxu0 0.0
    %4743 = vmatpush.msra.mxu0 0.0
    %4744 = vmatpush.msra.mxu0 0.0
    %4745 = vmatpush.msra.mxu0 0.0
    %4746 = vmatpush.msra.mxu0 0.0
    %4747 = vmatpush.msra.mxu0 0.0
    %4748 = vmatpush.msra.mxu0 %v4731
    %4749 = vmatpush.msra.mxu0 %v4730
    %4750 = vmatpush.msra.mxu0 %v4729
    %4751 = vmatpush.msra.mxu0 %v4728
    %4752 = vmatmul.f32.gmra.mxu0 %v4678
    %v4753 = vpop.f32.mrf.mxu0
    %v4754 = vadd.f32 %v4734, %v4753
    %4755 = vdwg.mxu0
    %v4756 = vld [vmem:[%s11] sm:$0xff]
    %v4757 = vld [vmem:[%s11 + $0x8] sm:$0xff]
    %v4758 = vld [vmem:[%s11 + $0x10] sm:$0xff]
    %v4759 = vld [vmem:[%s11 + $0x18] sm:$0xff]
    %v4760 = vld [vmem:[#allocation16] sm:$0x1]
    %v4762 = vperm.slane %v4760, 0
    %4764 = vmatpush.msra.mxu0 0.0
    %4765 = vmatpush.msra.mxu0 0.0
    %4766 = vmatpush.msra.mxu0 0.0
    %4767 = vmatpush.msra.mxu0 0.0
    %4768 = vmatpush.msra.mxu0 0.0
    %4769 = vmatpush.msra.mxu0 0.0
    %4770 = vmatpush.msra.mxu0 0.0
    %4771 = vmatpush.msra.mxu0 0.0
    %4772 = vmatpush.msra.mxu0 0.0
    %4773 = vmatpush.msra.mxu0 0.0
    %4774 = vmatpush.msra.mxu0 0.0
    %4775 = vmatpush.msra.mxu0 0.0
    %4776 = vmatpush.msra.mxu0 %v4759
    %4777 = vmatpush.msra.mxu0 %v4758
    %4778 = vmatpush.msra.mxu0 %v4757
    %4779 = vmatpush.msra.mxu0 %v4756
    %4780 = vmatmul.f32.gmra.mxu0 %v3988
    %v4781 = vpop.f32.mrf.mxu0
    %v4782 = vadd.f32 %v4762, %v4781
    %4783 = vdwg.mxu0
    %v4784 = vld [vmem:[%s1146] sm:$0xff]
    %v4785 = vld [vmem:[%s1146 + $0x8] sm:$0xff]
    %v4786 = vld [vmem:[%s1146 + $0x10] sm:$0xff]
    %v4787 = vld [vmem:[%s1146 + $0x18] sm:$0xff]
    %v4788 = vld [vmem:[%s1151] sm:$0x1]
    %v4790 = vperm.slane %v4788, 0
    %4792 = vmatpush.msra.mxu0 0.0
    %4793 = vmatpush.msra.mxu0 0.0
    %4794 = vmatpush.msra.mxu0 0.0
    %4795 = vmatpush.msra.mxu0 0.0
    %4796 = vmatpush.msra.mxu0 0.0
    %4797 = vmatpush.msra.mxu0 0.0
    %4798 = vmatpush.msra.mxu0 0.0
    %4799 = vmatpush.msra.mxu0 0.0
    %4800 = vmatpush.msra.mxu0 0.0
    %4801 = vmatpush.msra.mxu0 0.0
    %4802 = vmatpush.msra.mxu0 0.0
    %4803 = vmatpush.msra.mxu0 0.0
    %4804 = vmatpush.msra.mxu0 %v4787
    %4805 = vmatpush.msra.mxu0 %v4786
    %4806 = vmatpush.msra.mxu0 %v4785
    %4807 = vmatpush.msra.mxu0 %v4784
    %4808 = vmatmul.f32.gmra.mxu0 %v3988
    %v4809 = vpop.f32.mrf.mxu0
    %v4810 = vadd.f32 %v4790, %v4809
    %4811 = vdwg.mxu0
    %v4812 = vld [vmem:[%s1176] sm:$0xff]
    %v4813 = vld [vmem:[%s1176 + $0x8] sm:$0xff]
    %v4814 = vld [vmem:[%s1176 + $0x10] sm:$0xff]
    %v4815 = vld [vmem:[%s1176 + $0x18] sm:$0xff]
    %v4816 = vld [vmem:[%s1181] sm:$0x1]
    %v4818 = vperm.slane %v4816, 0
    %4820 = vmatpush.msra.mxu0 0.0
    %4821 = vmatpush.msra.mxu0 0.0
    %4822 = vmatpush.msra.mxu0 0.0
    %4823 = vmatpush.msra.mxu0 0.0
    %4824 = vmatpush.msra.mxu0 0.0
    %4825 = vmatpush.msra.mxu0 0.0
    %4826 = vmatpush.msra.mxu0 0.0
    %4827 = vmatpush.msra.mxu0 0.0
    %4828 = vmatpush.msra.mxu0 0.0
    %4829 = vmatpush.msra.mxu0 0.0
    %4830 = vmatpush.msra.mxu0 0.0
    %4831 = vmatpush.msra.mxu0 0.0
    %4832 = vmatpush.msra.mxu0 %v4815
    %4833 = vmatpush.msra.mxu0 %v4814
    %4834 = vmatpush.msra.mxu0 %v4813
    %4835 = vmatpush.msra.mxu0 %v4812
    %4836 = vmatmul.f32.gmra.mxu0 %v3988
    %v4837 = vpop.f32.mrf.mxu0
    %v4838 = vadd.f32 %v4818, %v4837
    %4839 = vdwg.mxu0
    %v4840 = vadd.f32 %v4698, %v4782
    %v4841 = vxor.u32 %v4840, 2147483648
    %v4842 = vmul.f32 %v4841, 1.442695
    %v4843 = vpow.pop %v4842
    %v4844 = vadd.f32 %v4843, 1.0
    %v4845 = vrcp.pop %v4844
    %v4846 = vmul.f32 %v4844, %v4845
    %v4847 = vsub.f32 1.0, %v4846
    %v4848 = vmul.f32 %v4845, %v4847
    %v4849 = vadd.f32 %v4845, %v4848
    %vm4850 = vweird.f32 %v4844
    %vm4851 = vweird.f32 %v4845
    %vm4852 = vmor %vm4850, %vm4851
    %v4853 = vsel %vm4852, %v4845, %v4849
    %v4854 = vand.u32 2147483647, %v4844
    %vm4855 = vcmp.eq.f32.partialorder %v4854, 8.507059e+37
    %v4856 = vand.u32 %v4844, 2147483648
    %v4857 = vor.u32 1.1754944e-38, %v4856
    %v4858 = vsel %vm4855, %v4857, %v4853
    %v4859 = vmul.f32 1.0, %v4858
    %v4860 = vadd.f32 %v4726, %v4810
    %v4861 = vxor.u32 %v4860, 2147483648
    %v4862 = vmul.f32 %v4861, 1.442695
    %v4863 = vpow.pop %v4862
    %v4864 = vadd.f32 %v4863, 1.0
    %v4865 = vrcp.pop %v4864
    %v4866 = vmul.f32 %v4864, %v4865
    %v4867 = vsub.f32 1.0, %v4866
    %v4868 = vmul.f32 %v4865, %v4867
    %v4869 = vadd.f32 %v4865, %v4868
    %vm4870 = vweird.f32 %v4864
    %vm4871 = vweird.f32 %v4865
    %vm4872 = vmor %vm4870, %vm4871
    %v4873 = vsel %vm4872, %v4865, %v4869
    %v4874 = vand.u32 2147483647, %v4864
    %vm4875 = vcmp.eq.f32.partialorder %v4874, 8.507059e+37
    %v4876 = vand.u32 %v4864, 2147483648
    %v4877 = vor.u32 1.1754944e-38, %v4876
    %v4878 = vsel %vm4875, %v4877, %v4873
    %v4879 = vmul.f32 1.0, %v4878
    %v4880 = vmul.f32 %v4859, %v4838
    %v4881 = vadd.f32 %v4754, %v4880
    %v4882 = vtanh.pop %v4881
    %v4883 = vsub.f32 1.0, %v4879
    %v4884 = vmul.f32 %v4883, %v4882
    %v4885 = vmul.f32 %v4879, %v3978
    %v4886 = vadd.f32 %v4884, %v4885
    %v4887 = vld [vmem:[%s14] sm:$0xff]
    %v4888 = vld [vmem:[%s14 + $0x8] sm:$0xff]
    %v4889 = vld [vmem:[%s14 + $0x10] sm:$0xff]
    %v4890 = vld [vmem:[%s14 + $0x18] sm:$0xff]
    %v4891 = vld [vmem:[#allocation17] sm:$0x1]
    %v4893 = vperm.slane %v4891, 0
    %v4896 = vsel %vm227, %v4886, 0
    %4898 = vmatpush.msra.mxu0 0.0
    %4899 = vmatpush.msra.mxu0 0.0
    %4900 = vmatpush.msra.mxu0 0.0
    %4901 = vmatpush.msra.mxu0 0.0
    %4902 = vmatpush.msra.mxu0 0.0
    %4903 = vmatpush.msra.mxu0 0.0
    %4904 = vmatpush.msra.mxu0 0.0
    %4905 = vmatpush.msra.mxu0 0.0
    %4906 = vmatpush.msra.mxu0 0.0
    %4907 = vmatpush.msra.mxu0 0.0
    %4908 = vmatpush.msra.mxu0 0.0
    %4909 = vmatpush.msra.mxu0 0.0
    %4910 = vmatpush.msra.mxu0 %v4890
    %4911 = vmatpush.msra.mxu0 %v4889
    %4912 = vmatpush.msra.mxu0 %v4888
    %4913 = vmatpush.msra.mxu0 %v4887
    %4914 = vmatmul.f32.gmra.mxu0 %v4896
    %v4915 = vpop.f32.mrf.mxu0
    %v4916 = vadd.f32 %v4893, %v4915
    %4917 = vdwg.mxu0
    %v4919 = vrot.slane %v4916, 1
    %4921 = vst.msk [vmem:[%s16 + $0x4] sm:$0x1] %vm1287, %v4916
    %4922 = vst.msk [vmem:[%s16 + $0xc] sm:$0x1] %vm1287, %v4919
    // Predicated region
    $region106: #{text_recognition_head_attention_forward.3} parent=1 // pred_check
      _
    $region107: #{text_recognition_head_attention_forward.3} parent=1 // pred_check_branch
      %4924 = sbr.rel (0) target = $region109
    $region108: #{text_recognition_head_attention_forward.3} parent=1 // pred_region
      _
    $region109: #{text_recognition_head_attention_forward.3} parent=1 // pred_fallthru
      _
    // Predicated region
    $region110: #{text_recognition_head_attention_forward.3} parent=1 // pred_check
      _
    $region111: #{text_recognition_head_attention_forward.3} parent=1 // pred_check_branch
      %4926 = sbr.rel (0) target = $region113
    $region112: #{text_recognition_head_attention_forward.3} parent=1 // pred_region
      _
    $region113: #{text_recognition_head_attention_forward.3} parent=1 // pred_fallthru
      _
    %4927 = vsyncpa [#allocation4], 1
    %4928 = vsyncpa [#allocation6], 1
    %4929 = vsyncpa [#allocation9], 1
    %4930 = vsyncpa [#allocation12], 1
    %4931 = vsyncpa [#allocation15], 1
    %4932 = vsyncpa [#allocation18], 1

</llo_original>
